<compile_context>
chip_gen: v6e
topology: v6e:2x2x1
jax: 0.10.0
libtpu: 0.0.40
codegen_flags: <defaults>
</compile_context>

<pallas_src>
import functools

import jax
import jax.numpy as jnp
from jax.experimental import pallas as pl
from jax.experimental.pallas import tpu as pltpu


# ----------------------------------------------------------------------------
# Hardware / feature probes (eager, module level -- never inside a jit trace).
# ----------------------------------------------------------------------------
def _num_tensorcores():
    """2 on v7x-class parts (two TensorCores per chip), 1 on v5e/v6e."""
    try:
        dev = jax.devices()[0]
        cores = getattr(dev, "num_cores", None)
        if isinstance(cores, int) and cores > 0:
            return cores
        kind = str(getattr(dev, "device_kind", "")).lower()
        if "v7" in kind or "7x" in kind:
            return 2
    except Exception:
        pass
    return 1


def _probe_buffered():
    """Check that BlockSpec(pipeline_mode=pl.Buffered(1)) lowers, runs and is
    numerically sane on this JAX/libtpu; fall back to default buffering if
    anything is off."""
    try:
        def k(x_ref, w_ref, o_ref):
            o_ref[...] = x_ref[...] + w_ref[...]

        fn = pl.pallas_call(
            k,
            out_shape=jax.ShapeDtypeStruct((16, 128), jnp.float32),
            grid=(2,),
            in_specs=[
                pl.BlockSpec((8, 128), lambda i: (i, 0)),
                pl.BlockSpec((8, 128), lambda i: (0, 0),
                             pipeline_mode=pl.Buffered(1)),
            ],
            out_specs=pl.BlockSpec((8, 128), lambda i: (i, 0)),
        )
        out = jax.block_until_ready(
            fn(jnp.ones((16, 128), jnp.float32),
               jnp.full((8, 128), 2.0, jnp.float32)))
        return bool(jnp.all(out == 3.0))
    except Exception:
        return False


_NUM_TC = _num_tensorcores()
_BUFFERED_OK = _probe_buffered()


def _const_spec(block_shape, index_map):
    """Spec for operands whose block never changes across the grid (weights,
    biases): single-buffer them so they don't reserve 2x VMEM."""
    if _BUFFERED_OK:
        try:
            return pl.BlockSpec(block_shape, index_map,
                                pipeline_mode=pl.Buffered(1))
        except Exception:
            pass
    return pl.BlockSpec(block_shape, index_map)


def _vmem_limit(est_bytes):
    """Scoped-VMEM request: generous headroom over the real block footprint,
    never below the 32 MiB default and never above 48 MiB (v7x has only
    64 MiB physical VMEM)."""
    return int(min(48 * 2 ** 20, max(32 * 2 ** 20, 2 * est_bytes + (4 << 20))))


def _silu(x):
    # SiLU = x * sigmoid(x); exp and the approx reciprocal both land on the EUP.
    return x * pl.reciprocal(1.0 + jnp.exp(-x), approx=True)


# ----------------------------------------------------------------------------
# Pallas kernel: fused (sum_i x_i @ w_i) + b1 [SiLU] [@ w2 + b2 [SiLU]].
# Operands are cast to bf16 for the MXU; accumulation and biases are f32.
# The multi-input form implements conv1x1 on a channel-concat without ever
# materializing the concatenated tensor; the optional second matmul fuses a
# following 1x1 conv / yolo head with the intermediate kept on-chip.
# ----------------------------------------------------------------------------
def _fused_mm_kernel(*refs, n_in, silu1, has_head, silu2):
    o_ref = refs[-1]
    xs = refs[:n_in]
    ws = refs[n_in:2 * n_in]
    b1_ref = refs[2 * n_in]

    acc = jnp.dot(xs[0][...].astype(jnp.bfloat16),
                  ws[0][...].astype(jnp.bfloat16),
                  preferred_element_type=jnp.float32)
    for x_ref, w_ref in zip(xs[1:], ws[1:]):
        acc = acc + jnp.dot(x_ref[...].astype(jnp.bfloat16),
                            w_ref[...].astype(jnp.bfloat16),
                            preferred_element_type=jnp.float32)
    acc = acc + b1_ref[...]
    if silu1:
        acc = _silu(acc)
    if has_head:
        w2_ref, b2_ref = refs[2 * n_in + 1], refs[2 * n_in + 2]
        acc = jnp.dot(acc.astype(jnp.bfloat16),
                      w2_ref[...].astype(jnp.bfloat16),
                      preferred_element_type=jnp.float32) + b2_ref[...]
        if silu2:
            acc = _silu(acc)
    o_ref[...] = acc.astype(o_ref.dtype)


def _row_tile(m8):
    """M tile: as big as possible.  A >=2-way split is forced only on
    multi-TensorCore parts (v7x) and only when each half keeps >=256 rows;
    on 1-TC chips (v5e/v6e) extra grid steps are pure per-step overhead."""
    tm = min(512, m8)
    if _NUM_TC >= 2 and m8 // tm < 2 and m8 >= 512:
        tm = ((m8 // 2 + 7) // 8) * 8
    return tm


def fused_matmul(xs, ws, b1, *, w2=None, b2=None, silu1=True, silu2=False,
                 out_dtype=jnp.bfloat16):
    """xs: list of (M, K_i) slabs; ws: list of (K_i, N1) bf16; b1: (N1,) f32.
    Optional fused second matmul: w2 (N1, N2) bf16, b2 (N2,) f32."""
    n_in = len(xs)
    M = xs[0].shape[0]
    N1 = ws[0].shape[1]
    has_head = w2 is not None
    n_out = w2.shape[1] if has_head else N1

    M8 = ((M + 7) // 8) * 8
    if M8 != M:  # rare fallback; the common path stays pad-free
        xs = [jnp.pad(x, ((0, M8 - M), (0, 0))) for x in xs]

    TM = _row_tile(M8)
    grid = (pl.cdiv(M8, TM),)

    in_specs = [pl.BlockSpec((TM, x.shape[1]), lambda i: (i, 0)) for x in xs]
    in_specs += [_const_spec((w.shape[0], N1), lambda i: (0, 0)) for w in ws]
    in_specs += [_const_spec((1, N1), lambda i: (0, 0))]
    args = list(xs) + list(ws) + [b1.reshape(1, N1).astype(jnp.float32)]
    if has_head:
        in_specs += [_const_spec((N1, n_out), lambda i: (0, 0)),
                     _const_spec((1, n_out), lambda i: (0, 0))]
        args += [w2, b2.reshape(1, n_out).astype(jnp.float32)]

    # explicit scoped-VMEM sizing from the actual block footprints
    est = sum(2 * TM * x.shape[1] * x.dtype.itemsize for x in xs)
    est += sum(w.shape[0] * N1 * 2 for w in ws) + 4 * N1
    est += 2 * TM * n_out * jnp.dtype(out_dtype).itemsize
    if has_head:
        est += N1 * n_out * 2 + 4 * n_out + TM * N1 * 4

    out = pl.pallas_call(
        functools.partial(_fused_mm_kernel, n_in=n_in, silu1=silu1,
                          has_head=has_head, silu2=silu2),
        out_shape=jax.ShapeDtypeStruct((M8, n_out), out_dtype),
        grid=grid,
        in_specs=in_specs,
        out_specs=pl.BlockSpec((TM, n_out), lambda i: (i, 0)),
        compiler_params=pltpu.CompilerParams(
            dimension_semantics=("parallel",),
            vmem_limit_bytes=_vmem_limit(est)),
    )(*args)
    return out[:M] if M8 != M else out


# ----------------------------------------------------------------------------
# Pallas kernel: fused 3x3 conv (stride 1, pad 1) + bias + SiLU.
# The spatially padded input is row-flattened so the 9 taps become constant
# row offsets; taps are read as bf16 windows straight from the block ref (no
# f32 upcast, no im2col) and the 9 matmuls accumulate on-chip.
# ----------------------------------------------------------------------------
def _conv3x3_kernel(x_ref, w_ref, b_ref, o_ref, *, Wp, n_rows):
    # x_ref : ((rows+3)*Wp, C) bf16 halo'd, row-flattened block
    # w_ref : (9, C, N) bf16 ; b_ref : (1, N) f32 ; o_ref : (rows*Wp, N) bf16
    acc = None
    for dy in range(3):
        for dx in range(3):
            off = dy * Wp + dx
            tap = x_ref[pl.ds(off, n_rows), :]            # bf16, no upcast
            part = jnp.dot(tap, w_ref[dy * 3 + dx],
                           preferred_element_type=jnp.float32)
            acc = part if acc is None else acc + part
    acc = acc + b_ref[...]
    o_ref[...] = _silu(acc).astype(o_ref.dtype)


def _pick_conv_rows(H, Wp, C):
    """Output image rows per grid step: the largest divisor of H whose halo'd
    bf16 input block fits a small VMEM budget; on 2-TC parts prefer >= 2 row
    blocks (when each keeps enough rows) so the second core has work at B=1."""
    budget = 2 * 2 ** 20                        # one bf16 input block
    row_bytes = Wp * C * 2
    max_rows = max(int(budget // row_bytes) - 3, 1)
    tri = 1
    for d in range(1, H + 1):
        if H % d == 0 and d <= max_rows:
            tri = d
    if _NUM_TC >= 2 and tri == H and H % 2 == 0 and (H // 2) * Wp >= 256:
        tri = H // 2
    return tri


def conv3x3_silu(x, w9, b):
    """Conv(c1, c2, 3, 1) = 3x3 conv + (folded) BN + SiLU on NHWC."""
    B, H, W, C = x.shape
    N = w9.shape[-1]
    Wp = W + 2
    TRI = _pick_conv_rows(H, Wp, C)
    nb = H // TRI
    n_rows = TRI * Wp                 # flat output rows per block
    blk_in = (TRI + 3) * Wp           # halo'd flat input rows per block

    # Single zero-pad (1 top / 2 bottom rows, 1 left / 1 right column); the
    # padded image is gathered into halo'd row blocks so BlockSpec tiling
    # never needs overlapping windows.
    xp = jnp.pad(x.astype(jnp.bfloat16), ((0, 0), (1, 2), (1, 1), (0, 0)))
    if nb == 1:
        xb = xp.reshape(B, 1, blk_in, C)
    else:
        xb = jnp.stack(
            [xp[:, j * TRI:j * TRI + TRI + 3] for j in range(nb)], axis=1)
        xb = xb.reshape(B, nb, blk_in, C)

    est = 2 * blk_in * C * 2 + 2 * n_rows * N * 2 + 9 * C * N * 2 + 4 * N

    y = pl.pallas_call(
        functools.partial(_conv3x3_kernel, Wp=Wp, n_rows=n_rows),
        out_shape=jax.ShapeDtypeStruct((B, nb, n_rows, N), jnp.bfloat16),
        grid=(B, nb),
        in_specs=[
            pl.BlockSpec((None, None, blk_in, C), lambda bi, j: (bi, j, 0, 0)),
            _const_spec((9, C, N), lambda bi, j: (0, 0, 0)),
            _const_spec((1, N), lambda bi, j: (0, 0)),
        ],
        out_specs=pl.BlockSpec((None, None, n_rows, N),
                               lambda bi, j: (bi, j, 0, 0)),
        compiler_params=pltpu.CompilerParams(
            dimension_semantics=("parallel", "parallel"),
            vmem_limit_bytes=_vmem_limit(est)),
    )(xb, w9, b.reshape(1, N).astype(jnp.float32))

    # rows are (y, padded_x); drop the padded_x >= W junk columns.
    # TODO(synk): store only W columns in-kernel / fuse this crop into the
    # consumer's BlockSpec to save one activation-sized HBM copy.
    return y.reshape(B, H, Wp, N)[:, :, :W, :]


# ----------------------------------------------------------------------------
# Layer helpers (NHWC feature maps).
# ----------------------------------------------------------------------------
def conv1x1_silu(x, w, b):
    """Conv(c1, c2, 1, 1) = 1x1 conv + (folded) BN + SiLU."""
    B, H, W, C = x.shape
    y = fused_matmul([x.reshape(B * H * W, C)], [w], b)
    return y.reshape(B, H, W, -1)


def conv_head(x, conv_wb, head_wb, nout):
    """Conv(1x1)+SiLU followed by the 1x1 yolo head, fused into one kernel.
    Head weights are zero-padded to 128 lanes; slice back to nout."""
    B, H, W, C = x.shape
    w1, b1 = conv_wb
    w2, b2 = head_wb
    y = fused_matmul([x.reshape(B * H * W, C)], [w1], b1, w2=w2, b2=b2,
                     silu1=True, silu2=False, out_dtype=jnp.float32)
    return y[:, :nout].reshape(B, H, W, nout)


def conv_split_head(xa, xb, conv_wb, head_wb, nout):
    """conv_for_feat2 on concat([xa, xb]) fused with yolo_head_P3, with the
    concat expressed as a split matmul (never materialized)."""
    B, H, W, Ca = xa.shape
    Cb = xb.shape[-1]
    w1, b1 = conv_wb
    w2, b2 = head_wb
    y = fused_matmul([xa.reshape(B * H * W, Ca), xb.reshape(B * H * W, Cb)],
                     [w1[:Ca], w1[Ca:]], b1, w2=w2, b2=b2,
                     silu1=True, silu2=False, out_dtype=jnp.float32)
    return y[:, :nout].reshape(B, H, W, nout)


def c3_block_split(xa, xb, p, follow=None):
    """C3(c1, c2, n, shortcut=False) applied to cat([xa, xb], channel) without
    materializing the concat: cv3(cat(m(cv1(x)), cv2(x))).  cv1 and cv2 run as
    ONE fused matmul (their weights concatenated along N -> reads the split
    activations once and fills the 256-wide MXU); `follow` optionally fuses a
    trailing 1x1 Conv+SiLU (conv_for_feat2) into the cv3 kernel."""
    B, H, W, Ca = xa.shape
    Cb = xb.shape[-1]
    M = B * H * W
    a2 = xa.reshape(M, Ca)
    b2 = xb.reshape(M, Cb)

    w1, bb1 = p["cv1"]
    w2, bb2 = p["cv2"]
    w3, bb3 = p["cv3"]
    c_ = w1.shape[1]

    # cv1 + cv2 in a single MXU pass.
    w12 = jnp.concatenate([w1, w2], axis=1)           # (Ca+Cb, 2*c_)
    b12 = jnp.concatenate([bb1, bb2], axis=0)         # (2*c_,)
    y12 = fused_matmul([a2, b2], [w12[:Ca], w12[Ca:]], b12)
    y1 = y12[:, :c_]
    y2 = y12[:, c_:]

    for bp in p["m"]:
        # Bottleneck(c_, c_, shortcut=False, e=1.0): 1x1 -> 3x3, no residual.
        y1 = fused_matmul([y1], [bp["cv1"][0]], bp["cv1"][1])
        y1 = conv3x3_silu(y1.reshape(B, H, W, c_), *bp["cv2"]).reshape(M, c_)

    if follow is not None:
        out = fused_matmul([y1, y2], [w3[:c_], w3[c_:]], bb3,
                           w2=follow[0], b2=follow[1], silu1=True, silu2=True)
    else:
        out = fused_matmul([y1, y2], [w3[:c_], w3[c_:]], bb3)
    return out.reshape(B, H, W, -1)


def upsample2x_nearest(x):
    # TODO(synk): folding this into the consuming split-matmul kernels needs an
    # in-kernel interleaved sublane expansion (reshape/gather across packed
    # bf16 sublane tiles); kept as a plain XLA nearest-repeat for robustness.
    return jnp.repeat(jnp.repeat(x, 2, axis=1), 2, axis=2)


def space_to_depth(x, s):
    B, H, W, C = x.shape
    x = x.reshape(B, H // s, s, W // s, s, C).transpose(0, 1, 3, 2, 4, 5)
    return x.reshape(B, H // s, W // s, s * s * C)


# TODO(synk): CSPDarknet's definition is not part of the provided module; this
# deterministic stand-in produces feature maps with the correct channel counts
# and strides (8/16/32) via space-to-depth + Pallas 1x1 Conv-BN-SiLU.
def backbone(x, p):
    feat1 = conv1x1_silu(space_to_depth(x, 8), *p["f1"])    # stride 8,  bc*4
    feat2 = conv1x1_silu(space_to_depth(x, 16), *p["f2"])   # stride 16, bc*8
    feat3 = conv1x1_silu(space_to_depth(x, 32), *p["f3"])   # stride 32, bc*16
    return feat1, feat2, feat3


# ----------------------------------------------------------------------------
# Parameter init (deterministic, BN folded, weights stored bf16, biases f32).
# ----------------------------------------------------------------------------
def _init_conv(key, cin, cout, k=1):
    kw, kb = jax.random.split(key)
    fan_in = cin * k * k
    if k == 1:
        w = jax.random.normal(kw, (cin, cout), jnp.float32)
    else:
        w = jax.random.normal(kw, (k * k, cin, cout), jnp.float32)
    w = (w / jnp.sqrt(jnp.float32(fan_in))).astype(jnp.bfloat16)
    b = 0.01 * jax.random.normal(kb, (cout,), jnp.float32)
    return w, b


def _init_head(key, cin, nout, npad=128):
    # Zero-pad the head's output channels to a lane-dense 128 so the Pallas
    # store is unmasked; the wrapper slices back to nout.
    kw, kb = jax.random.split(key)
    w = jnp.zeros((cin, npad), jnp.float32)
    w = w.at[:, :nout].set(
        jax.random.normal(kw, (cin, nout), jnp.float32)
        / jnp.sqrt(jnp.float32(cin)))
    b = jnp.zeros((npad,), jnp.float32)
    b = b.at[:nout].set(0.01 * jax.random.normal(kb, (nout,), jnp.float32))
    return w.astype(jnp.bfloat16), b


def init_yolo_body_params(key, num_classes, anchors_mask, phi="s", in_ch=3):
    depth_dict = {"s": 0.33, "m": 0.67, "l": 1.0, "x": 1.33}
    width_dict = {"s": 0.5, "m": 0.75, "l": 1.0, "x": 1.25}
    dep_mul, wid_mul = depth_dict[phi], width_dict[phi]
    bc = int(wid_mul * 64)                     # base_channels
    bd = max(round(dep_mul * 3), 1)            # base_depth
    keys = iter(jax.random.split(key, 64))
    p = {"base_channels": bc, "base_depth": bd}

    # backbone stand-in (feat1/feat2/feat3 projections)
    p["f1"] = _init_conv(next(keys), in_ch * 8 * 8, bc * 4)
    p["f2"] = _init_conv(next(keys), in_ch * 16 * 16, bc * 8)
    p["f3"] = _init_conv(next(keys), in_ch * 32 * 32, bc * 16)

    # neck
    p["conv_for_feat3"] = _init_conv(next(keys), bc * 16, bc * 8)
    c_ = bc * 4  # hidden channels of C3(bc*16, bc*8, e=0.5)
    p["c3_1"] = {
        "cv1": _init_conv(next(keys), bc * 16, c_),
        "cv2": _init_conv(next(keys), bc * 16, c_),
        "cv3": _init_conv(next(keys), 2 * c_, bc * 8),
        "m": [{"cv1": _init_conv(next(keys), c_, c_),
               "cv2": _init_conv(next(keys), c_, c_, k=3)}
              for _ in range(bd)],
    }
    # NOTE: c3_2 is constructed in __init__ but never used in forward -> omitted.
    p["conv_for_feat2"] = _init_conv(next(keys), bc * 8, bc * 4)
    p["conv_for_feat2_to_p4"] = _init_conv(next(keys), bc * 4, bc * 8)
    p["conv_for_feat3_to_p5"] = _init_conv(next(keys), bc * 8, bc * 16)

    nout = 5 + num_classes
    p["head_nout3"] = len(anchors_mask[2]) * nout
    p["head_nout4"] = len(anchors_mask[1]) * nout
    p["head_nout5"] = len(anchors_mask[0]) * nout
    p["head_P3"] = _init_head(next(keys), bc * 4, p["head_nout3"])
    p["head_P4"] = _init_head(next(keys), bc * 8, p["head_nout4"])
    p["head_P5"] = _init_head(next(keys), bc * 16, p["head_nout5"])
    return p


# ----------------------------------------------------------------------------
# YoloBody forward (attention_idx=0 default -> attention branches skipped,
# exactly as in the PyTorch forward).
# ----------------------------------------------------------------------------
def yolo_body_forward(x_nchw, p):
    x = jnp.transpose(x_nchw, (0, 2, 3, 1))   # NCHW -> NHWC
    feat1, feat2, feat3 = backbone(x, p)

    P5 = conv1x1_silu(feat3, *p["conv_for_feat3"])
    P5_up = upsample2x_nearest(P5)
    # P4 = conv_for_feat2(C3(cat([P5_up, feat2]))): the concat is a split
    # matmul and conv_for_feat2 is fused into C3's cv3 kernel.
    P4 = c3_block_split(P5_up, feat2, p["c3_1"], follow=p["conv_for_feat2"])
    P4_up = upsample2x_nearest(P4)

    # out2 = yolo_head_P3(conv_for_feat2(cat([P4_up, feat1]))) -- the PyTorch
    # forward re-applies self.conv_for_feat2 here with shared weights.
    out2 = conv_split_head(P4_up, feat1, p["conv_for_feat2"], p["head_P3"],
                           p["head_nout3"])
    out1 = conv_head(P4, p["conv_for_feat2_to_p4"], p["head_P4"],
                     p["head_nout4"])
    out0 = conv_head(P5, p["conv_for_feat3_to_p5"], p["head_P5"],
                     p["head_nout5"])

    to_nchw = lambda t: jnp.transpose(t, (0, 3, 1, 2))   # back to NCHW
    return to_nchw(out0), to_nchw(out1), to_nchw(out2)


if __name__ == "__main__":
    key = jax.random.PRNGKey(0)
    k_param, k_x = jax.random.split(key)

    anchors_mask = [[6, 7, 8], [3, 4, 5], [0, 1, 2]]
    num_classes = 4
    phi = "s"  # base_channels = 32, base_depth = 1

    params = init_yolo_body_params(k_param, num_classes, anchors_mask, phi=phi)

    # Small input consistent with the module (stride-32 backbone): NCHW.
    x = jax.random.normal(k_x, (2, 3, 64, 64), jnp.float32)

    out0, out1, out2 = jax.block_until_ready(
        jax.jit(lambda xx: yolo_body_forward(xx, params))(x))

    nh = len(anchors_mask[0]) * (5 + num_classes)   # 27
    assert out0.shape == (2, nh, 2, 2), out0.shape   # P5 head (stride 32)
    assert out1.shape == (2, nh, 4, 4), out1.shape   # P4 head (stride 16)
    assert out2.shape == (2, nh, 8, 8), out2.shape   # P3 head (stride 8)
    assert all(bool(jnp.all(jnp.isfinite(o))) for o in (out0, out1, out2))
    print("KERNEL_OK")
</pallas_src>

<mosaic_0001>
module attributes {stable_mosaic.version = 11 : i64} {
  func.func @k(%arg0: i32, %arg1: memref<8x128xf32, #tpu.memory_space<vmem>>, %arg2: memref<8x128xf32, #tpu.memory_space<vmem>>, %arg3: memref<8x128xf32, #tpu.memory_space<vmem>>) attributes {dimension_semantics = [#tpu.dimension_semantics<arbitrary>], iteration_bounds = array<i64: 2>, scalar_prefetch = 0 : i64, scratch_operands = 0 : i64, tpu.core_type = #tpu.core_type<tc>, window_params = [{transform_indices = @transform_0, window_bounds = array<i64: 8, 128>}, {pipeline_mode = #tpu.pipeline_mode<synchronous>, transform_indices = @transform_1, window_bounds = array<i64: 8, 128>}, {transform_indices = @transform_2, window_bounds = array<i64: 8, 128>}]} {
    %c0 = arith.constant 0 : index
    %c0_0 = arith.constant 0 : index
    %0 = vector.load %arg1[%c0, %c0_0] : memref<8x128xf32, #tpu.memory_space<vmem>>, vector<8x128xf32>
    %c0_1 = arith.constant 0 : index
    %c0_2 = arith.constant 0 : index
    %1 = vector.load %arg2[%c0_1, %c0_2] : memref<8x128xf32, #tpu.memory_space<vmem>>, vector<8x128xf32>
    %2 = arith.addf %0, %1 : vector<8x128xf32>
    %c0_3 = arith.constant 0 : index
    %c0_4 = arith.constant 0 : index
    %3 = vector.load %arg3[%c0_3, %c0_4] : memref<8x128xf32, #tpu.memory_space<vmem>>, vector<8x128xf32>
    tpu.vector_store %arg3[%c0_3, %c0_4], %2 {strides = array<i32>} : memref<8x128xf32, #tpu.memory_space<vmem>>, vector<8x128xf32>,
    return
  }
  func.func @transform_0(%arg0: i32) -> (i32, i32) {
    %c0_i32 = arith.constant 0 : i32
    %c0_i32_0 = arith.constant 0 : i32
    return %arg0, %c0_i32 : i32, i32
  }
  func.func @transform_1(%arg0: i32) -> (i32, i32) {
    %c0_i32 = arith.constant 0 : i32
    %c0_i32_0 = arith.constant 0 : i32
    %c0_i32_1 = arith.constant 0 : i32
    return %c0_i32, %c0_i32_0 : i32, i32
  }
  func.func @transform_2(%arg0: i32) -> (i32, i32) {
    %c0_i32 = arith.constant 0 : i32
    %c0_i32_0 = arith.constant 0 : i32
    return %arg0, %c0_i32 : i32, i32
  }
}

module attributes {stable_mosaic.version = 11 : i64} {
  func.func @_fused_mm_kernel(%arg0: i32, %arg1: memref<8x3072xf32, #tpu.memory_space<vmem>>, %arg2: memref<3072x512xbf16, #tpu.memory_space<vmem>>, %arg3: memref<1x512xf32, #tpu.memory_space<vmem>>, %arg4: memref<8x512xbf16, #tpu.memory_space<vmem>>) attributes {dimension_semantics = [#tpu.dimension_semantics<parallel>], iteration_bounds = array<i64: 1>, scalar_prefetch = 0 : i64, scratch_operands = 0 : i64, tpu.core_type = #tpu.core_type<tc>, window_params = [{transform_indices = @transform_0, window_bounds = array<i64: 8, 3072>}, {pipeline_mode = #tpu.pipeline_mode<synchronous>, transform_indices = @transform_1, window_bounds = array<i64: 3072, 512>}, {pipeline_mode = #tpu.pipeline_mode<synchronous>, transform_indices = @transform_2, window_bounds = array<i64: 1, 512>}, {transform_indices = @transform_3, window_bounds = array<i64: 8, 512>}]} {
    %c0 = arith.constant 0 : index
    %c0_0 = arith.constant 0 : index
    %0 = vector.load %arg1[%c0, %c0_0] : memref<8x3072xf32, #tpu.memory_space<vmem>>, vector<8x3072xf32>
    %1 = arith.truncf %0 : vector<8x3072xf32> to vector<8x3072xbf16>
    %c0_1 = arith.constant 0 : index
    %c0_2 = arith.constant 0 : index
    %2 = vector.load %arg2[%c0_1, %c0_2] : memref<3072x512xbf16, #tpu.memory_space<vmem>>, vector<3072x512xbf16>
    %cst = arith.constant dense<0.000000e+00> : vector<8x512xf32>
    %3 = tpu.matmul %1, %2, %cst {dimension_numbers = #tpu.dot_dimension_numbers<[1], [0], [0], [1], [0, 0, 1, 1], [], []>} : vector<8x3072xbf16>, vector<3072x512xbf16>, vector<8x512xf32> -> vector<8x512xf32>
    %c0_3 = arith.constant 0 : index
    %c0_4 = arith.constant 0 : index
    %4 = vector.load %arg3[%c0_3, %c0_4] : memref<1x512xf32, #tpu.memory_space<vmem>>, vector<1x512xf32>
    %5 = vector.broadcast %4 : vector<1x512xf32> to vector<8x512xf32>
    %6 = arith.addf %3, %5 : vector<8x512xf32>
    %cst_5 = arith.constant 0.000000e+00 : f32
    %7 = vector.broadcast %cst_5 : f32 to vector<8x512xf32>
    %8 = arith.subf %7, %6 : vector<8x512xf32>
    %9 = math.exp %8 : vector<8x512xf32>
    %cst_6 = arith.constant 1.000000e+00 : f32
    %10 = vector.broadcast %cst_6 : f32 to vector<8x512xf32>
    %11 = arith.addf %10, %9 : vector<8x512xf32>
    %12 = tpu.reciprocal %11 {approx = true} : vector<8x512xf32> -> vector<8x512xf32>
    %13 = arith.mulf %6, %12 : vector<8x512xf32>
    %14 = arith.truncf %13 : vector<8x512xf32> to vector<8x512xbf16>
    %c0_7 = arith.constant 0 : index
    %c0_8 = arith.constant 0 : index
    %15 = vector.load %arg4[%c0_7, %c0_8] : memref<8x512xbf16, #tpu.memory_space<vmem>>, vector<8x512xbf16>
    tpu.vector_store %arg4[%c0_7, %c0_8], %14 {strides = array<i32>} : memref<8x512xbf16, #tpu.memory_space<vmem>>, vector<8x512xbf16>,
    return
  }
  func.func @transform_0(%arg0: i32) -> (i32, i32) {
    %c0_i32 = arith.constant 0 : i32
    %c0_i32_0 = arith.constant 0 : i32
    return %arg0, %c0_i32 : i32, i32
  }
  func.func @transform_1(%arg0: i32) -> (i32, i32) {
    %c0_i32 = arith.constant 0 : i32
    %c0_i32_0 = arith.constant 0 : i32
    %c0_i32_1 = arith.constant 0 : i32
    return %c0_i32, %c0_i32_0 : i32, i32
  }
  func.func @transform_2(%arg0: i32) -> (i32, i32) {
    %c0_i32 = arith.constant 0 : i32
    %c0_i32_0 = arith.constant 0 : i32
    %c0_i32_1 = arith.constant 0 : i32
    return %c0_i32, %c0_i32_0 : i32, i32
  }
  func.func @transform_3(%arg0: i32) -> (i32, i32) {
    %c0_i32 = arith.constant 0 : i32
    %c0_i32_0 = arith.constant 0 : i32
    return %arg0, %c0_i32 : i32, i32
  }
}

module attributes {stable_mosaic.version = 11 : i64} {
  func.func @_fused_mm_kernel(%arg0: i32, %arg1: memref<8x512xbf16, #tpu.memory_space<vmem>>, %arg2: memref<512x256xbf16, #tpu.memory_space<vmem>>, %arg3: memref<1x256xf32, #tpu.memory_space<vmem>>, %arg4: memref<8x256xbf16, #tpu.memory_space<vmem>>) attributes {dimension_semantics = [#tpu.dimension_semantics<parallel>], iteration_bounds = array<i64: 1>, scalar_prefetch = 0 : i64, scratch_operands = 0 : i64, tpu.core_type = #tpu.core_type<tc>, window_params = [{transform_indices = @transform_0, window_bounds = array<i64: 8, 512>}, {pipeline_mode = #tpu.pipeline_mode<synchronous>, transform_indices = @transform_1, window_bounds = array<i64: 512, 256>}, {pipeline_mode = #tpu.pipeline_mode<synchronous>, transform_indices = @transform_2, window_bounds = array<i64: 1, 256>}, {transform_indices = @transform_3, window_bounds = array<i64: 8, 256>}]} {
    %c0 = arith.constant 0 : index
    %c0_0 = arith.constant 0 : index
    %0 = vector.load %arg1[%c0, %c0_0] : memref<8x512xbf16, #tpu.memory_space<vmem>>, vector<8x512xbf16>
    %c0_1 = arith.constant 0 : index
    %c0_2 = arith.constant 0 : index
    %1 = vector.load %arg2[%c0_1, %c0_2] : memref<512x256xbf16, #tpu.memory_space<vmem>>, vector<512x256xbf16>
    %cst = arith.constant dense<0.000000e+00> : vector<8x256xf32>
    %2 = tpu.matmul %0, %1, %cst {dimension_numbers = #tpu.dot_dimension_numbers<[1], [0], [0], [1], [0, 0, 1, 1], [], []>} : vector<8x512xbf16>, vector<512x256xbf16>, vector<8x256xf32> -> vector<8x256xf32>
    %c0_3 = arith.constant 0 : index
    %c0_4 = arith.constant 0 : index
    %3 = vector.load %arg3[%c0_3, %c0_4] : memref<1x256xf32, #tpu.memory_space<vmem>>, vector<1x256xf32>
    %4 = vector.broadcast %3 : vector<1x256xf32> to vector<8x256xf32>
    %5 = arith.addf %2, %4 : vector<8x256xf32>
    %cst_5 = arith.constant 0.000000e+00 : f32
    %6 = vector.broadcast %cst_5 : f32 to vector<8x256xf32>
    %7 = arith.subf %6, %5 : vector<8x256xf32>
    %8 = math.exp %7 : vector<8x256xf32>
    %cst_6 = arith.constant 1.000000e+00 : f32
    %9 = vector.broadcast %cst_6 : f32 to vector<8x256xf32>
    %10 = arith.addf %9, %8 : vector<8x256xf32>
    %11 = tpu.reciprocal %10 {approx = true} : vector<8x256xf32> -> vector<8x256xf32>
    %12 = arith.mulf %5, %11 : vector<8x256xf32>
    %13 = arith.truncf %12 : vector<8x256xf32> to vector<8x256xbf16>
    %c0_7 = arith.constant 0 : index
    %c0_8 = arith.constant 0 : index
    %14 = vector.load %arg4[%c0_7, %c0_8] : memref<8x256xbf16, #tpu.memory_space<vmem>>, vector<8x256xbf16>
    tpu.vector_store %arg4[%c0_7, %c0_8], %13 {strides = array<i32>} : memref<8x256xbf16, #tpu.memory_space<vmem>>, vector<8x256xbf16>,
    return
  }
  func.func @transform_0(%arg0: i32) -> (i32, i32) {
    %c0_i32 = arith.constant 0 : i32
    %c0_i32_0 = arith.constant 0 : i32
    return %arg0, %c0_i32 : i32, i32
  }
  func.func @transform_1(%arg0: i32) -> (i32, i32) {
    %c0_i32 = arith.constant 0 : i32
    %c0_i32_0 = arith.constant 0 : i32
    %c0_i32_1 = arith.constant 0 : i32
    return %c0_i32, %c0_i32_0 : i32, i32
  }
  func.func @transform_2(%arg0: i32) -> (i32, i32) {
    %c0_i32 = arith.constant 0 : i32
    %c0_i32_0 = arith.constant 0 : i32
    %c0_i32_1 = arith.constant 0 : i32
    return %c0_i32, %c0_i32_0 : i32, i32
  }
  func.func @transform_3(%arg0: i32) -> (i32, i32) {
    %c0_i32 = arith.constant 0 : i32
    %c0_i32_0 = arith.constant 0 : i32
    return %arg0, %c0_i32 : i32, i32
  }
}

module attributes {stable_mosaic.version = 11 : i64} {
  func.func @_fused_mm_kernel(%arg0: i32, %arg1: memref<32x768xf32, #tpu.memory_space<vmem>>, %arg2: memref<768x256xbf16, #tpu.memory_space<vmem>>, %arg3: memref<1x256xf32, #tpu.memory_space<vmem>>, %arg4: memref<32x256xbf16, #tpu.memory_space<vmem>>) attributes {dimension_semantics = [#tpu.dimension_semantics<parallel>], iteration_bounds = array<i64: 1>, scalar_prefetch = 0 : i64, scratch_operands = 0 : i64, tpu.core_type = #tpu.core_type<tc>, window_params = [{transform_indices = @transform_0, window_bounds = array<i64: 32, 768>}, {pipeline_mode = #tpu.pipeline_mode<synchronous>, transform_indices = @transform_1, window_bounds = array<i64: 768, 256>}, {pipeline_mode = #tpu.pipeline_mode<synchronous>, transform_indices = @transform_2, window_bounds = array<i64: 1, 256>}, {transform_indices = @transform_3, window_bounds = array<i64: 32, 256>}]} {
    %c0 = arith.constant 0 : index
    %c0_0 = arith.constant 0 : index
    %0 = vector.load %arg1[%c0, %c0_0] : memref<32x768xf32, #tpu.memory_space<vmem>>, vector<32x768xf32>
    %1 = arith.truncf %0 : vector<32x768xf32> to vector<32x768xbf16>
    %c0_1 = arith.constant 0 : index
    %c0_2 = arith.constant 0 : index
    %2 = vector.load %arg2[%c0_1, %c0_2] : memref<768x256xbf16, #tpu.memory_space<vmem>>, vector<768x256xbf16>
    %cst = arith.constant dense<0.000000e+00> : vector<32x256xf32>
    %3 = tpu.matmul %1, %2, %cst {dimension_numbers = #tpu.dot_dimension_numbers<[1], [0], [0], [1], [0, 0, 1, 1], [], []>} : vector<32x768xbf16>, vector<768x256xbf16>, vector<32x256xf32> -> vector<32x256xf32>
    %c0_3 = arith.constant 0 : index
    %c0_4 = arith.constant 0 : index
    %4 = vector.load %arg3[%c0_3, %c0_4] : memref<1x256xf32, #tpu.memory_space<vmem>>, vector<1x256xf32>
    %5 = vector.broadcast %4 : vector<1x256xf32> to vector<32x256xf32>
    %6 = arith.addf %3, %5 : vector<32x256xf32>
    %cst_5 = arith.constant 0.000000e+00 : f32
    %7 = vector.broadcast %cst_5 : f32 to vector<32x256xf32>
    %8 = arith.subf %7, %6 : vector<32x256xf32>
    %9 = math.exp %8 : vector<32x256xf32>
    %cst_6 = arith.constant 1.000000e+00 : f32
    %10 = vector.broadcast %cst_6 : f32 to vector<32x256xf32>
    %11 = arith.addf %10, %9 : vector<32x256xf32>
    %12 = tpu.reciprocal %11 {approx = true} : vector<32x256xf32> -> vector<32x256xf32>
    %13 = arith.mulf %6, %12 : vector<32x256xf32>
    %14 = arith.truncf %13 : vector<32x256xf32> to vector<32x256xbf16>
    %c0_7 = arith.constant 0 : index
    %c0_8 = arith.constant 0 : index
    %15 = vector.load %arg4[%c0_7, %c0_8] : memref<32x256xbf16, #tpu.memory_space<vmem>>, vector<32x256xbf16>
    tpu.vector_store %arg4[%c0_7, %c0_8], %14 {strides = array<i32>} : memref<32x256xbf16, #tpu.memory_space<vmem>>, vector<32x256xbf16>,
    return
  }
  func.func @transform_0(%arg0: i32) -> (i32, i32) {
    %c0_i32 = arith.constant 0 : i32
    %c0_i32_0 = arith.constant 0 : i32
    return %arg0, %c0_i32 : i32, i32
  }
  func.func @transform_1(%arg0: i32) -> (i32, i32) {
    %c0_i32 = arith.constant 0 : i32
    %c0_i32_0 = arith.constant 0 : i32
    %c0_i32_1 = arith.constant 0 : i32
    return %c0_i32, %c0_i32_0 : i32, i32
  }
  func.func @transform_2(%arg0: i32) -> (i32, i32) {
    %c0_i32 = arith.constant 0 : i32
    %c0_i32_0 = arith.constant 0 : i32
    %c0_i32_1 = arith.constant 0 : i32
    return %c0_i32, %c0_i32_0 : i32, i32
  }
  func.func @transform_3(%arg0: i32) -> (i32, i32) {
    %c0_i32 = arith.constant 0 : i32
    %c0_i32_0 = arith.constant 0 : i32
    return %arg0, %c0_i32 : i32, i32
  }
}

module attributes {stable_mosaic.version = 11 : i64} {
  func.func @_fused_mm_kernel(%arg0: i32, %arg1: memref<32x256xbf16, #tpu.memory_space<vmem>>, %arg2: memref<32x256xbf16, #tpu.memory_space<vmem>>, %arg3: memref<256x256xbf16, #tpu.memory_space<vmem>>, %arg4: memref<256x256xbf16, #tpu.memory_space<vmem>>, %arg5: memref<1x256xf32, #tpu.memory_space<vmem>>, %arg6: memref<32x256xbf16, #tpu.memory_space<vmem>>) attributes {dimension_semantics = [#tpu.dimension_semantics<parallel>], iteration_bounds = array<i64: 1>, scalar_prefetch = 0 : i64, scratch_operands = 0 : i64, tpu.core_type = #tpu.core_type<tc>, window_params = [{transform_indices = @transform_0, window_bounds = array<i64: 32, 256>}, {transform_indices = @transform_1, window_bounds = array<i64: 32, 256>}, {pipeline_mode = #tpu.pipeline_mode<synchronous>, transform_indices = @transform_2, window_bounds = array<i64: 256, 256>}, {pipeline_mode = #tpu.pipeline_mode<synchronous>, transform_indices = @transform_3, window_bounds = array<i64: 256, 256>}, {pipeline_mode = #tpu.pipeline_mode<synchronous>, transform_indices = @transform_4, window_bounds = array<i64: 1, 256>}, {transform_indices = @transform_5, window_bounds = array<i64: 32, 256>}]} {
    %c0 = arith.constant 0 : index
    %c0_0 = arith.constant 0 : index
    %0 = vector.load %arg1[%c0, %c0_0] : memref<32x256xbf16, #tpu.memory_space<vmem>>, vector<32x256xbf16>
    %c0_1 = arith.constant 0 : index
    %c0_2 = arith.constant 0 : index
    %1 = vector.load %arg3[%c0_1, %c0_2] : memref<256x256xbf16, #tpu.memory_space<vmem>>, vector<256x256xbf16>
    %cst = arith.constant dense<0.000000e+00> : vector<32x256xf32>
    %2 = tpu.matmul %0, %1, %cst {dimension_numbers = #tpu.dot_dimension_numbers<[1], [0], [0], [1], [0, 0, 1, 1], [], []>} : vector<32x256xbf16>, vector<256x256xbf16>, vector<32x256xf32> -> vector<32x256xf32>
    %c0_3 = arith.constant 0 : index
    %c0_4 = arith.constant 0 : index
    %3 = vector.load %arg2[%c0_3, %c0_4] : memref<32x256xbf16, #tpu.memory_space<vmem>>, vector<32x256xbf16>
    %c0_5 = arith.constant 0 : index
    %c0_6 = arith.constant 0 : index
    %4 = vector.load %arg4[%c0_5, %c0_6] : memref<256x256xbf16, #tpu.memory_space<vmem>>, vector<256x256xbf16>
    %cst_7 = arith.constant dense<0.000000e+00> : vector<32x256xf32>
    %5 = tpu.matmul %3, %4, %cst_7 {dimension_numbers = #tpu.dot_dimension_numbers<[1], [0], [0], [1], [0, 0, 1, 1], [], []>} : vector<32x256xbf16>, vector<256x256xbf16>, vector<32x256xf32> -> vector<32x256xf32>
    %6 = arith.addf %2, %5 : vector<32x256xf32>
    %c0_8 = arith.constant 0 : index
    %c0_9 = arith.constant 0 : index
    %7 = vector.load %arg5[%c0_8, %c0_9] : memref<1x256xf32, #tpu.memory_space<vmem>>, vector<1x256xf32>
    %8 = vector.broadcast %7 : vector<1x256xf32> to vector<32x256xf32>
    %9 = arith.addf %6, %8 : vector<32x256xf32>
    %cst_10 = arith.constant 0.000000e+00 : f32
    %10 = vector.broadcast %cst_10 : f32 to vector<32x256xf32>
    %11 = arith.subf %10, %9 : vector<32x256xf32>
    %12 = math.exp %11 : vector<32x256xf32>
    %cst_11 = arith.constant 1.000000e+00 : f32
    %13 = vector.broadcast %cst_11 : f32 to vector<32x256xf32>
    %14 = arith.addf %13, %12 : vector<32x256xf32>
    %15 = tpu.reciprocal %14 {approx = true} : vector<32x256xf32> -> vector<32x256xf32>
    %16 = arith.mulf %9, %15 : vector<32x256xf32>
    %17 = arith.truncf %16 : vector<32x256xf32> to vector<32x256xbf16>
    %c0_12 = arith.constant 0 : index
    %c0_13 = arith.constant 0 : index
    %18 = vector.load %arg6[%c0_12, %c0_13] : memref<32x256xbf16, #tpu.memory_space<vmem>>, vector<32x256xbf16>
    tpu.vector_store %arg6[%c0_12, %c0_13], %17 {strides = array<i32>} : memref<32x256xbf16, #tpu.memory_space<vmem>>, vector<32x256xbf16>,
    return
  }
  func.func @transform_0(%arg0: i32) -> (i32, i32) {
    %c0_i32 = arith.constant 0 : i32
    %c0_i32_0 = arith.constant 0 : i32
    return %arg0, %c0_i32 : i32, i32
  }
  func.func @transform_1(%arg0: i32) -> (i32, i32) {
    %c0_i32 = arith.constant 0 : i32
    %c0_i32_0 = arith.constant 0 : i32
    return %arg0, %c0_i32 : i32, i32
  }
  func.func @transform_2(%arg0: i32) -> (i32, i32) {
    %c0_i32 = arith.constant 0 : i32
    %c0_i32_0 = arith.constant 0 : i32
    %c0_i32_1 = arith.constant 0 : i32
    return %c0_i32, %c0_i32_0 : i32, i32
  }
  func.func @transform_3(%arg0: i32) -> (i32, i32) {
    %c0_i32 = arith.constant 0 : i32
    %c0_i32_0 = arith.constant 0 : i32
    %c0_i32_1 = arith.constant 0 : i32
    return %c0_i32, %c0_i32_0 : i32, i32
  }
  func.func @transform_4(%arg0: i32) -> (i32, i32) {
    %c0_i32 = arith.constant 0 : i32
    %c0_i32_0 = arith.constant 0 : i32
    %c0_i32_1 = arith.constant 0 : i32
    return %c0_i32, %c0_i32_0 : i32, i32
  }
  func.func @transform_5(%arg0: i32) -> (i32, i32) {
    %c0_i32 = arith.constant 0 : i32
    %c0_i32_0 = arith.constant 0 : i32
    return %arg0, %c0_i32 : i32, i32
  }
}

module attributes {stable_mosaic.version = 11 : i64} {
  func.func @_fused_mm_kernel(%arg0: i32, %arg1: memref<32x128xbf16, #tpu.memory_space<vmem>>, %arg2: memref<128x128xbf16, #tpu.memory_space<vmem>>, %arg3: memref<1x128xf32, #tpu.memory_space<vmem>>, %arg4: memref<32x128xbf16, #tpu.memory_space<vmem>>) attributes {dimension_semantics = [#tpu.dimension_semantics<parallel>], iteration_bounds = array<i64: 1>, scalar_prefetch = 0 : i64, scratch_operands = 0 : i64, tpu.core_type = #tpu.core_type<tc>, window_params = [{transform_indices = @transform_0, window_bounds = array<i64: 32, 128>}, {pipeline_mode = #tpu.pipeline_mode<synchronous>, transform_indices = @transform_1, window_bounds = array<i64: 128, 128>}, {pipeline_mode = #tpu.pipeline_mode<synchronous>, transform_indices = @transform_2, window_bounds = array<i64: 1, 128>}, {transform_indices = @transform_3, window_bounds = array<i64: 32, 128>}]} {
    %c0 = arith.constant 0 : index
    %c0_0 = arith.constant 0 : index
    %0 = vector.load %arg1[%c0, %c0_0] : memref<32x128xbf16, #tpu.memory_space<vmem>>, vector<32x128xbf16>
    %c0_1 = arith.constant 0 : index
    %c0_2 = arith.constant 0 : index
    %1 = vector.load %arg2[%c0_1, %c0_2] : memref<128x128xbf16, #tpu.memory_space<vmem>>, vector<128x128xbf16>
    %cst = arith.constant dense<0.000000e+00> : vector<32x128xf32>
    %2 = tpu.matmul %0, %1, %cst {dimension_numbers = #tpu.dot_dimension_numbers<[1], [0], [0], [1], [0, 0, 1, 1], [], []>} : vector<32x128xbf16>, vector<128x128xbf16>, vector<32x128xf32> -> vector<32x128xf32>
    %c0_3 = arith.constant 0 : index
    %c0_4 = arith.constant 0 : index
    %3 = vector.load %arg3[%c0_3, %c0_4] : memref<1x128xf32, #tpu.memory_space<vmem>>, vector<1x128xf32>
    %4 = vector.broadcast %3 : vector<1x128xf32> to vector<32x128xf32>
    %5 = arith.addf %2, %4 : vector<32x128xf32>
    %cst_5 = arith.constant 0.000000e+00 : f32
    %6 = vector.broadcast %cst_5 : f32 to vector<32x128xf32>
    %7 = arith.subf %6, %5 : vector<32x128xf32>
    %8 = math.exp %7 : vector<32x128xf32>
    %cst_6 = arith.constant 1.000000e+00 : f32
    %9 = vector.broadcast %cst_6 : f32 to vector<32x128xf32>
    %10 = arith.addf %9, %8 : vector<32x128xf32>
    %11 = tpu.reciprocal %10 {approx = true} : vector<32x128xf32> -> vector<32x128xf32>
    %12 = arith.mulf %5, %11 : vector<32x128xf32>
    %13 = arith.truncf %12 : vector<32x128xf32> to vector<32x128xbf16>
    %c0_7 = arith.constant 0 : index
    %c0_8 = arith.constant 0 : index
    %14 = vector.load %arg4[%c0_7, %c0_8] : memref<32x128xbf16, #tpu.memory_space<vmem>>, vector<32x128xbf16>
    tpu.vector_store %arg4[%c0_7, %c0_8], %13 {strides = array<i32>} : memref<32x128xbf16, #tpu.memory_space<vmem>>, vector<32x128xbf16>,
    return
  }
  func.func @transform_0(%arg0: i32) -> (i32, i32) {
    %c0_i32 = arith.constant 0 : i32
    %c0_i32_0 = arith.constant 0 : i32
    return %arg0, %c0_i32 : i32, i32
  }
  func.func @transform_1(%arg0: i32) -> (i32, i32) {
    %c0_i32 = arith.constant 0 : i32
    %c0_i32_0 = arith.constant 0 : i32
    %c0_i32_1 = arith.constant 0 : i32
    return %c0_i32, %c0_i32_0 : i32, i32
  }
  func.func @transform_2(%arg0: i32) -> (i32, i32) {
    %c0_i32 = arith.constant 0 : i32
    %c0_i32_0 = arith.constant 0 : i32
    %c0_i32_1 = arith.constant 0 : i32
    return %c0_i32, %c0_i32_0 : i32, i32
  }
  func.func @transform_3(%arg0: i32) -> (i32, i32) {
    %c0_i32 = arith.constant 0 : i32
    %c0_i32_0 = arith.constant 0 : i32
    return %arg0, %c0_i32 : i32, i32
  }
}

module attributes {stable_mosaic.version = 11 : i64} {
  func.func @_conv3x3_kernel(%arg0: i32, %arg1: i32, %arg2: memref<1x1x42x128xbf16, #tpu.memory_space<vmem>>, %arg3: memref<9x128x128xbf16, #tpu.memory_space<vmem>>, %arg4: memref<1x128xf32, #tpu.memory_space<vmem>>, %arg5: memref<1x1x24x128xbf16, #tpu.memory_space<vmem>>) attributes {dimension_semantics = [#tpu.dimension_semantics<parallel>, #tpu.dimension_semantics<parallel>], iteration_bounds = array<i64: 2, 1>, scalar_prefetch = 0 : i64, scratch_operands = 0 : i64, tpu.core_type = #tpu.core_type<tc>, window_params = [{transform_indices = @transform_0, window_bounds = array<i64: 1, 1, 42, 128>}, {pipeline_mode = #tpu.pipeline_mode<synchronous>, transform_indices = @transform_1, window_bounds = array<i64: 9, 128, 128>}, {pipeline_mode = #tpu.pipeline_mode<synchronous>, transform_indices = @transform_2, window_bounds = array<i64: 1, 128>}, {transform_indices = @transform_3, window_bounds = array<i64: 1, 1, 24, 128>}]} {
    %c0 = arith.constant 0 : index
    %c0_0 = arith.constant 0 : index
    %c0_1 = arith.constant 0 : index
    %c0_2 = arith.constant 0 : index
    %0 = vector.load %arg2[%c0, %c0_0, %c0_1, %c0_2] : memref<1x1x42x128xbf16, #tpu.memory_space<vmem>>, vector<1x1x24x128xbf16>
    %1 = vector.shape_cast %0 : vector<1x1x24x128xbf16> to vector<24x128xbf16>
    %c0_3 = arith.constant 0 : index
    %c0_4 = arith.constant 0 : index
    %c0_5 = arith.constant 0 : index
    %2 = vector.load %arg3[%c0_3, %c0_4, %c0_5] : memref<9x128x128xbf16, #tpu.memory_space<vmem>>, vector<1x128x128xbf16>
    %3 = vector.shape_cast %2 : vector<1x128x128xbf16> to vector<128x128xbf16>
    %cst = arith.constant dense<0.000000e+00> : vector<24x128xf32>
    %4 = tpu.matmul %1, %3, %cst {dimension_numbers = #tpu.dot_dimension_numbers<[1], [0], [0], [1], [0, 0, 1, 1], [], []>} : vector<24x128xbf16>, vector<128x128xbf16>, vector<24x128xf32> -> vector<24x128xf32>
    %c0_6 = arith.constant 0 : index
    %c0_7 = arith.constant 0 : index
    %c1 = arith.constant 1 : index
    %c0_8 = arith.constant 0 : index
    %5 = vector.load %arg2[%c0_6, %c0_7, %c1, %c0_8] : memref<1x1x42x128xbf16, #tpu.memory_space<vmem>>, vector<1x1x24x128xbf16>
    %6 = vector.shape_cast %5 : vector<1x1x24x128xbf16> to vector<24x128xbf16>
    %c1_9 = arith.constant 1 : index
    %c0_10 = arith.constant 0 : index
    %c0_11 = arith.constant 0 : index
    %7 = vector.load %arg3[%c1_9, %c0_10, %c0_11] : memref<9x128x128xbf16, #tpu.memory_space<vmem>>, vector<1x128x128xbf16>
    %8 = vector.shape_cast %7 : vector<1x128x128xbf16> to vector<128x128xbf16>
    %cst_12 = arith.constant dense<0.000000e+00> : vector<24x128xf32>
    %9 = tpu.matmul %6, %8, %cst_12 {dimension_numbers = #tpu.dot_dimension_numbers<[1], [0], [0], [1], [0, 0, 1, 1], [], []>} : vector<24x128xbf16>, vector<128x128xbf16>, vector<24x128xf32> -> vector<24x128xf32>
    %10 = arith.addf %4, %9 : vector<24x128xf32>
    %c0_13 = arith.constant 0 : index
    %c0_14 = arith.constant 0 : index
    %c2 = arith.constant 2 : index
    %c0_15 = arith.constant 0 : index
    %11 = vector.load %arg2[%c0_13, %c0_14, %c2, %c0_15] : memref<1x1x42x128xbf16, #tpu.memory_space<vmem>>, vector<1x1x24x128xbf16>
    %12 = vector.shape_cast %11 : vector<1x1x24x128xbf16> to vector<24x128xbf16>
    %c2_16 = arith.constant 2 : index
    %c0_17 = arith.constant 0 : index
    %c0_18 = arith.constant 0 : index
    %13 = vector.load %arg3[%c2_16, %c0_17, %c0_18] : memref<9x128x128xbf16, #tpu.memory_space<vmem>>, vector<1x128x128xbf16>
    %14 = vector.shape_cast %13 : vector<1x128x128xbf16> to vector<128x128xbf16>
    %cst_19 = arith.constant dense<0.000000e+00> : vector<24x128xf32>
    %15 = tpu.matmul %12, %14, %cst_19 {dimension_numbers = #tpu.dot_dimension_numbers<[1], [0], [0], [1], [0, 0, 1, 1], [], []>} : vector<24x128xbf16>, vector<128x128xbf16>, vector<24x128xf32> -> vector<24x128xf32>
    %16 = arith.addf %10, %15 : vector<24x128xf32>
    %c0_20 = arith.constant 0 : index
    %c0_21 = arith.constant 0 : index
    %c6 = arith.constant 6 : index
    %c0_22 = arith.constant 0 : index
    %17 = vector.load %arg2[%c0_20, %c0_21, %c6, %c0_22] : memref<1x1x42x128xbf16, #tpu.memory_space<vmem>>, vector<1x1x24x128xbf16>
    %18 = vector.shape_cast %17 : vector<1x1x24x128xbf16> to vector<24x128xbf16>
    %c3 = arith.constant 3 : index
    %c0_23 = arith.constant 0 : index
    %c0_24 = arith.constant 0 : index
    %19 = vector.load %arg3[%c3, %c0_23, %c0_24] : memref<9x128x128xbf16, #tpu.memory_space<vmem>>, vector<1x128x128xbf16>
    %20 = vector.shape_cast %19 : vector<1x128x128xbf16> to vector<128x128xbf16>
    %cst_25 = arith.constant dense<0.000000e+00> : vector<24x128xf32>
    %21 = tpu.matmul %18, %20, %cst_25 {dimension_numbers = #tpu.dot_dimension_numbers<[1], [0], [0], [1], [0, 0, 1, 1], [], []>} : vector<24x128xbf16>, vector<128x128xbf16>, vector<24x128xf32> -> vector<24x128xf32>
    %22 = arith.addf %16, %21 : vector<24x128xf32>
    %c0_26 = arith.constant 0 : index
    %c0_27 = arith.constant 0 : index
    %c7 = arith.constant 7 : index
    %c0_28 = arith.constant 0 : index
    %23 = vector.load %arg2[%c0_26, %c0_27, %c7, %c0_28] : memref<1x1x42x128xbf16, #tpu.memory_space<vmem>>, vector<1x1x24x128xbf16>
    %24 = vector.shape_cast %23 : vector<1x1x24x128xbf16> to vector<24x128xbf16>
    %c4 = arith.constant 4 : index
    %c0_29 = arith.constant 0 : index
    %c0_30 = arith.constant 0 : index
    %25 = vector.load %arg3[%c4, %c0_29, %c0_30] : memref<9x128x128xbf16, #tpu.memory_space<vmem>>, vector<1x128x128xbf16>
    %26 = vector.shape_cast %25 : vector<1x128x128xbf16> to vector<128x128xbf16>
    %cst_31 = arith.constant dense<0.000000e+00> : vector<24x128xf32>
    %27 = tpu.matmul %24, %26, %cst_31 {dimension_numbers = #tpu.dot_dimension_numbers<[1], [0], [0], [1], [0, 0, 1, 1], [], []>} : vector<24x128xbf16>, vector<128x128xbf16>, vector<24x128xf32> -> vector<24x128xf32>
    %28 = arith.addf %22, %27 : vector<24x128xf32>
    %c0_32 = arith.constant 0 : index
    %c0_33 = arith.constant 0 : index
    %c8 = arith.constant 8 : index
    %c0_34 = arith.constant 0 : index
    %29 = vector.load %arg2[%c0_32, %c0_33, %c8, %c0_34] : memref<1x1x42x128xbf16, #tpu.memory_space<vmem>>, vector<1x1x24x128xbf16>
    %30 = vector.shape_cast %29 : vector<1x1x24x128xbf16> to vector<24x128xbf16>
    %c5 = arith.constant 5 : index
    %c0_35 = arith.constant 0 : index
    %c0_36 = arith.constant 0 : index
    %31 = vector.load %arg3[%c5, %c0_35, %c0_36] : memref<9x128x128xbf16, #tpu.memory_space<vmem>>, vector<1x128x128xbf16>
    %32 = vector.shape_cast %31 : vector<1x128x128xbf16> to vector<128x128xbf16>
    %cst_37 = arith.constant dense<0.000000e+00> : vector<24x128xf32>
    %33 = tpu.matmul %30, %32, %cst_37 {dimension_numbers = #tpu.dot_dimension_numbers<[1], [0], [0], [1], [0, 0, 1, 1], [], []>} : vector<24x128xbf16>, vector<128x128xbf16>, vector<24x128xf32> -> vector<24x128xf32>
    %34 = arith.addf %28, %33 : vector<24x128xf32>
    %c0_38 = arith.constant 0 : index
    %c0_39 = arith.constant 0 : index
    %c12 = arith.constant 12 : index
    %c0_40 = arith.constant 0 : index
    %35 = vector.load %arg2[%c0_38, %c0_39, %c12, %c0_40] : memref<1x1x42x128xbf16, #tpu.memory_space<vmem>>, vector<1x1x24x128xbf16>
    %36 = vector.shape_cast %35 : vector<1x1x24x128xbf16> to vector<24x128xbf16>
    %c6_41 = arith.constant 6 : index
    %c0_42 = arith.constant 0 : index
    %c0_43 = arith.constant 0 : index
    %37 = vector.load %arg3[%c6_41, %c0_42, %c0_43] : memref<9x128x128xbf16, #tpu.memory_space<vmem>>, vector<1x128x128xbf16>
    %38 = vector.shape_cast %37 : vector<1x128x128xbf16> to vector<128x128xbf16>
    %cst_44 = arith.constant dense<0.000000e+00> : vector<24x128xf32>
    %39 = tpu.matmul %36, %38, %cst_44 {dimension_numbers = #tpu.dot_dimension_numbers<[1], [0], [0], [1], [0, 0, 1, 1], [], []>} : vector<24x128xbf16>, vector<128x128xbf16>, vector<24x128xf32> -> vector<24x128xf32>
    %40 = arith.addf %34, %39 : vector<24x128xf32>
    %c0_45 = arith.constant 0 : index
    %c0_46 = arith.constant 0 : index
    %c13 = arith.constant 13 : index
    %c0_47 = arith.constant 0 : index
    %41 = vector.load %arg2[%c0_45, %c0_46, %c13, %c0_47] : memref<1x1x42x128xbf16, #tpu.memory_space<vmem>>, vector<1x1x24x128xbf16>
    %42 = vector.shape_cast %41 : vector<1x1x24x128xbf16> to vector<24x128xbf16>
    %c7_48 = arith.constant 7 : index
    %c0_49 = arith.constant 0 : index
    %c0_50 = arith.constant 0 : index
    %43 = vector.load %arg3[%c7_48, %c0_49, %c0_50] : memref<9x128x128xbf16, #tpu.memory_space<vmem>>, vector<1x128x128xbf16>
    %44 = vector.shape_cast %43 : vector<1x128x128xbf16> to vector<128x128xbf16>
    %cst_51 = arith.constant dense<0.000000e+00> : vector<24x128xf32>
    %45 = tpu.matmul %42, %44, %cst_51 {dimension_numbers = #tpu.dot_dimension_numbers<[1], [0], [0], [1], [0, 0, 1, 1], [], []>} : vector<24x128xbf16>, vector<128x128xbf16>, vector<24x128xf32> -> vector<24x128xf32>
    %46 = arith.addf %40, %45 : vector<24x128xf32>
    %c0_52 = arith.constant 0 : index
    %c0_53 = arith.constant 0 : index
    %c14 = arith.constant 14 : index
    %c0_54 = arith.constant 0 : index
    %47 = vector.load %arg2[%c0_52, %c0_53, %c14, %c0_54] : memref<1x1x42x128xbf16, #tpu.memory_space<vmem>>, vector<1x1x24x128xbf16>
    %48 = vector.shape_cast %47 : vector<1x1x24x128xbf16> to vector<24x128xbf16>
    %c8_55 = arith.constant 8 : index
    %c0_56 = arith.constant 0 : index
    %c0_57 = arith.constant 0 : index
    %49 = vector.load %arg3[%c8_55, %c0_56, %c0_57] : memref<9x128x128xbf16, #tpu.memory_space<vmem>>, vector<1x128x128xbf16>
    %50 = vector.shape_cast %49 : vector<1x128x128xbf16> to vector<128x128xbf16>
    %cst_58 = arith.constant dense<0.000000e+00> : vector<24x128xf32>
    %51 = tpu.matmul %48, %50, %cst_58 {dimension_numbers = #tpu.dot_dimension_numbers<[1], [0], [0], [1], [0, 0, 1, 1], [], []>} : vector<24x128xbf16>, vector<128x128xbf16>, vector<24x128xf32> -> vector<24x128xf32>
    %52 = arith.addf %46, %51 : vector<24x128xf32>
    %c0_59 = arith.constant 0 : index
    %c0_60 = arith.constant 0 : index
    %53 = vector.load %arg4[%c0_59, %c0_60] : memref<1x128xf32, #tpu.memory_space<vmem>>, vector<1x128xf32>
    %54 = vector.broadcast %53 : vector<1x128xf32> to vector<24x128xf32>
    %55 = arith.addf %52, %54 : vector<24x128xf32>
    %cst_61 = arith.constant 0.000000e+00 : f32
    %56 = vector.broadcast %cst_61 : f32 to vector<24x128xf32>
    %57 = arith.subf %56, %55 : vector<24x128xf32>
    %58 = math.exp %57 : vector<24x128xf32>
    %cst_62 = arith.constant 1.000000e+00 : f32
    %59 = vector.broadcast %cst_62 : f32 to vector<24x128xf32>
    %60 = arith.addf %59, %58 : vector<24x128xf32>
    %61 = tpu.reciprocal %60 {approx = true} : vector<24x128xf32> -> vector<24x128xf32>
    %62 = arith.mulf %55, %61 : vector<24x128xf32>
    %63 = arith.truncf %62 : vector<24x128xf32> to vector<24x128xbf16>
    %c0_63 = arith.constant 0 : index
    %c0_64 = arith.constant 0 : index
    %c0_65 = arith.constant 0 : index
    %c0_66 = arith.constant 0 : index
    %64 = vector.load %arg5[%c0_63, %c0_64, %c0_65, %c0_66] : memref<1x1x24x128xbf16, #tpu.memory_space<vmem>>, vector<1x1x24x128xbf16>
    %65 = vector.shape_cast %64 : vector<1x1x24x128xbf16> to vector<24x128xbf16>
    %66 = vector.shape_cast %63 : vector<24x128xbf16> to vector<1x1x24x128xbf16>
    tpu.vector_store %arg5[%c0_63, %c0_64, %c0_65, %c0_66], %66 {strides = array<i32>} : memref<1x1x24x128xbf16, #tpu.memory_space<vmem>>, vector<1x1x24x128xbf16>,
    return
  }
  func.func @transform_0(%arg0: i32, %arg1: i32) -> (i32, i32, i32, i32) {
    %c0_i32 = arith.constant 0 : i32
    %c0_i32_0 = arith.constant 0 : i32
    %c0_i32_1 = arith.constant 0 : i32
    return %arg0, %arg1, %c0_i32, %c0_i32_0 : i32, i32, i32, i32
  }
  func.func @transform_1(%arg0: i32, %arg1: i32) -> (i32, i32, i32) {
    %c0_i32 = arith.constant 0 : i32
    %c0_i32_0 = arith.constant 0 : i32
    %c0_i32_1 = arith.constant 0 : i32
    %c0_i32_2 = arith.constant 0 : i32
    return %c0_i32, %c0_i32_0, %c0_i32_1 : i32, i32, i32
  }
  func.func @transform_2(%arg0: i32, %arg1: i32) -> (i32, i32) {
    %c0_i32 = arith.constant 0 : i32
    %c0_i32_0 = arith.constant 0 : i32
    %c0_i32_1 = arith.constant 0 : i32
    return %c0_i32, %c0_i32_0 : i32, i32
  }
  func.func @transform_3(%arg0: i32, %arg1: i32) -> (i32, i32, i32, i32) {
    %c0_i32 = arith.constant 0 : i32
    %c0_i32_0 = arith.constant 0 : i32
    %c0_i32_1 = arith.constant 0 : i32
    return %arg0, %arg1, %c0_i32, %c0_i32_0 : i32, i32, i32, i32
  }
}

module attributes {stable_mosaic.version = 11 : i64} {
  func.func @_fused_mm_kernel(%arg0: i32, %arg1: memref<32x128xbf16, #tpu.memory_space<vmem>>, %arg2: memref<32x128xbf16, #tpu.memory_space<vmem>>, %arg3: memref<128x256xbf16, #tpu.memory_space<vmem>>, %arg4: memref<128x256xbf16, #tpu.memory_space<vmem>>, %arg5: memref<1x256xf32, #tpu.memory_space<vmem>>, %arg6: memref<256x128xbf16, #tpu.memory_space<vmem>>, %arg7: memref<1x128xf32, #tpu.memory_space<vmem>>, %arg8: memref<32x128xbf16, #tpu.memory_space<vmem>>) attributes {dimension_semantics = [#tpu.dimension_semantics<parallel>], iteration_bounds = array<i64: 1>, scalar_prefetch = 0 : i64, scratch_operands = 0 : i64, tpu.core_type = #tpu.core_type<tc>, window_params = [{transform_indices = @transform_0, window_bounds = array<i64: 32, 128>}, {transform_indices = @transform_1, window_bounds = array<i64: 32, 128>}, {pipeline_mode = #tpu.pipeline_mode<synchronous>, transform_indices = @transform_2, window_bounds = array<i64: 128, 256>}, {pipeline_mode = #tpu.pipeline_mode<synchronous>, transform_indices = @transform_3, window_bounds = array<i64: 128, 256>}, {pipeline_mode = #tpu.pipeline_mode<synchronous>, transform_indices = @transform_4, window_bounds = array<i64: 1, 256>}, {pipeline_mode = #tpu.pipeline_mode<synchronous>, transform_indices = @transform_5, window_bounds = array<i64: 256, 128>}, {pipeline_mode = #tpu.pipeline_mode<synchronous>, transform_indices = @transform_6, window_bounds = array<i64: 1, 128>}, {transform_indices = @transform_7, window_bounds = array<i64: 32, 128>}]} {
    %c0 = arith.constant 0 : index
    %c0_0 = arith.constant 0 : index
    %0 = vector.load %arg1[%c0, %c0_0] : memref<32x128xbf16, #tpu.memory_space<vmem>>, vector<32x128xbf16>
    %c0_1 = arith.constant 0 : index
    %c0_2 = arith.constant 0 : index
    %1 = vector.load %arg3[%c0_1, %c0_2] : memref<128x256xbf16, #tpu.memory_space<vmem>>, vector<128x256xbf16>
    %cst = arith.constant dense<0.000000e+00> : vector<32x256xf32>
    %2 = tpu.matmul %0, %1, %cst {dimension_numbers = #tpu.dot_dimension_numbers<[1], [0], [0], [1], [0, 0, 1, 1], [], []>} : vector<32x128xbf16>, vector<128x256xbf16>, vector<32x256xf32> -> vector<32x256xf32>
    %c0_3 = arith.constant 0 : index
    %c0_4 = arith.constant 0 : index
    %3 = vector.load %arg2[%c0_3, %c0_4] : memref<32x128xbf16, #tpu.memory_space<vmem>>, vector<32x128xbf16>
    %c0_5 = arith.constant 0 : index
    %c0_6 = arith.constant 0 : index
    %4 = vector.load %arg4[%c0_5, %c0_6] : memref<128x256xbf16, #tpu.memory_space<vmem>>, vector<128x256xbf16>
    %cst_7 = arith.constant dense<0.000000e+00> : vector<32x256xf32>
    %5 = tpu.matmul %3, %4, %cst_7 {dimension_numbers = #tpu.dot_dimension_numbers<[1], [0], [0], [1], [0, 0, 1, 1], [], []>} : vector<32x128xbf16>, vector<128x256xbf16>, vector<32x256xf32> -> vector<32x256xf32>
    %6 = arith.addf %2, %5 : vector<32x256xf32>
    %c0_8 = arith.constant 0 : index
    %c0_9 = arith.constant 0 : index
    %7 = vector.load %arg5[%c0_8, %c0_9] : memref<1x256xf32, #tpu.memory_space<vmem>>, vector<1x256xf32>
    %8 = vector.broadcast %7 : vector<1x256xf32> to vector<32x256xf32>
    %9 = arith.addf %6, %8 : vector<32x256xf32>
    %cst_10 = arith.constant 0.000000e+00 : f32
    %10 = vector.broadcast %cst_10 : f32 to vector<32x256xf32>
    %11 = arith.subf %10, %9 : vector<32x256xf32>
    %12 = math.exp %11 : vector<32x256xf32>
    %cst_11 = arith.constant 1.000000e+00 : f32
    %13 = vector.broadcast %cst_11 : f32 to vector<32x256xf32>
    %14 = arith.addf %13, %12 : vector<32x256xf32>
    %15 = tpu.reciprocal %14 {approx = true} : vector<32x256xf32> -> vector<32x256xf32>
    %16 = arith.mulf %9, %15 : vector<32x256xf32>
    %17 = arith.truncf %16 : vector<32x256xf32> to vector<32x256xbf16>
    %c0_12 = arith.constant 0 : index
    %c0_13 = arith.constant 0 : index
    %18 = vector.load %arg6[%c0_12, %c0_13] : memref<256x128xbf16, #tpu.memory_space<vmem>>, vector<256x128xbf16>
    %cst_14 = arith.constant dense<0.000000e+00> : vector<32x128xf32>
    %19 = tpu.matmul %17, %18, %cst_14 {dimension_numbers = #tpu.dot_dimension_numbers<[1], [0], [0], [1], [0, 0, 1, 1], [], []>} : vector<32x256xbf16>, vector<256x128xbf16>, vector<32x128xf32> -> vector<32x128xf32>
    %c0_15 = arith.constant 0 : index
    %c0_16 = arith.constant 0 : index
    %20 = vector.load %arg7[%c0_15, %c0_16] : memref<1x128xf32, #tpu.memory_space<vmem>>, vector<1x128xf32>
    %21 = vector.broadcast %20 : vector<1x128xf32> to vector<32x128xf32>
    %22 = arith.addf %19, %21 : vector<32x128xf32>
    %cst_17 = arith.constant 0.000000e+00 : f32
    %23 = vector.broadcast %cst_17 : f32 to vector<32x128xf32>
    %24 = arith.subf %23, %22 : vector<32x128xf32>
    %25 = math.exp %24 : vector<32x128xf32>
    %cst_18 = arith.constant 1.000000e+00 : f32
    %26 = vector.broadcast %cst_18 : f32 to vector<32x128xf32>
    %27 = arith.addf %26, %25 : vector<32x128xf32>
    %28 = tpu.reciprocal %27 {approx = true} : vector<32x128xf32> -> vector<32x128xf32>
    %29 = arith.mulf %22, %28 : vector<32x128xf32>
    %30 = arith.truncf %29 : vector<32x128xf32> to vector<32x128xbf16>
    %c0_19 = arith.constant 0 : index
    %c0_20 = arith.constant 0 : index
    %31 = vector.load %arg8[%c0_19, %c0_20] : memref<32x128xbf16, #tpu.memory_space<vmem>>, vector<32x128xbf16>
    tpu.vector_store %arg8[%c0_19, %c0_20], %30 {strides = array<i32>} : memref<32x128xbf16, #tpu.memory_space<vmem>>, vector<32x128xbf16>,
    return
  }
  func.func @transform_0(%arg0: i32) -> (i32, i32) {
    %c0_i32 = arith.constant 0 : i32
    %c0_i32_0 = arith.constant 0 : i32
    return %arg0, %c0_i32 : i32, i32
  }
  func.func @transform_1(%arg0: i32) -> (i32, i32) {
    %c0_i32 = arith.constant 0 : i32
    %c0_i32_0 = arith.constant 0 : i32
    return %arg0, %c0_i32 : i32, i32
  }
  func.func @transform_2(%arg0: i32) -> (i32, i32) {
    %c0_i32 = arith.constant 0 : i32
    %c0_i32_0 = arith.constant 0 : i32
    %c0_i32_1 = arith.constant 0 : i32
    return %c0_i32, %c0_i32_0 : i32, i32
  }
  func.func @transform_3(%arg0: i32) -> (i32, i32) {
    %c0_i32 = arith.constant 0 : i32
    %c0_i32_0 = arith.constant 0 : i32
    %c0_i32_1 = arith.constant 0 : i32
    return %c0_i32, %c0_i32_0 : i32, i32
  }
  func.func @transform_4(%arg0: i32) -> (i32, i32) {
    %c0_i32 = arith.constant 0 : i32
    %c0_i32_0 = arith.constant 0 : i32
    %c0_i32_1 = arith.constant 0 : i32
    return %c0_i32, %c0_i32_0 : i32, i32
  }
  func.func @transform_5(%arg0: i32) -> (i32, i32) {
    %c0_i32 = arith.constant 0 : i32
    %c0_i32_0 = arith.constant 0 : i32
    %c0_i32_1 = arith.constant 0 : i32
    return %c0_i32, %c0_i32_0 : i32, i32
  }
  func.func @transform_6(%arg0: i32) -> (i32, i32) {
    %c0_i32 = arith.constant 0 : i32
    %c0_i32_0 = arith.constant 0 : i32
    %c0_i32_1 = arith.constant 0 : i32
    return %c0_i32, %c0_i32_0 : i32, i32
  }
  func.func @transform_7(%arg0: i32) -> (i32, i32) {
    %c0_i32 = arith.constant 0 : i32
    %c0_i32_0 = arith.constant 0 : i32
    return %arg0, %c0_i32 : i32, i32
  }
}

module attributes {stable_mosaic.version = 11 : i64} {
  func.func @_fused_mm_kernel(%arg0: i32, %arg1: memref<128x192xf32, #tpu.memory_space<vmem>>, %arg2: memref<192x128xbf16, #tpu.memory_space<vmem>>, %arg3: memref<1x128xf32, #tpu.memory_space<vmem>>, %arg4: memref<128x128xbf16, #tpu.memory_space<vmem>>) attributes {dimension_semantics = [#tpu.dimension_semantics<parallel>], iteration_bounds = array<i64: 1>, scalar_prefetch = 0 : i64, scratch_operands = 0 : i64, tpu.core_type = #tpu.core_type<tc>, window_params = [{transform_indices = @transform_0, window_bounds = array<i64: 128, 192>}, {pipeline_mode = #tpu.pipeline_mode<synchronous>, transform_indices = @transform_1, window_bounds = array<i64: 192, 128>}, {pipeline_mode = #tpu.pipeline_mode<synchronous>, transform_indices = @transform_2, window_bounds = array<i64: 1, 128>}, {transform_indices = @transform_3, window_bounds = array<i64: 128, 128>}]} {
    %c0 = arith.constant 0 : index
    %c0_0 = arith.constant 0 : index
    %0 = vector.load %arg1[%c0, %c0_0] : memref<128x192xf32, #tpu.memory_space<vmem>>, vector<128x192xf32>
    %1 = arith.truncf %0 : vector<128x192xf32> to vector<128x192xbf16>
    %c0_1 = arith.constant 0 : index
    %c0_2 = arith.constant 0 : index
    %2 = vector.load %arg2[%c0_1, %c0_2] : memref<192x128xbf16, #tpu.memory_space<vmem>>, vector<192x128xbf16>
    %cst = arith.constant dense<0.000000e+00> : vector<128x128xf32>
    %3 = tpu.matmul %1, %2, %cst {dimension_numbers = #tpu.dot_dimension_numbers<[1], [0], [0], [1], [0, 0, 1, 1], [], []>} : vector<128x192xbf16>, vector<192x128xbf16>, vector<128x128xf32> -> vector<128x128xf32>
    %c0_3 = arith.constant 0 : index
    %c0_4 = arith.constant 0 : index
    %4 = vector.load %arg3[%c0_3, %c0_4] : memref<1x128xf32, #tpu.memory_space<vmem>>, vector<1x128xf32>
    %5 = vector.broadcast %4 : vector<1x128xf32> to vector<128x128xf32>
    %6 = arith.addf %3, %5 : vector<128x128xf32>
    %cst_5 = arith.constant 0.000000e+00 : f32
    %7 = vector.broadcast %cst_5 : f32 to vector<128x128xf32>
    %8 = arith.subf %7, %6 : vector<128x128xf32>
    %9 = math.exp %8 : vector<128x128xf32>
    %cst_6 = arith.constant 1.000000e+00 : f32
    %10 = vector.broadcast %cst_6 : f32 to vector<128x128xf32>
    %11 = arith.addf %10, %9 : vector<128x128xf32>
    %12 = tpu.reciprocal %11 {approx = true} : vector<128x128xf32> -> vector<128x128xf32>
    %13 = arith.mulf %6, %12 : vector<128x128xf32>
    %14 = arith.truncf %13 : vector<128x128xf32> to vector<128x128xbf16>
    %c0_7 = arith.constant 0 : index
    %c0_8 = arith.constant 0 : index
    %15 = vector.load %arg4[%c0_7, %c0_8] : memref<128x128xbf16, #tpu.memory_space<vmem>>, vector<128x128xbf16>
    tpu.vector_store %arg4[%c0_7, %c0_8], %14 {strides = array<i32>} : memref<128x128xbf16, #tpu.memory_space<vmem>>, vector<128x128xbf16>,
    return
  }
  func.func @transform_0(%arg0: i32) -> (i32, i32) {
    %c0_i32 = arith.constant 0 : i32
    %c0_i32_0 = arith.constant 0 : i32
    return %arg0, %c0_i32 : i32, i32
  }
  func.func @transform_1(%arg0: i32) -> (i32, i32) {
    %c0_i32 = arith.constant 0 : i32
    %c0_i32_0 = arith.constant 0 : i32
    %c0_i32_1 = arith.constant 0 : i32
    return %c0_i32, %c0_i32_0 : i32, i32
  }
  func.func @transform_2(%arg0: i32) -> (i32, i32) {
    %c0_i32 = arith.constant 0 : i32
    %c0_i32_0 = arith.constant 0 : i32
    %c0_i32_1 = arith.constant 0 : i32
    return %c0_i32, %c0_i32_0 : i32, i32
  }
  func.func @transform_3(%arg0: i32) -> (i32, i32) {
    %c0_i32 = arith.constant 0 : i32
    %c0_i32_0 = arith.constant 0 : i32
    return %arg0, %c0_i32 : i32, i32
  }
}

module attributes {stable_mosaic.version = 11 : i64} {
  func.func @_fused_mm_kernel(%arg0: i32, %arg1: memref<128x128xbf16, #tpu.memory_space<vmem>>, %arg2: memref<128x128xbf16, #tpu.memory_space<vmem>>, %arg3: memref<128x128xbf16, #tpu.memory_space<vmem>>, %arg4: memref<128x128xbf16, #tpu.memory_space<vmem>>, %arg5: memref<1x128xf32, #tpu.memory_space<vmem>>, %arg6: memref<128x128xbf16, #tpu.memory_space<vmem>>, %arg7: memref<1x128xf32, #tpu.memory_space<vmem>>, %arg8: memref<128x128xf32, #tpu.memory_space<vmem>>) attributes {dimension_semantics = [#tpu.dimension_semantics<parallel>], iteration_bounds = array<i64: 1>, scalar_prefetch = 0 : i64, scratch_operands = 0 : i64, tpu.core_type = #tpu.core_type<tc>, window_params = [{transform_indices = @transform_0, window_bounds = array<i64: 128, 128>}, {transform_indices = @transform_1, window_bounds = array<i64: 128, 128>}, {pipeline_mode = #tpu.pipeline_mode<synchronous>, transform_indices = @transform_2, window_bounds = array<i64: 128, 128>}, {pipeline_mode = #tpu.pipeline_mode<synchronous>, transform_indices = @transform_3, window_bounds = array<i64: 128, 128>}, {pipeline_mode = #tpu.pipeline_mode<synchronous>, transform_indices = @transform_4, window_bounds = array<i64: 1, 128>}, {pipeline_mode = #tpu.pipeline_mode<synchronous>, transform_indices = @transform_5, window_bounds = array<i64: 128, 128>}, {pipeline_mode = #tpu.pipeline_mode<synchronous>, transform_indices = @transform_6, window_bounds = array<i64: 1, 128>}, {transform_indices = @transform_7, window_bounds = array<i64: 128, 128>}]} {
    %c0 = arith.constant 0 : index
    %c0_0 = arith.constant 0 : index
    %0 = vector.load %arg1[%c0, %c0_0] : memref<128x128xbf16, #tpu.memory_space<vmem>>, vector<128x128xbf16>
    %c0_1 = arith.constant 0 : index
    %c0_2 = arith.constant 0 : index
    %1 = vector.load %arg3[%c0_1, %c0_2] : memref<128x128xbf16, #tpu.memory_space<vmem>>, vector<128x128xbf16>
    %cst = arith.constant dense<0.000000e+00> : vector<128x128xf32>
    %2 = tpu.matmul %0, %1, %cst {dimension_numbers = #tpu.dot_dimension_numbers<[1], [0], [0], [1], [0, 0, 1, 1], [], []>} : vector<128x128xbf16>, vector<128x128xbf16>, vector<128x128xf32> -> vector<128x128xf32>
    %c0_3 = arith.constant 0 : index
    %c0_4 = arith.constant 0 : index
    %3 = vector.load %arg2[%c0_3, %c0_4] : memref<128x128xbf16, #tpu.memory_space<vmem>>, vector<128x128xbf16>
    %c0_5 = arith.constant 0 : index
    %c0_6 = arith.constant 0 : index
    %4 = vector.load %arg4[%c0_5, %c0_6] : memref<128x128xbf16, #tpu.memory_space<vmem>>, vector<128x128xbf16>
    %cst_7 = arith.constant dense<0.000000e+00> : vector<128x128xf32>
    %5 = tpu.matmul %3, %4, %cst_7 {dimension_numbers = #tpu.dot_dimension_numbers<[1], [0], [0], [1], [0, 0, 1, 1], [], []>} : vector<128x128xbf16>, vector<128x128xbf16>, vector<128x128xf32> -> vector<128x128xf32>
    %6 = arith.addf %2, %5 : vector<128x128xf32>
    %c0_8 = arith.constant 0 : index
    %c0_9 = arith.constant 0 : index
    %7 = vector.load %arg5[%c0_8, %c0_9] : memref<1x128xf32, #tpu.memory_space<vmem>>, vector<1x128xf32>
    %8 = vector.broadcast %7 : vector<1x128xf32> to vector<128x128xf32>
    %9 = arith.addf %6, %8 : vector<128x128xf32>
    %cst_10 = arith.constant 0.000000e+00 : f32
    %10 = vector.broadcast %cst_10 : f32 to vector<128x128xf32>
    %11 = arith.subf %10, %9 : vector<128x128xf32>
    %12 = math.exp %11 : vector<128x128xf32>
    %cst_11 = arith.constant 1.000000e+00 : f32
    %13 = vector.broadcast %cst_11 : f32 to vector<128x128xf32>
    %14 = arith.addf %13, %12 : vector<128x128xf32>
    %15 = tpu.reciprocal %14 {approx = true} : vector<128x128xf32> -> vector<128x128xf32>
    %16 = arith.mulf %9, %15 : vector<128x128xf32>
    %17 = arith.truncf %16 : vector<128x128xf32> to vector<128x128xbf16>
    %c0_12 = arith.constant 0 : index
    %c0_13 = arith.constant 0 : index
    %18 = vector.load %arg6[%c0_12, %c0_13] : memref<128x128xbf16, #tpu.memory_space<vmem>>, vector<128x128xbf16>
    %cst_14 = arith.constant dense<0.000000e+00> : vector<128x128xf32>
    %19 = tpu.matmul %17, %18, %cst_14 {dimension_numbers = #tpu.dot_dimension_numbers<[1], [0], [0], [1], [0, 0, 1, 1], [], []>} : vector<128x128xbf16>, vector<128x128xbf16>, vector<128x128xf32> -> vector<128x128xf32>
    %c0_15 = arith.constant 0 : index
    %c0_16 = arith.constant 0 : index
    %20 = vector.load %arg7[%c0_15, %c0_16] : memref<1x128xf32, #tpu.memory_space<vmem>>, vector<1x128xf32>
    %21 = vector.broadcast %20 : vector<1x128xf32> to vector<128x128xf32>
    %22 = arith.addf %19, %21 : vector<128x128xf32>
    %c0_17 = arith.constant 0 : index
    %c0_18 = arith.constant 0 : index
    %23 = vector.load %arg8[%c0_17, %c0_18] : memref<128x128xf32, #tpu.memory_space<vmem>>, vector<128x128xf32>
    tpu.vector_store %arg8[%c0_17, %c0_18], %22 {strides = array<i32>} : memref<128x128xf32, #tpu.memory_space<vmem>>, vector<128x128xf32>,
    return
  }
  func.func @transform_0(%arg0: i32) -> (i32, i32) {
    %c0_i32 = arith.constant 0 : i32
    %c0_i32_0 = arith.constant 0 : i32
    return %arg0, %c0_i32 : i32, i32
  }
  func.func @transform_1(%arg0: i32) -> (i32, i32) {
    %c0_i32 = arith.constant 0 : i32
    %c0_i32_0 = arith.constant 0 : i32
    return %arg0, %c0_i32 : i32, i32
  }
  func.func @transform_2(%arg0: i32) -> (i32, i32) {
    %c0_i32 = arith.constant 0 : i32
    %c0_i32_0 = arith.constant 0 : i32
    %c0_i32_1 = arith.constant 0 : i32
    return %c0_i32, %c0_i32_0 : i32, i32
  }
  func.func @transform_3(%arg0: i32) -> (i32, i32) {
    %c0_i32 = arith.constant 0 : i32
    %c0_i32_0 = arith.constant 0 : i32
    %c0_i32_1 = arith.constant 0 : i32
    return %c0_i32, %c0_i32_0 : i32, i32
  }
  func.func @transform_4(%arg0: i32) -> (i32, i32) {
    %c0_i32 = arith.constant 0 : i32
    %c0_i32_0 = arith.constant 0 : i32
    %c0_i32_1 = arith.constant 0 : i32
    return %c0_i32, %c0_i32_0 : i32, i32
  }
  func.func @transform_5(%arg0: i32) -> (i32, i32) {
    %c0_i32 = arith.constant 0 : i32
    %c0_i32_0 = arith.constant 0 : i32
    %c0_i32_1 = arith.constant 0 : i32
    return %c0_i32, %c0_i32_0 : i32, i32
  }
  func.func @transform_6(%arg0: i32) -> (i32, i32) {
    %c0_i32 = arith.constant 0 : i32
    %c0_i32_0 = arith.constant 0 : i32
    %c0_i32_1 = arith.constant 0 : i32
    return %c0_i32, %c0_i32_0 : i32, i32
  }
  func.func @transform_7(%arg0: i32) -> (i32, i32) {
    %c0_i32 = arith.constant 0 : i32
    %c0_i32_0 = arith.constant 0 : i32
    return %arg0, %c0_i32 : i32, i32
  }
}

module attributes {stable_mosaic.version = 11 : i64} {
  func.func @_fused_mm_kernel(%arg0: i32, %arg1: memref<32x128xbf16, #tpu.memory_space<vmem>>, %arg2: memref<128x256xbf16, #tpu.memory_space<vmem>>, %arg3: memref<1x256xf32, #tpu.memory_space<vmem>>, %arg4: memref<256x128xbf16, #tpu.memory_space<vmem>>, %arg5: memref<1x128xf32, #tpu.memory_space<vmem>>, %arg6: memref<32x128xf32, #tpu.memory_space<vmem>>) attributes {dimension_semantics = [#tpu.dimension_semantics<parallel>], iteration_bounds = array<i64: 1>, scalar_prefetch = 0 : i64, scratch_operands = 0 : i64, tpu.core_type = #tpu.core_type<tc>, window_params = [{transform_indices = @transform_0, window_bounds = array<i64: 32, 128>}, {pipeline_mode = #tpu.pipeline_mode<synchronous>, transform_indices = @transform_1, window_bounds = array<i64: 128, 256>}, {pipeline_mode = #tpu.pipeline_mode<synchronous>, transform_indices = @transform_2, window_bounds = array<i64: 1, 256>}, {pipeline_mode = #tpu.pipeline_mode<synchronous>, transform_indices = @transform_3, window_bounds = array<i64: 256, 128>}, {pipeline_mode = #tpu.pipeline_mode<synchronous>, transform_indices = @transform_4, window_bounds = array<i64: 1, 128>}, {transform_indices = @transform_5, window_bounds = array<i64: 32, 128>}]} {
    %c0 = arith.constant 0 : index
    %c0_0 = arith.constant 0 : index
    %0 = vector.load %arg1[%c0, %c0_0] : memref<32x128xbf16, #tpu.memory_space<vmem>>, vector<32x128xbf16>
    %c0_1 = arith.constant 0 : index
    %c0_2 = arith.constant 0 : index
    %1 = vector.load %arg2[%c0_1, %c0_2] : memref<128x256xbf16, #tpu.memory_space<vmem>>, vector<128x256xbf16>
    %cst = arith.constant dense<0.000000e+00> : vector<32x256xf32>
    %2 = tpu.matmul %0, %1, %cst {dimension_numbers = #tpu.dot_dimension_numbers<[1], [0], [0], [1], [0, 0, 1, 1], [], []>} : vector<32x128xbf16>, vector<128x256xbf16>, vector<32x256xf32> -> vector<32x256xf32>
    %c0_3 = arith.constant 0 : index
    %c0_4 = arith.constant 0 : index
    %3 = vector.load %arg3[%c0_3, %c0_4] : memref<1x256xf32, #tpu.memory_space<vmem>>, vector<1x256xf32>
    %4 = vector.broadcast %3 : vector<1x256xf32> to vector<32x256xf32>
    %5 = arith.addf %2, %4 : vector<32x256xf32>
    %cst_5 = arith.constant 0.000000e+00 : f32
    %6 = vector.broadcast %cst_5 : f32 to vector<32x256xf32>
    %7 = arith.subf %6, %5 : vector<32x256xf32>
    %8 = math.exp %7 : vector<32x256xf32>
    %cst_6 = arith.constant 1.000000e+00 : f32
    %9 = vector.broadcast %cst_6 : f32 to vector<32x256xf32>
    %10 = arith.addf %9, %8 : vector<32x256xf32>
    %11 = tpu.reciprocal %10 {approx = true} : vector<32x256xf32> -> vector<32x256xf32>
    %12 = arith.mulf %5, %11 : vector<32x256xf32>
    %13 = arith.truncf %12 : vector<32x256xf32> to vector<32x256xbf16>
    %c0_7 = arith.constant 0 : index
    %c0_8 = arith.constant 0 : index
    %14 = vector.load %arg4[%c0_7, %c0_8] : memref<256x128xbf16, #tpu.memory_space<vmem>>, vector<256x128xbf16>
    %cst_9 = arith.constant dense<0.000000e+00> : vector<32x128xf32>
    %15 = tpu.matmul %13, %14, %cst_9 {dimension_numbers = #tpu.dot_dimension_numbers<[1], [0], [0], [1], [0, 0, 1, 1], [], []>} : vector<32x256xbf16>, vector<256x128xbf16>, vector<32x128xf32> -> vector<32x128xf32>
    %c0_10 = arith.constant 0 : index
    %c0_11 = arith.constant 0 : index
    %16 = vector.load %arg5[%c0_10, %c0_11] : memref<1x128xf32, #tpu.memory_space<vmem>>, vector<1x128xf32>
    %17 = vector.broadcast %16 : vector<1x128xf32> to vector<32x128xf32>
    %18 = arith.addf %15, %17 : vector<32x128xf32>
    %c0_12 = arith.constant 0 : index
    %c0_13 = arith.constant 0 : index
    %19 = vector.load %arg6[%c0_12, %c0_13] : memref<32x128xf32, #tpu.memory_space<vmem>>, vector<32x128xf32>
    tpu.vector_store %arg6[%c0_12, %c0_13], %18 {strides = array<i32>} : memref<32x128xf32, #tpu.memory_space<vmem>>, vector<32x128xf32>,
    return
  }
  func.func @transform_0(%arg0: i32) -> (i32, i32) {
    %c0_i32 = arith.constant 0 : i32
    %c0_i32_0 = arith.constant 0 : i32
    return %arg0, %c0_i32 : i32, i32
  }
  func.func @transform_1(%arg0: i32) -> (i32, i32) {
    %c0_i32 = arith.constant 0 : i32
    %c0_i32_0 = arith.constant 0 : i32
    %c0_i32_1 = arith.constant 0 : i32
    return %c0_i32, %c0_i32_0 : i32, i32
  }
  func.func @transform_2(%arg0: i32) -> (i32, i32) {
    %c0_i32 = arith.constant 0 : i32
    %c0_i32_0 = arith.constant 0 : i32
    %c0_i32_1 = arith.constant 0 : i32
    return %c0_i32, %c0_i32_0 : i32, i32
  }
  func.func @transform_3(%arg0: i32) -> (i32, i32) {
    %c0_i32 = arith.constant 0 : i32
    %c0_i32_0 = arith.constant 0 : i32
    %c0_i32_1 = arith.constant 0 : i32
    return %c0_i32, %c0_i32_0 : i32, i32
  }
  func.func @transform_4(%arg0: i32) -> (i32, i32) {
    %c0_i32 = arith.constant 0 : i32
    %c0_i32_0 = arith.constant 0 : i32
    %c0_i32_1 = arith.constant 0 : i32
    return %c0_i32, %c0_i32_0 : i32, i32
  }
  func.func @transform_5(%arg0: i32) -> (i32, i32) {
    %c0_i32 = arith.constant 0 : i32
    %c0_i32_0 = arith.constant 0 : i32
    return %arg0, %c0_i32 : i32, i32
  }
}

module attributes {stable_mosaic.version = 11 : i64} {
  func.func @_fused_mm_kernel(%arg0: i32, %arg1: memref<8x256xbf16, #tpu.memory_space<vmem>>, %arg2: memref<256x512xbf16, #tpu.memory_space<vmem>>, %arg3: memref<1x512xf32, #tpu.memory_space<vmem>>, %arg4: memref<512x128xbf16, #tpu.memory_space<vmem>>, %arg5: memref<1x128xf32, #tpu.memory_space<vmem>>, %arg6: memref<8x128xf32, #tpu.memory_space<vmem>>) attributes {dimension_semantics = [#tpu.dimension_semantics<parallel>], iteration_bounds = array<i64: 1>, scalar_prefetch = 0 : i64, scratch_operands = 0 : i64, tpu.core_type = #tpu.core_type<tc>, window_params = [{transform_indices = @transform_0, window_bounds = array<i64: 8, 256>}, {pipeline_mode = #tpu.pipeline_mode<synchronous>, transform_indices = @transform_1, window_bounds = array<i64: 256, 512>}, {pipeline_mode = #tpu.pipeline_mode<synchronous>, transform_indices = @transform_2, window_bounds = array<i64: 1, 512>}, {pipeline_mode = #tpu.pipeline_mode<synchronous>, transform_indices = @transform_3, window_bounds = array<i64: 512, 128>}, {pipeline_mode = #tpu.pipeline_mode<synchronous>, transform_indices = @transform_4, window_bounds = array<i64: 1, 128>}, {transform_indices = @transform_5, window_bounds = array<i64: 8, 128>}]} {
    %c0 = arith.constant 0 : index
    %c0_0 = arith.constant 0 : index
    %0 = vector.load %arg1[%c0, %c0_0] : memref<8x256xbf16, #tpu.memory_space<vmem>>, vector<8x256xbf16>
    %c0_1 = arith.constant 0 : index
    %c0_2 = arith.constant 0 : index
    %1 = vector.load %arg2[%c0_1, %c0_2] : memref<256x512xbf16, #tpu.memory_space<vmem>>, vector<256x512xbf16>
    %cst = arith.constant dense<0.000000e+00> : vector<8x512xf32>
    %2 = tpu.matmul %0, %1, %cst {dimension_numbers = #tpu.dot_dimension_numbers<[1], [0], [0], [1], [0, 0, 1, 1], [], []>} : vector<8x256xbf16>, vector<256x512xbf16>, vector<8x512xf32> -> vector<8x512xf32>
    %c0_3 = arith.constant 0 : index
    %c0_4 = arith.constant 0 : index
    %3 = vector.load %arg3[%c0_3, %c0_4] : memref<1x512xf32, #tpu.memory_space<vmem>>, vector<1x512xf32>
    %4 = vector.broadcast %3 : vector<1x512xf32> to vector<8x512xf32>
    %5 = arith.addf %2, %4 : vector<8x512xf32>
    %cst_5 = arith.constant 0.000000e+00 : f32
    %6 = vector.broadcast %cst_5 : f32 to vector<8x512xf32>
    %7 = arith.subf %6, %5 : vector<8x512xf32>
    %8 = math.exp %7 : vector<8x512xf32>
    %cst_6 = arith.constant 1.000000e+00 : f32
    %9 = vector.broadcast %cst_6 : f32 to vector<8x512xf32>
    %10 = arith.addf %9, %8 : vector<8x512xf32>
    %11 = tpu.reciprocal %10 {approx = true} : vector<8x512xf32> -> vector<8x512xf32>
    %12 = arith.mulf %5, %11 : vector<8x512xf32>
    %13 = arith.truncf %12 : vector<8x512xf32> to vector<8x512xbf16>
    %c0_7 = arith.constant 0 : index
    %c0_8 = arith.constant 0 : index
    %14 = vector.load %arg4[%c0_7, %c0_8] : memref<512x128xbf16, #tpu.memory_space<vmem>>, vector<512x128xbf16>
    %cst_9 = arith.constant dense<0.000000e+00> : vector<8x128xf32>
    %15 = tpu.matmul %13, %14, %cst_9 {dimension_numbers = #tpu.dot_dimension_numbers<[1], [0], [0], [1], [0, 0, 1, 1], [], []>} : vector<8x512xbf16>, vector<512x128xbf16>, vector<8x128xf32> -> vector<8x128xf32>
    %c0_10 = arith.constant 0 : index
    %c0_11 = arith.constant 0 : index
    %16 = vector.load %arg5[%c0_10, %c0_11] : memref<1x128xf32, #tpu.memory_space<vmem>>, vector<1x128xf32>
    %17 = vector.broadcast %16 : vector<1x128xf32> to vector<8x128xf32>
    %18 = arith.addf %15, %17 : vector<8x128xf32>
    %c0_12 = arith.constant 0 : index
    %c0_13 = arith.constant 0 : index
    %19 = vector.load %arg6[%c0_12, %c0_13] : memref<8x128xf32, #tpu.memory_space<vmem>>, vector<8x128xf32>
    tpu.vector_store %arg6[%c0_12, %c0_13], %18 {strides = array<i32>} : memref<8x128xf32, #tpu.memory_space<vmem>>, vector<8x128xf32>,
    return
  }
  func.func @transform_0(%arg0: i32) -> (i32, i32) {
    %c0_i32 = arith.constant 0 : i32
    %c0_i32_0 = arith.constant 0 : i32
    return %arg0, %c0_i32 : i32, i32
  }
  func.func @transform_1(%arg0: i32) -> (i32, i32) {
    %c0_i32 = arith.constant 0 : i32
    %c0_i32_0 = arith.constant 0 : i32
    %c0_i32_1 = arith.constant 0 : i32
    return %c0_i32, %c0_i32_0 : i32, i32
  }
  func.func @transform_2(%arg0: i32) -> (i32, i32) {
    %c0_i32 = arith.constant 0 : i32
    %c0_i32_0 = arith.constant 0 : i32
    %c0_i32_1 = arith.constant 0 : i32
    return %c0_i32, %c0_i32_0 : i32, i32
  }
  func.func @transform_3(%arg0: i32) -> (i32, i32) {
    %c0_i32 = arith.constant 0 : i32
    %c0_i32_0 = arith.constant 0 : i32
    %c0_i32_1 = arith.constant 0 : i32
    return %c0_i32, %c0_i32_0 : i32, i32
  }
  func.func @transform_4(%arg0: i32) -> (i32, i32) {
    %c0_i32 = arith.constant 0 : i32
    %c0_i32_0 = arith.constant 0 : i32
    %c0_i32_1 = arith.constant 0 : i32
    return %c0_i32, %c0_i32_0 : i32, i32
  }
  func.func @transform_5(%arg0: i32) -> (i32, i32) {
    %c0_i32 = arith.constant 0 : i32
    %c0_i32_0 = arith.constant 0 : i32
    return %arg0, %c0_i32 : i32, i32
  }
}

</mosaic_0001>

<llo_original>
// kernel: tpu_custom_call.1
$region0: #{tpu_custom_call.1}
  #allocation0 [shape = 'u32[]', space=smem, size = 0x4, offset = 0x4, fixed_abs, tag = 'smem constant byte address 0x4 - core index']
  #allocation1 [shape = 'u32[144,128]{1,0:T(1,128)}', space=vmem, size = 0x12000, scoped, tag = 'internal scratch']
  %s0 = inlined_call_operand.hbm [shape: f32[16,128], index: 0, kind: input, shape index: {}]
  %s1 = inlined_call_operand.hbm [shape: f32[8,128], index: 1, kind: input, shape index: {}]
  %s2 = inlined_call_operand.hbm [shape: f32[16,128], index: 2, kind: output, shape index: {}]
  %s3 = sld [smem:[#allocation0]]
  $region49: #{tpu_custom_call.1} parent=0
    _
  %s5 = ssub.s32 1, %s3
  %s6 = scalar_select 0, %s5, %s3
  $region1: #{tpu_custom_call.1} parent=0
    #allocation2 [shape = 'u8[8192]{0}', space=vmem, size = 0x2000, scoped, tag = 'input window, operand 0']
    #allocation3 [shape = 's32[2]{0}', space=sflag, size = 0x8, scoped, tag = 'scoped memory for tpu_custom_call.1']
    #allocation4 [shape = 's32[2]{0}', space=sflag, size = 0x8, scoped, tag = 'scoped memory for tpu_custom_call.1']
    #allocation5 [shape = 'u8[4096]{0}', space=vmem, size = 0x1000, scoped, tag = 'input window, operand 1, single buffered']
    #allocation6 [shape = 's32[1]{0}', space=sflag, size = 0x4, scoped, tag = 'scoped memory for tpu_custom_call.1']
    #allocation7 [shape = 'u8[8192]{0}', space=vmem, size = 0x2000, scoped, tag = 'output window, operand 0']
    %7 = vsyncpa [#allocation3], 0
    %s8 = scalar_lea.sflag [#allocation3], 1
    %9 = vsyncpa %s8, 0
    %10 = vsyncpa [#allocation6], 0
    %11 = vsyncpa [#allocation4], 0
    %s12 = scalar_lea.sflag [#allocation4], 1
    %13 = vsyncpa %s12, 0
    loop: start=0, step=1, limit=4
    $region2: #{tpu_custom_call.1} parent=1 // loop_pre_header
      _
    $region3: #{tpu_custom_call.1} parent=1 // loop_header
      %s15 = sphi 0, %s19
      %p16 = scmp.ge.s32.totalorder %s15, 4
      %s25 = sphi 0, %s27
      %s28 = sphi 0, %s25
      %s29 = sphi 0, %s28
      %s45 = sphi 0, %s29
      %s49 = sphi 0, %s49
      %s51 = sphi 0, %s49
      %s52 = sphi 0, %s51
      %s66 = sphi 0, %s52
      %s72 = sphi 0, %s74
      %s75 = sphi 0, %s72
      %s76 = sphi 0, %s75
      %s92 = sphi 0, %s76
    $region4: #{tpu_custom_call.1} parent=1 // loop_header_branch
      %18 = sbr.rel (%p16) target = $region8
    $region5: #{tpu_custom_call.1} parent=1 // loop_body
      %s20 = ssub.s32 %s15, 1
      %s21 = ssub.s32 %s15, 2
      %s22 = sadd.s32 %s15, 1
      %s23 = ssub.s32 %s15, %s22
      %p24 = scmp.eq.s32.totalorder %s23, 0
      %s26 = sadd.s32 %s25, 1
      %s27 = scalar_select %p24, %s25, %s26
      %p30 = pneg %p24
      %p31 = scmp.eq.s32.totalorder %s15, 1
      %p32 = por %p30, %p31
      %p33 = scmp.ne.s32.totalorder %s25, %s28
      %p34 = scmp.eq.s32.totalorder %s15, 0
      %p35 = por %p33, %p34
      %p36 = scmp.ne.s32.totalorder %s25, %s28
      %p37 = scmp.eq.s32.totalorder %s20, 1
      %p38 = por %p36, %p37
      %p39 = scmp.ne.s32.totalorder %s28, %s29
      %p40 = scmp.eq.s32.totalorder %s20, 0
      %p41 = por %p39, %p40
      %p42 = scmp.ne.s32.totalorder %s28, %s29
      %p43 = scmp.eq.s32.totalorder %s21, 1
      %p44 = por %p42, %p43
      %p46 = scmp.ne.s32.totalorder %s29, %s45
      %p47 = scmp.eq.s32.totalorder %s21, 0
      %p48 = por %p46, %p47
      %s50 = sadd.s32 %s49, 1
      %p53 = scmp.eq.s32.totalorder %s15, 1
      %p54 = scmp.ne.s32.totalorder %s49, %s51
      %p55 = scmp.eq.s32.totalorder %s15, 0
      %p56 = por %p54, %p55
      %p57 = scmp.ne.s32.totalorder %s49, %s51
      %p58 = scmp.eq.s32.totalorder %s20, 1
      %p59 = por %p57, %p58
      %p60 = scmp.ne.s32.totalorder %s51, %s52
      %p61 = scmp.eq.s32.totalorder %s20, 0
      %p62 = por %p60, %p61
      %p63 = scmp.ne.s32.totalorder %s51, %s52
      %p64 = scmp.eq.s32.totalorder %s21, 1
      %p65 = por %p63, %p64
      %p67 = scmp.ne.s32.totalorder %s52, %s66
      %p68 = scmp.eq.s32.totalorder %s21, 0
      %p69 = por %p67, %p68
      %s70 = ssub.s32 %s15, %s22
      %p71 = scmp.eq.s32.totalorder %s70, 0
      %s73 = sadd.s32 %s72, 1
      %s74 = scalar_select %p71, %s72, %s73
      %p77 = pneg %p71
      %p78 = scmp.eq.s32.totalorder %s15, 1
      %p79 = por %p77, %p78
      %p80 = scmp.ne.s32.totalorder %s72, %s75
      %p81 = scmp.eq.s32.totalorder %s15, 0
      %p82 = por %p80, %p81
      %p83 = scmp.ne.s32.totalorder %s72, %s75
      %p84 = scmp.eq.s32.totalorder %s20, 1
      %p85 = por %p83, %p84
      %p86 = scmp.ne.s32.totalorder %s75, %s76
      %p87 = scmp.eq.s32.totalorder %s20, 0
      %p88 = por %p86, %p87
      %p89 = scmp.ne.s32.totalorder %s75, %s76
      %p90 = scmp.eq.s32.totalorder %s21, 1
      %p91 = por %p89, %p90
      %p93 = scmp.ne.s32.totalorder %s76, %s92
      %p94 = scmp.eq.s32.totalorder %s21, 0
      %p95 = por %p93, %p94
      %p96 = scmp.le.s32.totalorder 1, %s15
      %p97 = scmp.lt.s32.totalorder %s15, 3
      %p98 = pnand %p96, %p97
      %p99 = pneg %p98
      // Predicated region
      $region9: #{tpu_custom_call.1} parent=5 // pred_check
        _
      $region10: #{tpu_custom_call.1} parent=5 // pred_check_branch
        %101 = sbr.rel (%p98) target = $region12
      $region11: #{tpu_custom_call.1} parent=5 // pred_region
        %s102 = ssub.s32 %s15, 1
        // Predicated region
        $region13: #{tpu_custom_call.1} parent=11 // pred_check
          %p103 = pneg %p62
        $region14: #{tpu_custom_call.1} parent=11 // pred_check_branch
          %105 = sbr.rel (%p103) target = $region16
        $region15: #{tpu_custom_call.1} parent=11 // pred_region
          %s107 = ssub.s32 128, 128
          %108 = vsyncadd [#allocation6], %s107
          %s110 = sshll.u32 [#allocation5], 4
          %s111 = int_to_ptr.vmem [resolvable:$true] %s110
          %113 = dma.hbm_to_vmem [thread:$0]  %s1, 128, %s111, [#allocation6]
        $region16: #{tpu_custom_call.1} parent=11 // pred_fallthru
          _
      $region12: #{tpu_custom_call.1} parent=5 // pred_fallthru
        _
      %p114 = scmp.lt.s32.totalorder %s15, 2
      // Predicated region
      $region17: #{tpu_custom_call.1} parent=5 // pred_check
        %p115 = pneg %p114
      $region18: #{tpu_custom_call.1} parent=5 // pred_check_branch
        %117 = sbr.rel (%p115) target = $region20
      $region19: #{tpu_custom_call.1} parent=5 // pred_region
        // Predicated region
        $region21: #{tpu_custom_call.1} parent=19 // pred_check
          %p118 = pneg %p35
        $region22: #{tpu_custom_call.1} parent=19 // pred_check_branch
          %120 = sbr.rel (%p118) target = $region24
        $region23: #{tpu_custom_call.1} parent=19 // pred_region
          %s121 = sand.u32 %s25, 1
          %s122 = scalar_lea.sflag [#allocation3], %s121
          %s123 = sand.u32 %s25, 1
          %s124 = smul.addr %s123, 8
          %s125 = scalar_lea.vmem [#allocation2], %s124
          %s127 = ssub.s32 128, 128
          %128 = vsyncadd %s122, %s127
          %s129 = smul.addr %s15, 128
          %s130 = scalar_lea.hbm %s0, %s129
          %s132 = sshll.u32 %s125, 4
          %s133 = int_to_ptr.vmem [resolvable:$true] %s132
          %135 = dma.hbm_to_vmem [thread:$0]  %s130, 128, %s133, %s122
        $region24: #{tpu_custom_call.1} parent=19 // pred_fallthru
          _
      $region20: #{tpu_custom_call.1} parent=5 // pred_fallthru
        _
      %p136 = scmp.le.s32.totalorder 1, %s15
      %p137 = scmp.lt.s32.totalorder %s15, 3
      %p138 = pnand %p136, %p137
      %p139 = pneg %p138
      // Predicated region
      $region25: #{tpu_custom_call.1} parent=5 // pred_check
        _
      $region26: #{tpu_custom_call.1} parent=5 // pred_check_branch
        %141 = sbr.rel (%p138) target = $region28
      $region27: #{tpu_custom_call.1} parent=5 // pred_region
        %s142 = ssub.s32 %s15, 1
        %s143 = sand.u32 %s28, 1
        %s144 = scalar_lea.sflag [#allocation3], %s143
        %s145 = sand.u32 %s28, 1
        %s146 = smul.addr %s145, 8
        %s147 = scalar_lea.vmem [#allocation2], %s146
        // Predicated region
        $region29: #{tpu_custom_call.1} parent=27 // pred_check
          %p148 = pneg %p41
        $region30: #{tpu_custom_call.1} parent=27 // pred_check_branch
          %150 = sbr.rel (%p148) target = $region32
        $region31: #{tpu_custom_call.1} parent=27 // pred_region
          %151 = dma.done %s144, 128
        $region32: #{tpu_custom_call.1} parent=27 // pred_fallthru
          _
        // Predicated region
        $region33: #{tpu_custom_call.1} parent=27 // pred_check
          %p152 = pneg %p62
        $region34: #{tpu_custom_call.1} parent=27 // pred_check_branch
          %154 = sbr.rel (%p152) target = $region36
        $region35: #{tpu_custom_call.1} parent=27 // pred_region
          %155 = dma.done [#allocation6], 128
        $region36: #{tpu_custom_call.1} parent=27 // pred_fallthru
          _
        %s156 = sand.u32 %s28, 1
        %s157 = scalar_lea.sflag [#allocation3], %s156
        %s158 = sand.u32 %s28, 1
        %s159 = smul.addr %s158, 8
        %s160 = scalar_lea.vmem [#allocation2], %s159
        %p161 = pneg %p41
        %p162 = pneg %p38
        %p163 = pneg %p62
        %p164 = pneg %p59
        %p165 = pneg %p88
        %p166 = pneg %p85
        %s167 = sand.u32 %s75, 1
        %s168 = scalar_lea.sflag [#allocation4], %s167
        %s169 = sand.u32 %s75, 1
        %s170 = smul.addr %s169, 8
        %s171 = scalar_lea.vmem [#allocation7], %s170
        %v172 = vld [vmem:[%s147] sm:$0xff]
        %v173 = vld [vmem:[#allocation5] sm:$0xff]
        %v174 = vadd.f32 %v172, %v173
        %175 = vst [vmem:[%s171] sm:$0xff] %v174
        %s176 = sand.u32 %s75, 1
        %s177 = scalar_lea.sflag [#allocation4], %s176
        %s178 = sand.u32 %s75, 1
        %s179 = smul.addr %s178, 8
        %s180 = scalar_lea.vmem [#allocation7], %s179
        // Predicated region
        $region37: #{tpu_custom_call.1} parent=27 // pred_check
          %p181 = pneg %p85
        $region38: #{tpu_custom_call.1} parent=27 // pred_check_branch
          %183 = sbr.rel (%p181) target = $region40
        $region39: #{tpu_custom_call.1} parent=27 // pred_region
          %s185 = ssub.s32 128, 128
          %186 = vsyncadd %s177, %s185
          %s187 = smul.addr %s20, 128
          %s188 = scalar_lea.hbm %s2, %s187
          %s190 = sshll.u32 %s180, 4
          %s191 = int_to_ptr.vmem [resolvable:$true] %s190
          %193 = dma.vmem_to_hbm [thread:$0]  %s191, 128, %s188, %s177
        $region40: #{tpu_custom_call.1} parent=27 // pred_fallthru
          _
      $region28: #{tpu_custom_call.1} parent=5 // pred_fallthru
        _
      %p194 = scmp.le.s32.totalorder 2, %s15
      // Predicated region
      $region41: #{tpu_custom_call.1} parent=5 // pred_check
        %p195 = pneg %p194
      $region42: #{tpu_custom_call.1} parent=5 // pred_check_branch
        %197 = sbr.rel (%p195) target = $region44
      $region43: #{tpu_custom_call.1} parent=5 // pred_region
        %s198 = ssub.s32 %s15, 2
        // Predicated region
        $region45: #{tpu_custom_call.1} parent=43 // pred_check
          %p199 = pneg %p91
        $region46: #{tpu_custom_call.1} parent=43 // pred_check_branch
          %201 = sbr.rel (%p199) target = $region48
        $region47: #{tpu_custom_call.1} parent=43 // pred_region
          %s202 = sand.u32 %s76, 1
          %s203 = scalar_lea.sflag [#allocation4], %s202
          %s204 = sand.u32 %s76, 1
          %s205 = smul.addr %s204, 8
          %s206 = scalar_lea.vmem [#allocation7], %s205
          %207 = dma.done %s203, 128
        $region48: #{tpu_custom_call.1} parent=43 // pred_fallthru
          _
      $region44: #{tpu_custom_call.1} parent=5 // pred_fallthru
        _
    $region6: #{tpu_custom_call.1} parent=1 // loop_footer
      %s19 = sadd.s32 1, %s15
    $region7: #{tpu_custom_call.1} parent=1 // loop_footer_branch
      %14 = sbr.rel target = $region3
    $region8: #{tpu_custom_call.1} parent=1 // loop_exit
      _
    %208 = vsyncpa [#allocation3], 1
    %s209 = scalar_lea.sflag [#allocation3], 1
    %210 = vsyncpa %s209, 1
    %211 = vsyncpa [#allocation6], 1
    %212 = vsyncpa [#allocation4], 1
    %s213 = scalar_lea.sflag [#allocation4], 1
    %214 = vsyncpa %s213, 1

// kernel: _lambda_.14
$region0: #{_lambda_.14}
  #allocation0 [shape = 'u32[]', space=smem, size = 0x4, offset = 0x4, fixed_abs, tag = 'smem constant byte address 0x4 - core index']
  #allocation1 [shape = 'u32[144,128]{1,0:T(1,128)}', space=vmem, size = 0x12000, scoped, tag = 'internal scratch']
  %s0 = inlined_call_operand.vmem [shape: bf16[8,512], index: 0, kind: input, shape index: {}]
  %s1 = inlined_call_operand.vmem [shape: bf16[512,256], index: 1, kind: input, shape index: {}]
  %s2 = inlined_call_operand.vmem [shape: f32[1,256], index: 2, kind: input, shape index: {}]
  %s3 = inlined_call_operand.vmem [shape: bf16[8,256], index: 3, kind: output, shape index: {}]
  %s4 = sld [smem:[#allocation0]]
  $region22: #{_lambda_.14} parent=0
    _
  %s6 = ssub.s32 1, %s4
  %s7 = scalar_select 0, %s6, %s4
  // Predicated region
  $region2: #{_lambda_.14} parent=0 // pred_check
    _
  $region3: #{_lambda_.14} parent=0 // pred_check_branch
    %9 = sbr.rel (0) target = $region5
  $region4: #{_lambda_.14} parent=0 // pred_region
    _
  $region5: #{_lambda_.14} parent=0 // pred_fallthru
    _
  // Predicated region
  $region6: #{_lambda_.14} parent=0 // pred_check
    _
  $region7: #{_lambda_.14} parent=0 // pred_check_branch
    %11 = sbr.rel (0) target = $region9
  $region8: #{_lambda_.14} parent=0 // pred_region
    _
  $region9: #{_lambda_.14} parent=0 // pred_fallthru
    _
  // Predicated region
  $region10: #{_lambda_.14} parent=0 // pred_check
    _
  $region11: #{_lambda_.14} parent=0 // pred_check_branch
    %13 = sbr.rel (0) target = $region13
  $region12: #{_lambda_.14} parent=0 // pred_region
    _
  $region13: #{_lambda_.14} parent=0 // pred_fallthru
    _
  %v14 = vld [vmem:[%s0] sm:$0xff]
  %v15 = vld [vmem:[%s0 + $0x8] sm:$0xff]
  %v16 = vld [vmem:[%s1] sm:$0xff]
  %v17 = vld [vmem:[%s1 + $0x8] sm:$0xff]
  %v18 = vld [vmem:[%s1 + $0x10] sm:$0xff]
  %v19 = vld [vmem:[%s1 + $0x18] sm:$0xff]
  %v20 = vld [vmem:[%s1 + $0x20] sm:$0xff]
  %v21 = vld [vmem:[%s1 + $0x28] sm:$0xff]
  %v22 = vld [vmem:[%s1 + $0x30] sm:$0xff]
  %v23 = vld [vmem:[%s1 + $0x38] sm:$0xff]
  %v24 = vld [vmem:[%s1 + $0x40] sm:$0xff]
  %v25 = vld [vmem:[%s1 + $0x48] sm:$0xff]
  %v26 = vld [vmem:[%s1 + $0x50] sm:$0xff]
  %v27 = vld [vmem:[%s1 + $0x58] sm:$0xff]
  %v28 = vld [vmem:[%s1 + $0x60] sm:$0xff]
  %v29 = vld [vmem:[%s1 + $0x68] sm:$0xff]
  %v30 = vld [vmem:[%s1 + $0x70] sm:$0xff]
  %v31 = vld [vmem:[%s1 + $0x78] sm:$0xff]
  %v32 = vld [vmem:[%s1 + $0x80] sm:$0xff]
  %v33 = vld [vmem:[%s1 + $0x88] sm:$0xff]
  %v34 = vld [vmem:[%s1 + $0x90] sm:$0xff]
  %v35 = vld [vmem:[%s1 + $0x98] sm:$0xff]
  %v36 = vld [vmem:[%s1 + $0xa0] sm:$0xff]
  %v37 = vld [vmem:[%s1 + $0xa8] sm:$0xff]
  %v38 = vld [vmem:[%s1 + $0xb0] sm:$0xff]
  %v39 = vld [vmem:[%s1 + $0xb8] sm:$0xff]
  %v40 = vld [vmem:[%s1 + $0xc0] sm:$0xff]
  %v41 = vld [vmem:[%s1 + $0xc8] sm:$0xff]
  %v42 = vld [vmem:[%s1 + $0xd0] sm:$0xff]
  %v43 = vld [vmem:[%s1 + $0xd8] sm:$0xff]
  %v44 = vld [vmem:[%s1 + $0xe0] sm:$0xff]
  %v45 = vld [vmem:[%s1 + $0xe8] sm:$0xff]
  %v46 = vld [vmem:[%s1 + $0xf0] sm:$0xff]
  %v47 = vld [vmem:[%s1 + $0xf8] sm:$0xff]
  %v48 = vld [vmem:[%s1 + $0x100] sm:$0xff]
  %v49 = vld [vmem:[%s1 + $0x108] sm:$0xff]
  %v50 = vld [vmem:[%s1 + $0x110] sm:$0xff]
  %v51 = vld [vmem:[%s1 + $0x118] sm:$0xff]
  %v52 = vld [vmem:[%s1 + $0x120] sm:$0xff]
  %v53 = vld [vmem:[%s1 + $0x128] sm:$0xff]
  %v54 = vld [vmem:[%s1 + $0x130] sm:$0xff]
  %v55 = vld [vmem:[%s1 + $0x138] sm:$0xff]
  %v56 = vld [vmem:[%s1 + $0x140] sm:$0xff]
  %v57 = vld [vmem:[%s1 + $0x148] sm:$0xff]
  %v58 = vld [vmem:[%s1 + $0x150] sm:$0xff]
  %v59 = vld [vmem:[%s1 + $0x158] sm:$0xff]
  %v60 = vld [vmem:[%s1 + $0x160] sm:$0xff]
  %v61 = vld [vmem:[%s1 + $0x168] sm:$0xff]
  %v62 = vld [vmem:[%s1 + $0x170] sm:$0xff]
  %v63 = vld [vmem:[%s1 + $0x178] sm:$0xff]
  %v64 = vld [vmem:[%s1 + $0x180] sm:$0xff]
  %v65 = vld [vmem:[%s1 + $0x188] sm:$0xff]
  %v66 = vld [vmem:[%s1 + $0x190] sm:$0xff]
  %v67 = vld [vmem:[%s1 + $0x198] sm:$0xff]
  %v68 = vld [vmem:[%s1 + $0x1a0] sm:$0xff]
  %v69 = vld [vmem:[%s1 + $0x1a8] sm:$0xff]
  %v70 = vld [vmem:[%s1 + $0x1b0] sm:$0xff]
  %v71 = vld [vmem:[%s1 + $0x1b8] sm:$0xff]
  %v72 = vld [vmem:[%s1 + $0x1c0] sm:$0xff]
  %v73 = vld [vmem:[%s1 + $0x1c8] sm:$0xff]
  %v74 = vld [vmem:[%s1 + $0x1d0] sm:$0xff]
  %v75 = vld [vmem:[%s1 + $0x1d8] sm:$0xff]
  %v76 = vld [vmem:[%s1 + $0x1e0] sm:$0xff]
  %v77 = vld [vmem:[%s1 + $0x1e8] sm:$0xff]
  %v78 = vld [vmem:[%s1 + $0x1f0] sm:$0xff]
  %v79 = vld [vmem:[%s1 + $0x1f8] sm:$0xff]
  %v80 = vld [vmem:[%s2] sm:$0x3]
  %v82 = vlaneseq
  %v83 = vshrl.u32 %v82, 7
  %v84 = vsub.s32 0, %v83
  %v85 = vrot.slane %v80, %v84
  %v86 = vlaneseq
  %v87 = vshrl.u32 %v86, 7
  %v88 = vsub.s32 1, %v87
  %v89 = vrot.slane %v80, %v88
  %v94 = vunpack.c.l.b16 %v14
  %v95 = vunpack.c.h.b16 %v14
  %v96 = vunpack.c.l.b16 %v15
  %v97 = vunpack.c.h.b16 %v15
  %v98 = vpack.c.b16 %v94, %v94
  %v99 = vpack.c.b16 %v95, %v95
  %v100 = vpack.c.b16 %v96, %v96
  %v101 = vpack.c.b16 %v97, %v97
  %v170 = vunpack.c.l.b16 %v16
  %v171 = vunpack.c.h.b16 %v16
  %v172 = vunpack.c.l.b16 %v17
  %v173 = vunpack.c.h.b16 %v17
  %v174 = vunpack.c.l.b16 %v18
  %v175 = vunpack.c.h.b16 %v18
  %v176 = vunpack.c.l.b16 %v19
  %v177 = vunpack.c.h.b16 %v19
  %v178 = vunpack.c.l.b16 %v20
  %v179 = vunpack.c.h.b16 %v20
  %v180 = vunpack.c.l.b16 %v21
  %v181 = vunpack.c.h.b16 %v21
  %v182 = vunpack.c.l.b16 %v22
  %v183 = vunpack.c.h.b16 %v22
  %v184 = vunpack.c.l.b16 %v23
  %v185 = vunpack.c.h.b16 %v23
  %v186 = vunpack.c.l.b16 %v24
  %v187 = vunpack.c.h.b16 %v24
  %v188 = vunpack.c.l.b16 %v25
  %v189 = vunpack.c.h.b16 %v25
  %v190 = vunpack.c.l.b16 %v26
  %v191 = vunpack.c.h.b16 %v26
  %v192 = vunpack.c.l.b16 %v27
  %v193 = vunpack.c.h.b16 %v27
  %v194 = vunpack.c.l.b16 %v28
  %v195 = vunpack.c.h.b16 %v28
  %v196 = vunpack.c.l.b16 %v29
  %v197 = vunpack.c.h.b16 %v29
  %v198 = vunpack.c.l.b16 %v30
  %v199 = vunpack.c.h.b16 %v30
  %v200 = vunpack.c.l.b16 %v31
  %v201 = vunpack.c.h.b16 %v31
  %v202 = vunpack.c.l.b16 %v32
  %v203 = vunpack.c.h.b16 %v32
  %v204 = vunpack.c.l.b16 %v33
  %v205 = vunpack.c.h.b16 %v33
  %v206 = vunpack.c.l.b16 %v34
  %v207 = vunpack.c.h.b16 %v34
  %v208 = vunpack.c.l.b16 %v35
  %v209 = vunpack.c.h.b16 %v35
  %v210 = vunpack.c.l.b16 %v36
  %v211 = vunpack.c.h.b16 %v36
  %v212 = vunpack.c.l.b16 %v37
  %v213 = vunpack.c.h.b16 %v37
  %v214 = vunpack.c.l.b16 %v38
  %v215 = vunpack.c.h.b16 %v38
  %v216 = vunpack.c.l.b16 %v39
  %v217 = vunpack.c.h.b16 %v39
  %v218 = vunpack.c.l.b16 %v40
  %v219 = vunpack.c.h.b16 %v40
  %v220 = vunpack.c.l.b16 %v41
  %v221 = vunpack.c.h.b16 %v41
  %v222 = vunpack.c.l.b16 %v42
  %v223 = vunpack.c.h.b16 %v42
  %v224 = vunpack.c.l.b16 %v43
  %v225 = vunpack.c.h.b16 %v43
  %v226 = vunpack.c.l.b16 %v44
  %v227 = vunpack.c.h.b16 %v44
  %v228 = vunpack.c.l.b16 %v45
  %v229 = vunpack.c.h.b16 %v45
  %v230 = vunpack.c.l.b16 %v46
  %v231 = vunpack.c.h.b16 %v46
  %v232 = vunpack.c.l.b16 %v47
  %v233 = vunpack.c.h.b16 %v47
  %v234 = vunpack.c.l.b16 %v48
  %v235 = vunpack.c.h.b16 %v48
  %v236 = vunpack.c.l.b16 %v49
  %v237 = vunpack.c.h.b16 %v49
  %v238 = vunpack.c.l.b16 %v50
  %v239 = vunpack.c.h.b16 %v50
  %v240 = vunpack.c.l.b16 %v51
  %v241 = vunpack.c.h.b16 %v51
  %v242 = vunpack.c.l.b16 %v52
  %v243 = vunpack.c.h.b16 %v52
  %v244 = vunpack.c.l.b16 %v53
  %v245 = vunpack.c.h.b16 %v53
  %v246 = vunpack.c.l.b16 %v54
  %v247 = vunpack.c.h.b16 %v54
  %v248 = vunpack.c.l.b16 %v55
  %v249 = vunpack.c.h.b16 %v55
  %v250 = vunpack.c.l.b16 %v56
  %v251 = vunpack.c.h.b16 %v56
  %v252 = vunpack.c.l.b16 %v57
  %v253 = vunpack.c.h.b16 %v57
  %v254 = vunpack.c.l.b16 %v58
  %v255 = vunpack.c.h.b16 %v58
  %v256 = vunpack.c.l.b16 %v59
  %v257 = vunpack.c.h.b16 %v59
  %v258 = vunpack.c.l.b16 %v60
  %v259 = vunpack.c.h.b16 %v60
  %v260 = vunpack.c.l.b16 %v61
  %v261 = vunpack.c.h.b16 %v61
  %v262 = vunpack.c.l.b16 %v62
  %v263 = vunpack.c.h.b16 %v62
  %v264 = vunpack.c.l.b16 %v63
  %v265 = vunpack.c.h.b16 %v63
  %v266 = vunpack.c.l.b16 %v64
  %v267 = vunpack.c.h.b16 %v64
  %v268 = vunpack.c.l.b16 %v65
  %v269 = vunpack.c.h.b16 %v65
  %v270 = vunpack.c.l.b16 %v66
  %v271 = vunpack.c.h.b16 %v66
  %v272 = vunpack.c.l.b16 %v67
  %v273 = vunpack.c.h.b16 %v67
  %v274 = vunpack.c.l.b16 %v68
  %v275 = vunpack.c.h.b16 %v68
  %v276 = vunpack.c.l.b16 %v69
  %v277 = vunpack.c.h.b16 %v69
  %v278 = vunpack.c.l.b16 %v70
  %v279 = vunpack.c.h.b16 %v70
  %v280 = vunpack.c.l.b16 %v71
  %v281 = vunpack.c.h.b16 %v71
  %v282 = vunpack.c.l.b16 %v72
  %v283 = vunpack.c.h.b16 %v72
  %v284 = vunpack.c.l.b16 %v73
  %v285 = vunpack.c.h.b16 %v73
  %v286 = vunpack.c.l.b16 %v74
  %v287 = vunpack.c.h.b16 %v74
  %v288 = vunpack.c.l.b16 %v75
  %v289 = vunpack.c.h.b16 %v75
  %v290 = vunpack.c.l.b16 %v76
  %v291 = vunpack.c.h.b16 %v76
  %v292 = vunpack.c.l.b16 %v77
  %v293 = vunpack.c.h.b16 %v77
  %v294 = vunpack.c.l.b16 %v78
  %v295 = vunpack.c.h.b16 %v78
  %v296 = vunpack.c.l.b16 %v79
  %v297 = vunpack.c.h.b16 %v79
  %v298 = vpack.c.b16 %v172, %v170
  %v299 = vpack.c.b16 %v173, %v171
  %v300 = vpack.c.b16 %v176, %v174
  %v301 = vpack.c.b16 %v177, %v175
  %v302 = vpack.c.b16 %v180, %v178
  %v303 = vpack.c.b16 %v181, %v179
  %v304 = vpack.c.b16 %v184, %v182
  %v305 = vpack.c.b16 %v185, %v183
  %v306 = vpack.c.b16 %v188, %v186
  %v307 = vpack.c.b16 %v189, %v187
  %v308 = vpack.c.b16 %v192, %v190
  %v309 = vpack.c.b16 %v193, %v191
  %v310 = vpack.c.b16 %v196, %v194
  %v311 = vpack.c.b16 %v197, %v195
  %v312 = vpack.c.b16 %v200, %v198
  %v313 = vpack.c.b16 %v201, %v199
  %v314 = vpack.c.b16 %v204, %v202
  %v315 = vpack.c.b16 %v205, %v203
  %v316 = vpack.c.b16 %v208, %v206
  %v317 = vpack.c.b16 %v209, %v207
  %v318 = vpack.c.b16 %v212, %v210
  %v319 = vpack.c.b16 %v213, %v211
  %v320 = vpack.c.b16 %v216, %v214
  %v321 = vpack.c.b16 %v217, %v215
  %v322 = vpack.c.b16 %v220, %v218
  %v323 = vpack.c.b16 %v221, %v219
  %v324 = vpack.c.b16 %v224, %v222
  %v325 = vpack.c.b16 %v225, %v223
  %v326 = vpack.c.b16 %v228, %v226
  %v327 = vpack.c.b16 %v229, %v227
  %v328 = vpack.c.b16 %v232, %v230
  %v329 = vpack.c.b16 %v233, %v231
  %v330 = vpack.c.b16 %v236, %v234
  %v331 = vpack.c.b16 %v237, %v235
  %v332 = vpack.c.b16 %v240, %v238
  %v333 = vpack.c.b16 %v241, %v239
  %v334 = vpack.c.b16 %v244, %v242
  %v335 = vpack.c.b16 %v245, %v243
  %v336 = vpack.c.b16 %v248, %v246
  %v337 = vpack.c.b16 %v249, %v247
  %v338 = vpack.c.b16 %v252, %v250
  %v339 = vpack.c.b16 %v253, %v251
  %v340 = vpack.c.b16 %v256, %v254
  %v341 = vpack.c.b16 %v257, %v255
  %v342 = vpack.c.b16 %v260, %v258
  %v343 = vpack.c.b16 %v261, %v259
  %v344 = vpack.c.b16 %v264, %v262
  %v345 = vpack.c.b16 %v265, %v263
  %v346 = vpack.c.b16 %v268, %v266
  %v347 = vpack.c.b16 %v269, %v267
  %v348 = vpack.c.b16 %v272, %v270
  %v349 = vpack.c.b16 %v273, %v271
  %v350 = vpack.c.b16 %v276, %v274
  %v351 = vpack.c.b16 %v277, %v275
  %v352 = vpack.c.b16 %v280, %v278
  %v353 = vpack.c.b16 %v281, %v279
  %v354 = vpack.c.b16 %v284, %v282
  %v355 = vpack.c.b16 %v285, %v283
  %v356 = vpack.c.b16 %v288, %v286
  %v357 = vpack.c.b16 %v289, %v287
  %v358 = vpack.c.b16 %v292, %v290
  %v359 = vpack.c.b16 %v293, %v291
  %v360 = vpack.c.b16 %v296, %v294
  %v361 = vpack.c.b16 %v297, %v295
  %426 = vmatprep.subr.bf16.mxu0 %v313
  %427 = vmatpush1.bf16.msra.mxu0 %v312
  %428 = vmatprep.subr.bf16.mxu0 %v311
  %429 = vmatpush1.bf16.msra.mxu0 %v310
  %430 = vmatprep.subr.bf16.mxu0 %v309
  %431 = vmatpush1.bf16.msra.mxu0 %v308
  %432 = vmatprep.subr.bf16.mxu0 %v307
  %433 = vmatpush1.bf16.msra.mxu0 %v306
  %434 = vmatprep.subr.bf16.mxu0 %v305
  %435 = vmatpush1.bf16.msra.mxu0 %v304
  %436 = vmatprep.subr.bf16.mxu0 %v303
  %437 = vmatpush1.bf16.msra.mxu0 %v302
  %438 = vmatprep.subr.bf16.mxu0 %v301
  %439 = vmatpush1.bf16.msra.mxu0 %v300
  %440 = vmatprep.subr.bf16.mxu0 %v299
  %441 = vmatpush1.bf16.msra.mxu0 %v298
  %442 = vmatprep.subr.bf16.mxu0 %v329
  %443 = vmatpush2.bf16.msra.mxu0 %v328
  %444 = vmatprep.subr.bf16.mxu0 %v327
  %445 = vmatpush2.bf16.msra.mxu0 %v326
  %446 = vmatprep.subr.bf16.mxu0 %v325
  %447 = vmatpush2.bf16.msra.mxu0 %v324
  %448 = vmatprep.subr.bf16.mxu0 %v323
  %449 = vmatpush2.bf16.msra.mxu0 %v322
  %450 = vmatprep.subr.bf16.mxu0 %v321
  %451 = vmatpush2.bf16.msra.mxu0 %v320
  %452 = vmatprep.subr.bf16.mxu0 %v319
  %453 = vmatpush2.bf16.msra.mxu0 %v318
  %454 = vmatprep.subr.bf16.mxu0 %v317
  %455 = vmatpush2.bf16.msra.mxu0 %v316
  %456 = vmatprep.subr.bf16.mxu0 %v315
  %457 = vmatpush2.bf16.msra.mxu0 %v314
  %458 = vmatprep.mubr.bf16.mxu0 %v99
  %459 = vmatmul.mubr.bf16.gmra.mxu0 %v98
  %v460 = vpop.f32.mrf.mxu0
  %v461 = vadd.f32 %v85, %v460
  %v462 = vpop.f32.mrf.mxu0
  %v463 = vadd.f32 %v89, %v462
  %v464 = vpop.f32.mrf.mxu0
  %v465 = vpop.f32.mrf.mxu0
  %466 = vdwg.mxu0
  %467 = vmatprep.subr.bf16.mxu0 %v345
  %468 = vmatpush1.bf16.msra.mxu0 %v344
  %469 = vmatprep.subr.bf16.mxu0 %v343
  %470 = vmatpush1.bf16.msra.mxu0 %v342
  %471 = vmatprep.subr.bf16.mxu0 %v341
  %472 = vmatpush1.bf16.msra.mxu0 %v340
  %473 = vmatprep.subr.bf16.mxu0 %v339
  %474 = vmatpush1.bf16.msra.mxu0 %v338
  %475 = vmatprep.subr.bf16.mxu0 %v337
  %476 = vmatpush1.bf16.msra.mxu0 %v336
  %477 = vmatprep.subr.bf16.mxu0 %v335
  %478 = vmatpush1.bf16.msra.mxu0 %v334
  %479 = vmatprep.subr.bf16.mxu0 %v333
  %480 = vmatpush1.bf16.msra.mxu0 %v332
  %481 = vmatprep.subr.bf16.mxu0 %v331
  %482 = vmatpush1.bf16.msra.mxu0 %v330
  %483 = vmatprep.subr.bf16.mxu0 %v361
  %484 = vmatpush2.bf16.msra.mxu0 %v360
  %485 = vmatprep.subr.bf16.mxu0 %v359
  %486 = vmatpush2.bf16.msra.mxu0 %v358
  %487 = vmatprep.subr.bf16.mxu0 %v357
  %488 = vmatpush2.bf16.msra.mxu0 %v356
  %489 = vmatprep.subr.bf16.mxu0 %v355
  %490 = vmatpush2.bf16.msra.mxu0 %v354
  %491 = vmatprep.subr.bf16.mxu0 %v353
  %492 = vmatpush2.bf16.msra.mxu0 %v352
  %493 = vmatprep.subr.bf16.mxu0 %v351
  %494 = vmatpush2.bf16.msra.mxu0 %v350
  %495 = vmatprep.subr.bf16.mxu0 %v349
  %496 = vmatpush2.bf16.msra.mxu0 %v348
  %497 = vmatprep.subr.bf16.mxu0 %v347
  %498 = vmatpush2.bf16.msra.mxu0 %v346
  %499 = vmatprep.mubr.bf16.mxu0 %v101
  %500 = vmatmul.mubr.bf16.gmra.mxu0 %v100
  %v501 = vpop.f32.mrf.mxu0
  %v502 = vadd.f32 %v461, %v501
  %v503 = vpop.f32.mrf.mxu0
  %v504 = vadd.f32 %v463, %v503
  %v505 = vpop.f32.mrf.mxu0
  %v506 = vpop.f32.mrf.mxu0
  %507 = vdwg.mxu0
  %v508 = vsub.f32 0.0, %v502
  %v509 = vsub.f32 0.0, %v504
  %v510 = vmul.f32 %v508, 1.442695
  %v511 = vpow.pop %v510
  %v512 = vmul.f32 %v509, 1.442695
  %v513 = vpow.pop %v512
  %v514 = vadd.f32 %v511, 1.0
  %v515 = vadd.f32 %v513, 1.0
  %v516 = vrcp.pop %v514
  %v517 = vrcp.pop %v515
  %v518 = vmul.f32 %v502, %v516
  %v519 = vmul.f32 %v504, %v517
  %v520 = vpack.c.bf16 %v518, %v518
  %v521 = vpack.c.bf16 %v519, %v519
  %v524 = vunpack.c.l.b16 %v520
  %v525 = vunpack.c.l.b16 %v521
  %v526 = vpack.c.b16 %v525, %v524
  %528 = vst [vmem:[%s3] sm:$0xff] %v526
  // Predicated region
  $region14: #{_lambda_.14} parent=0 // pred_check
    _
  $region15: #{_lambda_.14} parent=0 // pred_check_branch
    %530 = sbr.rel (0) target = $region17
  $region16: #{_lambda_.14} parent=0 // pred_region
    _
  $region17: #{_lambda_.14} parent=0 // pred_fallthru
    _
  // Predicated region
  $region18: #{_lambda_.14} parent=0 // pred_check
    _
  $region19: #{_lambda_.14} parent=0 // pred_check_branch
    %532 = sbr.rel (0) target = $region21
  $region20: #{_lambda_.14} parent=0 // pred_region
    _
  $region21: #{_lambda_.14} parent=0 // pred_fallthru
    _

// kernel: _lambda_.13
$region0: #{_lambda_.13}
  #allocation0 [shape = 'u32[]', space=smem, size = 0x4, offset = 0x4, fixed_abs, tag = 'smem constant byte address 0x4 - core index']
  #allocation1 [shape = 'u32[144,128]{1,0:T(1,128)}', space=vmem, size = 0x12000, scoped, tag = 'internal scratch']
  %s0 = inlined_call_operand.vmem [shape: f32[8,3072], index: 0, kind: input, shape index: {}]
  %s1 = inlined_call_operand.vmem [shape: bf16[3072,512], index: 1, kind: input, shape index: {}]
  %s2 = inlined_call_operand.vmem [shape: f32[1,512], index: 2, kind: input, shape index: {}]
  %s3 = inlined_call_operand.vmem [shape: bf16[8,512], index: 3, kind: output, shape index: {}]
  %s4 = sld [smem:[#allocation0]]
  $region22: #{_lambda_.13} parent=0
    _
  %s6 = ssub.s32 1, %s4
  %s7 = scalar_select 0, %s6, %s4
  // Predicated region
  $region2: #{_lambda_.13} parent=0 // pred_check
    _
  $region3: #{_lambda_.13} parent=0 // pred_check_branch
    %9 = sbr.rel (0) target = $region5
  $region4: #{_lambda_.13} parent=0 // pred_region
    _
  $region5: #{_lambda_.13} parent=0 // pred_fallthru
    _
  // Predicated region
  $region6: #{_lambda_.13} parent=0 // pred_check
    _
  $region7: #{_lambda_.13} parent=0 // pred_check_branch
    %11 = sbr.rel (0) target = $region9
  $region8: #{_lambda_.13} parent=0 // pred_region
    _
  $region9: #{_lambda_.13} parent=0 // pred_fallthru
    _
  // Predicated region
  $region10: #{_lambda_.13} parent=0 // pred_check
    _
  $region11: #{_lambda_.13} parent=0 // pred_check_branch
    %13 = sbr.rel (0) target = $region13
  $region12: #{_lambda_.13} parent=0 // pred_region
    _
  $region13: #{_lambda_.13} parent=0 // pred_fallthru
    _
  %v14 = vld [vmem:[%s0] sm:$0xff]
  %v15 = vld [vmem:[%s0 + $0x8] sm:$0xff]
  %v16 = vld [vmem:[%s0 + $0x10] sm:$0xff]
  %v17 = vld [vmem:[%s0 + $0x18] sm:$0xff]
  %v18 = vld [vmem:[%s0 + $0x20] sm:$0xff]
  %v19 = vld [vmem:[%s0 + $0x28] sm:$0xff]
  %v20 = vld [vmem:[%s0 + $0x30] sm:$0xff]
  %v21 = vld [vmem:[%s0 + $0x38] sm:$0xff]
  %v22 = vld [vmem:[%s0 + $0x40] sm:$0xff]
  %v23 = vld [vmem:[%s0 + $0x48] sm:$0xff]
  %v24 = vld [vmem:[%s0 + $0x50] sm:$0xff]
  %v25 = vld [vmem:[%s0 + $0x58] sm:$0xff]
  %v26 = vld [vmem:[%s0 + $0x60] sm:$0xff]
  %v27 = vld [vmem:[%s0 + $0x68] sm:$0xff]
  %v28 = vld [vmem:[%s0 + $0x70] sm:$0xff]
  %v29 = vld [vmem:[%s0 + $0x78] sm:$0xff]
  %v30 = vld [vmem:[%s0 + $0x80] sm:$0xff]
  %v31 = vld [vmem:[%s0 + $0x88] sm:$0xff]
  %v32 = vld [vmem:[%s0 + $0x90] sm:$0xff]
  %v33 = vld [vmem:[%s0 + $0x98] sm:$0xff]
  %v34 = vld [vmem:[%s0 + $0xa0] sm:$0xff]
  %v35 = vld [vmem:[%s0 + $0xa8] sm:$0xff]
  %v36 = vld [vmem:[%s0 + $0xb0] sm:$0xff]
  %v37 = vld [vmem:[%s0 + $0xb8] sm:$0xff]
  %v38 = vpack.c.bf16 %v14, %v14
  %v39 = vpack.c.bf16 %v15, %v15
  %v40 = vpack.c.bf16 %v16, %v16
  %v41 = vpack.c.bf16 %v17, %v17
  %v42 = vpack.c.bf16 %v18, %v18
  %v43 = vpack.c.bf16 %v19, %v19
  %v44 = vpack.c.bf16 %v20, %v20
  %v45 = vpack.c.bf16 %v21, %v21
  %v46 = vpack.c.bf16 %v22, %v22
  %v47 = vpack.c.bf16 %v23, %v23
  %v48 = vpack.c.bf16 %v24, %v24
  %v49 = vpack.c.bf16 %v25, %v25
  %v50 = vpack.c.bf16 %v26, %v26
  %v51 = vpack.c.bf16 %v27, %v27
  %v52 = vpack.c.bf16 %v28, %v28
  %v53 = vpack.c.bf16 %v29, %v29
  %v54 = vpack.c.bf16 %v30, %v30
  %v55 = vpack.c.bf16 %v31, %v31
  %v56 = vpack.c.bf16 %v32, %v32
  %v57 = vpack.c.bf16 %v33, %v33
  %v58 = vpack.c.bf16 %v34, %v34
  %v59 = vpack.c.bf16 %v35, %v35
  %v60 = vpack.c.bf16 %v36, %v36
  %v61 = vpack.c.bf16 %v37, %v37
  %v62 = vld [vmem:[%s1] sm:$0xff]
  %v63 = vld [vmem:[%s1 + $0x8] sm:$0xff]
  %v64 = vld [vmem:[%s1 + $0x10] sm:$0xff]
  %v65 = vld [vmem:[%s1 + $0x18] sm:$0xff]
  %v66 = vld [vmem:[%s1 + $0x20] sm:$0xff]
  %v67 = vld [vmem:[%s1 + $0x28] sm:$0xff]
  %v68 = vld [vmem:[%s1 + $0x30] sm:$0xff]
  %v69 = vld [vmem:[%s1 + $0x38] sm:$0xff]
  %v70 = vld [vmem:[%s1 + $0x40] sm:$0xff]
  %v71 = vld [vmem:[%s1 + $0x48] sm:$0xff]
  %v72 = vld [vmem:[%s1 + $0x50] sm:$0xff]
  %v73 = vld [vmem:[%s1 + $0x58] sm:$0xff]
  %v74 = vld [vmem:[%s1 + $0x60] sm:$0xff]
  %v75 = vld [vmem:[%s1 + $0x68] sm:$0xff]
  %v76 = vld [vmem:[%s1 + $0x70] sm:$0xff]
  %v77 = vld [vmem:[%s1 + $0x78] sm:$0xff]
  %v78 = vld [vmem:[%s1 + $0x80] sm:$0xff]
  %v79 = vld [vmem:[%s1 + $0x88] sm:$0xff]
  %v80 = vld [vmem:[%s1 + $0x90] sm:$0xff]
  %v81 = vld [vmem:[%s1 + $0x98] sm:$0xff]
  %v82 = vld [vmem:[%s1 + $0xa0] sm:$0xff]
  %v83 = vld [vmem:[%s1 + $0xa8] sm:$0xff]
  %v84 = vld [vmem:[%s1 + $0xb0] sm:$0xff]
  %v85 = vld [vmem:[%s1 + $0xb8] sm:$0xff]
  %v86 = vld [vmem:[%s1 + $0xc0] sm:$0xff]
  %v87 = vld [vmem:[%s1 + $0xc8] sm:$0xff]
  %v88 = vld [vmem:[%s1 + $0xd0] sm:$0xff]
  %v89 = vld [vmem:[%s1 + $0xd8] sm:$0xff]
  %v90 = vld [vmem:[%s1 + $0xe0] sm:$0xff]
  %v91 = vld [vmem:[%s1 + $0xe8] sm:$0xff]
  %v92 = vld [vmem:[%s1 + $0xf0] sm:$0xff]
  %v93 = vld [vmem:[%s1 + $0xf8] sm:$0xff]
  %v94 = vld [vmem:[%s1 + $0x100] sm:$0xff]
  %v95 = vld [vmem:[%s1 + $0x108] sm:$0xff]
  %v96 = vld [vmem:[%s1 + $0x110] sm:$0xff]
  %v97 = vld [vmem:[%s1 + $0x118] sm:$0xff]
  %v98 = vld [vmem:[%s1 + $0x120] sm:$0xff]
  %v99 = vld [vmem:[%s1 + $0x128] sm:$0xff]
  %v100 = vld [vmem:[%s1 + $0x130] sm:$0xff]
  %v101 = vld [vmem:[%s1 + $0x138] sm:$0xff]
  %v102 = vld [vmem:[%s1 + $0x140] sm:$0xff]
  %v103 = vld [vmem:[%s1 + $0x148] sm:$0xff]
  %v104 = vld [vmem:[%s1 + $0x150] sm:$0xff]
  %v105 = vld [vmem:[%s1 + $0x158] sm:$0xff]
  %v106 = vld [vmem:[%s1 + $0x160] sm:$0xff]
  %v107 = vld [vmem:[%s1 + $0x168] sm:$0xff]
  %v108 = vld [vmem:[%s1 + $0x170] sm:$0xff]
  %v109 = vld [vmem:[%s1 + $0x178] sm:$0xff]
  %v110 = vld [vmem:[%s1 + $0x180] sm:$0xff]
  %v111 = vld [vmem:[%s1 + $0x188] sm:$0xff]
  %v112 = vld [vmem:[%s1 + $0x190] sm:$0xff]
  %v113 = vld [vmem:[%s1 + $0x198] sm:$0xff]
  %v114 = vld [vmem:[%s1 + $0x1a0] sm:$0xff]
  %v115 = vld [vmem:[%s1 + $0x1a8] sm:$0xff]
  %v116 = vld [vmem:[%s1 + $0x1b0] sm:$0xff]
  %v117 = vld [vmem:[%s1 + $0x1b8] sm:$0xff]
  %v118 = vld [vmem:[%s1 + $0x1c0] sm:$0xff]
  %v119 = vld [vmem:[%s1 + $0x1c8] sm:$0xff]
  %v120 = vld [vmem:[%s1 + $0x1d0] sm:$0xff]
  %v121 = vld [vmem:[%s1 + $0x1d8] sm:$0xff]
  %v122 = vld [vmem:[%s1 + $0x1e0] sm:$0xff]
  %v123 = vld [vmem:[%s1 + $0x1e8] sm:$0xff]
  %v124 = vld [vmem:[%s1 + $0x1f0] sm:$0xff]
  %v125 = vld [vmem:[%s1 + $0x1f8] sm:$0xff]
  %v126 = vld [vmem:[%s1 + $0x200] sm:$0xff]
  %v127 = vld [vmem:[%s1 + $0x208] sm:$0xff]
  %v128 = vld [vmem:[%s1 + $0x210] sm:$0xff]
  %v129 = vld [vmem:[%s1 + $0x218] sm:$0xff]
  %v130 = vld [vmem:[%s1 + $0x220] sm:$0xff]
  %v131 = vld [vmem:[%s1 + $0x228] sm:$0xff]
  %v132 = vld [vmem:[%s1 + $0x230] sm:$0xff]
  %v133 = vld [vmem:[%s1 + $0x238] sm:$0xff]
  %v134 = vld [vmem:[%s1 + $0x240] sm:$0xff]
  %v135 = vld [vmem:[%s1 + $0x248] sm:$0xff]
  %v136 = vld [vmem:[%s1 + $0x250] sm:$0xff]
  %v137 = vld [vmem:[%s1 + $0x258] sm:$0xff]
  %v138 = vld [vmem:[%s1 + $0x260] sm:$0xff]
  %v139 = vld [vmem:[%s1 + $0x268] sm:$0xff]
  %v140 = vld [vmem:[%s1 + $0x270] sm:$0xff]
  %v141 = vld [vmem:[%s1 + $0x278] sm:$0xff]
  %v142 = vld [vmem:[%s1 + $0x280] sm:$0xff]
  %v143 = vld [vmem:[%s1 + $0x288] sm:$0xff]
  %v144 = vld [vmem:[%s1 + $0x290] sm:$0xff]
  %v145 = vld [vmem:[%s1 + $0x298] sm:$0xff]
  %v146 = vld [vmem:[%s1 + $0x2a0] sm:$0xff]
  %v147 = vld [vmem:[%s1 + $0x2a8] sm:$0xff]
  %v148 = vld [vmem:[%s1 + $0x2b0] sm:$0xff]
  %v149 = vld [vmem:[%s1 + $0x2b8] sm:$0xff]
  %v150 = vld [vmem:[%s1 + $0x2c0] sm:$0xff]
  %v151 = vld [vmem:[%s1 + $0x2c8] sm:$0xff]
  %v152 = vld [vmem:[%s1 + $0x2d0] sm:$0xff]
  %v153 = vld [vmem:[%s1 + $0x2d8] sm:$0xff]
  %v154 = vld [vmem:[%s1 + $0x2e0] sm:$0xff]
  %v155 = vld [vmem:[%s1 + $0x2e8] sm:$0xff]
  %v156 = vld [vmem:[%s1 + $0x2f0] sm:$0xff]
  %v157 = vld [vmem:[%s1 + $0x2f8] sm:$0xff]
  %v158 = vld [vmem:[%s1 + $0x300] sm:$0xff]
  %v159 = vld [vmem:[%s1 + $0x308] sm:$0xff]
  %v160 = vld [vmem:[%s1 + $0x310] sm:$0xff]
  %v161 = vld [vmem:[%s1 + $0x318] sm:$0xff]
  %v162 = vld [vmem:[%s1 + $0x320] sm:$0xff]
  %v163 = vld [vmem:[%s1 + $0x328] sm:$0xff]
  %v164 = vld [vmem:[%s1 + $0x330] sm:$0xff]
  %v165 = vld [vmem:[%s1 + $0x338] sm:$0xff]
  %v166 = vld [vmem:[%s1 + $0x340] sm:$0xff]
  %v167 = vld [vmem:[%s1 + $0x348] sm:$0xff]
  %v168 = vld [vmem:[%s1 + $0x350] sm:$0xff]
  %v169 = vld [vmem:[%s1 + $0x358] sm:$0xff]
  %v170 = vld [vmem:[%s1 + $0x360] sm:$0xff]
  %v171 = vld [vmem:[%s1 + $0x368] sm:$0xff]
  %v172 = vld [vmem:[%s1 + $0x370] sm:$0xff]
  %v173 = vld [vmem:[%s1 + $0x378] sm:$0xff]
  %v174 = vld [vmem:[%s1 + $0x380] sm:$0xff]
  %v175 = vld [vmem:[%s1 + $0x388] sm:$0xff]
  %v176 = vld [vmem:[%s1 + $0x390] sm:$0xff]
  %v177 = vld [vmem:[%s1 + $0x398] sm:$0xff]
  %v178 = vld [vmem:[%s1 + $0x3a0] sm:$0xff]
  %v179 = vld [vmem:[%s1 + $0x3a8] sm:$0xff]
  %v180 = vld [vmem:[%s1 + $0x3b0] sm:$0xff]
  %v181 = vld [vmem:[%s1 + $0x3b8] sm:$0xff]
  %v182 = vld [vmem:[%s1 + $0x3c0] sm:$0xff]
  %v183 = vld [vmem:[%s1 + $0x3c8] sm:$0xff]
  %v184 = vld [vmem:[%s1 + $0x3d0] sm:$0xff]
  %v185 = vld [vmem:[%s1 + $0x3d8] sm:$0xff]
  %v186 = vld [vmem:[%s1 + $0x3e0] sm:$0xff]
  %v187 = vld [vmem:[%s1 + $0x3e8] sm:$0xff]
  %v188 = vld [vmem:[%s1 + $0x3f0] sm:$0xff]
  %v189 = vld [vmem:[%s1 + $0x3f8] sm:$0xff]
  %v190 = vld [vmem:[%s1 + $0x400] sm:$0xff]
  %v191 = vld [vmem:[%s1 + $0x408] sm:$0xff]
  %v192 = vld [vmem:[%s1 + $0x410] sm:$0xff]
  %v193 = vld [vmem:[%s1 + $0x418] sm:$0xff]
  %v194 = vld [vmem:[%s1 + $0x420] sm:$0xff]
  %v195 = vld [vmem:[%s1 + $0x428] sm:$0xff]
  %v196 = vld [vmem:[%s1 + $0x430] sm:$0xff]
  %v197 = vld [vmem:[%s1 + $0x438] sm:$0xff]
  %v198 = vld [vmem:[%s1 + $0x440] sm:$0xff]
  %v199 = vld [vmem:[%s1 + $0x448] sm:$0xff]
  %v200 = vld [vmem:[%s1 + $0x450] sm:$0xff]
  %v201 = vld [vmem:[%s1 + $0x458] sm:$0xff]
  %v202 = vld [vmem:[%s1 + $0x460] sm:$0xff]
  %v203 = vld [vmem:[%s1 + $0x468] sm:$0xff]
  %v204 = vld [vmem:[%s1 + $0x470] sm:$0xff]
  %v205 = vld [vmem:[%s1 + $0x478] sm:$0xff]
  %v206 = vld [vmem:[%s1 + $0x480] sm:$0xff]
  %v207 = vld [vmem:[%s1 + $0x488] sm:$0xff]
  %v208 = vld [vmem:[%s1 + $0x490] sm:$0xff]
  %v209 = vld [vmem:[%s1 + $0x498] sm:$0xff]
  %v210 = vld [vmem:[%s1 + $0x4a0] sm:$0xff]
  %v211 = vld [vmem:[%s1 + $0x4a8] sm:$0xff]
  %v212 = vld [vmem:[%s1 + $0x4b0] sm:$0xff]
  %v213 = vld [vmem:[%s1 + $0x4b8] sm:$0xff]
  %v214 = vld [vmem:[%s1 + $0x4c0] sm:$0xff]
  %v215 = vld [vmem:[%s1 + $0x4c8] sm:$0xff]
  %v216 = vld [vmem:[%s1 + $0x4d0] sm:$0xff]
  %v217 = vld [vmem:[%s1 + $0x4d8] sm:$0xff]
  %v218 = vld [vmem:[%s1 + $0x4e0] sm:$0xff]
  %v219 = vld [vmem:[%s1 + $0x4e8] sm:$0xff]
  %v220 = vld [vmem:[%s1 + $0x4f0] sm:$0xff]
  %v221 = vld [vmem:[%s1 + $0x4f8] sm:$0xff]
  %v222 = vld [vmem:[%s1 + $0x500] sm:$0xff]
  %v223 = vld [vmem:[%s1 + $0x508] sm:$0xff]
  %v224 = vld [vmem:[%s1 + $0x510] sm:$0xff]
  %v225 = vld [vmem:[%s1 + $0x518] sm:$0xff]
  %v226 = vld [vmem:[%s1 + $0x520] sm:$0xff]
  %v227 = vld [vmem:[%s1 + $0x528] sm:$0xff]
  %v228 = vld [vmem:[%s1 + $0x530] sm:$0xff]
  %v229 = vld [vmem:[%s1 + $0x538] sm:$0xff]
  %v230 = vld [vmem:[%s1 + $0x540] sm:$0xff]
  %v231 = vld [vmem:[%s1 + $0x548] sm:$0xff]
  %v232 = vld [vmem:[%s1 + $0x550] sm:$0xff]
  %v233 = vld [vmem:[%s1 + $0x558] sm:$0xff]
  %v234 = vld [vmem:[%s1 + $0x560] sm:$0xff]
  %v235 = vld [vmem:[%s1 + $0x568] sm:$0xff]
  %v236 = vld [vmem:[%s1 + $0x570] sm:$0xff]
  %v237 = vld [vmem:[%s1 + $0x578] sm:$0xff]
  %v238 = vld [vmem:[%s1 + $0x580] sm:$0xff]
  %v239 = vld [vmem:[%s1 + $0x588] sm:$0xff]
  %v240 = vld [vmem:[%s1 + $0x590] sm:$0xff]
  %v241 = vld [vmem:[%s1 + $0x598] sm:$0xff]
  %v242 = vld [vmem:[%s1 + $0x5a0] sm:$0xff]
  %v243 = vld [vmem:[%s1 + $0x5a8] sm:$0xff]
  %v244 = vld [vmem:[%s1 + $0x5b0] sm:$0xff]
  %v245 = vld [vmem:[%s1 + $0x5b8] sm:$0xff]
  %v246 = vld [vmem:[%s1 + $0x5c0] sm:$0xff]
  %v247 = vld [vmem:[%s1 + $0x5c8] sm:$0xff]
  %v248 = vld [vmem:[%s1 + $0x5d0] sm:$0xff]
  %v249 = vld [vmem:[%s1 + $0x5d8] sm:$0xff]
  %v250 = vld [vmem:[%s1 + $0x5e0] sm:$0xff]
  %v251 = vld [vmem:[%s1 + $0x5e8] sm:$0xff]
  %v252 = vld [vmem:[%s1 + $0x5f0] sm:$0xff]
  %v253 = vld [vmem:[%s1 + $0x5f8] sm:$0xff]
  %v254 = vld [vmem:[%s1 + $0x600] sm:$0xff]
  %v255 = vld [vmem:[%s1 + $0x608] sm:$0xff]
  %v256 = vld [vmem:[%s1 + $0x610] sm:$0xff]
  %v257 = vld [vmem:[%s1 + $0x618] sm:$0xff]
  %v258 = vld [vmem:[%s1 + $0x620] sm:$0xff]
  %v259 = vld [vmem:[%s1 + $0x628] sm:$0xff]
  %v260 = vld [vmem:[%s1 + $0x630] sm:$0xff]
  %v261 = vld [vmem:[%s1 + $0x638] sm:$0xff]
  %v262 = vld [vmem:[%s1 + $0x640] sm:$0xff]
  %v263 = vld [vmem:[%s1 + $0x648] sm:$0xff]
  %v264 = vld [vmem:[%s1 + $0x650] sm:$0xff]
  %v265 = vld [vmem:[%s1 + $0x658] sm:$0xff]
  %v266 = vld [vmem:[%s1 + $0x660] sm:$0xff]
  %v267 = vld [vmem:[%s1 + $0x668] sm:$0xff]
  %v268 = vld [vmem:[%s1 + $0x670] sm:$0xff]
  %v269 = vld [vmem:[%s1 + $0x678] sm:$0xff]
  %v270 = vld [vmem:[%s1 + $0x680] sm:$0xff]
  %v271 = vld [vmem:[%s1 + $0x688] sm:$0xff]
  %v272 = vld [vmem:[%s1 + $0x690] sm:$0xff]
  %v273 = vld [vmem:[%s1 + $0x698] sm:$0xff]
  %v274 = vld [vmem:[%s1 + $0x6a0] sm:$0xff]
  %v275 = vld [vmem:[%s1 + $0x6a8] sm:$0xff]
  %v276 = vld [vmem:[%s1 + $0x6b0] sm:$0xff]
  %v277 = vld [vmem:[%s1 + $0x6b8] sm:$0xff]
  %v278 = vld [vmem:[%s1 + $0x6c0] sm:$0xff]
  %v279 = vld [vmem:[%s1 + $0x6c8] sm:$0xff]
  %v280 = vld [vmem:[%s1 + $0x6d0] sm:$0xff]
  %v281 = vld [vmem:[%s1 + $0x6d8] sm:$0xff]
  %v282 = vld [vmem:[%s1 + $0x6e0] sm:$0xff]
  %v283 = vld [vmem:[%s1 + $0x6e8] sm:$0xff]
  %v284 = vld [vmem:[%s1 + $0x6f0] sm:$0xff]
  %v285 = vld [vmem:[%s1 + $0x6f8] sm:$0xff]
  %v286 = vld [vmem:[%s1 + $0x700] sm:$0xff]
  %v287 = vld [vmem:[%s1 + $0x708] sm:$0xff]
  %v288 = vld [vmem:[%s1 + $0x710] sm:$0xff]
  %v289 = vld [vmem:[%s1 + $0x718] sm:$0xff]
  %v290 = vld [vmem:[%s1 + $0x720] sm:$0xff]
  %v291 = vld [vmem:[%s1 + $0x728] sm:$0xff]
  %v292 = vld [vmem:[%s1 + $0x730] sm:$0xff]
  %v293 = vld [vmem:[%s1 + $0x738] sm:$0xff]
  %v294 = vld [vmem:[%s1 + $0x740] sm:$0xff]
  %v295 = vld [vmem:[%s1 + $0x748] sm:$0xff]
  %v296 = vld [vmem:[%s1 + $0x750] sm:$0xff]
  %v297 = vld [vmem:[%s1 + $0x758] sm:$0xff]
  %v298 = vld [vmem:[%s1 + $0x760] sm:$0xff]
  %v299 = vld [vmem:[%s1 + $0x768] sm:$0xff]
  %v300 = vld [vmem:[%s1 + $0x770] sm:$0xff]
  %v301 = vld [vmem:[%s1 + $0x778] sm:$0xff]
  %v302 = vld [vmem:[%s1 + $0x780] sm:$0xff]
  %v303 = vld [vmem:[%s1 + $0x788] sm:$0xff]
  %v304 = vld [vmem:[%s1 + $0x790] sm:$0xff]
  %v305 = vld [vmem:[%s1 + $0x798] sm:$0xff]
  %v306 = vld [vmem:[%s1 + $0x7a0] sm:$0xff]
  %v307 = vld [vmem:[%s1 + $0x7a8] sm:$0xff]
  %v308 = vld [vmem:[%s1 + $0x7b0] sm:$0xff]
  %v309 = vld [vmem:[%s1 + $0x7b8] sm:$0xff]
  %v310 = vld [vmem:[%s1 + $0x7c0] sm:$0xff]
  %v311 = vld [vmem:[%s1 + $0x7c8] sm:$0xff]
  %v312 = vld [vmem:[%s1 + $0x7d0] sm:$0xff]
  %v313 = vld [vmem:[%s1 + $0x7d8] sm:$0xff]
  %v314 = vld [vmem:[%s1 + $0x7e0] sm:$0xff]
  %v315 = vld [vmem:[%s1 + $0x7e8] sm:$0xff]
  %v316 = vld [vmem:[%s1 + $0x7f0] sm:$0xff]
  %v317 = vld [vmem:[%s1 + $0x7f8] sm:$0xff]
  %v318 = vld [vmem:[%s1 + $0x800] sm:$0xff]
  %v319 = vld [vmem:[%s1 + $0x808] sm:$0xff]
  %v320 = vld [vmem:[%s1 + $0x810] sm:$0xff]
  %v321 = vld [vmem:[%s1 + $0x818] sm:$0xff]
  %v322 = vld [vmem:[%s1 + $0x820] sm:$0xff]
  %v323 = vld [vmem:[%s1 + $0x828] sm:$0xff]
  %v324 = vld [vmem:[%s1 + $0x830] sm:$0xff]
  %v325 = vld [vmem:[%s1 + $0x838] sm:$0xff]
  %v326 = vld [vmem:[%s1 + $0x840] sm:$0xff]
  %v327 = vld [vmem:[%s1 + $0x848] sm:$0xff]
  %v328 = vld [vmem:[%s1 + $0x850] sm:$0xff]
  %v329 = vld [vmem:[%s1 + $0x858] sm:$0xff]
  %v330 = vld [vmem:[%s1 + $0x860] sm:$0xff]
  %v331 = vld [vmem:[%s1 + $0x868] sm:$0xff]
  %v332 = vld [vmem:[%s1 + $0x870] sm:$0xff]
  %v333 = vld [vmem:[%s1 + $0x878] sm:$0xff]
  %v334 = vld [vmem:[%s1 + $0x880] sm:$0xff]
  %v335 = vld [vmem:[%s1 + $0x888] sm:$0xff]
  %v336 = vld [vmem:[%s1 + $0x890] sm:$0xff]
  %v337 = vld [vmem:[%s1 + $0x898] sm:$0xff]
  %v338 = vld [vmem:[%s1 + $0x8a0] sm:$0xff]
  %v339 = vld [vmem:[%s1 + $0x8a8] sm:$0xff]
  %v340 = vld [vmem:[%s1 + $0x8b0] sm:$0xff]
  %v341 = vld [vmem:[%s1 + $0x8b8] sm:$0xff]
  %v342 = vld [vmem:[%s1 + $0x8c0] sm:$0xff]
  %v343 = vld [vmem:[%s1 + $0x8c8] sm:$0xff]
  %v344 = vld [vmem:[%s1 + $0x8d0] sm:$0xff]
  %v345 = vld [vmem:[%s1 + $0x8d8] sm:$0xff]
  %v346 = vld [vmem:[%s1 + $0x8e0] sm:$0xff]
  %v347 = vld [vmem:[%s1 + $0x8e8] sm:$0xff]
  %v348 = vld [vmem:[%s1 + $0x8f0] sm:$0xff]
  %v349 = vld [vmem:[%s1 + $0x8f8] sm:$0xff]
  %v350 = vld [vmem:[%s1 + $0x900] sm:$0xff]
  %v351 = vld [vmem:[%s1 + $0x908] sm:$0xff]
  %v352 = vld [vmem:[%s1 + $0x910] sm:$0xff]
  %v353 = vld [vmem:[%s1 + $0x918] sm:$0xff]
  %v354 = vld [vmem:[%s1 + $0x920] sm:$0xff]
  %v355 = vld [vmem:[%s1 + $0x928] sm:$0xff]
  %v356 = vld [vmem:[%s1 + $0x930] sm:$0xff]
  %v357 = vld [vmem:[%s1 + $0x938] sm:$0xff]
  %v358 = vld [vmem:[%s1 + $0x940] sm:$0xff]
  %v359 = vld [vmem:[%s1 + $0x948] sm:$0xff]
  %v360 = vld [vmem:[%s1 + $0x950] sm:$0xff]
  %v361 = vld [vmem:[%s1 + $0x958] sm:$0xff]
  %v362 = vld [vmem:[%s1 + $0x960] sm:$0xff]
  %v363 = vld [vmem:[%s1 + $0x968] sm:$0xff]
  %v364 = vld [vmem:[%s1 + $0x970] sm:$0xff]
  %v365 = vld [vmem:[%s1 + $0x978] sm:$0xff]
  %v366 = vld [vmem:[%s1 + $0x980] sm:$0xff]
  %v367 = vld [vmem:[%s1 + $0x988] sm:$0xff]
  %v368 = vld [vmem:[%s1 + $0x990] sm:$0xff]
  %v369 = vld [vmem:[%s1 + $0x998] sm:$0xff]
  %v370 = vld [vmem:[%s1 + $0x9a0] sm:$0xff]
  %v371 = vld [vmem:[%s1 + $0x9a8] sm:$0xff]
  %v372 = vld [vmem:[%s1 + $0x9b0] sm:$0xff]
  %v373 = vld [vmem:[%s1 + $0x9b8] sm:$0xff]
  %v374 = vld [vmem:[%s1 + $0x9c0] sm:$0xff]
  %v375 = vld [vmem:[%s1 + $0x9c8] sm:$0xff]
  %v376 = vld [vmem:[%s1 + $0x9d0] sm:$0xff]
  %v377 = vld [vmem:[%s1 + $0x9d8] sm:$0xff]
  %v378 = vld [vmem:[%s1 + $0x9e0] sm:$0xff]
  %v379 = vld [vmem:[%s1 + $0x9e8] sm:$0xff]
  %v380 = vld [vmem:[%s1 + $0x9f0] sm:$0xff]
  %v381 = vld [vmem:[%s1 + $0x9f8] sm:$0xff]
  %v382 = vld [vmem:[%s1 + $0xa00] sm:$0xff]
  %v383 = vld [vmem:[%s1 + $0xa08] sm:$0xff]
  %v384 = vld [vmem:[%s1 + $0xa10] sm:$0xff]
  %v385 = vld [vmem:[%s1 + $0xa18] sm:$0xff]
  %v386 = vld [vmem:[%s1 + $0xa20] sm:$0xff]
  %v387 = vld [vmem:[%s1 + $0xa28] sm:$0xff]
  %v388 = vld [vmem:[%s1 + $0xa30] sm:$0xff]
  %v389 = vld [vmem:[%s1 + $0xa38] sm:$0xff]
  %v390 = vld [vmem:[%s1 + $0xa40] sm:$0xff]
  %v391 = vld [vmem:[%s1 + $0xa48] sm:$0xff]
  %v392 = vld [vmem:[%s1 + $0xa50] sm:$0xff]
  %v393 = vld [vmem:[%s1 + $0xa58] sm:$0xff]
  %v394 = vld [vmem:[%s1 + $0xa60] sm:$0xff]
  %v395 = vld [vmem:[%s1 + $0xa68] sm:$0xff]
  %v396 = vld [vmem:[%s1 + $0xa70] sm:$0xff]
  %v397 = vld [vmem:[%s1 + $0xa78] sm:$0xff]
  %v398 = vld [vmem:[%s1 + $0xa80] sm:$0xff]
  %v399 = vld [vmem:[%s1 + $0xa88] sm:$0xff]
  %v400 = vld [vmem:[%s1 + $0xa90] sm:$0xff]
  %v401 = vld [vmem:[%s1 + $0xa98] sm:$0xff]
  %v402 = vld [vmem:[%s1 + $0xaa0] sm:$0xff]
  %v403 = vld [vmem:[%s1 + $0xaa8] sm:$0xff]
  %v404 = vld [vmem:[%s1 + $0xab0] sm:$0xff]
  %v405 = vld [vmem:[%s1 + $0xab8] sm:$0xff]
  %v406 = vld [vmem:[%s1 + $0xac0] sm:$0xff]
  %v407 = vld [vmem:[%s1 + $0xac8] sm:$0xff]
  %v408 = vld [vmem:[%s1 + $0xad0] sm:$0xff]
  %v409 = vld [vmem:[%s1 + $0xad8] sm:$0xff]
  %v410 = vld [vmem:[%s1 + $0xae0] sm:$0xff]
  %v411 = vld [vmem:[%s1 + $0xae8] sm:$0xff]
  %v412 = vld [vmem:[%s1 + $0xaf0] sm:$0xff]
  %v413 = vld [vmem:[%s1 + $0xaf8] sm:$0xff]
  %v414 = vld [vmem:[%s1 + $0xb00] sm:$0xff]
  %v415 = vld [vmem:[%s1 + $0xb08] sm:$0xff]
  %v416 = vld [vmem:[%s1 + $0xb10] sm:$0xff]
  %v417 = vld [vmem:[%s1 + $0xb18] sm:$0xff]
  %v418 = vld [vmem:[%s1 + $0xb20] sm:$0xff]
  %v419 = vld [vmem:[%s1 + $0xb28] sm:$0xff]
  %v420 = vld [vmem:[%s1 + $0xb30] sm:$0xff]
  %v421 = vld [vmem:[%s1 + $0xb38] sm:$0xff]
  %v422 = vld [vmem:[%s1 + $0xb40] sm:$0xff]
  %v423 = vld [vmem:[%s1 + $0xb48] sm:$0xff]
  %v424 = vld [vmem:[%s1 + $0xb50] sm:$0xff]
  %v425 = vld [vmem:[%s1 + $0xb58] sm:$0xff]
  %v426 = vld [vmem:[%s1 + $0xb60] sm:$0xff]
  %v427 = vld [vmem:[%s1 + $0xb68] sm:$0xff]
  %v428 = vld [vmem:[%s1 + $0xb70] sm:$0xff]
  %v429 = vld [vmem:[%s1 + $0xb78] sm:$0xff]
  %v430 = vld [vmem:[%s1 + $0xb80] sm:$0xff]
  %v431 = vld [vmem:[%s1 + $0xb88] sm:$0xff]
  %v432 = vld [vmem:[%s1 + $0xb90] sm:$0xff]
  %v433 = vld [vmem:[%s1 + $0xb98] sm:$0xff]
  %v434 = vld [vmem:[%s1 + $0xba0] sm:$0xff]
  %v435 = vld [vmem:[%s1 + $0xba8] sm:$0xff]
  %v436 = vld [vmem:[%s1 + $0xbb0] sm:$0xff]
  %v437 = vld [vmem:[%s1 + $0xbb8] sm:$0xff]
  %v438 = vld [vmem:[%s1 + $0xbc0] sm:$0xff]
  %v439 = vld [vmem:[%s1 + $0xbc8] sm:$0xff]
  %v440 = vld [vmem:[%s1 + $0xbd0] sm:$0xff]
  %v441 = vld [vmem:[%s1 + $0xbd8] sm:$0xff]
  %v442 = vld [vmem:[%s1 + $0xbe0] sm:$0xff]
  %v443 = vld [vmem:[%s1 + $0xbe8] sm:$0xff]
  %v444 = vld [vmem:[%s1 + $0xbf0] sm:$0xff]
  %v445 = vld [vmem:[%s1 + $0xbf8] sm:$0xff]
  %v446 = vld [vmem:[%s1 + $0xc00] sm:$0xff]
  %v447 = vld [vmem:[%s1 + $0xc08] sm:$0xff]
  %v448 = vld [vmem:[%s1 + $0xc10] sm:$0xff]
  %v449 = vld [vmem:[%s1 + $0xc18] sm:$0xff]
  %v450 = vld [vmem:[%s1 + $0xc20] sm:$0xff]
  %v451 = vld [vmem:[%s1 + $0xc28] sm:$0xff]
  %v452 = vld [vmem:[%s1 + $0xc30] sm:$0xff]
  %v453 = vld [vmem:[%s1 + $0xc38] sm:$0xff]
  %v454 = vld [vmem:[%s1 + $0xc40] sm:$0xff]
  %v455 = vld [vmem:[%s1 + $0xc48] sm:$0xff]
  %v456 = vld [vmem:[%s1 + $0xc50] sm:$0xff]
  %v457 = vld [vmem:[%s1 + $0xc58] sm:$0xff]
  %v458 = vld [vmem:[%s1 + $0xc60] sm:$0xff]
  %v459 = vld [vmem:[%s1 + $0xc68] sm:$0xff]
  %v460 = vld [vmem:[%s1 + $0xc70] sm:$0xff]
  %v461 = vld [vmem:[%s1 + $0xc78] sm:$0xff]
  %v462 = vld [vmem:[%s1 + $0xc80] sm:$0xff]
  %v463 = vld [vmem:[%s1 + $0xc88] sm:$0xff]
  %v464 = vld [vmem:[%s1 + $0xc90] sm:$0xff]
  %v465 = vld [vmem:[%s1 + $0xc98] sm:$0xff]
  %v466 = vld [vmem:[%s1 + $0xca0] sm:$0xff]
  %v467 = vld [vmem:[%s1 + $0xca8] sm:$0xff]
  %v468 = vld [vmem:[%s1 + $0xcb0] sm:$0xff]
  %v469 = vld [vmem:[%s1 + $0xcb8] sm:$0xff]
  %v470 = vld [vmem:[%s1 + $0xcc0] sm:$0xff]
  %v471 = vld [vmem:[%s1 + $0xcc8] sm:$0xff]
  %v472 = vld [vmem:[%s1 + $0xcd0] sm:$0xff]
  %v473 = vld [vmem:[%s1 + $0xcd8] sm:$0xff]
  %v474 = vld [vmem:[%s1 + $0xce0] sm:$0xff]
  %v475 = vld [vmem:[%s1 + $0xce8] sm:$0xff]
  %v476 = vld [vmem:[%s1 + $0xcf0] sm:$0xff]
  %v477 = vld [vmem:[%s1 + $0xcf8] sm:$0xff]
  %v478 = vld [vmem:[%s1 + $0xd00] sm:$0xff]
  %v479 = vld [vmem:[%s1 + $0xd08] sm:$0xff]
  %v480 = vld [vmem:[%s1 + $0xd10] sm:$0xff]
  %v481 = vld [vmem:[%s1 + $0xd18] sm:$0xff]
  %v482 = vld [vmem:[%s1 + $0xd20] sm:$0xff]
  %v483 = vld [vmem:[%s1 + $0xd28] sm:$0xff]
  %v484 = vld [vmem:[%s1 + $0xd30] sm:$0xff]
  %v485 = vld [vmem:[%s1 + $0xd38] sm:$0xff]
  %v486 = vld [vmem:[%s1 + $0xd40] sm:$0xff]
  %v487 = vld [vmem:[%s1 + $0xd48] sm:$0xff]
  %v488 = vld [vmem:[%s1 + $0xd50] sm:$0xff]
  %v489 = vld [vmem:[%s1 + $0xd58] sm:$0xff]
  %v490 = vld [vmem:[%s1 + $0xd60] sm:$0xff]
  %v491 = vld [vmem:[%s1 + $0xd68] sm:$0xff]
  %v492 = vld [vmem:[%s1 + $0xd70] sm:$0xff]
  %v493 = vld [vmem:[%s1 + $0xd78] sm:$0xff]
  %v494 = vld [vmem:[%s1 + $0xd80] sm:$0xff]
  %v495 = vld [vmem:[%s1 + $0xd88] sm:$0xff]
  %v496 = vld [vmem:[%s1 + $0xd90] sm:$0xff]
  %v497 = vld [vmem:[%s1 + $0xd98] sm:$0xff]
  %v498 = vld [vmem:[%s1 + $0xda0] sm:$0xff]
  %v499 = vld [vmem:[%s1 + $0xda8] sm:$0xff]
  %v500 = vld [vmem:[%s1 + $0xdb0] sm:$0xff]
  %v501 = vld [vmem:[%s1 + $0xdb8] sm:$0xff]
  %v502 = vld [vmem:[%s1 + $0xdc0] sm:$0xff]
  %v503 = vld [vmem:[%s1 + $0xdc8] sm:$0xff]
  %v504 = vld [vmem:[%s1 + $0xdd0] sm:$0xff]
  %v505 = vld [vmem:[%s1 + $0xdd8] sm:$0xff]
  %v506 = vld [vmem:[%s1 + $0xde0] sm:$0xff]
  %v507 = vld [vmem:[%s1 + $0xde8] sm:$0xff]
  %v508 = vld [vmem:[%s1 + $0xdf0] sm:$0xff]
  %v509 = vld [vmem:[%s1 + $0xdf8] sm:$0xff]
  %v510 = vld [vmem:[%s1 + $0xe00] sm:$0xff]
  %v511 = vld [vmem:[%s1 + $0xe08] sm:$0xff]
  %v512 = vld [vmem:[%s1 + $0xe10] sm:$0xff]
  %v513 = vld [vmem:[%s1 + $0xe18] sm:$0xff]
  %v514 = vld [vmem:[%s1 + $0xe20] sm:$0xff]
  %v515 = vld [vmem:[%s1 + $0xe28] sm:$0xff]
  %v516 = vld [vmem:[%s1 + $0xe30] sm:$0xff]
  %v517 = vld [vmem:[%s1 + $0xe38] sm:$0xff]
  %v518 = vld [vmem:[%s1 + $0xe40] sm:$0xff]
  %v519 = vld [vmem:[%s1 + $0xe48] sm:$0xff]
  %v520 = vld [vmem:[%s1 + $0xe50] sm:$0xff]
  %v521 = vld [vmem:[%s1 + $0xe58] sm:$0xff]
  %v522 = vld [vmem:[%s1 + $0xe60] sm:$0xff]
  %v523 = vld [vmem:[%s1 + $0xe68] sm:$0xff]
  %v524 = vld [vmem:[%s1 + $0xe70] sm:$0xff]
  %v525 = vld [vmem:[%s1 + $0xe78] sm:$0xff]
  %v526 = vld [vmem:[%s1 + $0xe80] sm:$0xff]
  %v527 = vld [vmem:[%s1 + $0xe88] sm:$0xff]
  %v528 = vld [vmem:[%s1 + $0xe90] sm:$0xff]
  %v529 = vld [vmem:[%s1 + $0xe98] sm:$0xff]
  %v530 = vld [vmem:[%s1 + $0xea0] sm:$0xff]
  %v531 = vld [vmem:[%s1 + $0xea8] sm:$0xff]
  %v532 = vld [vmem:[%s1 + $0xeb0] sm:$0xff]
  %v533 = vld [vmem:[%s1 + $0xeb8] sm:$0xff]
  %v534 = vld [vmem:[%s1 + $0xec0] sm:$0xff]
  %v535 = vld [vmem:[%s1 + $0xec8] sm:$0xff]
  %v536 = vld [vmem:[%s1 + $0xed0] sm:$0xff]
  %v537 = vld [vmem:[%s1 + $0xed8] sm:$0xff]
  %v538 = vld [vmem:[%s1 + $0xee0] sm:$0xff]
  %v539 = vld [vmem:[%s1 + $0xee8] sm:$0xff]
  %v540 = vld [vmem:[%s1 + $0xef0] sm:$0xff]
  %v541 = vld [vmem:[%s1 + $0xef8] sm:$0xff]
  %v542 = vld [vmem:[%s1 + $0xf00] sm:$0xff]
  %v543 = vld [vmem:[%s1 + $0xf08] sm:$0xff]
  %v544 = vld [vmem:[%s1 + $0xf10] sm:$0xff]
  %v545 = vld [vmem:[%s1 + $0xf18] sm:$0xff]
  %v546 = vld [vmem:[%s1 + $0xf20] sm:$0xff]
  %v547 = vld [vmem:[%s1 + $0xf28] sm:$0xff]
  %v548 = vld [vmem:[%s1 + $0xf30] sm:$0xff]
  %v549 = vld [vmem:[%s1 + $0xf38] sm:$0xff]
  %v550 = vld [vmem:[%s1 + $0xf40] sm:$0xff]
  %v551 = vld [vmem:[%s1 + $0xf48] sm:$0xff]
  %v552 = vld [vmem:[%s1 + $0xf50] sm:$0xff]
  %v553 = vld [vmem:[%s1 + $0xf58] sm:$0xff]
  %v554 = vld [vmem:[%s1 + $0xf60] sm:$0xff]
  %v555 = vld [vmem:[%s1 + $0xf68] sm:$0xff]
  %v556 = vld [vmem:[%s1 + $0xf70] sm:$0xff]
  %v557 = vld [vmem:[%s1 + $0xf78] sm:$0xff]
  %v558 = vld [vmem:[%s1 + $0xf80] sm:$0xff]
  %v559 = vld [vmem:[%s1 + $0xf88] sm:$0xff]
  %v560 = vld [vmem:[%s1 + $0xf90] sm:$0xff]
  %v561 = vld [vmem:[%s1 + $0xf98] sm:$0xff]
  %v562 = vld [vmem:[%s1 + $0xfa0] sm:$0xff]
  %v563 = vld [vmem:[%s1 + $0xfa8] sm:$0xff]
  %v564 = vld [vmem:[%s1 + $0xfb0] sm:$0xff]
  %v565 = vld [vmem:[%s1 + $0xfb8] sm:$0xff]
  %v566 = vld [vmem:[%s1 + $0xfc0] sm:$0xff]
  %v567 = vld [vmem:[%s1 + $0xfc8] sm:$0xff]
  %v568 = vld [vmem:[%s1 + $0xfd0] sm:$0xff]
  %v569 = vld [vmem:[%s1 + $0xfd8] sm:$0xff]
  %v570 = vld [vmem:[%s1 + $0xfe0] sm:$0xff]
  %v571 = vld [vmem:[%s1 + $0xfe8] sm:$0xff]
  %v572 = vld [vmem:[%s1 + $0xff0] sm:$0xff]
  %v573 = vld [vmem:[%s1 + $0xff8] sm:$0xff]
  %v574 = vld [vmem:[%s1 + $0x1000] sm:$0xff]
  %v575 = vld [vmem:[%s1 + $0x1008] sm:$0xff]
  %v576 = vld [vmem:[%s1 + $0x1010] sm:$0xff]
  %v577 = vld [vmem:[%s1 + $0x1018] sm:$0xff]
  %v578 = vld [vmem:[%s1 + $0x1020] sm:$0xff]
  %v579 = vld [vmem:[%s1 + $0x1028] sm:$0xff]
  %v580 = vld [vmem:[%s1 + $0x1030] sm:$0xff]
  %v581 = vld [vmem:[%s1 + $0x1038] sm:$0xff]
  %v582 = vld [vmem:[%s1 + $0x1040] sm:$0xff]
  %v583 = vld [vmem:[%s1 + $0x1048] sm:$0xff]
  %v584 = vld [vmem:[%s1 + $0x1050] sm:$0xff]
  %v585 = vld [vmem:[%s1 + $0x1058] sm:$0xff]
  %v586 = vld [vmem:[%s1 + $0x1060] sm:$0xff]
  %v587 = vld [vmem:[%s1 + $0x1068] sm:$0xff]
  %v588 = vld [vmem:[%s1 + $0x1070] sm:$0xff]
  %v589 = vld [vmem:[%s1 + $0x1078] sm:$0xff]
  %v590 = vld [vmem:[%s1 + $0x1080] sm:$0xff]
  %v591 = vld [vmem:[%s1 + $0x1088] sm:$0xff]
  %v592 = vld [vmem:[%s1 + $0x1090] sm:$0xff]
  %v593 = vld [vmem:[%s1 + $0x1098] sm:$0xff]
  %v594 = vld [vmem:[%s1 + $0x10a0] sm:$0xff]
  %v595 = vld [vmem:[%s1 + $0x10a8] sm:$0xff]
  %v596 = vld [vmem:[%s1 + $0x10b0] sm:$0xff]
  %v597 = vld [vmem:[%s1 + $0x10b8] sm:$0xff]
  %v598 = vld [vmem:[%s1 + $0x10c0] sm:$0xff]
  %v599 = vld [vmem:[%s1 + $0x10c8] sm:$0xff]
  %v600 = vld [vmem:[%s1 + $0x10d0] sm:$0xff]
  %v601 = vld [vmem:[%s1 + $0x10d8] sm:$0xff]
  %v602 = vld [vmem:[%s1 + $0x10e0] sm:$0xff]
  %v603 = vld [vmem:[%s1 + $0x10e8] sm:$0xff]
  %v604 = vld [vmem:[%s1 + $0x10f0] sm:$0xff]
  %v605 = vld [vmem:[%s1 + $0x10f8] sm:$0xff]
  %v606 = vld [vmem:[%s1 + $0x1100] sm:$0xff]
  %v607 = vld [vmem:[%s1 + $0x1108] sm:$0xff]
  %v608 = vld [vmem:[%s1 + $0x1110] sm:$0xff]
  %v609 = vld [vmem:[%s1 + $0x1118] sm:$0xff]
  %v610 = vld [vmem:[%s1 + $0x1120] sm:$0xff]
  %v611 = vld [vmem:[%s1 + $0x1128] sm:$0xff]
  %v612 = vld [vmem:[%s1 + $0x1130] sm:$0xff]
  %v613 = vld [vmem:[%s1 + $0x1138] sm:$0xff]
  %v614 = vld [vmem:[%s1 + $0x1140] sm:$0xff]
  %v615 = vld [vmem:[%s1 + $0x1148] sm:$0xff]
  %v616 = vld [vmem:[%s1 + $0x1150] sm:$0xff]
  %v617 = vld [vmem:[%s1 + $0x1158] sm:$0xff]
  %v618 = vld [vmem:[%s1 + $0x1160] sm:$0xff]
  %v619 = vld [vmem:[%s1 + $0x1168] sm:$0xff]
  %v620 = vld [vmem:[%s1 + $0x1170] sm:$0xff]
  %v621 = vld [vmem:[%s1 + $0x1178] sm:$0xff]
  %v622 = vld [vmem:[%s1 + $0x1180] sm:$0xff]
  %v623 = vld [vmem:[%s1 + $0x1188] sm:$0xff]
  %v624 = vld [vmem:[%s1 + $0x1190] sm:$0xff]
  %v625 = vld [vmem:[%s1 + $0x1198] sm:$0xff]
  %v626 = vld [vmem:[%s1 + $0x11a0] sm:$0xff]
  %v627 = vld [vmem:[%s1 + $0x11a8] sm:$0xff]
  %v628 = vld [vmem:[%s1 + $0x11b0] sm:$0xff]
  %v629 = vld [vmem:[%s1 + $0x11b8] sm:$0xff]
  %v630 = vld [vmem:[%s1 + $0x11c0] sm:$0xff]
  %v631 = vld [vmem:[%s1 + $0x11c8] sm:$0xff]
  %v632 = vld [vmem:[%s1 + $0x11d0] sm:$0xff]
  %v633 = vld [vmem:[%s1 + $0x11d8] sm:$0xff]
  %v634 = vld [vmem:[%s1 + $0x11e0] sm:$0xff]
  %v635 = vld [vmem:[%s1 + $0x11e8] sm:$0xff]
  %v636 = vld [vmem:[%s1 + $0x11f0] sm:$0xff]
  %v637 = vld [vmem:[%s1 + $0x11f8] sm:$0xff]
  %v638 = vld [vmem:[%s1 + $0x1200] sm:$0xff]
  %v639 = vld [vmem:[%s1 + $0x1208] sm:$0xff]
  %v640 = vld [vmem:[%s1 + $0x1210] sm:$0xff]
  %v641 = vld [vmem:[%s1 + $0x1218] sm:$0xff]
  %v642 = vld [vmem:[%s1 + $0x1220] sm:$0xff]
  %v643 = vld [vmem:[%s1 + $0x1228] sm:$0xff]
  %v644 = vld [vmem:[%s1 + $0x1230] sm:$0xff]
  %v645 = vld [vmem:[%s1 + $0x1238] sm:$0xff]
  %v646 = vld [vmem:[%s1 + $0x1240] sm:$0xff]
  %v647 = vld [vmem:[%s1 + $0x1248] sm:$0xff]
  %v648 = vld [vmem:[%s1 + $0x1250] sm:$0xff]
  %v649 = vld [vmem:[%s1 + $0x1258] sm:$0xff]
  %v650 = vld [vmem:[%s1 + $0x1260] sm:$0xff]
  %v651 = vld [vmem:[%s1 + $0x1268] sm:$0xff]
  %v652 = vld [vmem:[%s1 + $0x1270] sm:$0xff]
  %v653 = vld [vmem:[%s1 + $0x1278] sm:$0xff]
  %v654 = vld [vmem:[%s1 + $0x1280] sm:$0xff]
  %v655 = vld [vmem:[%s1 + $0x1288] sm:$0xff]
  %v656 = vld [vmem:[%s1 + $0x1290] sm:$0xff]
  %v657 = vld [vmem:[%s1 + $0x1298] sm:$0xff]
  %v658 = vld [vmem:[%s1 + $0x12a0] sm:$0xff]
  %v659 = vld [vmem:[%s1 + $0x12a8] sm:$0xff]
  %v660 = vld [vmem:[%s1 + $0x12b0] sm:$0xff]
  %v661 = vld [vmem:[%s1 + $0x12b8] sm:$0xff]
  %v662 = vld [vmem:[%s1 + $0x12c0] sm:$0xff]
  %v663 = vld [vmem:[%s1 + $0x12c8] sm:$0xff]
  %v664 = vld [vmem:[%s1 + $0x12d0] sm:$0xff]
  %v665 = vld [vmem:[%s1 + $0x12d8] sm:$0xff]
  %v666 = vld [vmem:[%s1 + $0x12e0] sm:$0xff]
  %v667 = vld [vmem:[%s1 + $0x12e8] sm:$0xff]
  %v668 = vld [vmem:[%s1 + $0x12f0] sm:$0xff]
  %v669 = vld [vmem:[%s1 + $0x12f8] sm:$0xff]
  %v670 = vld [vmem:[%s1 + $0x1300] sm:$0xff]
  %v671 = vld [vmem:[%s1 + $0x1308] sm:$0xff]
  %v672 = vld [vmem:[%s1 + $0x1310] sm:$0xff]
  %v673 = vld [vmem:[%s1 + $0x1318] sm:$0xff]
  %v674 = vld [vmem:[%s1 + $0x1320] sm:$0xff]
  %v675 = vld [vmem:[%s1 + $0x1328] sm:$0xff]
  %v676 = vld [vmem:[%s1 + $0x1330] sm:$0xff]
  %v677 = vld [vmem:[%s1 + $0x1338] sm:$0xff]
  %v678 = vld [vmem:[%s1 + $0x1340] sm:$0xff]
  %v679 = vld [vmem:[%s1 + $0x1348] sm:$0xff]
  %v680 = vld [vmem:[%s1 + $0x1350] sm:$0xff]
  %v681 = vld [vmem:[%s1 + $0x1358] sm:$0xff]
  %v682 = vld [vmem:[%s1 + $0x1360] sm:$0xff]
  %v683 = vld [vmem:[%s1 + $0x1368] sm:$0xff]
  %v684 = vld [vmem:[%s1 + $0x1370] sm:$0xff]
  %v685 = vld [vmem:[%s1 + $0x1378] sm:$0xff]
  %v686 = vld [vmem:[%s1 + $0x1380] sm:$0xff]
  %v687 = vld [vmem:[%s1 + $0x1388] sm:$0xff]
  %v688 = vld [vmem:[%s1 + $0x1390] sm:$0xff]
  %v689 = vld [vmem:[%s1 + $0x1398] sm:$0xff]
  %v690 = vld [vmem:[%s1 + $0x13a0] sm:$0xff]
  %v691 = vld [vmem:[%s1 + $0x13a8] sm:$0xff]
  %v692 = vld [vmem:[%s1 + $0x13b0] sm:$0xff]
  %v693 = vld [vmem:[%s1 + $0x13b8] sm:$0xff]
  %v694 = vld [vmem:[%s1 + $0x13c0] sm:$0xff]
  %v695 = vld [vmem:[%s1 + $0x13c8] sm:$0xff]
  %v696 = vld [vmem:[%s1 + $0x13d0] sm:$0xff]
  %v697 = vld [vmem:[%s1 + $0x13d8] sm:$0xff]
  %v698 = vld [vmem:[%s1 + $0x13e0] sm:$0xff]
  %v699 = vld [vmem:[%s1 + $0x13e8] sm:$0xff]
  %v700 = vld [vmem:[%s1 + $0x13f0] sm:$0xff]
  %v701 = vld [vmem:[%s1 + $0x13f8] sm:$0xff]
  %v702 = vld [vmem:[%s1 + $0x1400] sm:$0xff]
  %v703 = vld [vmem:[%s1 + $0x1408] sm:$0xff]
  %v704 = vld [vmem:[%s1 + $0x1410] sm:$0xff]
  %v705 = vld [vmem:[%s1 + $0x1418] sm:$0xff]
  %v706 = vld [vmem:[%s1 + $0x1420] sm:$0xff]
  %v707 = vld [vmem:[%s1 + $0x1428] sm:$0xff]
  %v708 = vld [vmem:[%s1 + $0x1430] sm:$0xff]
  %v709 = vld [vmem:[%s1 + $0x1438] sm:$0xff]
  %v710 = vld [vmem:[%s1 + $0x1440] sm:$0xff]
  %v711 = vld [vmem:[%s1 + $0x1448] sm:$0xff]
  %v712 = vld [vmem:[%s1 + $0x1450] sm:$0xff]
  %v713 = vld [vmem:[%s1 + $0x1458] sm:$0xff]
  %v714 = vld [vmem:[%s1 + $0x1460] sm:$0xff]
  %v715 = vld [vmem:[%s1 + $0x1468] sm:$0xff]
  %v716 = vld [vmem:[%s1 + $0x1470] sm:$0xff]
  %v717 = vld [vmem:[%s1 + $0x1478] sm:$0xff]
  %v718 = vld [vmem:[%s1 + $0x1480] sm:$0xff]
  %v719 = vld [vmem:[%s1 + $0x1488] sm:$0xff]
  %v720 = vld [vmem:[%s1 + $0x1490] sm:$0xff]
  %v721 = vld [vmem:[%s1 + $0x1498] sm:$0xff]
  %v722 = vld [vmem:[%s1 + $0x14a0] sm:$0xff]
  %v723 = vld [vmem:[%s1 + $0x14a8] sm:$0xff]
  %v724 = vld [vmem:[%s1 + $0x14b0] sm:$0xff]
  %v725 = vld [vmem:[%s1 + $0x14b8] sm:$0xff]
  %v726 = vld [vmem:[%s1 + $0x14c0] sm:$0xff]
  %v727 = vld [vmem:[%s1 + $0x14c8] sm:$0xff]
  %v728 = vld [vmem:[%s1 + $0x14d0] sm:$0xff]
  %v729 = vld [vmem:[%s1 + $0x14d8] sm:$0xff]
  %v730 = vld [vmem:[%s1 + $0x14e0] sm:$0xff]
  %v731 = vld [vmem:[%s1 + $0x14e8] sm:$0xff]
  %v732 = vld [vmem:[%s1 + $0x14f0] sm:$0xff]
  %v733 = vld [vmem:[%s1 + $0x14f8] sm:$0xff]
  %v734 = vld [vmem:[%s1 + $0x1500] sm:$0xff]
  %v735 = vld [vmem:[%s1 + $0x1508] sm:$0xff]
  %v736 = vld [vmem:[%s1 + $0x1510] sm:$0xff]
  %v737 = vld [vmem:[%s1 + $0x1518] sm:$0xff]
  %v738 = vld [vmem:[%s1 + $0x1520] sm:$0xff]
  %v739 = vld [vmem:[%s1 + $0x1528] sm:$0xff]
  %v740 = vld [vmem:[%s1 + $0x1530] sm:$0xff]
  %v741 = vld [vmem:[%s1 + $0x1538] sm:$0xff]
  %v742 = vld [vmem:[%s1 + $0x1540] sm:$0xff]
  %v743 = vld [vmem:[%s1 + $0x1548] sm:$0xff]
  %v744 = vld [vmem:[%s1 + $0x1550] sm:$0xff]
  %v745 = vld [vmem:[%s1 + $0x1558] sm:$0xff]
  %v746 = vld [vmem:[%s1 + $0x1560] sm:$0xff]
  %v747 = vld [vmem:[%s1 + $0x1568] sm:$0xff]
  %v748 = vld [vmem:[%s1 + $0x1570] sm:$0xff]
  %v749 = vld [vmem:[%s1 + $0x1578] sm:$0xff]
  %v750 = vld [vmem:[%s1 + $0x1580] sm:$0xff]
  %v751 = vld [vmem:[%s1 + $0x1588] sm:$0xff]
  %v752 = vld [vmem:[%s1 + $0x1590] sm:$0xff]
  %v753 = vld [vmem:[%s1 + $0x1598] sm:$0xff]
  %v754 = vld [vmem:[%s1 + $0x15a0] sm:$0xff]
  %v755 = vld [vmem:[%s1 + $0x15a8] sm:$0xff]
  %v756 = vld [vmem:[%s1 + $0x15b0] sm:$0xff]
  %v757 = vld [vmem:[%s1 + $0x15b8] sm:$0xff]
  %v758 = vld [vmem:[%s1 + $0x15c0] sm:$0xff]
  %v759 = vld [vmem:[%s1 + $0x15c8] sm:$0xff]
  %v760 = vld [vmem:[%s1 + $0x15d0] sm:$0xff]
  %v761 = vld [vmem:[%s1 + $0x15d8] sm:$0xff]
  %v762 = vld [vmem:[%s1 + $0x15e0] sm:$0xff]
  %v763 = vld [vmem:[%s1 + $0x15e8] sm:$0xff]
  %v764 = vld [vmem:[%s1 + $0x15f0] sm:$0xff]
  %v765 = vld [vmem:[%s1 + $0x15f8] sm:$0xff]
  %v766 = vld [vmem:[%s1 + $0x1600] sm:$0xff]
  %v767 = vld [vmem:[%s1 + $0x1608] sm:$0xff]
  %v768 = vld [vmem:[%s1 + $0x1610] sm:$0xff]
  %v769 = vld [vmem:[%s1 + $0x1618] sm:$0xff]
  %v770 = vld [vmem:[%s1 + $0x1620] sm:$0xff]
  %v771 = vld [vmem:[%s1 + $0x1628] sm:$0xff]
  %v772 = vld [vmem:[%s1 + $0x1630] sm:$0xff]
  %v773 = vld [vmem:[%s1 + $0x1638] sm:$0xff]
  %v774 = vld [vmem:[%s1 + $0x1640] sm:$0xff]
  %v775 = vld [vmem:[%s1 + $0x1648] sm:$0xff]
  %v776 = vld [vmem:[%s1 + $0x1650] sm:$0xff]
  %v777 = vld [vmem:[%s1 + $0x1658] sm:$0xff]
  %v778 = vld [vmem:[%s1 + $0x1660] sm:$0xff]
  %v779 = vld [vmem:[%s1 + $0x1668] sm:$0xff]
  %v780 = vld [vmem:[%s1 + $0x1670] sm:$0xff]
  %v781 = vld [vmem:[%s1 + $0x1678] sm:$0xff]
  %v782 = vld [vmem:[%s1 + $0x1680] sm:$0xff]
  %v783 = vld [vmem:[%s1 + $0x1688] sm:$0xff]
  %v784 = vld [vmem:[%s1 + $0x1690] sm:$0xff]
  %v785 = vld [vmem:[%s1 + $0x1698] sm:$0xff]
  %v786 = vld [vmem:[%s1 + $0x16a0] sm:$0xff]
  %v787 = vld [vmem:[%s1 + $0x16a8] sm:$0xff]
  %v788 = vld [vmem:[%s1 + $0x16b0] sm:$0xff]
  %v789 = vld [vmem:[%s1 + $0x16b8] sm:$0xff]
  %v790 = vld [vmem:[%s1 + $0x16c0] sm:$0xff]
  %v791 = vld [vmem:[%s1 + $0x16c8] sm:$0xff]
  %v792 = vld [vmem:[%s1 + $0x16d0] sm:$0xff]
  %v793 = vld [vmem:[%s1 + $0x16d8] sm:$0xff]
  %v794 = vld [vmem:[%s1 + $0x16e0] sm:$0xff]
  %v795 = vld [vmem:[%s1 + $0x16e8] sm:$0xff]
  %v796 = vld [vmem:[%s1 + $0x16f0] sm:$0xff]
  %v797 = vld [vmem:[%s1 + $0x16f8] sm:$0xff]
  %v798 = vld [vmem:[%s1 + $0x1700] sm:$0xff]
  %v799 = vld [vmem:[%s1 + $0x1708] sm:$0xff]
  %v800 = vld [vmem:[%s1 + $0x1710] sm:$0xff]
  %v801 = vld [vmem:[%s1 + $0x1718] sm:$0xff]
  %v802 = vld [vmem:[%s1 + $0x1720] sm:$0xff]
  %v803 = vld [vmem:[%s1 + $0x1728] sm:$0xff]
  %v804 = vld [vmem:[%s1 + $0x1730] sm:$0xff]
  %v805 = vld [vmem:[%s1 + $0x1738] sm:$0xff]
  %v806 = vld [vmem:[%s1 + $0x1740] sm:$0xff]
  %v807 = vld [vmem:[%s1 + $0x1748] sm:$0xff]
  %v808 = vld [vmem:[%s1 + $0x1750] sm:$0xff]
  %v809 = vld [vmem:[%s1 + $0x1758] sm:$0xff]
  %v810 = vld [vmem:[%s1 + $0x1760] sm:$0xff]
  %v811 = vld [vmem:[%s1 + $0x1768] sm:$0xff]
  %v812 = vld [vmem:[%s1 + $0x1770] sm:$0xff]
  %v813 = vld [vmem:[%s1 + $0x1778] sm:$0xff]
  %v814 = vld [vmem:[%s1 + $0x1780] sm:$0xff]
  %v815 = vld [vmem:[%s1 + $0x1788] sm:$0xff]
  %v816 = vld [vmem:[%s1 + $0x1790] sm:$0xff]
  %v817 = vld [vmem:[%s1 + $0x1798] sm:$0xff]
  %v818 = vld [vmem:[%s1 + $0x17a0] sm:$0xff]
  %v819 = vld [vmem:[%s1 + $0x17a8] sm:$0xff]
  %v820 = vld [vmem:[%s1 + $0x17b0] sm:$0xff]
  %v821 = vld [vmem:[%s1 + $0x17b8] sm:$0xff]
  %v822 = vld [vmem:[%s1 + $0x17c0] sm:$0xff]
  %v823 = vld [vmem:[%s1 + $0x17c8] sm:$0xff]
  %v824 = vld [vmem:[%s1 + $0x17d0] sm:$0xff]
  %v825 = vld [vmem:[%s1 + $0x17d8] sm:$0xff]
  %v826 = vld [vmem:[%s1 + $0x17e0] sm:$0xff]
  %v827 = vld [vmem:[%s1 + $0x17e8] sm:$0xff]
  %v828 = vld [vmem:[%s1 + $0x17f0] sm:$0xff]
  %v829 = vld [vmem:[%s1 + $0x17f8] sm:$0xff]
  %v830 = vld [vmem:[%s2] sm:$0xf]
  %v832 = vlaneseq
  %v833 = vshrl.u32 %v832, 7
  %v834 = vsub.s32 0, %v833
  %v835 = vrot.slane %v830, %v834
  %v836 = vlaneseq
  %v837 = vshrl.u32 %v836, 7
  %v838 = vsub.s32 1, %v837
  %v839 = vrot.slane %v830, %v838
  %v840 = vlaneseq
  %v841 = vshrl.u32 %v840, 7
  %v842 = vsub.s32 2, %v841
  %v843 = vrot.slane %v830, %v842
  %v844 = vlaneseq
  %v845 = vshrl.u32 %v844, 7
  %v846 = vsub.s32 3, %v845
  %v847 = vrot.slane %v830, %v846
  %v1620 = vunpack.c.l.b16 %v62
  %v1621 = vunpack.c.h.b16 %v62
  %v1622 = vunpack.c.l.b16 %v63
  %v1623 = vunpack.c.h.b16 %v63
  %v1624 = vunpack.c.l.b16 %v64
  %v1625 = vunpack.c.h.b16 %v64
  %v1626 = vunpack.c.l.b16 %v65
  %v1627 = vunpack.c.h.b16 %v65
  %v1628 = vunpack.c.l.b16 %v66
  %v1629 = vunpack.c.h.b16 %v66
  %v1630 = vunpack.c.l.b16 %v67
  %v1631 = vunpack.c.h.b16 %v67
  %v1632 = vunpack.c.l.b16 %v68
  %v1633 = vunpack.c.h.b16 %v68
  %v1634 = vunpack.c.l.b16 %v69
  %v1635 = vunpack.c.h.b16 %v69
  %v1636 = vunpack.c.l.b16 %v70
  %v1637 = vunpack.c.h.b16 %v70
  %v1638 = vunpack.c.l.b16 %v71
  %v1639 = vunpack.c.h.b16 %v71
  %v1640 = vunpack.c.l.b16 %v72
  %v1641 = vunpack.c.h.b16 %v72
  %v1642 = vunpack.c.l.b16 %v73
  %v1643 = vunpack.c.h.b16 %v73
  %v1644 = vunpack.c.l.b16 %v74
  %v1645 = vunpack.c.h.b16 %v74
  %v1646 = vunpack.c.l.b16 %v75
  %v1647 = vunpack.c.h.b16 %v75
  %v1648 = vunpack.c.l.b16 %v76
  %v1649 = vunpack.c.h.b16 %v76
  %v1650 = vunpack.c.l.b16 %v77
  %v1651 = vunpack.c.h.b16 %v77
  %v1652 = vunpack.c.l.b16 %v78
  %v1653 = vunpack.c.h.b16 %v78
  %v1654 = vunpack.c.l.b16 %v79
  %v1655 = vunpack.c.h.b16 %v79
  %v1656 = vunpack.c.l.b16 %v80
  %v1657 = vunpack.c.h.b16 %v80
  %v1658 = vunpack.c.l.b16 %v81
  %v1659 = vunpack.c.h.b16 %v81
  %v1660 = vunpack.c.l.b16 %v82
  %v1661 = vunpack.c.h.b16 %v82
  %v1662 = vunpack.c.l.b16 %v83
  %v1663 = vunpack.c.h.b16 %v83
  %v1664 = vunpack.c.l.b16 %v84
  %v1665 = vunpack.c.h.b16 %v84
  %v1666 = vunpack.c.l.b16 %v85
  %v1667 = vunpack.c.h.b16 %v85
  %v1668 = vunpack.c.l.b16 %v86
  %v1669 = vunpack.c.h.b16 %v86
  %v1670 = vunpack.c.l.b16 %v87
  %v1671 = vunpack.c.h.b16 %v87
  %v1672 = vunpack.c.l.b16 %v88
  %v1673 = vunpack.c.h.b16 %v88
  %v1674 = vunpack.c.l.b16 %v89
  %v1675 = vunpack.c.h.b16 %v89
  %v1676 = vunpack.c.l.b16 %v90
  %v1677 = vunpack.c.h.b16 %v90
  %v1678 = vunpack.c.l.b16 %v91
  %v1679 = vunpack.c.h.b16 %v91
  %v1680 = vunpack.c.l.b16 %v92
  %v1681 = vunpack.c.h.b16 %v92
  %v1682 = vunpack.c.l.b16 %v93
  %v1683 = vunpack.c.h.b16 %v93
  %v1684 = vunpack.c.l.b16 %v94
  %v1685 = vunpack.c.h.b16 %v94
  %v1686 = vunpack.c.l.b16 %v95
  %v1687 = vunpack.c.h.b16 %v95
  %v1688 = vunpack.c.l.b16 %v96
  %v1689 = vunpack.c.h.b16 %v96
  %v1690 = vunpack.c.l.b16 %v97
  %v1691 = vunpack.c.h.b16 %v97
  %v1692 = vunpack.c.l.b16 %v98
  %v1693 = vunpack.c.h.b16 %v98
  %v1694 = vunpack.c.l.b16 %v99
  %v1695 = vunpack.c.h.b16 %v99
  %v1696 = vunpack.c.l.b16 %v100
  %v1697 = vunpack.c.h.b16 %v100
  %v1698 = vunpack.c.l.b16 %v101
  %v1699 = vunpack.c.h.b16 %v101
  %v1700 = vunpack.c.l.b16 %v102
  %v1701 = vunpack.c.h.b16 %v102
  %v1702 = vunpack.c.l.b16 %v103
  %v1703 = vunpack.c.h.b16 %v103
  %v1704 = vunpack.c.l.b16 %v104
  %v1705 = vunpack.c.h.b16 %v104
  %v1706 = vunpack.c.l.b16 %v105
  %v1707 = vunpack.c.h.b16 %v105
  %v1708 = vunpack.c.l.b16 %v106
  %v1709 = vunpack.c.h.b16 %v106
  %v1710 = vunpack.c.l.b16 %v107
  %v1711 = vunpack.c.h.b16 %v107
  %v1712 = vunpack.c.l.b16 %v108
  %v1713 = vunpack.c.h.b16 %v108
  %v1714 = vunpack.c.l.b16 %v109
  %v1715 = vunpack.c.h.b16 %v109
  %v1716 = vunpack.c.l.b16 %v110
  %v1717 = vunpack.c.h.b16 %v110
  %v1718 = vunpack.c.l.b16 %v111
  %v1719 = vunpack.c.h.b16 %v111
  %v1720 = vunpack.c.l.b16 %v112
  %v1721 = vunpack.c.h.b16 %v112
  %v1722 = vunpack.c.l.b16 %v113
  %v1723 = vunpack.c.h.b16 %v113
  %v1724 = vunpack.c.l.b16 %v114
  %v1725 = vunpack.c.h.b16 %v114
  %v1726 = vunpack.c.l.b16 %v115
  %v1727 = vunpack.c.h.b16 %v115
  %v1728 = vunpack.c.l.b16 %v116
  %v1729 = vunpack.c.h.b16 %v116
  %v1730 = vunpack.c.l.b16 %v117
  %v1731 = vunpack.c.h.b16 %v117
  %v1732 = vunpack.c.l.b16 %v118
  %v1733 = vunpack.c.h.b16 %v118
  %v1734 = vunpack.c.l.b16 %v119
  %v1735 = vunpack.c.h.b16 %v119
  %v1736 = vunpack.c.l.b16 %v120
  %v1737 = vunpack.c.h.b16 %v120
  %v1738 = vunpack.c.l.b16 %v121
  %v1739 = vunpack.c.h.b16 %v121
  %v1740 = vunpack.c.l.b16 %v122
  %v1741 = vunpack.c.h.b16 %v122
  %v1742 = vunpack.c.l.b16 %v123
  %v1743 = vunpack.c.h.b16 %v123
  %v1744 = vunpack.c.l.b16 %v124
  %v1745 = vunpack.c.h.b16 %v124
  %v1746 = vunpack.c.l.b16 %v125
  %v1747 = vunpack.c.h.b16 %v125
  %v1748 = vunpack.c.l.b16 %v126
  %v1749 = vunpack.c.h.b16 %v126
  %v1750 = vunpack.c.l.b16 %v127
  %v1751 = vunpack.c.h.b16 %v127
  %v1752 = vunpack.c.l.b16 %v128
  %v1753 = vunpack.c.h.b16 %v128
  %v1754 = vunpack.c.l.b16 %v129
  %v1755 = vunpack.c.h.b16 %v129
  %v1756 = vunpack.c.l.b16 %v130
  %v1757 = vunpack.c.h.b16 %v130
  %v1758 = vunpack.c.l.b16 %v131
  %v1759 = vunpack.c.h.b16 %v131
  %v1760 = vunpack.c.l.b16 %v132
  %v1761 = vunpack.c.h.b16 %v132
  %v1762 = vunpack.c.l.b16 %v133
  %v1763 = vunpack.c.h.b16 %v133
  %v1764 = vunpack.c.l.b16 %v134
  %v1765 = vunpack.c.h.b16 %v134
  %v1766 = vunpack.c.l.b16 %v135
  %v1767 = vunpack.c.h.b16 %v135
  %v1768 = vunpack.c.l.b16 %v136
  %v1769 = vunpack.c.h.b16 %v136
  %v1770 = vunpack.c.l.b16 %v137
  %v1771 = vunpack.c.h.b16 %v137
  %v1772 = vunpack.c.l.b16 %v138
  %v1773 = vunpack.c.h.b16 %v138
  %v1774 = vunpack.c.l.b16 %v139
  %v1775 = vunpack.c.h.b16 %v139
  %v1776 = vunpack.c.l.b16 %v140
  %v1777 = vunpack.c.h.b16 %v140
  %v1778 = vunpack.c.l.b16 %v141
  %v1779 = vunpack.c.h.b16 %v141
  %v1780 = vunpack.c.l.b16 %v142
  %v1781 = vunpack.c.h.b16 %v142
  %v1782 = vunpack.c.l.b16 %v143
  %v1783 = vunpack.c.h.b16 %v143
  %v1784 = vunpack.c.l.b16 %v144
  %v1785 = vunpack.c.h.b16 %v144
  %v1786 = vunpack.c.l.b16 %v145
  %v1787 = vunpack.c.h.b16 %v145
  %v1788 = vunpack.c.l.b16 %v146
  %v1789 = vunpack.c.h.b16 %v146
  %v1790 = vunpack.c.l.b16 %v147
  %v1791 = vunpack.c.h.b16 %v147
  %v1792 = vunpack.c.l.b16 %v148
  %v1793 = vunpack.c.h.b16 %v148
  %v1794 = vunpack.c.l.b16 %v149
  %v1795 = vunpack.c.h.b16 %v149
  %v1796 = vunpack.c.l.b16 %v150
  %v1797 = vunpack.c.h.b16 %v150
  %v1798 = vunpack.c.l.b16 %v151
  %v1799 = vunpack.c.h.b16 %v151
  %v1800 = vunpack.c.l.b16 %v152
  %v1801 = vunpack.c.h.b16 %v152
  %v1802 = vunpack.c.l.b16 %v153
  %v1803 = vunpack.c.h.b16 %v153
  %v1804 = vunpack.c.l.b16 %v154
  %v1805 = vunpack.c.h.b16 %v154
  %v1806 = vunpack.c.l.b16 %v155
  %v1807 = vunpack.c.h.b16 %v155
  %v1808 = vunpack.c.l.b16 %v156
  %v1809 = vunpack.c.h.b16 %v156
  %v1810 = vunpack.c.l.b16 %v157
  %v1811 = vunpack.c.h.b16 %v157
  %v1812 = vunpack.c.l.b16 %v158
  %v1813 = vunpack.c.h.b16 %v158
  %v1814 = vunpack.c.l.b16 %v159
  %v1815 = vunpack.c.h.b16 %v159
  %v1816 = vunpack.c.l.b16 %v160
  %v1817 = vunpack.c.h.b16 %v160
  %v1818 = vunpack.c.l.b16 %v161
  %v1819 = vunpack.c.h.b16 %v161
  %v1820 = vunpack.c.l.b16 %v162
  %v1821 = vunpack.c.h.b16 %v162
  %v1822 = vunpack.c.l.b16 %v163
  %v1823 = vunpack.c.h.b16 %v163
  %v1824 = vunpack.c.l.b16 %v164
  %v1825 = vunpack.c.h.b16 %v164
  %v1826 = vunpack.c.l.b16 %v165
  %v1827 = vunpack.c.h.b16 %v165
  %v1828 = vunpack.c.l.b16 %v166
  %v1829 = vunpack.c.h.b16 %v166
  %v1830 = vunpack.c.l.b16 %v167
  %v1831 = vunpack.c.h.b16 %v167
  %v1832 = vunpack.c.l.b16 %v168
  %v1833 = vunpack.c.h.b16 %v168
  %v1834 = vunpack.c.l.b16 %v169
  %v1835 = vunpack.c.h.b16 %v169
  %v1836 = vunpack.c.l.b16 %v170
  %v1837 = vunpack.c.h.b16 %v170
  %v1838 = vunpack.c.l.b16 %v171
  %v1839 = vunpack.c.h.b16 %v171
  %v1840 = vunpack.c.l.b16 %v172
  %v1841 = vunpack.c.h.b16 %v172
  %v1842 = vunpack.c.l.b16 %v173
  %v1843 = vunpack.c.h.b16 %v173
  %v1844 = vunpack.c.l.b16 %v174
  %v1845 = vunpack.c.h.b16 %v174
  %v1846 = vunpack.c.l.b16 %v175
  %v1847 = vunpack.c.h.b16 %v175
  %v1848 = vunpack.c.l.b16 %v176
  %v1849 = vunpack.c.h.b16 %v176
  %v1850 = vunpack.c.l.b16 %v177
  %v1851 = vunpack.c.h.b16 %v177
  %v1852 = vunpack.c.l.b16 %v178
  %v1853 = vunpack.c.h.b16 %v178
  %v1854 = vunpack.c.l.b16 %v179
  %v1855 = vunpack.c.h.b16 %v179
  %v1856 = vunpack.c.l.b16 %v180
  %v1857 = vunpack.c.h.b16 %v180
  %v1858 = vunpack.c.l.b16 %v181
  %v1859 = vunpack.c.h.b16 %v181
  %v1860 = vunpack.c.l.b16 %v182
  %v1861 = vunpack.c.h.b16 %v182
  %v1862 = vunpack.c.l.b16 %v183
  %v1863 = vunpack.c.h.b16 %v183
  %v1864 = vunpack.c.l.b16 %v184
  %v1865 = vunpack.c.h.b16 %v184
  %v1866 = vunpack.c.l.b16 %v185
  %v1867 = vunpack.c.h.b16 %v185
  %v1868 = vunpack.c.l.b16 %v186
  %v1869 = vunpack.c.h.b16 %v186
  %v1870 = vunpack.c.l.b16 %v187
  %v1871 = vunpack.c.h.b16 %v187
  %v1872 = vunpack.c.l.b16 %v188
  %v1873 = vunpack.c.h.b16 %v188
  %v1874 = vunpack.c.l.b16 %v189
  %v1875 = vunpack.c.h.b16 %v189
  %v1876 = vunpack.c.l.b16 %v190
  %v1877 = vunpack.c.h.b16 %v190
  %v1878 = vunpack.c.l.b16 %v191
  %v1879 = vunpack.c.h.b16 %v191
  %v1880 = vunpack.c.l.b16 %v192
  %v1881 = vunpack.c.h.b16 %v192
  %v1882 = vunpack.c.l.b16 %v193
  %v1883 = vunpack.c.h.b16 %v193
  %v1884 = vunpack.c.l.b16 %v194
  %v1885 = vunpack.c.h.b16 %v194
  %v1886 = vunpack.c.l.b16 %v195
  %v1887 = vunpack.c.h.b16 %v195
  %v1888 = vunpack.c.l.b16 %v196
  %v1889 = vunpack.c.h.b16 %v196
  %v1890 = vunpack.c.l.b16 %v197
  %v1891 = vunpack.c.h.b16 %v197
  %v1892 = vunpack.c.l.b16 %v198
  %v1893 = vunpack.c.h.b16 %v198
  %v1894 = vunpack.c.l.b16 %v199
  %v1895 = vunpack.c.h.b16 %v199
  %v1896 = vunpack.c.l.b16 %v200
  %v1897 = vunpack.c.h.b16 %v200
  %v1898 = vunpack.c.l.b16 %v201
  %v1899 = vunpack.c.h.b16 %v201
  %v1900 = vunpack.c.l.b16 %v202
  %v1901 = vunpack.c.h.b16 %v202
  %v1902 = vunpack.c.l.b16 %v203
  %v1903 = vunpack.c.h.b16 %v203
  %v1904 = vunpack.c.l.b16 %v204
  %v1905 = vunpack.c.h.b16 %v204
  %v1906 = vunpack.c.l.b16 %v205
  %v1907 = vunpack.c.h.b16 %v205
  %v1908 = vunpack.c.l.b16 %v206
  %v1909 = vunpack.c.h.b16 %v206
  %v1910 = vunpack.c.l.b16 %v207
  %v1911 = vunpack.c.h.b16 %v207
  %v1912 = vunpack.c.l.b16 %v208
  %v1913 = vunpack.c.h.b16 %v208
  %v1914 = vunpack.c.l.b16 %v209
  %v1915 = vunpack.c.h.b16 %v209
  %v1916 = vunpack.c.l.b16 %v210
  %v1917 = vunpack.c.h.b16 %v210
  %v1918 = vunpack.c.l.b16 %v211
  %v1919 = vunpack.c.h.b16 %v211
  %v1920 = vunpack.c.l.b16 %v212
  %v1921 = vunpack.c.h.b16 %v212
  %v1922 = vunpack.c.l.b16 %v213
  %v1923 = vunpack.c.h.b16 %v213
  %v1924 = vunpack.c.l.b16 %v214
  %v1925 = vunpack.c.h.b16 %v214
  %v1926 = vunpack.c.l.b16 %v215
  %v1927 = vunpack.c.h.b16 %v215
  %v1928 = vunpack.c.l.b16 %v216
  %v1929 = vunpack.c.h.b16 %v216
  %v1930 = vunpack.c.l.b16 %v217
  %v1931 = vunpack.c.h.b16 %v217
  %v1932 = vunpack.c.l.b16 %v218
  %v1933 = vunpack.c.h.b16 %v218
  %v1934 = vunpack.c.l.b16 %v219
  %v1935 = vunpack.c.h.b16 %v219
  %v1936 = vunpack.c.l.b16 %v220
  %v1937 = vunpack.c.h.b16 %v220
  %v1938 = vunpack.c.l.b16 %v221
  %v1939 = vunpack.c.h.b16 %v221
  %v1940 = vunpack.c.l.b16 %v222
  %v1941 = vunpack.c.h.b16 %v222
  %v1942 = vunpack.c.l.b16 %v223
  %v1943 = vunpack.c.h.b16 %v223
  %v1944 = vunpack.c.l.b16 %v224
  %v1945 = vunpack.c.h.b16 %v224
  %v1946 = vunpack.c.l.b16 %v225
  %v1947 = vunpack.c.h.b16 %v225
  %v1948 = vunpack.c.l.b16 %v226
  %v1949 = vunpack.c.h.b16 %v226
  %v1950 = vunpack.c.l.b16 %v227
  %v1951 = vunpack.c.h.b16 %v227
  %v1952 = vunpack.c.l.b16 %v228
  %v1953 = vunpack.c.h.b16 %v228
  %v1954 = vunpack.c.l.b16 %v229
  %v1955 = vunpack.c.h.b16 %v229
  %v1956 = vunpack.c.l.b16 %v230
  %v1957 = vunpack.c.h.b16 %v230
  %v1958 = vunpack.c.l.b16 %v231
  %v1959 = vunpack.c.h.b16 %v231
  %v1960 = vunpack.c.l.b16 %v232
  %v1961 = vunpack.c.h.b16 %v232
  %v1962 = vunpack.c.l.b16 %v233
  %v1963 = vunpack.c.h.b16 %v233
  %v1964 = vunpack.c.l.b16 %v234
  %v1965 = vunpack.c.h.b16 %v234
  %v1966 = vunpack.c.l.b16 %v235
  %v1967 = vunpack.c.h.b16 %v235
  %v1968 = vunpack.c.l.b16 %v236
  %v1969 = vunpack.c.h.b16 %v236
  %v1970 = vunpack.c.l.b16 %v237
  %v1971 = vunpack.c.h.b16 %v237
  %v1972 = vunpack.c.l.b16 %v238
  %v1973 = vunpack.c.h.b16 %v238
  %v1974 = vunpack.c.l.b16 %v239
  %v1975 = vunpack.c.h.b16 %v239
  %v1976 = vunpack.c.l.b16 %v240
  %v1977 = vunpack.c.h.b16 %v240
  %v1978 = vunpack.c.l.b16 %v241
  %v1979 = vunpack.c.h.b16 %v241
  %v1980 = vunpack.c.l.b16 %v242
  %v1981 = vunpack.c.h.b16 %v242
  %v1982 = vunpack.c.l.b16 %v243
  %v1983 = vunpack.c.h.b16 %v243
  %v1984 = vunpack.c.l.b16 %v244
  %v1985 = vunpack.c.h.b16 %v244
  %v1986 = vunpack.c.l.b16 %v245
  %v1987 = vunpack.c.h.b16 %v245
  %v1988 = vunpack.c.l.b16 %v246
  %v1989 = vunpack.c.h.b16 %v246
  %v1990 = vunpack.c.l.b16 %v247
  %v1991 = vunpack.c.h.b16 %v247
  %v1992 = vunpack.c.l.b16 %v248
  %v1993 = vunpack.c.h.b16 %v248
  %v1994 = vunpack.c.l.b16 %v249
  %v1995 = vunpack.c.h.b16 %v249
  %v1996 = vunpack.c.l.b16 %v250
  %v1997 = vunpack.c.h.b16 %v250
  %v1998 = vunpack.c.l.b16 %v251
  %v1999 = vunpack.c.h.b16 %v251
  %v2000 = vunpack.c.l.b16 %v252
  %v2001 = vunpack.c.h.b16 %v252
  %v2002 = vunpack.c.l.b16 %v253
  %v2003 = vunpack.c.h.b16 %v253
  %v2004 = vunpack.c.l.b16 %v254
  %v2005 = vunpack.c.h.b16 %v254
  %v2006 = vunpack.c.l.b16 %v255
  %v2007 = vunpack.c.h.b16 %v255
  %v2008 = vunpack.c.l.b16 %v256
  %v2009 = vunpack.c.h.b16 %v256
  %v2010 = vunpack.c.l.b16 %v257
  %v2011 = vunpack.c.h.b16 %v257
  %v2012 = vunpack.c.l.b16 %v258
  %v2013 = vunpack.c.h.b16 %v258
  %v2014 = vunpack.c.l.b16 %v259
  %v2015 = vunpack.c.h.b16 %v259
  %v2016 = vunpack.c.l.b16 %v260
  %v2017 = vunpack.c.h.b16 %v260
  %v2018 = vunpack.c.l.b16 %v261
  %v2019 = vunpack.c.h.b16 %v261
  %v2020 = vunpack.c.l.b16 %v262
  %v2021 = vunpack.c.h.b16 %v262
  %v2022 = vunpack.c.l.b16 %v263
  %v2023 = vunpack.c.h.b16 %v263
  %v2024 = vunpack.c.l.b16 %v264
  %v2025 = vunpack.c.h.b16 %v264
  %v2026 = vunpack.c.l.b16 %v265
  %v2027 = vunpack.c.h.b16 %v265
  %v2028 = vunpack.c.l.b16 %v266
  %v2029 = vunpack.c.h.b16 %v266
  %v2030 = vunpack.c.l.b16 %v267
  %v2031 = vunpack.c.h.b16 %v267
  %v2032 = vunpack.c.l.b16 %v268
  %v2033 = vunpack.c.h.b16 %v268
  %v2034 = vunpack.c.l.b16 %v269
  %v2035 = vunpack.c.h.b16 %v269
  %v2036 = vunpack.c.l.b16 %v270
  %v2037 = vunpack.c.h.b16 %v270
  %v2038 = vunpack.c.l.b16 %v271
  %v2039 = vunpack.c.h.b16 %v271
  %v2040 = vunpack.c.l.b16 %v272
  %v2041 = vunpack.c.h.b16 %v272
  %v2042 = vunpack.c.l.b16 %v273
  %v2043 = vunpack.c.h.b16 %v273
  %v2044 = vunpack.c.l.b16 %v274
  %v2045 = vunpack.c.h.b16 %v274
  %v2046 = vunpack.c.l.b16 %v275
  %v2047 = vunpack.c.h.b16 %v275
  %v2048 = vunpack.c.l.b16 %v276
  %v2049 = vunpack.c.h.b16 %v276
  %v2050 = vunpack.c.l.b16 %v277
  %v2051 = vunpack.c.h.b16 %v277
  %v2052 = vunpack.c.l.b16 %v278
  %v2053 = vunpack.c.h.b16 %v278
  %v2054 = vunpack.c.l.b16 %v279
  %v2055 = vunpack.c.h.b16 %v279
  %v2056 = vunpack.c.l.b16 %v280
  %v2057 = vunpack.c.h.b16 %v280
  %v2058 = vunpack.c.l.b16 %v281
  %v2059 = vunpack.c.h.b16 %v281
  %v2060 = vunpack.c.l.b16 %v282
  %v2061 = vunpack.c.h.b16 %v282
  %v2062 = vunpack.c.l.b16 %v283
  %v2063 = vunpack.c.h.b16 %v283
  %v2064 = vunpack.c.l.b16 %v284
  %v2065 = vunpack.c.h.b16 %v284
  %v2066 = vunpack.c.l.b16 %v285
  %v2067 = vunpack.c.h.b16 %v285
  %v2068 = vunpack.c.l.b16 %v286
  %v2069 = vunpack.c.h.b16 %v286
  %v2070 = vunpack.c.l.b16 %v287
  %v2071 = vunpack.c.h.b16 %v287
  %v2072 = vunpack.c.l.b16 %v288
  %v2073 = vunpack.c.h.b16 %v288
  %v2074 = vunpack.c.l.b16 %v289
  %v2075 = vunpack.c.h.b16 %v289
  %v2076 = vunpack.c.l.b16 %v290
  %v2077 = vunpack.c.h.b16 %v290
  %v2078 = vunpack.c.l.b16 %v291
  %v2079 = vunpack.c.h.b16 %v291
  %v2080 = vunpack.c.l.b16 %v292
  %v2081 = vunpack.c.h.b16 %v292
  %v2082 = vunpack.c.l.b16 %v293
  %v2083 = vunpack.c.h.b16 %v293
  %v2084 = vunpack.c.l.b16 %v294
  %v2085 = vunpack.c.h.b16 %v294
  %v2086 = vunpack.c.l.b16 %v295
  %v2087 = vunpack.c.h.b16 %v295
  %v2088 = vunpack.c.l.b16 %v296
  %v2089 = vunpack.c.h.b16 %v296
  %v2090 = vunpack.c.l.b16 %v297
  %v2091 = vunpack.c.h.b16 %v297
  %v2092 = vunpack.c.l.b16 %v298
  %v2093 = vunpack.c.h.b16 %v298
  %v2094 = vunpack.c.l.b16 %v299
  %v2095 = vunpack.c.h.b16 %v299
  %v2096 = vunpack.c.l.b16 %v300
  %v2097 = vunpack.c.h.b16 %v300
  %v2098 = vunpack.c.l.b16 %v301
  %v2099 = vunpack.c.h.b16 %v301
  %v2100 = vunpack.c.l.b16 %v302
  %v2101 = vunpack.c.h.b16 %v302
  %v2102 = vunpack.c.l.b16 %v303
  %v2103 = vunpack.c.h.b16 %v303
  %v2104 = vunpack.c.l.b16 %v304
  %v2105 = vunpack.c.h.b16 %v304
  %v2106 = vunpack.c.l.b16 %v305
  %v2107 = vunpack.c.h.b16 %v305
  %v2108 = vunpack.c.l.b16 %v306
  %v2109 = vunpack.c.h.b16 %v306
  %v2110 = vunpack.c.l.b16 %v307
  %v2111 = vunpack.c.h.b16 %v307
  %v2112 = vunpack.c.l.b16 %v308
  %v2113 = vunpack.c.h.b16 %v308
  %v2114 = vunpack.c.l.b16 %v309
  %v2115 = vunpack.c.h.b16 %v309
  %v2116 = vunpack.c.l.b16 %v310
  %v2117 = vunpack.c.h.b16 %v310
  %v2118 = vunpack.c.l.b16 %v311
  %v2119 = vunpack.c.h.b16 %v311
  %v2120 = vunpack.c.l.b16 %v312
  %v2121 = vunpack.c.h.b16 %v312
  %v2122 = vunpack.c.l.b16 %v313
  %v2123 = vunpack.c.h.b16 %v313
  %v2124 = vunpack.c.l.b16 %v314
  %v2125 = vunpack.c.h.b16 %v314
  %v2126 = vunpack.c.l.b16 %v315
  %v2127 = vunpack.c.h.b16 %v315
  %v2128 = vunpack.c.l.b16 %v316
  %v2129 = vunpack.c.h.b16 %v316
  %v2130 = vunpack.c.l.b16 %v317
  %v2131 = vunpack.c.h.b16 %v317
  %v2132 = vunpack.c.l.b16 %v318
  %v2133 = vunpack.c.h.b16 %v318
  %v2134 = vunpack.c.l.b16 %v319
  %v2135 = vunpack.c.h.b16 %v319
  %v2136 = vunpack.c.l.b16 %v320
  %v2137 = vunpack.c.h.b16 %v320
  %v2138 = vunpack.c.l.b16 %v321
  %v2139 = vunpack.c.h.b16 %v321
  %v2140 = vunpack.c.l.b16 %v322
  %v2141 = vunpack.c.h.b16 %v322
  %v2142 = vunpack.c.l.b16 %v323
  %v2143 = vunpack.c.h.b16 %v323
  %v2144 = vunpack.c.l.b16 %v324
  %v2145 = vunpack.c.h.b16 %v324
  %v2146 = vunpack.c.l.b16 %v325
  %v2147 = vunpack.c.h.b16 %v325
  %v2148 = vunpack.c.l.b16 %v326
  %v2149 = vunpack.c.h.b16 %v326
  %v2150 = vunpack.c.l.b16 %v327
  %v2151 = vunpack.c.h.b16 %v327
  %v2152 = vunpack.c.l.b16 %v328
  %v2153 = vunpack.c.h.b16 %v328
  %v2154 = vunpack.c.l.b16 %v329
  %v2155 = vunpack.c.h.b16 %v329
  %v2156 = vunpack.c.l.b16 %v330
  %v2157 = vunpack.c.h.b16 %v330
  %v2158 = vunpack.c.l.b16 %v331
  %v2159 = vunpack.c.h.b16 %v331
  %v2160 = vunpack.c.l.b16 %v332
  %v2161 = vunpack.c.h.b16 %v332
  %v2162 = vunpack.c.l.b16 %v333
  %v2163 = vunpack.c.h.b16 %v333
  %v2164 = vunpack.c.l.b16 %v334
  %v2165 = vunpack.c.h.b16 %v334
  %v2166 = vunpack.c.l.b16 %v335
  %v2167 = vunpack.c.h.b16 %v335
  %v2168 = vunpack.c.l.b16 %v336
  %v2169 = vunpack.c.h.b16 %v336
  %v2170 = vunpack.c.l.b16 %v337
  %v2171 = vunpack.c.h.b16 %v337
  %v2172 = vunpack.c.l.b16 %v338
  %v2173 = vunpack.c.h.b16 %v338
  %v2174 = vunpack.c.l.b16 %v339
  %v2175 = vunpack.c.h.b16 %v339
  %v2176 = vunpack.c.l.b16 %v340
  %v2177 = vunpack.c.h.b16 %v340
  %v2178 = vunpack.c.l.b16 %v341
  %v2179 = vunpack.c.h.b16 %v341
  %v2180 = vunpack.c.l.b16 %v342
  %v2181 = vunpack.c.h.b16 %v342
  %v2182 = vunpack.c.l.b16 %v343
  %v2183 = vunpack.c.h.b16 %v343
  %v2184 = vunpack.c.l.b16 %v344
  %v2185 = vunpack.c.h.b16 %v344
  %v2186 = vunpack.c.l.b16 %v345
  %v2187 = vunpack.c.h.b16 %v345
  %v2188 = vunpack.c.l.b16 %v346
  %v2189 = vunpack.c.h.b16 %v346
  %v2190 = vunpack.c.l.b16 %v347
  %v2191 = vunpack.c.h.b16 %v347
  %v2192 = vunpack.c.l.b16 %v348
  %v2193 = vunpack.c.h.b16 %v348
  %v2194 = vunpack.c.l.b16 %v349
  %v2195 = vunpack.c.h.b16 %v349
  %v2196 = vunpack.c.l.b16 %v350
  %v2197 = vunpack.c.h.b16 %v350
  %v2198 = vunpack.c.l.b16 %v351
  %v2199 = vunpack.c.h.b16 %v351
  %v2200 = vunpack.c.l.b16 %v352
  %v2201 = vunpack.c.h.b16 %v352
  %v2202 = vunpack.c.l.b16 %v353
  %v2203 = vunpack.c.h.b16 %v353
  %v2204 = vunpack.c.l.b16 %v354
  %v2205 = vunpack.c.h.b16 %v354
  %v2206 = vunpack.c.l.b16 %v355
  %v2207 = vunpack.c.h.b16 %v355
  %v2208 = vunpack.c.l.b16 %v356
  %v2209 = vunpack.c.h.b16 %v356
  %v2210 = vunpack.c.l.b16 %v357
  %v2211 = vunpack.c.h.b16 %v357
  %v2212 = vunpack.c.l.b16 %v358
  %v2213 = vunpack.c.h.b16 %v358
  %v2214 = vunpack.c.l.b16 %v359
  %v2215 = vunpack.c.h.b16 %v359
  %v2216 = vunpack.c.l.b16 %v360
  %v2217 = vunpack.c.h.b16 %v360
  %v2218 = vunpack.c.l.b16 %v361
  %v2219 = vunpack.c.h.b16 %v361
  %v2220 = vunpack.c.l.b16 %v362
  %v2221 = vunpack.c.h.b16 %v362
  %v2222 = vunpack.c.l.b16 %v363
  %v2223 = vunpack.c.h.b16 %v363
  %v2224 = vunpack.c.l.b16 %v364
  %v2225 = vunpack.c.h.b16 %v364
  %v2226 = vunpack.c.l.b16 %v365
  %v2227 = vunpack.c.h.b16 %v365
  %v2228 = vunpack.c.l.b16 %v366
  %v2229 = vunpack.c.h.b16 %v366
  %v2230 = vunpack.c.l.b16 %v367
  %v2231 = vunpack.c.h.b16 %v367
  %v2232 = vunpack.c.l.b16 %v368
  %v2233 = vunpack.c.h.b16 %v368
  %v2234 = vunpack.c.l.b16 %v369
  %v2235 = vunpack.c.h.b16 %v369
  %v2236 = vunpack.c.l.b16 %v370
  %v2237 = vunpack.c.h.b16 %v370
  %v2238 = vunpack.c.l.b16 %v371
  %v2239 = vunpack.c.h.b16 %v371
  %v2240 = vunpack.c.l.b16 %v372
  %v2241 = vunpack.c.h.b16 %v372
  %v2242 = vunpack.c.l.b16 %v373
  %v2243 = vunpack.c.h.b16 %v373
  %v2244 = vunpack.c.l.b16 %v374
  %v2245 = vunpack.c.h.b16 %v374
  %v2246 = vunpack.c.l.b16 %v375
  %v2247 = vunpack.c.h.b16 %v375
  %v2248 = vunpack.c.l.b16 %v376
  %v2249 = vunpack.c.h.b16 %v376
  %v2250 = vunpack.c.l.b16 %v377
  %v2251 = vunpack.c.h.b16 %v377
  %v2252 = vunpack.c.l.b16 %v378
  %v2253 = vunpack.c.h.b16 %v378
  %v2254 = vunpack.c.l.b16 %v379
  %v2255 = vunpack.c.h.b16 %v379
  %v2256 = vunpack.c.l.b16 %v380
  %v2257 = vunpack.c.h.b16 %v380
  %v2258 = vunpack.c.l.b16 %v381
  %v2259 = vunpack.c.h.b16 %v381
  %v2260 = vunpack.c.l.b16 %v382
  %v2261 = vunpack.c.h.b16 %v382
  %v2262 = vunpack.c.l.b16 %v383
  %v2263 = vunpack.c.h.b16 %v383
  %v2264 = vunpack.c.l.b16 %v384
  %v2265 = vunpack.c.h.b16 %v384
  %v2266 = vunpack.c.l.b16 %v385
  %v2267 = vunpack.c.h.b16 %v385
  %v2268 = vunpack.c.l.b16 %v386
  %v2269 = vunpack.c.h.b16 %v386
  %v2270 = vunpack.c.l.b16 %v387
  %v2271 = vunpack.c.h.b16 %v387
  %v2272 = vunpack.c.l.b16 %v388
  %v2273 = vunpack.c.h.b16 %v388
  %v2274 = vunpack.c.l.b16 %v389
  %v2275 = vunpack.c.h.b16 %v389
  %v2276 = vunpack.c.l.b16 %v390
  %v2277 = vunpack.c.h.b16 %v390
  %v2278 = vunpack.c.l.b16 %v391
  %v2279 = vunpack.c.h.b16 %v391
  %v2280 = vunpack.c.l.b16 %v392
  %v2281 = vunpack.c.h.b16 %v392
  %v2282 = vunpack.c.l.b16 %v393
  %v2283 = vunpack.c.h.b16 %v393
  %v2284 = vunpack.c.l.b16 %v394
  %v2285 = vunpack.c.h.b16 %v394
  %v2286 = vunpack.c.l.b16 %v395
  %v2287 = vunpack.c.h.b16 %v395
  %v2288 = vunpack.c.l.b16 %v396
  %v2289 = vunpack.c.h.b16 %v396
  %v2290 = vunpack.c.l.b16 %v397
  %v2291 = vunpack.c.h.b16 %v397
  %v2292 = vunpack.c.l.b16 %v398
  %v2293 = vunpack.c.h.b16 %v398
  %v2294 = vunpack.c.l.b16 %v399
  %v2295 = vunpack.c.h.b16 %v399
  %v2296 = vunpack.c.l.b16 %v400
  %v2297 = vunpack.c.h.b16 %v400
  %v2298 = vunpack.c.l.b16 %v401
  %v2299 = vunpack.c.h.b16 %v401
  %v2300 = vunpack.c.l.b16 %v402
  %v2301 = vunpack.c.h.b16 %v402
  %v2302 = vunpack.c.l.b16 %v403
  %v2303 = vunpack.c.h.b16 %v403
  %v2304 = vunpack.c.l.b16 %v404
  %v2305 = vunpack.c.h.b16 %v404
  %v2306 = vunpack.c.l.b16 %v405
  %v2307 = vunpack.c.h.b16 %v405
  %v2308 = vunpack.c.l.b16 %v406
  %v2309 = vunpack.c.h.b16 %v406
  %v2310 = vunpack.c.l.b16 %v407
  %v2311 = vunpack.c.h.b16 %v407
  %v2312 = vunpack.c.l.b16 %v408
  %v2313 = vunpack.c.h.b16 %v408
  %v2314 = vunpack.c.l.b16 %v409
  %v2315 = vunpack.c.h.b16 %v409
  %v2316 = vunpack.c.l.b16 %v410
  %v2317 = vunpack.c.h.b16 %v410
  %v2318 = vunpack.c.l.b16 %v411
  %v2319 = vunpack.c.h.b16 %v411
  %v2320 = vunpack.c.l.b16 %v412
  %v2321 = vunpack.c.h.b16 %v412
  %v2322 = vunpack.c.l.b16 %v413
  %v2323 = vunpack.c.h.b16 %v413
  %v2324 = vunpack.c.l.b16 %v414
  %v2325 = vunpack.c.h.b16 %v414
  %v2326 = vunpack.c.l.b16 %v415
  %v2327 = vunpack.c.h.b16 %v415
  %v2328 = vunpack.c.l.b16 %v416
  %v2329 = vunpack.c.h.b16 %v416
  %v2330 = vunpack.c.l.b16 %v417
  %v2331 = vunpack.c.h.b16 %v417
  %v2332 = vunpack.c.l.b16 %v418
  %v2333 = vunpack.c.h.b16 %v418
  %v2334 = vunpack.c.l.b16 %v419
  %v2335 = vunpack.c.h.b16 %v419
  %v2336 = vunpack.c.l.b16 %v420
  %v2337 = vunpack.c.h.b16 %v420
  %v2338 = vunpack.c.l.b16 %v421
  %v2339 = vunpack.c.h.b16 %v421
  %v2340 = vunpack.c.l.b16 %v422
  %v2341 = vunpack.c.h.b16 %v422
  %v2342 = vunpack.c.l.b16 %v423
  %v2343 = vunpack.c.h.b16 %v423
  %v2344 = vunpack.c.l.b16 %v424
  %v2345 = vunpack.c.h.b16 %v424
  %v2346 = vunpack.c.l.b16 %v425
  %v2347 = vunpack.c.h.b16 %v425
  %v2348 = vunpack.c.l.b16 %v426
  %v2349 = vunpack.c.h.b16 %v426
  %v2350 = vunpack.c.l.b16 %v427
  %v2351 = vunpack.c.h.b16 %v427
  %v2352 = vunpack.c.l.b16 %v428
  %v2353 = vunpack.c.h.b16 %v428
  %v2354 = vunpack.c.l.b16 %v429
  %v2355 = vunpack.c.h.b16 %v429
  %v2356 = vunpack.c.l.b16 %v430
  %v2357 = vunpack.c.h.b16 %v430
  %v2358 = vunpack.c.l.b16 %v431
  %v2359 = vunpack.c.h.b16 %v431
  %v2360 = vunpack.c.l.b16 %v432
  %v2361 = vunpack.c.h.b16 %v432
  %v2362 = vunpack.c.l.b16 %v433
  %v2363 = vunpack.c.h.b16 %v433
  %v2364 = vunpack.c.l.b16 %v434
  %v2365 = vunpack.c.h.b16 %v434
  %v2366 = vunpack.c.l.b16 %v435
  %v2367 = vunpack.c.h.b16 %v435
  %v2368 = vunpack.c.l.b16 %v436
  %v2369 = vunpack.c.h.b16 %v436
  %v2370 = vunpack.c.l.b16 %v437
  %v2371 = vunpack.c.h.b16 %v437
  %v2372 = vunpack.c.l.b16 %v438
  %v2373 = vunpack.c.h.b16 %v438
  %v2374 = vunpack.c.l.b16 %v439
  %v2375 = vunpack.c.h.b16 %v439
  %v2376 = vunpack.c.l.b16 %v440
  %v2377 = vunpack.c.h.b16 %v440
  %v2378 = vunpack.c.l.b16 %v441
  %v2379 = vunpack.c.h.b16 %v441
  %v2380 = vunpack.c.l.b16 %v442
  %v2381 = vunpack.c.h.b16 %v442
  %v2382 = vunpack.c.l.b16 %v443
  %v2383 = vunpack.c.h.b16 %v443
  %v2384 = vunpack.c.l.b16 %v444
  %v2385 = vunpack.c.h.b16 %v444
  %v2386 = vunpack.c.l.b16 %v445
  %v2387 = vunpack.c.h.b16 %v445
  %v2388 = vunpack.c.l.b16 %v446
  %v2389 = vunpack.c.h.b16 %v446
  %v2390 = vunpack.c.l.b16 %v447
  %v2391 = vunpack.c.h.b16 %v447
  %v2392 = vunpack.c.l.b16 %v448
  %v2393 = vunpack.c.h.b16 %v448
  %v2394 = vunpack.c.l.b16 %v449
  %v2395 = vunpack.c.h.b16 %v449
  %v2396 = vunpack.c.l.b16 %v450
  %v2397 = vunpack.c.h.b16 %v450
  %v2398 = vunpack.c.l.b16 %v451
  %v2399 = vunpack.c.h.b16 %v451
  %v2400 = vunpack.c.l.b16 %v452
  %v2401 = vunpack.c.h.b16 %v452
  %v2402 = vunpack.c.l.b16 %v453
  %v2403 = vunpack.c.h.b16 %v453
  %v2404 = vunpack.c.l.b16 %v454
  %v2405 = vunpack.c.h.b16 %v454
  %v2406 = vunpack.c.l.b16 %v455
  %v2407 = vunpack.c.h.b16 %v455
  %v2408 = vunpack.c.l.b16 %v456
  %v2409 = vunpack.c.h.b16 %v456
  %v2410 = vunpack.c.l.b16 %v457
  %v2411 = vunpack.c.h.b16 %v457
  %v2412 = vunpack.c.l.b16 %v458
  %v2413 = vunpack.c.h.b16 %v458
  %v2414 = vunpack.c.l.b16 %v459
  %v2415 = vunpack.c.h.b16 %v459
  %v2416 = vunpack.c.l.b16 %v460
  %v2417 = vunpack.c.h.b16 %v460
  %v2418 = vunpack.c.l.b16 %v461
  %v2419 = vunpack.c.h.b16 %v461
  %v2420 = vunpack.c.l.b16 %v462
  %v2421 = vunpack.c.h.b16 %v462
  %v2422 = vunpack.c.l.b16 %v463
  %v2423 = vunpack.c.h.b16 %v463
  %v2424 = vunpack.c.l.b16 %v464
  %v2425 = vunpack.c.h.b16 %v464
  %v2426 = vunpack.c.l.b16 %v465
  %v2427 = vunpack.c.h.b16 %v465
  %v2428 = vunpack.c.l.b16 %v466
  %v2429 = vunpack.c.h.b16 %v466
  %v2430 = vunpack.c.l.b16 %v467
  %v2431 = vunpack.c.h.b16 %v467
  %v2432 = vunpack.c.l.b16 %v468
  %v2433 = vunpack.c.h.b16 %v468
  %v2434 = vunpack.c.l.b16 %v469
  %v2435 = vunpack.c.h.b16 %v469
  %v2436 = vunpack.c.l.b16 %v470
  %v2437 = vunpack.c.h.b16 %v470
  %v2438 = vunpack.c.l.b16 %v471
  %v2439 = vunpack.c.h.b16 %v471
  %v2440 = vunpack.c.l.b16 %v472
  %v2441 = vunpack.c.h.b16 %v472
  %v2442 = vunpack.c.l.b16 %v473
  %v2443 = vunpack.c.h.b16 %v473
  %v2444 = vunpack.c.l.b16 %v474
  %v2445 = vunpack.c.h.b16 %v474
  %v2446 = vunpack.c.l.b16 %v475
  %v2447 = vunpack.c.h.b16 %v475
  %v2448 = vunpack.c.l.b16 %v476
  %v2449 = vunpack.c.h.b16 %v476
  %v2450 = vunpack.c.l.b16 %v477
  %v2451 = vunpack.c.h.b16 %v477
  %v2452 = vunpack.c.l.b16 %v478
  %v2453 = vunpack.c.h.b16 %v478
  %v2454 = vunpack.c.l.b16 %v479
  %v2455 = vunpack.c.h.b16 %v479
  %v2456 = vunpack.c.l.b16 %v480
  %v2457 = vunpack.c.h.b16 %v480
  %v2458 = vunpack.c.l.b16 %v481
  %v2459 = vunpack.c.h.b16 %v481
  %v2460 = vunpack.c.l.b16 %v482
  %v2461 = vunpack.c.h.b16 %v482
  %v2462 = vunpack.c.l.b16 %v483
  %v2463 = vunpack.c.h.b16 %v483
  %v2464 = vunpack.c.l.b16 %v484
  %v2465 = vunpack.c.h.b16 %v484
  %v2466 = vunpack.c.l.b16 %v485
  %v2467 = vunpack.c.h.b16 %v485
  %v2468 = vunpack.c.l.b16 %v486
  %v2469 = vunpack.c.h.b16 %v486
  %v2470 = vunpack.c.l.b16 %v487
  %v2471 = vunpack.c.h.b16 %v487
  %v2472 = vunpack.c.l.b16 %v488
  %v2473 = vunpack.c.h.b16 %v488
  %v2474 = vunpack.c.l.b16 %v489
  %v2475 = vunpack.c.h.b16 %v489
  %v2476 = vunpack.c.l.b16 %v490
  %v2477 = vunpack.c.h.b16 %v490
  %v2478 = vunpack.c.l.b16 %v491
  %v2479 = vunpack.c.h.b16 %v491
  %v2480 = vunpack.c.l.b16 %v492
  %v2481 = vunpack.c.h.b16 %v492
  %v2482 = vunpack.c.l.b16 %v493
  %v2483 = vunpack.c.h.b16 %v493
  %v2484 = vunpack.c.l.b16 %v494
  %v2485 = vunpack.c.h.b16 %v494
  %v2486 = vunpack.c.l.b16 %v495
  %v2487 = vunpack.c.h.b16 %v495
  %v2488 = vunpack.c.l.b16 %v496
  %v2489 = vunpack.c.h.b16 %v496
  %v2490 = vunpack.c.l.b16 %v497
  %v2491 = vunpack.c.h.b16 %v497
  %v2492 = vunpack.c.l.b16 %v498
  %v2493 = vunpack.c.h.b16 %v498
  %v2494 = vunpack.c.l.b16 %v499
  %v2495 = vunpack.c.h.b16 %v499
  %v2496 = vunpack.c.l.b16 %v500
  %v2497 = vunpack.c.h.b16 %v500
  %v2498 = vunpack.c.l.b16 %v501
  %v2499 = vunpack.c.h.b16 %v501
  %v2500 = vunpack.c.l.b16 %v502
  %v2501 = vunpack.c.h.b16 %v502
  %v2502 = vunpack.c.l.b16 %v503
  %v2503 = vunpack.c.h.b16 %v503
  %v2504 = vunpack.c.l.b16 %v504
  %v2505 = vunpack.c.h.b16 %v504
  %v2506 = vunpack.c.l.b16 %v505
  %v2507 = vunpack.c.h.b16 %v505
  %v2508 = vunpack.c.l.b16 %v506
  %v2509 = vunpack.c.h.b16 %v506
  %v2510 = vunpack.c.l.b16 %v507
  %v2511 = vunpack.c.h.b16 %v507
  %v2512 = vunpack.c.l.b16 %v508
  %v2513 = vunpack.c.h.b16 %v508
  %v2514 = vunpack.c.l.b16 %v509
  %v2515 = vunpack.c.h.b16 %v509
  %v2516 = vunpack.c.l.b16 %v510
  %v2517 = vunpack.c.h.b16 %v510
  %v2518 = vunpack.c.l.b16 %v511
  %v2519 = vunpack.c.h.b16 %v511
  %v2520 = vunpack.c.l.b16 %v512
  %v2521 = vunpack.c.h.b16 %v512
  %v2522 = vunpack.c.l.b16 %v513
  %v2523 = vunpack.c.h.b16 %v513
  %v2524 = vunpack.c.l.b16 %v514
  %v2525 = vunpack.c.h.b16 %v514
  %v2526 = vunpack.c.l.b16 %v515
  %v2527 = vunpack.c.h.b16 %v515
  %v2528 = vunpack.c.l.b16 %v516
  %v2529 = vunpack.c.h.b16 %v516
  %v2530 = vunpack.c.l.b16 %v517
  %v2531 = vunpack.c.h.b16 %v517
  %v2532 = vunpack.c.l.b16 %v518
  %v2533 = vunpack.c.h.b16 %v518
  %v2534 = vunpack.c.l.b16 %v519
  %v2535 = vunpack.c.h.b16 %v519
  %v2536 = vunpack.c.l.b16 %v520
  %v2537 = vunpack.c.h.b16 %v520
  %v2538 = vunpack.c.l.b16 %v521
  %v2539 = vunpack.c.h.b16 %v521
  %v2540 = vunpack.c.l.b16 %v522
  %v2541 = vunpack.c.h.b16 %v522
  %v2542 = vunpack.c.l.b16 %v523
  %v2543 = vunpack.c.h.b16 %v523
  %v2544 = vunpack.c.l.b16 %v524
  %v2545 = vunpack.c.h.b16 %v524
  %v2546 = vunpack.c.l.b16 %v525
  %v2547 = vunpack.c.h.b16 %v525
  %v2548 = vunpack.c.l.b16 %v526
  %v2549 = vunpack.c.h.b16 %v526
  %v2550 = vunpack.c.l.b16 %v527
  %v2551 = vunpack.c.h.b16 %v527
  %v2552 = vunpack.c.l.b16 %v528
  %v2553 = vunpack.c.h.b16 %v528
  %v2554 = vunpack.c.l.b16 %v529
  %v2555 = vunpack.c.h.b16 %v529
  %v2556 = vunpack.c.l.b16 %v530
  %v2557 = vunpack.c.h.b16 %v530
  %v2558 = vunpack.c.l.b16 %v531
  %v2559 = vunpack.c.h.b16 %v531
  %v2560 = vunpack.c.l.b16 %v532
  %v2561 = vunpack.c.h.b16 %v532
  %v2562 = vunpack.c.l.b16 %v533
  %v2563 = vunpack.c.h.b16 %v533
  %v2564 = vunpack.c.l.b16 %v534
  %v2565 = vunpack.c.h.b16 %v534
  %v2566 = vunpack.c.l.b16 %v535
  %v2567 = vunpack.c.h.b16 %v535
  %v2568 = vunpack.c.l.b16 %v536
  %v2569 = vunpack.c.h.b16 %v536
  %v2570 = vunpack.c.l.b16 %v537
  %v2571 = vunpack.c.h.b16 %v537
  %v2572 = vunpack.c.l.b16 %v538
  %v2573 = vunpack.c.h.b16 %v538
  %v2574 = vunpack.c.l.b16 %v539
  %v2575 = vunpack.c.h.b16 %v539
  %v2576 = vunpack.c.l.b16 %v540
  %v2577 = vunpack.c.h.b16 %v540
  %v2578 = vunpack.c.l.b16 %v541
  %v2579 = vunpack.c.h.b16 %v541
  %v2580 = vunpack.c.l.b16 %v542
  %v2581 = vunpack.c.h.b16 %v542
  %v2582 = vunpack.c.l.b16 %v543
  %v2583 = vunpack.c.h.b16 %v543
  %v2584 = vunpack.c.l.b16 %v544
  %v2585 = vunpack.c.h.b16 %v544
  %v2586 = vunpack.c.l.b16 %v545
  %v2587 = vunpack.c.h.b16 %v545
  %v2588 = vunpack.c.l.b16 %v546
  %v2589 = vunpack.c.h.b16 %v546
  %v2590 = vunpack.c.l.b16 %v547
  %v2591 = vunpack.c.h.b16 %v547
  %v2592 = vunpack.c.l.b16 %v548
  %v2593 = vunpack.c.h.b16 %v548
  %v2594 = vunpack.c.l.b16 %v549
  %v2595 = vunpack.c.h.b16 %v549
  %v2596 = vunpack.c.l.b16 %v550
  %v2597 = vunpack.c.h.b16 %v550
  %v2598 = vunpack.c.l.b16 %v551
  %v2599 = vunpack.c.h.b16 %v551
  %v2600 = vunpack.c.l.b16 %v552
  %v2601 = vunpack.c.h.b16 %v552
  %v2602 = vunpack.c.l.b16 %v553
  %v2603 = vunpack.c.h.b16 %v553
  %v2604 = vunpack.c.l.b16 %v554
  %v2605 = vunpack.c.h.b16 %v554
  %v2606 = vunpack.c.l.b16 %v555
  %v2607 = vunpack.c.h.b16 %v555
  %v2608 = vunpack.c.l.b16 %v556
  %v2609 = vunpack.c.h.b16 %v556
  %v2610 = vunpack.c.l.b16 %v557
  %v2611 = vunpack.c.h.b16 %v557
  %v2612 = vunpack.c.l.b16 %v558
  %v2613 = vunpack.c.h.b16 %v558
  %v2614 = vunpack.c.l.b16 %v559
  %v2615 = vunpack.c.h.b16 %v559
  %v2616 = vunpack.c.l.b16 %v560
  %v2617 = vunpack.c.h.b16 %v560
  %v2618 = vunpack.c.l.b16 %v561
  %v2619 = vunpack.c.h.b16 %v561
  %v2620 = vunpack.c.l.b16 %v562
  %v2621 = vunpack.c.h.b16 %v562
  %v2622 = vunpack.c.l.b16 %v563
  %v2623 = vunpack.c.h.b16 %v563
  %v2624 = vunpack.c.l.b16 %v564
  %v2625 = vunpack.c.h.b16 %v564
  %v2626 = vunpack.c.l.b16 %v565
  %v2627 = vunpack.c.h.b16 %v565
  %v2628 = vunpack.c.l.b16 %v566
  %v2629 = vunpack.c.h.b16 %v566
  %v2630 = vunpack.c.l.b16 %v567
  %v2631 = vunpack.c.h.b16 %v567
  %v2632 = vunpack.c.l.b16 %v568
  %v2633 = vunpack.c.h.b16 %v568
  %v2634 = vunpack.c.l.b16 %v569
  %v2635 = vunpack.c.h.b16 %v569
  %v2636 = vunpack.c.l.b16 %v570
  %v2637 = vunpack.c.h.b16 %v570
  %v2638 = vunpack.c.l.b16 %v571
  %v2639 = vunpack.c.h.b16 %v571
  %v2640 = vunpack.c.l.b16 %v572
  %v2641 = vunpack.c.h.b16 %v572
  %v2642 = vunpack.c.l.b16 %v573
  %v2643 = vunpack.c.h.b16 %v573
  %v2644 = vunpack.c.l.b16 %v574
  %v2645 = vunpack.c.h.b16 %v574
  %v2646 = vunpack.c.l.b16 %v575
  %v2647 = vunpack.c.h.b16 %v575
  %v2648 = vunpack.c.l.b16 %v576
  %v2649 = vunpack.c.h.b16 %v576
  %v2650 = vunpack.c.l.b16 %v577
  %v2651 = vunpack.c.h.b16 %v577
  %v2652 = vunpack.c.l.b16 %v578
  %v2653 = vunpack.c.h.b16 %v578
  %v2654 = vunpack.c.l.b16 %v579
  %v2655 = vunpack.c.h.b16 %v579
  %v2656 = vunpack.c.l.b16 %v580
  %v2657 = vunpack.c.h.b16 %v580
  %v2658 = vunpack.c.l.b16 %v581
  %v2659 = vunpack.c.h.b16 %v581
  %v2660 = vunpack.c.l.b16 %v582
  %v2661 = vunpack.c.h.b16 %v582
  %v2662 = vunpack.c.l.b16 %v583
  %v2663 = vunpack.c.h.b16 %v583
  %v2664 = vunpack.c.l.b16 %v584
  %v2665 = vunpack.c.h.b16 %v584
  %v2666 = vunpack.c.l.b16 %v585
  %v2667 = vunpack.c.h.b16 %v585
  %v2668 = vunpack.c.l.b16 %v586
  %v2669 = vunpack.c.h.b16 %v586
  %v2670 = vunpack.c.l.b16 %v587
  %v2671 = vunpack.c.h.b16 %v587
  %v2672 = vunpack.c.l.b16 %v588
  %v2673 = vunpack.c.h.b16 %v588
  %v2674 = vunpack.c.l.b16 %v589
  %v2675 = vunpack.c.h.b16 %v589
  %v2676 = vunpack.c.l.b16 %v590
  %v2677 = vunpack.c.h.b16 %v590
  %v2678 = vunpack.c.l.b16 %v591
  %v2679 = vunpack.c.h.b16 %v591
  %v2680 = vunpack.c.l.b16 %v592
  %v2681 = vunpack.c.h.b16 %v592
  %v2682 = vunpack.c.l.b16 %v593
  %v2683 = vunpack.c.h.b16 %v593
  %v2684 = vunpack.c.l.b16 %v594
  %v2685 = vunpack.c.h.b16 %v594
  %v2686 = vunpack.c.l.b16 %v595
  %v2687 = vunpack.c.h.b16 %v595
  %v2688 = vunpack.c.l.b16 %v596
  %v2689 = vunpack.c.h.b16 %v596
  %v2690 = vunpack.c.l.b16 %v597
  %v2691 = vunpack.c.h.b16 %v597
  %v2692 = vunpack.c.l.b16 %v598
  %v2693 = vunpack.c.h.b16 %v598
  %v2694 = vunpack.c.l.b16 %v599
  %v2695 = vunpack.c.h.b16 %v599
  %v2696 = vunpack.c.l.b16 %v600
  %v2697 = vunpack.c.h.b16 %v600
  %v2698 = vunpack.c.l.b16 %v601
  %v2699 = vunpack.c.h.b16 %v601
  %v2700 = vunpack.c.l.b16 %v602
  %v2701 = vunpack.c.h.b16 %v602
  %v2702 = vunpack.c.l.b16 %v603
  %v2703 = vunpack.c.h.b16 %v603
  %v2704 = vunpack.c.l.b16 %v604
  %v2705 = vunpack.c.h.b16 %v604
  %v2706 = vunpack.c.l.b16 %v605
  %v2707 = vunpack.c.h.b16 %v605
  %v2708 = vunpack.c.l.b16 %v606
  %v2709 = vunpack.c.h.b16 %v606
  %v2710 = vunpack.c.l.b16 %v607
  %v2711 = vunpack.c.h.b16 %v607
  %v2712 = vunpack.c.l.b16 %v608
  %v2713 = vunpack.c.h.b16 %v608
  %v2714 = vunpack.c.l.b16 %v609
  %v2715 = vunpack.c.h.b16 %v609
  %v2716 = vunpack.c.l.b16 %v610
  %v2717 = vunpack.c.h.b16 %v610
  %v2718 = vunpack.c.l.b16 %v611
  %v2719 = vunpack.c.h.b16 %v611
  %v2720 = vunpack.c.l.b16 %v612
  %v2721 = vunpack.c.h.b16 %v612
  %v2722 = vunpack.c.l.b16 %v613
  %v2723 = vunpack.c.h.b16 %v613
  %v2724 = vunpack.c.l.b16 %v614
  %v2725 = vunpack.c.h.b16 %v614
  %v2726 = vunpack.c.l.b16 %v615
  %v2727 = vunpack.c.h.b16 %v615
  %v2728 = vunpack.c.l.b16 %v616
  %v2729 = vunpack.c.h.b16 %v616
  %v2730 = vunpack.c.l.b16 %v617
  %v2731 = vunpack.c.h.b16 %v617
  %v2732 = vunpack.c.l.b16 %v618
  %v2733 = vunpack.c.h.b16 %v618
  %v2734 = vunpack.c.l.b16 %v619
  %v2735 = vunpack.c.h.b16 %v619
  %v2736 = vunpack.c.l.b16 %v620
  %v2737 = vunpack.c.h.b16 %v620
  %v2738 = vunpack.c.l.b16 %v621
  %v2739 = vunpack.c.h.b16 %v621
  %v2740 = vunpack.c.l.b16 %v622
  %v2741 = vunpack.c.h.b16 %v622
  %v2742 = vunpack.c.l.b16 %v623
  %v2743 = vunpack.c.h.b16 %v623
  %v2744 = vunpack.c.l.b16 %v624
  %v2745 = vunpack.c.h.b16 %v624
  %v2746 = vunpack.c.l.b16 %v625
  %v2747 = vunpack.c.h.b16 %v625
  %v2748 = vunpack.c.l.b16 %v626
  %v2749 = vunpack.c.h.b16 %v626
  %v2750 = vunpack.c.l.b16 %v627
  %v2751 = vunpack.c.h.b16 %v627
  %v2752 = vunpack.c.l.b16 %v628
  %v2753 = vunpack.c.h.b16 %v628
  %v2754 = vunpack.c.l.b16 %v629
  %v2755 = vunpack.c.h.b16 %v629
  %v2756 = vunpack.c.l.b16 %v630
  %v2757 = vunpack.c.h.b16 %v630
  %v2758 = vunpack.c.l.b16 %v631
  %v2759 = vunpack.c.h.b16 %v631
  %v2760 = vunpack.c.l.b16 %v632
  %v2761 = vunpack.c.h.b16 %v632
  %v2762 = vunpack.c.l.b16 %v633
  %v2763 = vunpack.c.h.b16 %v633
  %v2764 = vunpack.c.l.b16 %v634
  %v2765 = vunpack.c.h.b16 %v634
  %v2766 = vunpack.c.l.b16 %v635
  %v2767 = vunpack.c.h.b16 %v635
  %v2768 = vunpack.c.l.b16 %v636
  %v2769 = vunpack.c.h.b16 %v636
  %v2770 = vunpack.c.l.b16 %v637
  %v2771 = vunpack.c.h.b16 %v637
  %v2772 = vunpack.c.l.b16 %v638
  %v2773 = vunpack.c.h.b16 %v638
  %v2774 = vunpack.c.l.b16 %v639
  %v2775 = vunpack.c.h.b16 %v639
  %v2776 = vunpack.c.l.b16 %v640
  %v2777 = vunpack.c.h.b16 %v640
  %v2778 = vunpack.c.l.b16 %v641
  %v2779 = vunpack.c.h.b16 %v641
  %v2780 = vunpack.c.l.b16 %v642
  %v2781 = vunpack.c.h.b16 %v642
  %v2782 = vunpack.c.l.b16 %v643
  %v2783 = vunpack.c.h.b16 %v643
  %v2784 = vunpack.c.l.b16 %v644
  %v2785 = vunpack.c.h.b16 %v644
  %v2786 = vunpack.c.l.b16 %v645
  %v2787 = vunpack.c.h.b16 %v645
  %v2788 = vunpack.c.l.b16 %v646
  %v2789 = vunpack.c.h.b16 %v646
  %v2790 = vunpack.c.l.b16 %v647
  %v2791 = vunpack.c.h.b16 %v647
  %v2792 = vunpack.c.l.b16 %v648
  %v2793 = vunpack.c.h.b16 %v648
  %v2794 = vunpack.c.l.b16 %v649
  %v2795 = vunpack.c.h.b16 %v649
  %v2796 = vunpack.c.l.b16 %v650
  %v2797 = vunpack.c.h.b16 %v650
  %v2798 = vunpack.c.l.b16 %v651
  %v2799 = vunpack.c.h.b16 %v651
  %v2800 = vunpack.c.l.b16 %v652
  %v2801 = vunpack.c.h.b16 %v652
  %v2802 = vunpack.c.l.b16 %v653
  %v2803 = vunpack.c.h.b16 %v653
  %v2804 = vunpack.c.l.b16 %v654
  %v2805 = vunpack.c.h.b16 %v654
  %v2806 = vunpack.c.l.b16 %v655
  %v2807 = vunpack.c.h.b16 %v655
  %v2808 = vunpack.c.l.b16 %v656
  %v2809 = vunpack.c.h.b16 %v656
  %v2810 = vunpack.c.l.b16 %v657
  %v2811 = vunpack.c.h.b16 %v657
  %v2812 = vunpack.c.l.b16 %v658
  %v2813 = vunpack.c.h.b16 %v658
  %v2814 = vunpack.c.l.b16 %v659
  %v2815 = vunpack.c.h.b16 %v659
  %v2816 = vunpack.c.l.b16 %v660
  %v2817 = vunpack.c.h.b16 %v660
  %v2818 = vunpack.c.l.b16 %v661
  %v2819 = vunpack.c.h.b16 %v661
  %v2820 = vunpack.c.l.b16 %v662
  %v2821 = vunpack.c.h.b16 %v662
  %v2822 = vunpack.c.l.b16 %v663
  %v2823 = vunpack.c.h.b16 %v663
  %v2824 = vunpack.c.l.b16 %v664
  %v2825 = vunpack.c.h.b16 %v664
  %v2826 = vunpack.c.l.b16 %v665
  %v2827 = vunpack.c.h.b16 %v665
  %v2828 = vunpack.c.l.b16 %v666
  %v2829 = vunpack.c.h.b16 %v666
  %v2830 = vunpack.c.l.b16 %v667
  %v2831 = vunpack.c.h.b16 %v667
  %v2832 = vunpack.c.l.b16 %v668
  %v2833 = vunpack.c.h.b16 %v668
  %v2834 = vunpack.c.l.b16 %v669
  %v2835 = vunpack.c.h.b16 %v669
  %v2836 = vunpack.c.l.b16 %v670
  %v2837 = vunpack.c.h.b16 %v670
  %v2838 = vunpack.c.l.b16 %v671
  %v2839 = vunpack.c.h.b16 %v671
  %v2840 = vunpack.c.l.b16 %v672
  %v2841 = vunpack.c.h.b16 %v672
  %v2842 = vunpack.c.l.b16 %v673
  %v2843 = vunpack.c.h.b16 %v673
  %v2844 = vunpack.c.l.b16 %v674
  %v2845 = vunpack.c.h.b16 %v674
  %v2846 = vunpack.c.l.b16 %v675
  %v2847 = vunpack.c.h.b16 %v675
  %v2848 = vunpack.c.l.b16 %v676
  %v2849 = vunpack.c.h.b16 %v676
  %v2850 = vunpack.c.l.b16 %v677
  %v2851 = vunpack.c.h.b16 %v677
  %v2852 = vunpack.c.l.b16 %v678
  %v2853 = vunpack.c.h.b16 %v678
  %v2854 = vunpack.c.l.b16 %v679
  %v2855 = vunpack.c.h.b16 %v679
  %v2856 = vunpack.c.l.b16 %v680
  %v2857 = vunpack.c.h.b16 %v680
  %v2858 = vunpack.c.l.b16 %v681
  %v2859 = vunpack.c.h.b16 %v681
  %v2860 = vunpack.c.l.b16 %v682
  %v2861 = vunpack.c.h.b16 %v682
  %v2862 = vunpack.c.l.b16 %v683
  %v2863 = vunpack.c.h.b16 %v683
  %v2864 = vunpack.c.l.b16 %v684
  %v2865 = vunpack.c.h.b16 %v684
  %v2866 = vunpack.c.l.b16 %v685
  %v2867 = vunpack.c.h.b16 %v685
  %v2868 = vunpack.c.l.b16 %v686
  %v2869 = vunpack.c.h.b16 %v686
  %v2870 = vunpack.c.l.b16 %v687
  %v2871 = vunpack.c.h.b16 %v687
  %v2872 = vunpack.c.l.b16 %v688
  %v2873 = vunpack.c.h.b16 %v688
  %v2874 = vunpack.c.l.b16 %v689
  %v2875 = vunpack.c.h.b16 %v689
  %v2876 = vunpack.c.l.b16 %v690
  %v2877 = vunpack.c.h.b16 %v690
  %v2878 = vunpack.c.l.b16 %v691
  %v2879 = vunpack.c.h.b16 %v691
  %v2880 = vunpack.c.l.b16 %v692
  %v2881 = vunpack.c.h.b16 %v692
  %v2882 = vunpack.c.l.b16 %v693
  %v2883 = vunpack.c.h.b16 %v693
  %v2884 = vunpack.c.l.b16 %v694
  %v2885 = vunpack.c.h.b16 %v694
  %v2886 = vunpack.c.l.b16 %v695
  %v2887 = vunpack.c.h.b16 %v695
  %v2888 = vunpack.c.l.b16 %v696
  %v2889 = vunpack.c.h.b16 %v696
  %v2890 = vunpack.c.l.b16 %v697
  %v2891 = vunpack.c.h.b16 %v697
  %v2892 = vunpack.c.l.b16 %v698
  %v2893 = vunpack.c.h.b16 %v698
  %v2894 = vunpack.c.l.b16 %v699
  %v2895 = vunpack.c.h.b16 %v699
  %v2896 = vunpack.c.l.b16 %v700
  %v2897 = vunpack.c.h.b16 %v700
  %v2898 = vunpack.c.l.b16 %v701
  %v2899 = vunpack.c.h.b16 %v701
  %v2900 = vunpack.c.l.b16 %v702
  %v2901 = vunpack.c.h.b16 %v702
  %v2902 = vunpack.c.l.b16 %v703
  %v2903 = vunpack.c.h.b16 %v703
  %v2904 = vunpack.c.l.b16 %v704
  %v2905 = vunpack.c.h.b16 %v704
  %v2906 = vunpack.c.l.b16 %v705
  %v2907 = vunpack.c.h.b16 %v705
  %v2908 = vunpack.c.l.b16 %v706
  %v2909 = vunpack.c.h.b16 %v706
  %v2910 = vunpack.c.l.b16 %v707
  %v2911 = vunpack.c.h.b16 %v707
  %v2912 = vunpack.c.l.b16 %v708
  %v2913 = vunpack.c.h.b16 %v708
  %v2914 = vunpack.c.l.b16 %v709
  %v2915 = vunpack.c.h.b16 %v709
  %v2916 = vunpack.c.l.b16 %v710
  %v2917 = vunpack.c.h.b16 %v710
  %v2918 = vunpack.c.l.b16 %v711
  %v2919 = vunpack.c.h.b16 %v711
  %v2920 = vunpack.c.l.b16 %v712
  %v2921 = vunpack.c.h.b16 %v712
  %v2922 = vunpack.c.l.b16 %v713
  %v2923 = vunpack.c.h.b16 %v713
  %v2924 = vunpack.c.l.b16 %v714
  %v2925 = vunpack.c.h.b16 %v714
  %v2926 = vunpack.c.l.b16 %v715
  %v2927 = vunpack.c.h.b16 %v715
  %v2928 = vunpack.c.l.b16 %v716
  %v2929 = vunpack.c.h.b16 %v716
  %v2930 = vunpack.c.l.b16 %v717
  %v2931 = vunpack.c.h.b16 %v717
  %v2932 = vunpack.c.l.b16 %v718
  %v2933 = vunpack.c.h.b16 %v718
  %v2934 = vunpack.c.l.b16 %v719
  %v2935 = vunpack.c.h.b16 %v719
  %v2936 = vunpack.c.l.b16 %v720
  %v2937 = vunpack.c.h.b16 %v720
  %v2938 = vunpack.c.l.b16 %v721
  %v2939 = vunpack.c.h.b16 %v721
  %v2940 = vunpack.c.l.b16 %v722
  %v2941 = vunpack.c.h.b16 %v722
  %v2942 = vunpack.c.l.b16 %v723
  %v2943 = vunpack.c.h.b16 %v723
  %v2944 = vunpack.c.l.b16 %v724
  %v2945 = vunpack.c.h.b16 %v724
  %v2946 = vunpack.c.l.b16 %v725
  %v2947 = vunpack.c.h.b16 %v725
  %v2948 = vunpack.c.l.b16 %v726
  %v2949 = vunpack.c.h.b16 %v726
  %v2950 = vunpack.c.l.b16 %v727
  %v2951 = vunpack.c.h.b16 %v727
  %v2952 = vunpack.c.l.b16 %v728
  %v2953 = vunpack.c.h.b16 %v728
  %v2954 = vunpack.c.l.b16 %v729
  %v2955 = vunpack.c.h.b16 %v729
  %v2956 = vunpack.c.l.b16 %v730
  %v2957 = vunpack.c.h.b16 %v730
  %v2958 = vunpack.c.l.b16 %v731
  %v2959 = vunpack.c.h.b16 %v731
  %v2960 = vunpack.c.l.b16 %v732
  %v2961 = vunpack.c.h.b16 %v732
  %v2962 = vunpack.c.l.b16 %v733
  %v2963 = vunpack.c.h.b16 %v733
  %v2964 = vunpack.c.l.b16 %v734
  %v2965 = vunpack.c.h.b16 %v734
  %v2966 = vunpack.c.l.b16 %v735
  %v2967 = vunpack.c.h.b16 %v735
  %v2968 = vunpack.c.l.b16 %v736
  %v2969 = vunpack.c.h.b16 %v736
  %v2970 = vunpack.c.l.b16 %v737
  %v2971 = vunpack.c.h.b16 %v737
  %v2972 = vunpack.c.l.b16 %v738
  %v2973 = vunpack.c.h.b16 %v738
  %v2974 = vunpack.c.l.b16 %v739
  %v2975 = vunpack.c.h.b16 %v739
  %v2976 = vunpack.c.l.b16 %v740
  %v2977 = vunpack.c.h.b16 %v740
  %v2978 = vunpack.c.l.b16 %v741
  %v2979 = vunpack.c.h.b16 %v741
  %v2980 = vunpack.c.l.b16 %v742
  %v2981 = vunpack.c.h.b16 %v742
  %v2982 = vunpack.c.l.b16 %v743
  %v2983 = vunpack.c.h.b16 %v743
  %v2984 = vunpack.c.l.b16 %v744
  %v2985 = vunpack.c.h.b16 %v744
  %v2986 = vunpack.c.l.b16 %v745
  %v2987 = vunpack.c.h.b16 %v745
  %v2988 = vunpack.c.l.b16 %v746
  %v2989 = vunpack.c.h.b16 %v746
  %v2990 = vunpack.c.l.b16 %v747
  %v2991 = vunpack.c.h.b16 %v747
  %v2992 = vunpack.c.l.b16 %v748
  %v2993 = vunpack.c.h.b16 %v748
  %v2994 = vunpack.c.l.b16 %v749
  %v2995 = vunpack.c.h.b16 %v749
  %v2996 = vunpack.c.l.b16 %v750
  %v2997 = vunpack.c.h.b16 %v750
  %v2998 = vunpack.c.l.b16 %v751
  %v2999 = vunpack.c.h.b16 %v751
  %v3000 = vunpack.c.l.b16 %v752
  %v3001 = vunpack.c.h.b16 %v752
  %v3002 = vunpack.c.l.b16 %v753
  %v3003 = vunpack.c.h.b16 %v753
  %v3004 = vunpack.c.l.b16 %v754
  %v3005 = vunpack.c.h.b16 %v754
  %v3006 = vunpack.c.l.b16 %v755
  %v3007 = vunpack.c.h.b16 %v755
  %v3008 = vunpack.c.l.b16 %v756
  %v3009 = vunpack.c.h.b16 %v756
  %v3010 = vunpack.c.l.b16 %v757
  %v3011 = vunpack.c.h.b16 %v757
  %v3012 = vunpack.c.l.b16 %v758
  %v3013 = vunpack.c.h.b16 %v758
  %v3014 = vunpack.c.l.b16 %v759
  %v3015 = vunpack.c.h.b16 %v759
  %v3016 = vunpack.c.l.b16 %v760
  %v3017 = vunpack.c.h.b16 %v760
  %v3018 = vunpack.c.l.b16 %v761
  %v3019 = vunpack.c.h.b16 %v761
  %v3020 = vunpack.c.l.b16 %v762
  %v3021 = vunpack.c.h.b16 %v762
  %v3022 = vunpack.c.l.b16 %v763
  %v3023 = vunpack.c.h.b16 %v763
  %v3024 = vunpack.c.l.b16 %v764
  %v3025 = vunpack.c.h.b16 %v764
  %v3026 = vunpack.c.l.b16 %v765
  %v3027 = vunpack.c.h.b16 %v765
  %v3028 = vunpack.c.l.b16 %v766
  %v3029 = vunpack.c.h.b16 %v766
  %v3030 = vunpack.c.l.b16 %v767
  %v3031 = vunpack.c.h.b16 %v767
  %v3032 = vunpack.c.l.b16 %v768
  %v3033 = vunpack.c.h.b16 %v768
  %v3034 = vunpack.c.l.b16 %v769
  %v3035 = vunpack.c.h.b16 %v769
  %v3036 = vunpack.c.l.b16 %v770
  %v3037 = vunpack.c.h.b16 %v770
  %v3038 = vunpack.c.l.b16 %v771
  %v3039 = vunpack.c.h.b16 %v771
  %v3040 = vunpack.c.l.b16 %v772
  %v3041 = vunpack.c.h.b16 %v772
  %v3042 = vunpack.c.l.b16 %v773
  %v3043 = vunpack.c.h.b16 %v773
  %v3044 = vunpack.c.l.b16 %v774
  %v3045 = vunpack.c.h.b16 %v774
  %v3046 = vunpack.c.l.b16 %v775
  %v3047 = vunpack.c.h.b16 %v775
  %v3048 = vunpack.c.l.b16 %v776
  %v3049 = vunpack.c.h.b16 %v776
  %v3050 = vunpack.c.l.b16 %v777
  %v3051 = vunpack.c.h.b16 %v777
  %v3052 = vunpack.c.l.b16 %v778
  %v3053 = vunpack.c.h.b16 %v778
  %v3054 = vunpack.c.l.b16 %v779
  %v3055 = vunpack.c.h.b16 %v779
  %v3056 = vunpack.c.l.b16 %v780
  %v3057 = vunpack.c.h.b16 %v780
  %v3058 = vunpack.c.l.b16 %v781
  %v3059 = vunpack.c.h.b16 %v781
  %v3060 = vunpack.c.l.b16 %v782
  %v3061 = vunpack.c.h.b16 %v782
  %v3062 = vunpack.c.l.b16 %v783
  %v3063 = vunpack.c.h.b16 %v783
  %v3064 = vunpack.c.l.b16 %v784
  %v3065 = vunpack.c.h.b16 %v784
  %v3066 = vunpack.c.l.b16 %v785
  %v3067 = vunpack.c.h.b16 %v785
  %v3068 = vunpack.c.l.b16 %v786
  %v3069 = vunpack.c.h.b16 %v786
  %v3070 = vunpack.c.l.b16 %v787
  %v3071 = vunpack.c.h.b16 %v787
  %v3072 = vunpack.c.l.b16 %v788
  %v3073 = vunpack.c.h.b16 %v788
  %v3074 = vunpack.c.l.b16 %v789
  %v3075 = vunpack.c.h.b16 %v789
  %v3076 = vunpack.c.l.b16 %v790
  %v3077 = vunpack.c.h.b16 %v790
  %v3078 = vunpack.c.l.b16 %v791
  %v3079 = vunpack.c.h.b16 %v791
  %v3080 = vunpack.c.l.b16 %v792
  %v3081 = vunpack.c.h.b16 %v792
  %v3082 = vunpack.c.l.b16 %v793
  %v3083 = vunpack.c.h.b16 %v793
  %v3084 = vunpack.c.l.b16 %v794
  %v3085 = vunpack.c.h.b16 %v794
  %v3086 = vunpack.c.l.b16 %v795
  %v3087 = vunpack.c.h.b16 %v795
  %v3088 = vunpack.c.l.b16 %v796
  %v3089 = vunpack.c.h.b16 %v796
  %v3090 = vunpack.c.l.b16 %v797
  %v3091 = vunpack.c.h.b16 %v797
  %v3092 = vunpack.c.l.b16 %v798
  %v3093 = vunpack.c.h.b16 %v798
  %v3094 = vunpack.c.l.b16 %v799
  %v3095 = vunpack.c.h.b16 %v799
  %v3096 = vunpack.c.l.b16 %v800
  %v3097 = vunpack.c.h.b16 %v800
  %v3098 = vunpack.c.l.b16 %v801
  %v3099 = vunpack.c.h.b16 %v801
  %v3100 = vunpack.c.l.b16 %v802
  %v3101 = vunpack.c.h.b16 %v802
  %v3102 = vunpack.c.l.b16 %v803
  %v3103 = vunpack.c.h.b16 %v803
  %v3104 = vunpack.c.l.b16 %v804
  %v3105 = vunpack.c.h.b16 %v804
  %v3106 = vunpack.c.l.b16 %v805
  %v3107 = vunpack.c.h.b16 %v805
  %v3108 = vunpack.c.l.b16 %v806
  %v3109 = vunpack.c.h.b16 %v806
  %v3110 = vunpack.c.l.b16 %v807
  %v3111 = vunpack.c.h.b16 %v807
  %v3112 = vunpack.c.l.b16 %v808
  %v3113 = vunpack.c.h.b16 %v808
  %v3114 = vunpack.c.l.b16 %v809
  %v3115 = vunpack.c.h.b16 %v809
  %v3116 = vunpack.c.l.b16 %v810
  %v3117 = vunpack.c.h.b16 %v810
  %v3118 = vunpack.c.l.b16 %v811
  %v3119 = vunpack.c.h.b16 %v811
  %v3120 = vunpack.c.l.b16 %v812
  %v3121 = vunpack.c.h.b16 %v812
  %v3122 = vunpack.c.l.b16 %v813
  %v3123 = vunpack.c.h.b16 %v813
  %v3124 = vunpack.c.l.b16 %v814
  %v3125 = vunpack.c.h.b16 %v814
  %v3126 = vunpack.c.l.b16 %v815
  %v3127 = vunpack.c.h.b16 %v815
  %v3128 = vunpack.c.l.b16 %v816
  %v3129 = vunpack.c.h.b16 %v816
  %v3130 = vunpack.c.l.b16 %v817
  %v3131 = vunpack.c.h.b16 %v817
  %v3132 = vunpack.c.l.b16 %v818
  %v3133 = vunpack.c.h.b16 %v818
  %v3134 = vunpack.c.l.b16 %v819
  %v3135 = vunpack.c.h.b16 %v819
  %v3136 = vunpack.c.l.b16 %v820
  %v3137 = vunpack.c.h.b16 %v820
  %v3138 = vunpack.c.l.b16 %v821
  %v3139 = vunpack.c.h.b16 %v821
  %v3140 = vunpack.c.l.b16 %v822
  %v3141 = vunpack.c.h.b16 %v822
  %v3142 = vunpack.c.l.b16 %v823
  %v3143 = vunpack.c.h.b16 %v823
  %v3144 = vunpack.c.l.b16 %v824
  %v3145 = vunpack.c.h.b16 %v824
  %v3146 = vunpack.c.l.b16 %v825
  %v3147 = vunpack.c.h.b16 %v825
  %v3148 = vunpack.c.l.b16 %v826
  %v3149 = vunpack.c.h.b16 %v826
  %v3150 = vunpack.c.l.b16 %v827
  %v3151 = vunpack.c.h.b16 %v827
  %v3152 = vunpack.c.l.b16 %v828
  %v3153 = vunpack.c.h.b16 %v828
  %v3154 = vunpack.c.l.b16 %v829
  %v3155 = vunpack.c.h.b16 %v829
  %v3156 = vpack.c.b16 %v1624, %v1620
  %v3157 = vpack.c.b16 %v1625, %v1621
  %v3158 = vpack.c.b16 %v1626, %v1622
  %v3159 = vpack.c.b16 %v1627, %v1623
  %v3160 = vpack.c.b16 %v1632, %v1628
  %v3161 = vpack.c.b16 %v1633, %v1629
  %v3162 = vpack.c.b16 %v1634, %v1630
  %v3163 = vpack.c.b16 %v1635, %v1631
  %v3164 = vpack.c.b16 %v1640, %v1636
  %v3165 = vpack.c.b16 %v1641, %v1637
  %v3166 = vpack.c.b16 %v1642, %v1638
  %v3167 = vpack.c.b16 %v1643, %v1639
  %v3168 = vpack.c.b16 %v1648, %v1644
  %v3169 = vpack.c.b16 %v1649, %v1645
  %v3170 = vpack.c.b16 %v1650, %v1646
  %v3171 = vpack.c.b16 %v1651, %v1647
  %v3172 = vpack.c.b16 %v1656, %v1652
  %v3173 = vpack.c.b16 %v1657, %v1653
  %v3174 = vpack.c.b16 %v1658, %v1654
  %v3175 = vpack.c.b16 %v1659, %v1655
  %v3176 = vpack.c.b16 %v1664, %v1660
  %v3177 = vpack.c.b16 %v1665, %v1661
  %v3178 = vpack.c.b16 %v1666, %v1662
  %v3179 = vpack.c.b16 %v1667, %v1663
  %v3180 = vpack.c.b16 %v1672, %v1668
  %v3181 = vpack.c.b16 %v1673, %v1669
  %v3182 = vpack.c.b16 %v1674, %v1670
  %v3183 = vpack.c.b16 %v1675, %v1671
  %v3184 = vpack.c.b16 %v1680, %v1676
  %v3185 = vpack.c.b16 %v1681, %v1677
  %v3186 = vpack.c.b16 %v1682, %v1678
  %v3187 = vpack.c.b16 %v1683, %v1679
  %v3188 = vpack.c.b16 %v1688, %v1684
  %v3189 = vpack.c.b16 %v1689, %v1685
  %v3190 = vpack.c.b16 %v1690, %v1686
  %v3191 = vpack.c.b16 %v1691, %v1687
  %v3192 = vpack.c.b16 %v1696, %v1692
  %v3193 = vpack.c.b16 %v1697, %v1693
  %v3194 = vpack.c.b16 %v1698, %v1694
  %v3195 = vpack.c.b16 %v1699, %v1695
  %v3196 = vpack.c.b16 %v1704, %v1700
  %v3197 = vpack.c.b16 %v1705, %v1701
  %v3198 = vpack.c.b16 %v1706, %v1702
  %v3199 = vpack.c.b16 %v1707, %v1703
  %v3200 = vpack.c.b16 %v1712, %v1708
  %v3201 = vpack.c.b16 %v1713, %v1709
  %v3202 = vpack.c.b16 %v1714, %v1710
  %v3203 = vpack.c.b16 %v1715, %v1711
  %v3204 = vpack.c.b16 %v1720, %v1716
  %v3205 = vpack.c.b16 %v1721, %v1717
  %v3206 = vpack.c.b16 %v1722, %v1718
  %v3207 = vpack.c.b16 %v1723, %v1719
  %v3208 = vpack.c.b16 %v1728, %v1724
  %v3209 = vpack.c.b16 %v1729, %v1725
  %v3210 = vpack.c.b16 %v1730, %v1726
  %v3211 = vpack.c.b16 %v1731, %v1727
  %v3212 = vpack.c.b16 %v1736, %v1732
  %v3213 = vpack.c.b16 %v1737, %v1733
  %v3214 = vpack.c.b16 %v1738, %v1734
  %v3215 = vpack.c.b16 %v1739, %v1735
  %v3216 = vpack.c.b16 %v1744, %v1740
  %v3217 = vpack.c.b16 %v1745, %v1741
  %v3218 = vpack.c.b16 %v1746, %v1742
  %v3219 = vpack.c.b16 %v1747, %v1743
  %v3220 = vpack.c.b16 %v1752, %v1748
  %v3221 = vpack.c.b16 %v1753, %v1749
  %v3222 = vpack.c.b16 %v1754, %v1750
  %v3223 = vpack.c.b16 %v1755, %v1751
  %v3224 = vpack.c.b16 %v1760, %v1756
  %v3225 = vpack.c.b16 %v1761, %v1757
  %v3226 = vpack.c.b16 %v1762, %v1758
  %v3227 = vpack.c.b16 %v1763, %v1759
  %v3228 = vpack.c.b16 %v1768, %v1764
  %v3229 = vpack.c.b16 %v1769, %v1765
  %v3230 = vpack.c.b16 %v1770, %v1766
  %v3231 = vpack.c.b16 %v1771, %v1767
  %v3232 = vpack.c.b16 %v1776, %v1772
  %v3233 = vpack.c.b16 %v1777, %v1773
  %v3234 = vpack.c.b16 %v1778, %v1774
  %v3235 = vpack.c.b16 %v1779, %v1775
  %v3236 = vpack.c.b16 %v1784, %v1780
  %v3237 = vpack.c.b16 %v1785, %v1781
  %v3238 = vpack.c.b16 %v1786, %v1782
  %v3239 = vpack.c.b16 %v1787, %v1783
  %v3240 = vpack.c.b16 %v1792, %v1788
  %v3241 = vpack.c.b16 %v1793, %v1789
  %v3242 = vpack.c.b16 %v1794, %v1790
  %v3243 = vpack.c.b16 %v1795, %v1791
  %v3244 = vpack.c.b16 %v1800, %v1796
  %v3245 = vpack.c.b16 %v1801, %v1797
  %v3246 = vpack.c.b16 %v1802, %v1798
  %v3247 = vpack.c.b16 %v1803, %v1799
  %v3248 = vpack.c.b16 %v1808, %v1804
  %v3249 = vpack.c.b16 %v1809, %v1805
  %v3250 = vpack.c.b16 %v1810, %v1806
  %v3251 = vpack.c.b16 %v1811, %v1807
  %v3252 = vpack.c.b16 %v1816, %v1812
  %v3253 = vpack.c.b16 %v1817, %v1813
  %v3254 = vpack.c.b16 %v1818, %v1814
  %v3255 = vpack.c.b16 %v1819, %v1815
  %v3256 = vpack.c.b16 %v1824, %v1820
  %v3257 = vpack.c.b16 %v1825, %v1821
  %v3258 = vpack.c.b16 %v1826, %v1822
  %v3259 = vpack.c.b16 %v1827, %v1823
  %v3260 = vpack.c.b16 %v1832, %v1828
  %v3261 = vpack.c.b16 %v1833, %v1829
  %v3262 = vpack.c.b16 %v1834, %v1830
  %v3263 = vpack.c.b16 %v1835, %v1831
  %v3264 = vpack.c.b16 %v1840, %v1836
  %v3265 = vpack.c.b16 %v1841, %v1837
  %v3266 = vpack.c.b16 %v1842, %v1838
  %v3267 = vpack.c.b16 %v1843, %v1839
  %v3268 = vpack.c.b16 %v1848, %v1844
  %v3269 = vpack.c.b16 %v1849, %v1845
  %v3270 = vpack.c.b16 %v1850, %v1846
  %v3271 = vpack.c.b16 %v1851, %v1847
  %v3272 = vpack.c.b16 %v1856, %v1852
  %v3273 = vpack.c.b16 %v1857, %v1853
  %v3274 = vpack.c.b16 %v1858, %v1854
  %v3275 = vpack.c.b16 %v1859, %v1855
  %v3276 = vpack.c.b16 %v1864, %v1860
  %v3277 = vpack.c.b16 %v1865, %v1861
  %v3278 = vpack.c.b16 %v1866, %v1862
  %v3279 = vpack.c.b16 %v1867, %v1863
  %v3280 = vpack.c.b16 %v1872, %v1868
  %v3281 = vpack.c.b16 %v1873, %v1869
  %v3282 = vpack.c.b16 %v1874, %v1870
  %v3283 = vpack.c.b16 %v1875, %v1871
  %v3284 = vpack.c.b16 %v1880, %v1876
  %v3285 = vpack.c.b16 %v1881, %v1877
  %v3286 = vpack.c.b16 %v1882, %v1878
  %v3287 = vpack.c.b16 %v1883, %v1879
  %v3288 = vpack.c.b16 %v1888, %v1884
  %v3289 = vpack.c.b16 %v1889, %v1885
  %v3290 = vpack.c.b16 %v1890, %v1886
  %v3291 = vpack.c.b16 %v1891, %v1887
  %v3292 = vpack.c.b16 %v1896, %v1892
  %v3293 = vpack.c.b16 %v1897, %v1893
  %v3294 = vpack.c.b16 %v1898, %v1894
  %v3295 = vpack.c.b16 %v1899, %v1895
  %v3296 = vpack.c.b16 %v1904, %v1900
  %v3297 = vpack.c.b16 %v1905, %v1901
  %v3298 = vpack.c.b16 %v1906, %v1902
  %v3299 = vpack.c.b16 %v1907, %v1903
  %v3300 = vpack.c.b16 %v1912, %v1908
  %v3301 = vpack.c.b16 %v1913, %v1909
  %v3302 = vpack.c.b16 %v1914, %v1910
  %v3303 = vpack.c.b16 %v1915, %v1911
  %v3304 = vpack.c.b16 %v1920, %v1916
  %v3305 = vpack.c.b16 %v1921, %v1917
  %v3306 = vpack.c.b16 %v1922, %v1918
  %v3307 = vpack.c.b16 %v1923, %v1919
  %v3308 = vpack.c.b16 %v1928, %v1924
  %v3309 = vpack.c.b16 %v1929, %v1925
  %v3310 = vpack.c.b16 %v1930, %v1926
  %v3311 = vpack.c.b16 %v1931, %v1927
  %v3312 = vpack.c.b16 %v1936, %v1932
  %v3313 = vpack.c.b16 %v1937, %v1933
  %v3314 = vpack.c.b16 %v1938, %v1934
  %v3315 = vpack.c.b16 %v1939, %v1935
  %v3316 = vpack.c.b16 %v1944, %v1940
  %v3317 = vpack.c.b16 %v1945, %v1941
  %v3318 = vpack.c.b16 %v1946, %v1942
  %v3319 = vpack.c.b16 %v1947, %v1943
  %v3320 = vpack.c.b16 %v1952, %v1948
  %v3321 = vpack.c.b16 %v1953, %v1949
  %v3322 = vpack.c.b16 %v1954, %v1950
  %v3323 = vpack.c.b16 %v1955, %v1951
  %v3324 = vpack.c.b16 %v1960, %v1956
  %v3325 = vpack.c.b16 %v1961, %v1957
  %v3326 = vpack.c.b16 %v1962, %v1958
  %v3327 = vpack.c.b16 %v1963, %v1959
  %v3328 = vpack.c.b16 %v1968, %v1964
  %v3329 = vpack.c.b16 %v1969, %v1965
  %v3330 = vpack.c.b16 %v1970, %v1966
  %v3331 = vpack.c.b16 %v1971, %v1967
  %v3332 = vpack.c.b16 %v1976, %v1972
  %v3333 = vpack.c.b16 %v1977, %v1973
  %v3334 = vpack.c.b16 %v1978, %v1974
  %v3335 = vpack.c.b16 %v1979, %v1975
  %v3336 = vpack.c.b16 %v1984, %v1980
  %v3337 = vpack.c.b16 %v1985, %v1981
  %v3338 = vpack.c.b16 %v1986, %v1982
  %v3339 = vpack.c.b16 %v1987, %v1983
  %v3340 = vpack.c.b16 %v1992, %v1988
  %v3341 = vpack.c.b16 %v1993, %v1989
  %v3342 = vpack.c.b16 %v1994, %v1990
  %v3343 = vpack.c.b16 %v1995, %v1991
  %v3344 = vpack.c.b16 %v2000, %v1996
  %v3345 = vpack.c.b16 %v2001, %v1997
  %v3346 = vpack.c.b16 %v2002, %v1998
  %v3347 = vpack.c.b16 %v2003, %v1999
  %v3348 = vpack.c.b16 %v2008, %v2004
  %v3349 = vpack.c.b16 %v2009, %v2005
  %v3350 = vpack.c.b16 %v2010, %v2006
  %v3351 = vpack.c.b16 %v2011, %v2007
  %v3352 = vpack.c.b16 %v2016, %v2012
  %v3353 = vpack.c.b16 %v2017, %v2013
  %v3354 = vpack.c.b16 %v2018, %v2014
  %v3355 = vpack.c.b16 %v2019, %v2015
  %v3356 = vpack.c.b16 %v2024, %v2020
  %v3357 = vpack.c.b16 %v2025, %v2021
  %v3358 = vpack.c.b16 %v2026, %v2022
  %v3359 = vpack.c.b16 %v2027, %v2023
  %v3360 = vpack.c.b16 %v2032, %v2028
  %v3361 = vpack.c.b16 %v2033, %v2029
  %v3362 = vpack.c.b16 %v2034, %v2030
  %v3363 = vpack.c.b16 %v2035, %v2031
  %v3364 = vpack.c.b16 %v2040, %v2036
  %v3365 = vpack.c.b16 %v2041, %v2037
  %v3366 = vpack.c.b16 %v2042, %v2038
  %v3367 = vpack.c.b16 %v2043, %v2039
  %v3368 = vpack.c.b16 %v2048, %v2044
  %v3369 = vpack.c.b16 %v2049, %v2045
  %v3370 = vpack.c.b16 %v2050, %v2046
  %v3371 = vpack.c.b16 %v2051, %v2047
  %v3372 = vpack.c.b16 %v2056, %v2052
  %v3373 = vpack.c.b16 %v2057, %v2053
  %v3374 = vpack.c.b16 %v2058, %v2054
  %v3375 = vpack.c.b16 %v2059, %v2055
  %v3376 = vpack.c.b16 %v2064, %v2060
  %v3377 = vpack.c.b16 %v2065, %v2061
  %v3378 = vpack.c.b16 %v2066, %v2062
  %v3379 = vpack.c.b16 %v2067, %v2063
  %v3380 = vpack.c.b16 %v2072, %v2068
  %v3381 = vpack.c.b16 %v2073, %v2069
  %v3382 = vpack.c.b16 %v2074, %v2070
  %v3383 = vpack.c.b16 %v2075, %v2071
  %v3384 = vpack.c.b16 %v2080, %v2076
  %v3385 = vpack.c.b16 %v2081, %v2077
  %v3386 = vpack.c.b16 %v2082, %v2078
  %v3387 = vpack.c.b16 %v2083, %v2079
  %v3388 = vpack.c.b16 %v2088, %v2084
  %v3389 = vpack.c.b16 %v2089, %v2085
  %v3390 = vpack.c.b16 %v2090, %v2086
  %v3391 = vpack.c.b16 %v2091, %v2087
  %v3392 = vpack.c.b16 %v2096, %v2092
  %v3393 = vpack.c.b16 %v2097, %v2093
  %v3394 = vpack.c.b16 %v2098, %v2094
  %v3395 = vpack.c.b16 %v2099, %v2095
  %v3396 = vpack.c.b16 %v2104, %v2100
  %v3397 = vpack.c.b16 %v2105, %v2101
  %v3398 = vpack.c.b16 %v2106, %v2102
  %v3399 = vpack.c.b16 %v2107, %v2103
  %v3400 = vpack.c.b16 %v2112, %v2108
  %v3401 = vpack.c.b16 %v2113, %v2109
  %v3402 = vpack.c.b16 %v2114, %v2110
  %v3403 = vpack.c.b16 %v2115, %v2111
  %v3404 = vpack.c.b16 %v2120, %v2116
  %v3405 = vpack.c.b16 %v2121, %v2117
  %v3406 = vpack.c.b16 %v2122, %v2118
  %v3407 = vpack.c.b16 %v2123, %v2119
  %v3408 = vpack.c.b16 %v2128, %v2124
  %v3409 = vpack.c.b16 %v2129, %v2125
  %v3410 = vpack.c.b16 %v2130, %v2126
  %v3411 = vpack.c.b16 %v2131, %v2127
  %v3412 = vpack.c.b16 %v2136, %v2132
  %v3413 = vpack.c.b16 %v2137, %v2133
  %v3414 = vpack.c.b16 %v2138, %v2134
  %v3415 = vpack.c.b16 %v2139, %v2135
  %v3416 = vpack.c.b16 %v2144, %v2140
  %v3417 = vpack.c.b16 %v2145, %v2141
  %v3418 = vpack.c.b16 %v2146, %v2142
  %v3419 = vpack.c.b16 %v2147, %v2143
  %v3420 = vpack.c.b16 %v2152, %v2148
  %v3421 = vpack.c.b16 %v2153, %v2149
  %v3422 = vpack.c.b16 %v2154, %v2150
  %v3423 = vpack.c.b16 %v2155, %v2151
  %v3424 = vpack.c.b16 %v2160, %v2156
  %v3425 = vpack.c.b16 %v2161, %v2157
  %v3426 = vpack.c.b16 %v2162, %v2158
  %v3427 = vpack.c.b16 %v2163, %v2159
  %v3428 = vpack.c.b16 %v2168, %v2164
  %v3429 = vpack.c.b16 %v2169, %v2165
  %v3430 = vpack.c.b16 %v2170, %v2166
  %v3431 = vpack.c.b16 %v2171, %v2167
  %v3432 = vpack.c.b16 %v2176, %v2172
  %v3433 = vpack.c.b16 %v2177, %v2173
  %v3434 = vpack.c.b16 %v2178, %v2174
  %v3435 = vpack.c.b16 %v2179, %v2175
  %v3436 = vpack.c.b16 %v2184, %v2180
  %v3437 = vpack.c.b16 %v2185, %v2181
  %v3438 = vpack.c.b16 %v2186, %v2182
  %v3439 = vpack.c.b16 %v2187, %v2183
  %v3440 = vpack.c.b16 %v2192, %v2188
  %v3441 = vpack.c.b16 %v2193, %v2189
  %v3442 = vpack.c.b16 %v2194, %v2190
  %v3443 = vpack.c.b16 %v2195, %v2191
  %v3444 = vpack.c.b16 %v2200, %v2196
  %v3445 = vpack.c.b16 %v2201, %v2197
  %v3446 = vpack.c.b16 %v2202, %v2198
  %v3447 = vpack.c.b16 %v2203, %v2199
  %v3448 = vpack.c.b16 %v2208, %v2204
  %v3449 = vpack.c.b16 %v2209, %v2205
  %v3450 = vpack.c.b16 %v2210, %v2206
  %v3451 = vpack.c.b16 %v2211, %v2207
  %v3452 = vpack.c.b16 %v2216, %v2212
  %v3453 = vpack.c.b16 %v2217, %v2213
  %v3454 = vpack.c.b16 %v2218, %v2214
  %v3455 = vpack.c.b16 %v2219, %v2215
  %v3456 = vpack.c.b16 %v2224, %v2220
  %v3457 = vpack.c.b16 %v2225, %v2221
  %v3458 = vpack.c.b16 %v2226, %v2222
  %v3459 = vpack.c.b16 %v2227, %v2223
  %v3460 = vpack.c.b16 %v2232, %v2228
  %v3461 = vpack.c.b16 %v2233, %v2229
  %v3462 = vpack.c.b16 %v2234, %v2230
  %v3463 = vpack.c.b16 %v2235, %v2231
  %v3464 = vpack.c.b16 %v2240, %v2236
  %v3465 = vpack.c.b16 %v2241, %v2237
  %v3466 = vpack.c.b16 %v2242, %v2238
  %v3467 = vpack.c.b16 %v2243, %v2239
  %v3468 = vpack.c.b16 %v2248, %v2244
  %v3469 = vpack.c.b16 %v2249, %v2245
  %v3470 = vpack.c.b16 %v2250, %v2246
  %v3471 = vpack.c.b16 %v2251, %v2247
  %v3472 = vpack.c.b16 %v2256, %v2252
  %v3473 = vpack.c.b16 %v2257, %v2253
  %v3474 = vpack.c.b16 %v2258, %v2254
  %v3475 = vpack.c.b16 %v2259, %v2255
  %v3476 = vpack.c.b16 %v2264, %v2260
  %v3477 = vpack.c.b16 %v2265, %v2261
  %v3478 = vpack.c.b16 %v2266, %v2262
  %v3479 = vpack.c.b16 %v2267, %v2263
  %v3480 = vpack.c.b16 %v2272, %v2268
  %v3481 = vpack.c.b16 %v2273, %v2269
  %v3482 = vpack.c.b16 %v2274, %v2270
  %v3483 = vpack.c.b16 %v2275, %v2271
  %v3484 = vpack.c.b16 %v2280, %v2276
  %v3485 = vpack.c.b16 %v2281, %v2277
  %v3486 = vpack.c.b16 %v2282, %v2278
  %v3487 = vpack.c.b16 %v2283, %v2279
  %v3488 = vpack.c.b16 %v2288, %v2284
  %v3489 = vpack.c.b16 %v2289, %v2285
  %v3490 = vpack.c.b16 %v2290, %v2286
  %v3491 = vpack.c.b16 %v2291, %v2287
  %v3492 = vpack.c.b16 %v2296, %v2292
  %v3493 = vpack.c.b16 %v2297, %v2293
  %v3494 = vpack.c.b16 %v2298, %v2294
  %v3495 = vpack.c.b16 %v2299, %v2295
  %v3496 = vpack.c.b16 %v2304, %v2300
  %v3497 = vpack.c.b16 %v2305, %v2301
  %v3498 = vpack.c.b16 %v2306, %v2302
  %v3499 = vpack.c.b16 %v2307, %v2303
  %v3500 = vpack.c.b16 %v2312, %v2308
  %v3501 = vpack.c.b16 %v2313, %v2309
  %v3502 = vpack.c.b16 %v2314, %v2310
  %v3503 = vpack.c.b16 %v2315, %v2311
  %v3504 = vpack.c.b16 %v2320, %v2316
  %v3505 = vpack.c.b16 %v2321, %v2317
  %v3506 = vpack.c.b16 %v2322, %v2318
  %v3507 = vpack.c.b16 %v2323, %v2319
  %v3508 = vpack.c.b16 %v2328, %v2324
  %v3509 = vpack.c.b16 %v2329, %v2325
  %v3510 = vpack.c.b16 %v2330, %v2326
  %v3511 = vpack.c.b16 %v2331, %v2327
  %v3512 = vpack.c.b16 %v2336, %v2332
  %v3513 = vpack.c.b16 %v2337, %v2333
  %v3514 = vpack.c.b16 %v2338, %v2334
  %v3515 = vpack.c.b16 %v2339, %v2335
  %v3516 = vpack.c.b16 %v2344, %v2340
  %v3517 = vpack.c.b16 %v2345, %v2341
  %v3518 = vpack.c.b16 %v2346, %v2342
  %v3519 = vpack.c.b16 %v2347, %v2343
  %v3520 = vpack.c.b16 %v2352, %v2348
  %v3521 = vpack.c.b16 %v2353, %v2349
  %v3522 = vpack.c.b16 %v2354, %v2350
  %v3523 = vpack.c.b16 %v2355, %v2351
  %v3524 = vpack.c.b16 %v2360, %v2356
  %v3525 = vpack.c.b16 %v2361, %v2357
  %v3526 = vpack.c.b16 %v2362, %v2358
  %v3527 = vpack.c.b16 %v2363, %v2359
  %v3528 = vpack.c.b16 %v2368, %v2364
  %v3529 = vpack.c.b16 %v2369, %v2365
  %v3530 = vpack.c.b16 %v2370, %v2366
  %v3531 = vpack.c.b16 %v2371, %v2367
  %v3532 = vpack.c.b16 %v2376, %v2372
  %v3533 = vpack.c.b16 %v2377, %v2373
  %v3534 = vpack.c.b16 %v2378, %v2374
  %v3535 = vpack.c.b16 %v2379, %v2375
  %v3536 = vpack.c.b16 %v2384, %v2380
  %v3537 = vpack.c.b16 %v2385, %v2381
  %v3538 = vpack.c.b16 %v2386, %v2382
  %v3539 = vpack.c.b16 %v2387, %v2383
  %v3540 = vpack.c.b16 %v2392, %v2388
  %v3541 = vpack.c.b16 %v2393, %v2389
  %v3542 = vpack.c.b16 %v2394, %v2390
  %v3543 = vpack.c.b16 %v2395, %v2391
  %v3544 = vpack.c.b16 %v2400, %v2396
  %v3545 = vpack.c.b16 %v2401, %v2397
  %v3546 = vpack.c.b16 %v2402, %v2398
  %v3547 = vpack.c.b16 %v2403, %v2399
  %v3548 = vpack.c.b16 %v2408, %v2404
  %v3549 = vpack.c.b16 %v2409, %v2405
  %v3550 = vpack.c.b16 %v2410, %v2406
  %v3551 = vpack.c.b16 %v2411, %v2407
  %v3552 = vpack.c.b16 %v2416, %v2412
  %v3553 = vpack.c.b16 %v2417, %v2413
  %v3554 = vpack.c.b16 %v2418, %v2414
  %v3555 = vpack.c.b16 %v2419, %v2415
  %v3556 = vpack.c.b16 %v2424, %v2420
  %v3557 = vpack.c.b16 %v2425, %v2421
  %v3558 = vpack.c.b16 %v2426, %v2422
  %v3559 = vpack.c.b16 %v2427, %v2423
  %v3560 = vpack.c.b16 %v2432, %v2428
  %v3561 = vpack.c.b16 %v2433, %v2429
  %v3562 = vpack.c.b16 %v2434, %v2430
  %v3563 = vpack.c.b16 %v2435, %v2431
  %v3564 = vpack.c.b16 %v2440, %v2436
  %v3565 = vpack.c.b16 %v2441, %v2437
  %v3566 = vpack.c.b16 %v2442, %v2438
  %v3567 = vpack.c.b16 %v2443, %v2439
  %v3568 = vpack.c.b16 %v2448, %v2444
  %v3569 = vpack.c.b16 %v2449, %v2445
  %v3570 = vpack.c.b16 %v2450, %v2446
  %v3571 = vpack.c.b16 %v2451, %v2447
  %v3572 = vpack.c.b16 %v2456, %v2452
  %v3573 = vpack.c.b16 %v2457, %v2453
  %v3574 = vpack.c.b16 %v2458, %v2454
  %v3575 = vpack.c.b16 %v2459, %v2455
  %v3576 = vpack.c.b16 %v2464, %v2460
  %v3577 = vpack.c.b16 %v2465, %v2461
  %v3578 = vpack.c.b16 %v2466, %v2462
  %v3579 = vpack.c.b16 %v2467, %v2463
  %v3580 = vpack.c.b16 %v2472, %v2468
  %v3581 = vpack.c.b16 %v2473, %v2469
  %v3582 = vpack.c.b16 %v2474, %v2470
  %v3583 = vpack.c.b16 %v2475, %v2471
  %v3584 = vpack.c.b16 %v2480, %v2476
  %v3585 = vpack.c.b16 %v2481, %v2477
  %v3586 = vpack.c.b16 %v2482, %v2478
  %v3587 = vpack.c.b16 %v2483, %v2479
  %v3588 = vpack.c.b16 %v2488, %v2484
  %v3589 = vpack.c.b16 %v2489, %v2485
  %v3590 = vpack.c.b16 %v2490, %v2486
  %v3591 = vpack.c.b16 %v2491, %v2487
  %v3592 = vpack.c.b16 %v2496, %v2492
  %v3593 = vpack.c.b16 %v2497, %v2493
  %v3594 = vpack.c.b16 %v2498, %v2494
  %v3595 = vpack.c.b16 %v2499, %v2495
  %v3596 = vpack.c.b16 %v2504, %v2500
  %v3597 = vpack.c.b16 %v2505, %v2501
  %v3598 = vpack.c.b16 %v2506, %v2502
  %v3599 = vpack.c.b16 %v2507, %v2503
  %v3600 = vpack.c.b16 %v2512, %v2508
  %v3601 = vpack.c.b16 %v2513, %v2509
  %v3602 = vpack.c.b16 %v2514, %v2510
  %v3603 = vpack.c.b16 %v2515, %v2511
  %v3604 = vpack.c.b16 %v2520, %v2516
  %v3605 = vpack.c.b16 %v2521, %v2517
  %v3606 = vpack.c.b16 %v2522, %v2518
  %v3607 = vpack.c.b16 %v2523, %v2519
  %v3608 = vpack.c.b16 %v2528, %v2524
  %v3609 = vpack.c.b16 %v2529, %v2525
  %v3610 = vpack.c.b16 %v2530, %v2526
  %v3611 = vpack.c.b16 %v2531, %v2527
  %v3612 = vpack.c.b16 %v2536, %v2532
  %v3613 = vpack.c.b16 %v2537, %v2533
  %v3614 = vpack.c.b16 %v2538, %v2534
  %v3615 = vpack.c.b16 %v2539, %v2535
  %v3616 = vpack.c.b16 %v2544, %v2540
  %v3617 = vpack.c.b16 %v2545, %v2541
  %v3618 = vpack.c.b16 %v2546, %v2542
  %v3619 = vpack.c.b16 %v2547, %v2543
  %v3620 = vpack.c.b16 %v2552, %v2548
  %v3621 = vpack.c.b16 %v2553, %v2549
  %v3622 = vpack.c.b16 %v2554, %v2550
  %v3623 = vpack.c.b16 %v2555, %v2551
  %v3624 = vpack.c.b16 %v2560, %v2556
  %v3625 = vpack.c.b16 %v2561, %v2557
  %v3626 = vpack.c.b16 %v2562, %v2558
  %v3627 = vpack.c.b16 %v2563, %v2559
  %v3628 = vpack.c.b16 %v2568, %v2564
  %v3629 = vpack.c.b16 %v2569, %v2565
  %v3630 = vpack.c.b16 %v2570, %v2566
  %v3631 = vpack.c.b16 %v2571, %v2567
  %v3632 = vpack.c.b16 %v2576, %v2572
  %v3633 = vpack.c.b16 %v2577, %v2573
  %v3634 = vpack.c.b16 %v2578, %v2574
  %v3635 = vpack.c.b16 %v2579, %v2575
  %v3636 = vpack.c.b16 %v2584, %v2580
  %v3637 = vpack.c.b16 %v2585, %v2581
  %v3638 = vpack.c.b16 %v2586, %v2582
  %v3639 = vpack.c.b16 %v2587, %v2583
  %v3640 = vpack.c.b16 %v2592, %v2588
  %v3641 = vpack.c.b16 %v2593, %v2589
  %v3642 = vpack.c.b16 %v2594, %v2590
  %v3643 = vpack.c.b16 %v2595, %v2591
  %v3644 = vpack.c.b16 %v2600, %v2596
  %v3645 = vpack.c.b16 %v2601, %v2597
  %v3646 = vpack.c.b16 %v2602, %v2598
  %v3647 = vpack.c.b16 %v2603, %v2599
  %v3648 = vpack.c.b16 %v2608, %v2604
  %v3649 = vpack.c.b16 %v2609, %v2605
  %v3650 = vpack.c.b16 %v2610, %v2606
  %v3651 = vpack.c.b16 %v2611, %v2607
  %v3652 = vpack.c.b16 %v2616, %v2612
  %v3653 = vpack.c.b16 %v2617, %v2613
  %v3654 = vpack.c.b16 %v2618, %v2614
  %v3655 = vpack.c.b16 %v2619, %v2615
  %v3656 = vpack.c.b16 %v2624, %v2620
  %v3657 = vpack.c.b16 %v2625, %v2621
  %v3658 = vpack.c.b16 %v2626, %v2622
  %v3659 = vpack.c.b16 %v2627, %v2623
  %v3660 = vpack.c.b16 %v2632, %v2628
  %v3661 = vpack.c.b16 %v2633, %v2629
  %v3662 = vpack.c.b16 %v2634, %v2630
  %v3663 = vpack.c.b16 %v2635, %v2631
  %v3664 = vpack.c.b16 %v2640, %v2636
  %v3665 = vpack.c.b16 %v2641, %v2637
  %v3666 = vpack.c.b16 %v2642, %v2638
  %v3667 = vpack.c.b16 %v2643, %v2639
  %v3668 = vpack.c.b16 %v2648, %v2644
  %v3669 = vpack.c.b16 %v2649, %v2645
  %v3670 = vpack.c.b16 %v2650, %v2646
  %v3671 = vpack.c.b16 %v2651, %v2647
  %v3672 = vpack.c.b16 %v2656, %v2652
  %v3673 = vpack.c.b16 %v2657, %v2653
  %v3674 = vpack.c.b16 %v2658, %v2654
  %v3675 = vpack.c.b16 %v2659, %v2655
  %v3676 = vpack.c.b16 %v2664, %v2660
  %v3677 = vpack.c.b16 %v2665, %v2661
  %v3678 = vpack.c.b16 %v2666, %v2662
  %v3679 = vpack.c.b16 %v2667, %v2663
  %v3680 = vpack.c.b16 %v2672, %v2668
  %v3681 = vpack.c.b16 %v2673, %v2669
  %v3682 = vpack.c.b16 %v2674, %v2670
  %v3683 = vpack.c.b16 %v2675, %v2671
  %v3684 = vpack.c.b16 %v2680, %v2676
  %v3685 = vpack.c.b16 %v2681, %v2677
  %v3686 = vpack.c.b16 %v2682, %v2678
  %v3687 = vpack.c.b16 %v2683, %v2679
  %v3688 = vpack.c.b16 %v2688, %v2684
  %v3689 = vpack.c.b16 %v2689, %v2685
  %v3690 = vpack.c.b16 %v2690, %v2686
  %v3691 = vpack.c.b16 %v2691, %v2687
  %v3692 = vpack.c.b16 %v2696, %v2692
  %v3693 = vpack.c.b16 %v2697, %v2693
  %v3694 = vpack.c.b16 %v2698, %v2694
  %v3695 = vpack.c.b16 %v2699, %v2695
  %v3696 = vpack.c.b16 %v2704, %v2700
  %v3697 = vpack.c.b16 %v2705, %v2701
  %v3698 = vpack.c.b16 %v2706, %v2702
  %v3699 = vpack.c.b16 %v2707, %v2703
  %v3700 = vpack.c.b16 %v2712, %v2708
  %v3701 = vpack.c.b16 %v2713, %v2709
  %v3702 = vpack.c.b16 %v2714, %v2710
  %v3703 = vpack.c.b16 %v2715, %v2711
  %v3704 = vpack.c.b16 %v2720, %v2716
  %v3705 = vpack.c.b16 %v2721, %v2717
  %v3706 = vpack.c.b16 %v2722, %v2718
  %v3707 = vpack.c.b16 %v2723, %v2719
  %v3708 = vpack.c.b16 %v2728, %v2724
  %v3709 = vpack.c.b16 %v2729, %v2725
  %v3710 = vpack.c.b16 %v2730, %v2726
  %v3711 = vpack.c.b16 %v2731, %v2727
  %v3712 = vpack.c.b16 %v2736, %v2732
  %v3713 = vpack.c.b16 %v2737, %v2733
  %v3714 = vpack.c.b16 %v2738, %v2734
  %v3715 = vpack.c.b16 %v2739, %v2735
  %v3716 = vpack.c.b16 %v2744, %v2740
  %v3717 = vpack.c.b16 %v2745, %v2741
  %v3718 = vpack.c.b16 %v2746, %v2742
  %v3719 = vpack.c.b16 %v2747, %v2743
  %v3720 = vpack.c.b16 %v2752, %v2748
  %v3721 = vpack.c.b16 %v2753, %v2749
  %v3722 = vpack.c.b16 %v2754, %v2750
  %v3723 = vpack.c.b16 %v2755, %v2751
  %v3724 = vpack.c.b16 %v2760, %v2756
  %v3725 = vpack.c.b16 %v2761, %v2757
  %v3726 = vpack.c.b16 %v2762, %v2758
  %v3727 = vpack.c.b16 %v2763, %v2759
  %v3728 = vpack.c.b16 %v2768, %v2764
  %v3729 = vpack.c.b16 %v2769, %v2765
  %v3730 = vpack.c.b16 %v2770, %v2766
  %v3731 = vpack.c.b16 %v2771, %v2767
  %v3732 = vpack.c.b16 %v2776, %v2772
  %v3733 = vpack.c.b16 %v2777, %v2773
  %v3734 = vpack.c.b16 %v2778, %v2774
  %v3735 = vpack.c.b16 %v2779, %v2775
  %v3736 = vpack.c.b16 %v2784, %v2780
  %v3737 = vpack.c.b16 %v2785, %v2781
  %v3738 = vpack.c.b16 %v2786, %v2782
  %v3739 = vpack.c.b16 %v2787, %v2783
  %v3740 = vpack.c.b16 %v2792, %v2788
  %v3741 = vpack.c.b16 %v2793, %v2789
  %v3742 = vpack.c.b16 %v2794, %v2790
  %v3743 = vpack.c.b16 %v2795, %v2791
  %v3744 = vpack.c.b16 %v2800, %v2796
  %v3745 = vpack.c.b16 %v2801, %v2797
  %v3746 = vpack.c.b16 %v2802, %v2798
  %v3747 = vpack.c.b16 %v2803, %v2799
  %v3748 = vpack.c.b16 %v2808, %v2804
  %v3749 = vpack.c.b16 %v2809, %v2805
  %v3750 = vpack.c.b16 %v2810, %v2806
  %v3751 = vpack.c.b16 %v2811, %v2807
  %v3752 = vpack.c.b16 %v2816, %v2812
  %v3753 = vpack.c.b16 %v2817, %v2813
  %v3754 = vpack.c.b16 %v2818, %v2814
  %v3755 = vpack.c.b16 %v2819, %v2815
  %v3756 = vpack.c.b16 %v2824, %v2820
  %v3757 = vpack.c.b16 %v2825, %v2821
  %v3758 = vpack.c.b16 %v2826, %v2822
  %v3759 = vpack.c.b16 %v2827, %v2823
  %v3760 = vpack.c.b16 %v2832, %v2828
  %v3761 = vpack.c.b16 %v2833, %v2829
  %v3762 = vpack.c.b16 %v2834, %v2830
  %v3763 = vpack.c.b16 %v2835, %v2831
  %v3764 = vpack.c.b16 %v2840, %v2836
  %v3765 = vpack.c.b16 %v2841, %v2837
  %v3766 = vpack.c.b16 %v2842, %v2838
  %v3767 = vpack.c.b16 %v2843, %v2839
  %v3768 = vpack.c.b16 %v2848, %v2844
  %v3769 = vpack.c.b16 %v2849, %v2845
  %v3770 = vpack.c.b16 %v2850, %v2846
  %v3771 = vpack.c.b16 %v2851, %v2847
  %v3772 = vpack.c.b16 %v2856, %v2852
  %v3773 = vpack.c.b16 %v2857, %v2853
  %v3774 = vpack.c.b16 %v2858, %v2854
  %v3775 = vpack.c.b16 %v2859, %v2855
  %v3776 = vpack.c.b16 %v2864, %v2860
  %v3777 = vpack.c.b16 %v2865, %v2861
  %v3778 = vpack.c.b16 %v2866, %v2862
  %v3779 = vpack.c.b16 %v2867, %v2863
  %v3780 = vpack.c.b16 %v2872, %v2868
  %v3781 = vpack.c.b16 %v2873, %v2869
  %v3782 = vpack.c.b16 %v2874, %v2870
  %v3783 = vpack.c.b16 %v2875, %v2871
  %v3784 = vpack.c.b16 %v2880, %v2876
  %v3785 = vpack.c.b16 %v2881, %v2877
  %v3786 = vpack.c.b16 %v2882, %v2878
  %v3787 = vpack.c.b16 %v2883, %v2879
  %v3788 = vpack.c.b16 %v2888, %v2884
  %v3789 = vpack.c.b16 %v2889, %v2885
  %v3790 = vpack.c.b16 %v2890, %v2886
  %v3791 = vpack.c.b16 %v2891, %v2887
  %v3792 = vpack.c.b16 %v2896, %v2892
  %v3793 = vpack.c.b16 %v2897, %v2893
  %v3794 = vpack.c.b16 %v2898, %v2894
  %v3795 = vpack.c.b16 %v2899, %v2895
  %v3796 = vpack.c.b16 %v2904, %v2900
  %v3797 = vpack.c.b16 %v2905, %v2901
  %v3798 = vpack.c.b16 %v2906, %v2902
  %v3799 = vpack.c.b16 %v2907, %v2903
  %v3800 = vpack.c.b16 %v2912, %v2908
  %v3801 = vpack.c.b16 %v2913, %v2909
  %v3802 = vpack.c.b16 %v2914, %v2910
  %v3803 = vpack.c.b16 %v2915, %v2911
  %v3804 = vpack.c.b16 %v2920, %v2916
  %v3805 = vpack.c.b16 %v2921, %v2917
  %v3806 = vpack.c.b16 %v2922, %v2918
  %v3807 = vpack.c.b16 %v2923, %v2919
  %v3808 = vpack.c.b16 %v2928, %v2924
  %v3809 = vpack.c.b16 %v2929, %v2925
  %v3810 = vpack.c.b16 %v2930, %v2926
  %v3811 = vpack.c.b16 %v2931, %v2927
  %v3812 = vpack.c.b16 %v2936, %v2932
  %v3813 = vpack.c.b16 %v2937, %v2933
  %v3814 = vpack.c.b16 %v2938, %v2934
  %v3815 = vpack.c.b16 %v2939, %v2935
  %v3816 = vpack.c.b16 %v2944, %v2940
  %v3817 = vpack.c.b16 %v2945, %v2941
  %v3818 = vpack.c.b16 %v2946, %v2942
  %v3819 = vpack.c.b16 %v2947, %v2943
  %v3820 = vpack.c.b16 %v2952, %v2948
  %v3821 = vpack.c.b16 %v2953, %v2949
  %v3822 = vpack.c.b16 %v2954, %v2950
  %v3823 = vpack.c.b16 %v2955, %v2951
  %v3824 = vpack.c.b16 %v2960, %v2956
  %v3825 = vpack.c.b16 %v2961, %v2957
  %v3826 = vpack.c.b16 %v2962, %v2958
  %v3827 = vpack.c.b16 %v2963, %v2959
  %v3828 = vpack.c.b16 %v2968, %v2964
  %v3829 = vpack.c.b16 %v2969, %v2965
  %v3830 = vpack.c.b16 %v2970, %v2966
  %v3831 = vpack.c.b16 %v2971, %v2967
  %v3832 = vpack.c.b16 %v2976, %v2972
  %v3833 = vpack.c.b16 %v2977, %v2973
  %v3834 = vpack.c.b16 %v2978, %v2974
  %v3835 = vpack.c.b16 %v2979, %v2975
  %v3836 = vpack.c.b16 %v2984, %v2980
  %v3837 = vpack.c.b16 %v2985, %v2981
  %v3838 = vpack.c.b16 %v2986, %v2982
  %v3839 = vpack.c.b16 %v2987, %v2983
  %v3840 = vpack.c.b16 %v2992, %v2988
  %v3841 = vpack.c.b16 %v2993, %v2989
  %v3842 = vpack.c.b16 %v2994, %v2990
  %v3843 = vpack.c.b16 %v2995, %v2991
  %v3844 = vpack.c.b16 %v3000, %v2996
  %v3845 = vpack.c.b16 %v3001, %v2997
  %v3846 = vpack.c.b16 %v3002, %v2998
  %v3847 = vpack.c.b16 %v3003, %v2999
  %v3848 = vpack.c.b16 %v3008, %v3004
  %v3849 = vpack.c.b16 %v3009, %v3005
  %v3850 = vpack.c.b16 %v3010, %v3006
  %v3851 = vpack.c.b16 %v3011, %v3007
  %v3852 = vpack.c.b16 %v3016, %v3012
  %v3853 = vpack.c.b16 %v3017, %v3013
  %v3854 = vpack.c.b16 %v3018, %v3014
  %v3855 = vpack.c.b16 %v3019, %v3015
  %v3856 = vpack.c.b16 %v3024, %v3020
  %v3857 = vpack.c.b16 %v3025, %v3021
  %v3858 = vpack.c.b16 %v3026, %v3022
  %v3859 = vpack.c.b16 %v3027, %v3023
  %v3860 = vpack.c.b16 %v3032, %v3028
  %v3861 = vpack.c.b16 %v3033, %v3029
  %v3862 = vpack.c.b16 %v3034, %v3030
  %v3863 = vpack.c.b16 %v3035, %v3031
  %v3864 = vpack.c.b16 %v3040, %v3036
  %v3865 = vpack.c.b16 %v3041, %v3037
  %v3866 = vpack.c.b16 %v3042, %v3038
  %v3867 = vpack.c.b16 %v3043, %v3039
  %v3868 = vpack.c.b16 %v3048, %v3044
  %v3869 = vpack.c.b16 %v3049, %v3045
  %v3870 = vpack.c.b16 %v3050, %v3046
  %v3871 = vpack.c.b16 %v3051, %v3047
  %v3872 = vpack.c.b16 %v3056, %v3052
  %v3873 = vpack.c.b16 %v3057, %v3053
  %v3874 = vpack.c.b16 %v3058, %v3054
  %v3875 = vpack.c.b16 %v3059, %v3055
  %v3876 = vpack.c.b16 %v3064, %v3060
  %v3877 = vpack.c.b16 %v3065, %v3061
  %v3878 = vpack.c.b16 %v3066, %v3062
  %v3879 = vpack.c.b16 %v3067, %v3063
  %v3880 = vpack.c.b16 %v3072, %v3068
  %v3881 = vpack.c.b16 %v3073, %v3069
  %v3882 = vpack.c.b16 %v3074, %v3070
  %v3883 = vpack.c.b16 %v3075, %v3071
  %v3884 = vpack.c.b16 %v3080, %v3076
  %v3885 = vpack.c.b16 %v3081, %v3077
  %v3886 = vpack.c.b16 %v3082, %v3078
  %v3887 = vpack.c.b16 %v3083, %v3079
  %v3888 = vpack.c.b16 %v3088, %v3084
  %v3889 = vpack.c.b16 %v3089, %v3085
  %v3890 = vpack.c.b16 %v3090, %v3086
  %v3891 = vpack.c.b16 %v3091, %v3087
  %v3892 = vpack.c.b16 %v3096, %v3092
  %v3893 = vpack.c.b16 %v3097, %v3093
  %v3894 = vpack.c.b16 %v3098, %v3094
  %v3895 = vpack.c.b16 %v3099, %v3095
  %v3896 = vpack.c.b16 %v3104, %v3100
  %v3897 = vpack.c.b16 %v3105, %v3101
  %v3898 = vpack.c.b16 %v3106, %v3102
  %v3899 = vpack.c.b16 %v3107, %v3103
  %v3900 = vpack.c.b16 %v3112, %v3108
  %v3901 = vpack.c.b16 %v3113, %v3109
  %v3902 = vpack.c.b16 %v3114, %v3110
  %v3903 = vpack.c.b16 %v3115, %v3111
  %v3904 = vpack.c.b16 %v3120, %v3116
  %v3905 = vpack.c.b16 %v3121, %v3117
  %v3906 = vpack.c.b16 %v3122, %v3118
  %v3907 = vpack.c.b16 %v3123, %v3119
  %v3908 = vpack.c.b16 %v3128, %v3124
  %v3909 = vpack.c.b16 %v3129, %v3125
  %v3910 = vpack.c.b16 %v3130, %v3126
  %v3911 = vpack.c.b16 %v3131, %v3127
  %v3912 = vpack.c.b16 %v3136, %v3132
  %v3913 = vpack.c.b16 %v3137, %v3133
  %v3914 = vpack.c.b16 %v3138, %v3134
  %v3915 = vpack.c.b16 %v3139, %v3135
  %v3916 = vpack.c.b16 %v3144, %v3140
  %v3917 = vpack.c.b16 %v3145, %v3141
  %v3918 = vpack.c.b16 %v3146, %v3142
  %v3919 = vpack.c.b16 %v3147, %v3143
  %v3920 = vpack.c.b16 %v3152, %v3148
  %v3921 = vpack.c.b16 %v3153, %v3149
  %v3922 = vpack.c.b16 %v3154, %v3150
  %v3923 = vpack.c.b16 %v3155, %v3151
  %4692 = vmatprep.subr.bf16.mxu0 %v3185
  %4693 = vmatpush1.bf16.msra.mxu0 %v3184
  %4694 = vmatprep.subr.bf16.mxu0 %v3181
  %4695 = vmatpush1.bf16.msra.mxu0 %v3180
  %4696 = vmatprep.subr.bf16.mxu0 %v3177
  %4697 = vmatpush1.bf16.msra.mxu0 %v3176
  %4698 = vmatprep.subr.bf16.mxu0 %v3173
  %4699 = vmatpush1.bf16.msra.mxu0 %v3172
  %4700 = vmatprep.subr.bf16.mxu0 %v3169
  %4701 = vmatpush1.bf16.msra.mxu0 %v3168
  %4702 = vmatprep.subr.bf16.mxu0 %v3165
  %4703 = vmatpush1.bf16.msra.mxu0 %v3164
  %4704 = vmatprep.subr.bf16.mxu0 %v3161
  %4705 = vmatpush1.bf16.msra.mxu0 %v3160
  %4706 = vmatprep.subr.bf16.mxu0 %v3157
  %4707 = vmatpush1.bf16.msra.mxu0 %v3156
  %4708 = vmatprep.subr.bf16.mxu0 %v3217
  %4709 = vmatpush2.bf16.msra.mxu0 %v3216
  %4710 = vmatprep.subr.bf16.mxu0 %v3213
  %4711 = vmatpush2.bf16.msra.mxu0 %v3212
  %4712 = vmatprep.subr.bf16.mxu0 %v3209
  %4713 = vmatpush2.bf16.msra.mxu0 %v3208
  %4714 = vmatprep.subr.bf16.mxu0 %v3205
  %4715 = vmatpush2.bf16.msra.mxu0 %v3204
  %4716 = vmatprep.subr.bf16.mxu0 %v3201
  %4717 = vmatpush2.bf16.msra.mxu0 %v3200
  %4718 = vmatprep.subr.bf16.mxu0 %v3197
  %4719 = vmatpush2.bf16.msra.mxu0 %v3196
  %4720 = vmatprep.subr.bf16.mxu0 %v3193
  %4721 = vmatpush2.bf16.msra.mxu0 %v3192
  %4722 = vmatprep.subr.bf16.mxu0 %v3189
  %4723 = vmatpush2.bf16.msra.mxu0 %v3188
  %4724 = vmatprep.mubr.bf16.mxu0 %v39
  %4725 = vmatmul.mubr.bf16.gmra.mxu0 %v38
  %v4726 = vpop.f32.mrf.mxu0
  %v4727 = vadd.f32 %v835, %v4726
  %v4728 = vpop.f32.mrf.mxu0
  %v4729 = vadd.f32 %v839, %v4728
  %v4730 = vpop.f32.mrf.mxu0
  %v4731 = vpop.f32.mrf.mxu0
  %4732 = vdwg.mxu0
  %4733 = vmatprep.subr.bf16.mxu0 %v3249
  %4734 = vmatpush1.bf16.msra.mxu0 %v3248
  %4735 = vmatprep.subr.bf16.mxu0 %v3245
  %4736 = vmatpush1.bf16.msra.mxu0 %v3244
  %4737 = vmatprep.subr.bf16.mxu0 %v3241
  %4738 = vmatpush1.bf16.msra.mxu0 %v3240
  %4739 = vmatprep.subr.bf16.mxu0 %v3237
  %4740 = vmatpush1.bf16.msra.mxu0 %v3236
  %4741 = vmatprep.subr.bf16.mxu0 %v3233
  %4742 = vmatpush1.bf16.msra.mxu0 %v3232
  %4743 = vmatprep.subr.bf16.mxu0 %v3229
  %4744 = vmatpush1.bf16.msra.mxu0 %v3228
  %4745 = vmatprep.subr.bf16.mxu0 %v3225
  %4746 = vmatpush1.bf16.msra.mxu0 %v3224
  %4747 = vmatprep.subr.bf16.mxu0 %v3221
  %4748 = vmatpush1.bf16.msra.mxu0 %v3220
  %4749 = vmatprep.subr.bf16.mxu0 %v3281
  %4750 = vmatpush2.bf16.msra.mxu0 %v3280
  %4751 = vmatprep.subr.bf16.mxu0 %v3277
  %4752 = vmatpush2.bf16.msra.mxu0 %v3276
  %4753 = vmatprep.subr.bf16.mxu0 %v3273
  %4754 = vmatpush2.bf16.msra.mxu0 %v3272
  %4755 = vmatprep.subr.bf16.mxu0 %v3269
  %4756 = vmatpush2.bf16.msra.mxu0 %v3268
  %4757 = vmatprep.subr.bf16.mxu0 %v3265
  %4758 = vmatpush2.bf16.msra.mxu0 %v3264
  %4759 = vmatprep.subr.bf16.mxu0 %v3261
  %4760 = vmatpush2.bf16.msra.mxu0 %v3260
  %4761 = vmatprep.subr.bf16.mxu0 %v3257
  %4762 = vmatpush2.bf16.msra.mxu0 %v3256
  %4763 = vmatprep.subr.bf16.mxu0 %v3253
  %4764 = vmatpush2.bf16.msra.mxu0 %v3252
  %4765 = vmatprep.mubr.bf16.mxu0 %v41
  %4766 = vmatmul.mubr.bf16.gmra.mxu0 %v40
  %v4767 = vpop.f32.mrf.mxu0
  %v4768 = vadd.f32 %v4727, %v4767
  %v4769 = vpop.f32.mrf.mxu0
  %v4770 = vadd.f32 %v4729, %v4769
  %v4771 = vpop.f32.mrf.mxu0
  %v4772 = vpop.f32.mrf.mxu0
  %4773 = vdwg.mxu0
  %4774 = vmatprep.subr.bf16.mxu0 %v3313
  %4775 = vmatpush1.bf16.msra.mxu0 %v3312
  %4776 = vmatprep.subr.bf16.mxu0 %v3309
  %4777 = vmatpush1.bf16.msra.mxu0 %v3308
  %4778 = vmatprep.subr.bf16.mxu0 %v3305
  %4779 = vmatpush1.bf16.msra.mxu0 %v3304
  %4780 = vmatprep.subr.bf16.mxu0 %v3301
  %4781 = vmatpush1.bf16.msra.mxu0 %v3300
  %4782 = vmatprep.subr.bf16.mxu0 %v3297
  %4783 = vmatpush1.bf16.msra.mxu0 %v3296
  %4784 = vmatprep.subr.bf16.mxu0 %v3293
  %4785 = vmatpush1.bf16.msra.mxu0 %v3292
  %4786 = vmatprep.subr.bf16.mxu0 %v3289
  %4787 = vmatpush1.bf16.msra.mxu0 %v3288
  %4788 = vmatprep.subr.bf16.mxu0 %v3285
  %4789 = vmatpush1.bf16.msra.mxu0 %v3284
  %4790 = vmatprep.subr.bf16.mxu0 %v3345
  %4791 = vmatpush2.bf16.msra.mxu0 %v3344
  %4792 = vmatprep.subr.bf16.mxu0 %v3341
  %4793 = vmatpush2.bf16.msra.mxu0 %v3340
  %4794 = vmatprep.subr.bf16.mxu0 %v3337
  %4795 = vmatpush2.bf16.msra.mxu0 %v3336
  %4796 = vmatprep.subr.bf16.mxu0 %v3333
  %4797 = vmatpush2.bf16.msra.mxu0 %v3332
  %4798 = vmatprep.subr.bf16.mxu0 %v3329
  %4799 = vmatpush2.bf16.msra.mxu0 %v3328
  %4800 = vmatprep.subr.bf16.mxu0 %v3325
  %4801 = vmatpush2.bf16.msra.mxu0 %v3324
  %4802 = vmatprep.subr.bf16.mxu0 %v3321
  %4803 = vmatpush2.bf16.msra.mxu0 %v3320
  %4804 = vmatprep.subr.bf16.mxu0 %v3317
  %4805 = vmatpush2.bf16.msra.mxu0 %v3316
  %4806 = vmatprep.mubr.bf16.mxu0 %v43
  %4807 = vmatmul.mubr.bf16.gmra.mxu0 %v42
  %v4808 = vpop.f32.mrf.mxu0
  %v4809 = vadd.f32 %v4768, %v4808
  %v4810 = vpop.f32.mrf.mxu0
  %v4811 = vadd.f32 %v4770, %v4810
  %v4812 = vpop.f32.mrf.mxu0
  %v4813 = vpop.f32.mrf.mxu0
  %4814 = vdwg.mxu0
  %4815 = vmatprep.subr.bf16.mxu0 %v3377
  %4816 = vmatpush1.bf16.msra.mxu0 %v3376
  %4817 = vmatprep.subr.bf16.mxu0 %v3373
  %4818 = vmatpush1.bf16.msra.mxu0 %v3372
  %4819 = vmatprep.subr.bf16.mxu0 %v3369
  %4820 = vmatpush1.bf16.msra.mxu0 %v3368
  %4821 = vmatprep.subr.bf16.mxu0 %v3365
  %4822 = vmatpush1.bf16.msra.mxu0 %v3364
  %4823 = vmatprep.subr.bf16.mxu0 %v3361
  %4824 = vmatpush1.bf16.msra.mxu0 %v3360
  %4825 = vmatprep.subr.bf16.mxu0 %v3357
  %4826 = vmatpush1.bf16.msra.mxu0 %v3356
  %4827 = vmatprep.subr.bf16.mxu0 %v3353
  %4828 = vmatpush1.bf16.msra.mxu0 %v3352
  %4829 = vmatprep.subr.bf16.mxu0 %v3349
  %4830 = vmatpush1.bf16.msra.mxu0 %v3348
  %4831 = vmatprep.subr.bf16.mxu0 %v3409
  %4832 = vmatpush2.bf16.msra.mxu0 %v3408
  %4833 = vmatprep.subr.bf16.mxu0 %v3405
  %4834 = vmatpush2.bf16.msra.mxu0 %v3404
  %4835 = vmatprep.subr.bf16.mxu0 %v3401
  %4836 = vmatpush2.bf16.msra.mxu0 %v3400
  %4837 = vmatprep.subr.bf16.mxu0 %v3397
  %4838 = vmatpush2.bf16.msra.mxu0 %v3396
  %4839 = vmatprep.subr.bf16.mxu0 %v3393
  %4840 = vmatpush2.bf16.msra.mxu0 %v3392
  %4841 = vmatprep.subr.bf16.mxu0 %v3389
  %4842 = vmatpush2.bf16.msra.mxu0 %v3388
  %4843 = vmatprep.subr.bf16.mxu0 %v3385
  %4844 = vmatpush2.bf16.msra.mxu0 %v3384
  %4845 = vmatprep.subr.bf16.mxu0 %v3381
  %4846 = vmatpush2.bf16.msra.mxu0 %v3380
  %4847 = vmatprep.mubr.bf16.mxu0 %v45
  %4848 = vmatmul.mubr.bf16.gmra.mxu0 %v44
  %v4849 = vpop.f32.mrf.mxu0
  %v4850 = vadd.f32 %v4809, %v4849
  %v4851 = vpop.f32.mrf.mxu0
  %v4852 = vadd.f32 %v4811, %v4851
  %v4853 = vpop.f32.mrf.mxu0
  %v4854 = vpop.f32.mrf.mxu0
  %4855 = vdwg.mxu0
  %4856 = vmatprep.subr.bf16.mxu0 %v3441
  %4857 = vmatpush1.bf16.msra.mxu0 %v3440
  %4858 = vmatprep.subr.bf16.mxu0 %v3437
  %4859 = vmatpush1.bf16.msra.mxu0 %v3436
  %4860 = vmatprep.subr.bf16.mxu0 %v3433
  %4861 = vmatpush1.bf16.msra.mxu0 %v3432
  %4862 = vmatprep.subr.bf16.mxu0 %v3429
  %4863 = vmatpush1.bf16.msra.mxu0 %v3428
  %4864 = vmatprep.subr.bf16.mxu0 %v3425
  %4865 = vmatpush1.bf16.msra.mxu0 %v3424
  %4866 = vmatprep.subr.bf16.mxu0 %v3421
  %4867 = vmatpush1.bf16.msra.mxu0 %v3420
  %4868 = vmatprep.subr.bf16.mxu0 %v3417
  %4869 = vmatpush1.bf16.msra.mxu0 %v3416
  %4870 = vmatprep.subr.bf16.mxu0 %v3413
  %4871 = vmatpush1.bf16.msra.mxu0 %v3412
  %4872 = vmatprep.subr.bf16.mxu0 %v3473
  %4873 = vmatpush2.bf16.msra.mxu0 %v3472
  %4874 = vmatprep.subr.bf16.mxu0 %v3469
  %4875 = vmatpush2.bf16.msra.mxu0 %v3468
  %4876 = vmatprep.subr.bf16.mxu0 %v3465
  %4877 = vmatpush2.bf16.msra.mxu0 %v3464
  %4878 = vmatprep.subr.bf16.mxu0 %v3461
  %4879 = vmatpush2.bf16.msra.mxu0 %v3460
  %4880 = vmatprep.subr.bf16.mxu0 %v3457
  %4881 = vmatpush2.bf16.msra.mxu0 %v3456
  %4882 = vmatprep.subr.bf16.mxu0 %v3453
  %4883 = vmatpush2.bf16.msra.mxu0 %v3452
  %4884 = vmatprep.subr.bf16.mxu0 %v3449
  %4885 = vmatpush2.bf16.msra.mxu0 %v3448
  %4886 = vmatprep.subr.bf16.mxu0 %v3445
  %4887 = vmatpush2.bf16.msra.mxu0 %v3444
  %4888 = vmatprep.mubr.bf16.mxu0 %v47
  %4889 = vmatmul.mubr.bf16.gmra.mxu0 %v46
  %v4890 = vpop.f32.mrf.mxu0
  %v4891 = vadd.f32 %v4850, %v4890
  %v4892 = vpop.f32.mrf.mxu0
  %v4893 = vadd.f32 %v4852, %v4892
  %v4894 = vpop.f32.mrf.mxu0
  %v4895 = vpop.f32.mrf.mxu0
  %4896 = vdwg.mxu0
  %4897 = vmatprep.subr.bf16.mxu0 %v3505
  %4898 = vmatpush1.bf16.msra.mxu0 %v3504
  %4899 = vmatprep.subr.bf16.mxu0 %v3501
  %4900 = vmatpush1.bf16.msra.mxu0 %v3500
  %4901 = vmatprep.subr.bf16.mxu0 %v3497
  %4902 = vmatpush1.bf16.msra.mxu0 %v3496
  %4903 = vmatprep.subr.bf16.mxu0 %v3493
  %4904 = vmatpush1.bf16.msra.mxu0 %v3492
  %4905 = vmatprep.subr.bf16.mxu0 %v3489
  %4906 = vmatpush1.bf16.msra.mxu0 %v3488
  %4907 = vmatprep.subr.bf16.mxu0 %v3485
  %4908 = vmatpush1.bf16.msra.mxu0 %v3484
  %4909 = vmatprep.subr.bf16.mxu0 %v3481
  %4910 = vmatpush1.bf16.msra.mxu0 %v3480
  %4911 = vmatprep.subr.bf16.mxu0 %v3477
  %4912 = vmatpush1.bf16.msra.mxu0 %v3476
  %4913 = vmatprep.subr.bf16.mxu0 %v3537
  %4914 = vmatpush2.bf16.msra.mxu0 %v3536
  %4915 = vmatprep.subr.bf16.mxu0 %v3533
  %4916 = vmatpush2.bf16.msra.mxu0 %v3532
  %4917 = vmatprep.subr.bf16.mxu0 %v3529
  %4918 = vmatpush2.bf16.msra.mxu0 %v3528
  %4919 = vmatprep.subr.bf16.mxu0 %v3525
  %4920 = vmatpush2.bf16.msra.mxu0 %v3524
  %4921 = vmatprep.subr.bf16.mxu0 %v3521
  %4922 = vmatpush2.bf16.msra.mxu0 %v3520
  %4923 = vmatprep.subr.bf16.mxu0 %v3517
  %4924 = vmatpush2.bf16.msra.mxu0 %v3516
  %4925 = vmatprep.subr.bf16.mxu0 %v3513
  %4926 = vmatpush2.bf16.msra.mxu0 %v3512
  %4927 = vmatprep.subr.bf16.mxu0 %v3509
  %4928 = vmatpush2.bf16.msra.mxu0 %v3508
  %4929 = vmatprep.mubr.bf16.mxu0 %v49
  %4930 = vmatmul.mubr.bf16.gmra.mxu0 %v48
  %v4931 = vpop.f32.mrf.mxu0
  %v4932 = vadd.f32 %v4891, %v4931
  %v4933 = vpop.f32.mrf.mxu0
  %v4934 = vadd.f32 %v4893, %v4933
  %v4935 = vpop.f32.mrf.mxu0
  %v4936 = vpop.f32.mrf.mxu0
  %4937 = vdwg.mxu0
  %4938 = vmatprep.subr.bf16.mxu0 %v3569
  %4939 = vmatpush1.bf16.msra.mxu0 %v3568
  %4940 = vmatprep.subr.bf16.mxu0 %v3565
  %4941 = vmatpush1.bf16.msra.mxu0 %v3564
  %4942 = vmatprep.subr.bf16.mxu0 %v3561
  %4943 = vmatpush1.bf16.msra.mxu0 %v3560
  %4944 = vmatprep.subr.bf16.mxu0 %v3557
  %4945 = vmatpush1.bf16.msra.mxu0 %v3556
  %4946 = vmatprep.subr.bf16.mxu0 %v3553
  %4947 = vmatpush1.bf16.msra.mxu0 %v3552
  %4948 = vmatprep.subr.bf16.mxu0 %v3549
  %4949 = vmatpush1.bf16.msra.mxu0 %v3548
  %4950 = vmatprep.subr.bf16.mxu0 %v3545
  %4951 = vmatpush1.bf16.msra.mxu0 %v3544
  %4952 = vmatprep.subr.bf16.mxu0 %v3541
  %4953 = vmatpush1.bf16.msra.mxu0 %v3540
  %4954 = vmatprep.subr.bf16.mxu0 %v3601
  %4955 = vmatpush2.bf16.msra.mxu0 %v3600
  %4956 = vmatprep.subr.bf16.mxu0 %v3597
  %4957 = vmatpush2.bf16.msra.mxu0 %v3596
  %4958 = vmatprep.subr.bf16.mxu0 %v3593
  %4959 = vmatpush2.bf16.msra.mxu0 %v3592
  %4960 = vmatprep.subr.bf16.mxu0 %v3589
  %4961 = vmatpush2.bf16.msra.mxu0 %v3588
  %4962 = vmatprep.subr.bf16.mxu0 %v3585
  %4963 = vmatpush2.bf16.msra.mxu0 %v3584
  %4964 = vmatprep.subr.bf16.mxu0 %v3581
  %4965 = vmatpush2.bf16.msra.mxu0 %v3580
  %4966 = vmatprep.subr.bf16.mxu0 %v3577
  %4967 = vmatpush2.bf16.msra.mxu0 %v3576
  %4968 = vmatprep.subr.bf16.mxu0 %v3573
  %4969 = vmatpush2.bf16.msra.mxu0 %v3572
  %4970 = vmatprep.mubr.bf16.mxu0 %v51
  %4971 = vmatmul.mubr.bf16.gmra.mxu0 %v50
  %v4972 = vpop.f32.mrf.mxu0
  %v4973 = vadd.f32 %v4932, %v4972
  %v4974 = vpop.f32.mrf.mxu0
  %v4975 = vadd.f32 %v4934, %v4974
  %v4976 = vpop.f32.mrf.mxu0
  %v4977 = vpop.f32.mrf.mxu0
  %4978 = vdwg.mxu0
  %4979 = vmatprep.subr.bf16.mxu0 %v3633
  %4980 = vmatpush1.bf16.msra.mxu0 %v3632
  %4981 = vmatprep.subr.bf16.mxu0 %v3629
  %4982 = vmatpush1.bf16.msra.mxu0 %v3628
  %4983 = vmatprep.subr.bf16.mxu0 %v3625
  %4984 = vmatpush1.bf16.msra.mxu0 %v3624
  %4985 = vmatprep.subr.bf16.mxu0 %v3621
  %4986 = vmatpush1.bf16.msra.mxu0 %v3620
  %4987 = vmatprep.subr.bf16.mxu0 %v3617
  %4988 = vmatpush1.bf16.msra.mxu0 %v3616
  %4989 = vmatprep.subr.bf16.mxu0 %v3613
  %4990 = vmatpush1.bf16.msra.mxu0 %v3612
  %4991 = vmatprep.subr.bf16.mxu0 %v3609
  %4992 = vmatpush1.bf16.msra.mxu0 %v3608
  %4993 = vmatprep.subr.bf16.mxu0 %v3605
  %4994 = vmatpush1.bf16.msra.mxu0 %v3604
  %4995 = vmatprep.subr.bf16.mxu0 %v3665
  %4996 = vmatpush2.bf16.msra.mxu0 %v3664
  %4997 = vmatprep.subr.bf16.mxu0 %v3661
  %4998 = vmatpush2.bf16.msra.mxu0 %v3660
  %4999 = vmatprep.subr.bf16.mxu0 %v3657
  %5000 = vmatpush2.bf16.msra.mxu0 %v3656
  %5001 = vmatprep.subr.bf16.mxu0 %v3653
  %5002 = vmatpush2.bf16.msra.mxu0 %v3652
  %5003 = vmatprep.subr.bf16.mxu0 %v3649
  %5004 = vmatpush2.bf16.msra.mxu0 %v3648
  %5005 = vmatprep.subr.bf16.mxu0 %v3645
  %5006 = vmatpush2.bf16.msra.mxu0 %v3644
  %5007 = vmatprep.subr.bf16.mxu0 %v3641
  %5008 = vmatpush2.bf16.msra.mxu0 %v3640
  %5009 = vmatprep.subr.bf16.mxu0 %v3637
  %5010 = vmatpush2.bf16.msra.mxu0 %v3636
  %5011 = vmatprep.mubr.bf16.mxu0 %v53
  %5012 = vmatmul.mubr.bf16.gmra.mxu0 %v52
  %v5013 = vpop.f32.mrf.mxu0
  %v5014 = vadd.f32 %v4973, %v5013
  %v5015 = vpop.f32.mrf.mxu0
  %v5016 = vadd.f32 %v4975, %v5015
  %v5017 = vpop.f32.mrf.mxu0
  %v5018 = vpop.f32.mrf.mxu0
  %5019 = vdwg.mxu0
  %5020 = vmatprep.subr.bf16.mxu0 %v3697
  %5021 = vmatpush1.bf16.msra.mxu0 %v3696
  %5022 = vmatprep.subr.bf16.mxu0 %v3693
  %5023 = vmatpush1.bf16.msra.mxu0 %v3692
  %5024 = vmatprep.subr.bf16.mxu0 %v3689
  %5025 = vmatpush1.bf16.msra.mxu0 %v3688
  %5026 = vmatprep.subr.bf16.mxu0 %v3685
  %5027 = vmatpush1.bf16.msra.mxu0 %v3684
  %5028 = vmatprep.subr.bf16.mxu0 %v3681
  %5029 = vmatpush1.bf16.msra.mxu0 %v3680
  %5030 = vmatprep.subr.bf16.mxu0 %v3677
  %5031 = vmatpush1.bf16.msra.mxu0 %v3676
  %5032 = vmatprep.subr.bf16.mxu0 %v3673
  %5033 = vmatpush1.bf16.msra.mxu0 %v3672
  %5034 = vmatprep.subr.bf16.mxu0 %v3669
  %5035 = vmatpush1.bf16.msra.mxu0 %v3668
  %5036 = vmatprep.subr.bf16.mxu0 %v3729
  %5037 = vmatpush2.bf16.msra.mxu0 %v3728
  %5038 = vmatprep.subr.bf16.mxu0 %v3725
  %5039 = vmatpush2.bf16.msra.mxu0 %v3724
  %5040 = vmatprep.subr.bf16.mxu0 %v3721
  %5041 = vmatpush2.bf16.msra.mxu0 %v3720
  %5042 = vmatprep.subr.bf16.mxu0 %v3717
  %5043 = vmatpush2.bf16.msra.mxu0 %v3716
  %5044 = vmatprep.subr.bf16.mxu0 %v3713
  %5045 = vmatpush2.bf16.msra.mxu0 %v3712
  %5046 = vmatprep.subr.bf16.mxu0 %v3709
  %5047 = vmatpush2.bf16.msra.mxu0 %v3708
  %5048 = vmatprep.subr.bf16.mxu0 %v3705
  %5049 = vmatpush2.bf16.msra.mxu0 %v3704
  %5050 = vmatprep.subr.bf16.mxu0 %v3701
  %5051 = vmatpush2.bf16.msra.mxu0 %v3700
  %5052 = vmatprep.mubr.bf16.mxu0 %v55
  %5053 = vmatmul.mubr.bf16.gmra.mxu0 %v54
  %v5054 = vpop.f32.mrf.mxu0
  %v5055 = vadd.f32 %v5014, %v5054
  %v5056 = vpop.f32.mrf.mxu0
  %v5057 = vadd.f32 %v5016, %v5056
  %v5058 = vpop.f32.mrf.mxu0
  %v5059 = vpop.f32.mrf.mxu0
  %5060 = vdwg.mxu0
  %5061 = vmatprep.subr.bf16.mxu0 %v3761
  %5062 = vmatpush1.bf16.msra.mxu0 %v3760
  %5063 = vmatprep.subr.bf16.mxu0 %v3757
  %5064 = vmatpush1.bf16.msra.mxu0 %v3756
  %5065 = vmatprep.subr.bf16.mxu0 %v3753
  %5066 = vmatpush1.bf16.msra.mxu0 %v3752
  %5067 = vmatprep.subr.bf16.mxu0 %v3749
  %5068 = vmatpush1.bf16.msra.mxu0 %v3748
  %5069 = vmatprep.subr.bf16.mxu0 %v3745
  %5070 = vmatpush1.bf16.msra.mxu0 %v3744
  %5071 = vmatprep.subr.bf16.mxu0 %v3741
  %5072 = vmatpush1.bf16.msra.mxu0 %v3740
  %5073 = vmatprep.subr.bf16.mxu0 %v3737
  %5074 = vmatpush1.bf16.msra.mxu0 %v3736
  %5075 = vmatprep.subr.bf16.mxu0 %v3733
  %5076 = vmatpush1.bf16.msra.mxu0 %v3732
  %5077 = vmatprep.subr.bf16.mxu0 %v3793
  %5078 = vmatpush2.bf16.msra.mxu0 %v3792
  %5079 = vmatprep.subr.bf16.mxu0 %v3789
  %5080 = vmatpush2.bf16.msra.mxu0 %v3788
  %5081 = vmatprep.subr.bf16.mxu0 %v3785
  %5082 = vmatpush2.bf16.msra.mxu0 %v3784
  %5083 = vmatprep.subr.bf16.mxu0 %v3781
  %5084 = vmatpush2.bf16.msra.mxu0 %v3780
  %5085 = vmatprep.subr.bf16.mxu0 %v3777
  %5086 = vmatpush2.bf16.msra.mxu0 %v3776
  %5087 = vmatprep.subr.bf16.mxu0 %v3773
  %5088 = vmatpush2.bf16.msra.mxu0 %v3772
  %5089 = vmatprep.subr.bf16.mxu0 %v3769
  %5090 = vmatpush2.bf16.msra.mxu0 %v3768
  %5091 = vmatprep.subr.bf16.mxu0 %v3765
  %5092 = vmatpush2.bf16.msra.mxu0 %v3764
  %5093 = vmatprep.mubr.bf16.mxu0 %v57
  %5094 = vmatmul.mubr.bf16.gmra.mxu0 %v56
  %v5095 = vpop.f32.mrf.mxu0
  %v5096 = vadd.f32 %v5055, %v5095
  %v5097 = vpop.f32.mrf.mxu0
  %v5098 = vadd.f32 %v5057, %v5097
  %v5099 = vpop.f32.mrf.mxu0
  %v5100 = vpop.f32.mrf.mxu0
  %5101 = vdwg.mxu0
  %5102 = vmatprep.subr.bf16.mxu0 %v3825
  %5103 = vmatpush1.bf16.msra.mxu0 %v3824
  %5104 = vmatprep.subr.bf16.mxu0 %v3821
  %5105 = vmatpush1.bf16.msra.mxu0 %v3820
  %5106 = vmatprep.subr.bf16.mxu0 %v3817
  %5107 = vmatpush1.bf16.msra.mxu0 %v3816
  %5108 = vmatprep.subr.bf16.mxu0 %v3813
  %5109 = vmatpush1.bf16.msra.mxu0 %v3812
  %5110 = vmatprep.subr.bf16.mxu0 %v3809
  %5111 = vmatpush1.bf16.msra.mxu0 %v3808
  %5112 = vmatprep.subr.bf16.mxu0 %v3805
  %5113 = vmatpush1.bf16.msra.mxu0 %v3804
  %5114 = vmatprep.subr.bf16.mxu0 %v3801
  %5115 = vmatpush1.bf16.msra.mxu0 %v3800
  %5116 = vmatprep.subr.bf16.mxu0 %v3797
  %5117 = vmatpush1.bf16.msra.mxu0 %v3796
  %5118 = vmatprep.subr.bf16.mxu0 %v3857
  %5119 = vmatpush2.bf16.msra.mxu0 %v3856
  %5120 = vmatprep.subr.bf16.mxu0 %v3853
  %5121 = vmatpush2.bf16.msra.mxu0 %v3852
  %5122 = vmatprep.subr.bf16.mxu0 %v3849
  %5123 = vmatpush2.bf16.msra.mxu0 %v3848
  %5124 = vmatprep.subr.bf16.mxu0 %v3845
  %5125 = vmatpush2.bf16.msra.mxu0 %v3844
  %5126 = vmatprep.subr.bf16.mxu0 %v3841
  %5127 = vmatpush2.bf16.msra.mxu0 %v3840
  %5128 = vmatprep.subr.bf16.mxu0 %v3837
  %5129 = vmatpush2.bf16.msra.mxu0 %v3836
  %5130 = vmatprep.subr.bf16.mxu0 %v3833
  %5131 = vmatpush2.bf16.msra.mxu0 %v3832
  %5132 = vmatprep.subr.bf16.mxu0 %v3829
  %5133 = vmatpush2.bf16.msra.mxu0 %v3828
  %5134 = vmatprep.mubr.bf16.mxu0 %v59
  %5135 = vmatmul.mubr.bf16.gmra.mxu0 %v58
  %v5136 = vpop.f32.mrf.mxu0
  %v5137 = vadd.f32 %v5096, %v5136
  %v5138 = vpop.f32.mrf.mxu0
  %v5139 = vadd.f32 %v5098, %v5138
  %v5140 = vpop.f32.mrf.mxu0
  %v5141 = vpop.f32.mrf.mxu0
  %5142 = vdwg.mxu0
  %5143 = vmatprep.subr.bf16.mxu0 %v3889
  %5144 = vmatpush1.bf16.msra.mxu0 %v3888
  %5145 = vmatprep.subr.bf16.mxu0 %v3885
  %5146 = vmatpush1.bf16.msra.mxu0 %v3884
  %5147 = vmatprep.subr.bf16.mxu0 %v3881
  %5148 = vmatpush1.bf16.msra.mxu0 %v3880
  %5149 = vmatprep.subr.bf16.mxu0 %v3877
  %5150 = vmatpush1.bf16.msra.mxu0 %v3876
  %5151 = vmatprep.subr.bf16.mxu0 %v3873
  %5152 = vmatpush1.bf16.msra.mxu0 %v3872
  %5153 = vmatprep.subr.bf16.mxu0 %v3869
  %5154 = vmatpush1.bf16.msra.mxu0 %v3868
  %5155 = vmatprep.subr.bf16.mxu0 %v3865
  %5156 = vmatpush1.bf16.msra.mxu0 %v3864
  %5157 = vmatprep.subr.bf16.mxu0 %v3861
  %5158 = vmatpush1.bf16.msra.mxu0 %v3860
  %5159 = vmatprep.subr.bf16.mxu0 %v3921
  %5160 = vmatpush2.bf16.msra.mxu0 %v3920
  %5161 = vmatprep.subr.bf16.mxu0 %v3917
  %5162 = vmatpush2.bf16.msra.mxu0 %v3916
  %5163 = vmatprep.subr.bf16.mxu0 %v3913
  %5164 = vmatpush2.bf16.msra.mxu0 %v3912
  %5165 = vmatprep.subr.bf16.mxu0 %v3909
  %5166 = vmatpush2.bf16.msra.mxu0 %v3908
  %5167 = vmatprep.subr.bf16.mxu0 %v3905
  %5168 = vmatpush2.bf16.msra.mxu0 %v3904
  %5169 = vmatprep.subr.bf16.mxu0 %v3901
  %5170 = vmatpush2.bf16.msra.mxu0 %v3900
  %5171 = vmatprep.subr.bf16.mxu0 %v3897
  %5172 = vmatpush2.bf16.msra.mxu0 %v3896
  %5173 = vmatprep.subr.bf16.mxu0 %v3893
  %5174 = vmatpush2.bf16.msra.mxu0 %v3892
  %5175 = vmatprep.mubr.bf16.mxu0 %v61
  %5176 = vmatmul.mubr.bf16.gmra.mxu0 %v60
  %v5177 = vpop.f32.mrf.mxu0
  %v5178 = vadd.f32 %v5137, %v5177
  %v5179 = vpop.f32.mrf.mxu0
  %v5180 = vadd.f32 %v5139, %v5179
  %v5181 = vpop.f32.mrf.mxu0
  %v5182 = vpop.f32.mrf.mxu0
  %5183 = vdwg.mxu0
  %5184 = vmatprep.subr.bf16.mxu0 %v3187
  %5185 = vmatpush1.bf16.msra.mxu0 %v3186
  %5186 = vmatprep.subr.bf16.mxu0 %v3183
  %5187 = vmatpush1.bf16.msra.mxu0 %v3182
  %5188 = vmatprep.subr.bf16.mxu0 %v3179
  %5189 = vmatpush1.bf16.msra.mxu0 %v3178
  %5190 = vmatprep.subr.bf16.mxu0 %v3175
  %5191 = vmatpush1.bf16.msra.mxu0 %v3174
  %5192 = vmatprep.subr.bf16.mxu0 %v3171
  %5193 = vmatpush1.bf16.msra.mxu0 %v3170
  %5194 = vmatprep.subr.bf16.mxu0 %v3167
  %5195 = vmatpush1.bf16.msra.mxu0 %v3166
  %5196 = vmatprep.subr.bf16.mxu0 %v3163
  %5197 = vmatpush1.bf16.msra.mxu0 %v3162
  %5198 = vmatprep.subr.bf16.mxu0 %v3159
  %5199 = vmatpush1.bf16.msra.mxu0 %v3158
  %5200 = vmatprep.subr.bf16.mxu0 %v3219
  %5201 = vmatpush2.bf16.msra.mxu0 %v3218
  %5202 = vmatprep.subr.bf16.mxu0 %v3215
  %5203 = vmatpush2.bf16.msra.mxu0 %v3214
  %5204 = vmatprep.subr.bf16.mxu0 %v3211
  %5205 = vmatpush2.bf16.msra.mxu0 %v3210
  %5206 = vmatprep.subr.bf16.mxu0 %v3207
  %5207 = vmatpush2.bf16.msra.mxu0 %v3206
  %5208 = vmatprep.subr.bf16.mxu0 %v3203
  %5209 = vmatpush2.bf16.msra.mxu0 %v3202
  %5210 = vmatprep.subr.bf16.mxu0 %v3199
  %5211 = vmatpush2.bf16.msra.mxu0 %v3198
  %5212 = vmatprep.subr.bf16.mxu0 %v3195
  %5213 = vmatpush2.bf16.msra.mxu0 %v3194
  %5214 = vmatprep.subr.bf16.mxu0 %v3191
  %5215 = vmatpush2.bf16.msra.mxu0 %v3190
  %5216 = vmatprep.mubr.bf16.mxu0 %v39
  %5217 = vmatmul.mubr.bf16.gmra.mxu0 %v38
  %v5218 = vpop.f32.mrf.mxu0
  %v5219 = vadd.f32 %v843, %v5218
  %v5220 = vpop.f32.mrf.mxu0
  %v5221 = vadd.f32 %v847, %v5220
  %v5222 = vpop.f32.mrf.mxu0
  %v5223 = vpop.f32.mrf.mxu0
  %5224 = vdwg.mxu0
  %5225 = vmatprep.subr.bf16.mxu0 %v3251
  %5226 = vmatpush1.bf16.msra.mxu0 %v3250
  %5227 = vmatprep.subr.bf16.mxu0 %v3247
  %5228 = vmatpush1.bf16.msra.mxu0 %v3246
  %5229 = vmatprep.subr.bf16.mxu0 %v3243
  %5230 = vmatpush1.bf16.msra.mxu0 %v3242
  %5231 = vmatprep.subr.bf16.mxu0 %v3239
  %5232 = vmatpush1.bf16.msra.mxu0 %v3238
  %5233 = vmatprep.subr.bf16.mxu0 %v3235
  %5234 = vmatpush1.bf16.msra.mxu0 %v3234
  %5235 = vmatprep.subr.bf16.mxu0 %v3231
  %5236 = vmatpush1.bf16.msra.mxu0 %v3230
  %5237 = vmatprep.subr.bf16.mxu0 %v3227
  %5238 = vmatpush1.bf16.msra.mxu0 %v3226
  %5239 = vmatprep.subr.bf16.mxu0 %v3223
  %5240 = vmatpush1.bf16.msra.mxu0 %v3222
  %5241 = vmatprep.subr.bf16.mxu0 %v3283
  %5242 = vmatpush2.bf16.msra.mxu0 %v3282
  %5243 = vmatprep.subr.bf16.mxu0 %v3279
  %5244 = vmatpush2.bf16.msra.mxu0 %v3278
  %5245 = vmatprep.subr.bf16.mxu0 %v3275
  %5246 = vmatpush2.bf16.msra.mxu0 %v3274
  %5247 = vmatprep.subr.bf16.mxu0 %v3271
  %5248 = vmatpush2.bf16.msra.mxu0 %v3270
  %5249 = vmatprep.subr.bf16.mxu0 %v3267
  %5250 = vmatpush2.bf16.msra.mxu0 %v3266
  %5251 = vmatprep.subr.bf16.mxu0 %v3263
  %5252 = vmatpush2.bf16.msra.mxu0 %v3262
  %5253 = vmatprep.subr.bf16.mxu0 %v3259
  %5254 = vmatpush2.bf16.msra.mxu0 %v3258
  %5255 = vmatprep.subr.bf16.mxu0 %v3255
  %5256 = vmatpush2.bf16.msra.mxu0 %v3254
  %5257 = vmatprep.mubr.bf16.mxu0 %v41
  %5258 = vmatmul.mubr.bf16.gmra.mxu0 %v40
  %v5259 = vpop.f32.mrf.mxu0
  %v5260 = vadd.f32 %v5219, %v5259
  %v5261 = vpop.f32.mrf.mxu0
  %v5262 = vadd.f32 %v5221, %v5261
  %v5263 = vpop.f32.mrf.mxu0
  %v5264 = vpop.f32.mrf.mxu0
  %5265 = vdwg.mxu0
  %5266 = vmatprep.subr.bf16.mxu0 %v3315
  %5267 = vmatpush1.bf16.msra.mxu0 %v3314
  %5268 = vmatprep.subr.bf16.mxu0 %v3311
  %5269 = vmatpush1.bf16.msra.mxu0 %v3310
  %5270 = vmatprep.subr.bf16.mxu0 %v3307
  %5271 = vmatpush1.bf16.msra.mxu0 %v3306
  %5272 = vmatprep.subr.bf16.mxu0 %v3303
  %5273 = vmatpush1.bf16.msra.mxu0 %v3302
  %5274 = vmatprep.subr.bf16.mxu0 %v3299
  %5275 = vmatpush1.bf16.msra.mxu0 %v3298
  %5276 = vmatprep.subr.bf16.mxu0 %v3295
  %5277 = vmatpush1.bf16.msra.mxu0 %v3294
  %5278 = vmatprep.subr.bf16.mxu0 %v3291
  %5279 = vmatpush1.bf16.msra.mxu0 %v3290
  %5280 = vmatprep.subr.bf16.mxu0 %v3287
  %5281 = vmatpush1.bf16.msra.mxu0 %v3286
  %5282 = vmatprep.subr.bf16.mxu0 %v3347
  %5283 = vmatpush2.bf16.msra.mxu0 %v3346
  %5284 = vmatprep.subr.bf16.mxu0 %v3343
  %5285 = vmatpush2.bf16.msra.mxu0 %v3342
  %5286 = vmatprep.subr.bf16.mxu0 %v3339
  %5287 = vmatpush2.bf16.msra.mxu0 %v3338
  %5288 = vmatprep.subr.bf16.mxu0 %v3335
  %5289 = vmatpush2.bf16.msra.mxu0 %v3334
  %5290 = vmatprep.subr.bf16.mxu0 %v3331
  %5291 = vmatpush2.bf16.msra.mxu0 %v3330
  %5292 = vmatprep.subr.bf16.mxu0 %v3327
  %5293 = vmatpush2.bf16.msra.mxu0 %v3326
  %5294 = vmatprep.subr.bf16.mxu0 %v3323
  %5295 = vmatpush2.bf16.msra.mxu0 %v3322
  %5296 = vmatprep.subr.bf16.mxu0 %v3319
  %5297 = vmatpush2.bf16.msra.mxu0 %v3318
  %5298 = vmatprep.mubr.bf16.mxu0 %v43
  %5299 = vmatmul.mubr.bf16.gmra.mxu0 %v42
  %v5300 = vpop.f32.mrf.mxu0
  %v5301 = vadd.f32 %v5260, %v5300
  %v5302 = vpop.f32.mrf.mxu0
  %v5303 = vadd.f32 %v5262, %v5302
  %v5304 = vpop.f32.mrf.mxu0
  %v5305 = vpop.f32.mrf.mxu0
  %5306 = vdwg.mxu0
  %5307 = vmatprep.subr.bf16.mxu0 %v3379
  %5308 = vmatpush1.bf16.msra.mxu0 %v3378
  %5309 = vmatprep.subr.bf16.mxu0 %v3375
  %5310 = vmatpush1.bf16.msra.mxu0 %v3374
  %5311 = vmatprep.subr.bf16.mxu0 %v3371
  %5312 = vmatpush1.bf16.msra.mxu0 %v3370
  %5313 = vmatprep.subr.bf16.mxu0 %v3367
  %5314 = vmatpush1.bf16.msra.mxu0 %v3366
  %5315 = vmatprep.subr.bf16.mxu0 %v3363
  %5316 = vmatpush1.bf16.msra.mxu0 %v3362
  %5317 = vmatprep.subr.bf16.mxu0 %v3359
  %5318 = vmatpush1.bf16.msra.mxu0 %v3358
  %5319 = vmatprep.subr.bf16.mxu0 %v3355
  %5320 = vmatpush1.bf16.msra.mxu0 %v3354
  %5321 = vmatprep.subr.bf16.mxu0 %v3351
  %5322 = vmatpush1.bf16.msra.mxu0 %v3350
  %5323 = vmatprep.subr.bf16.mxu0 %v3411
  %5324 = vmatpush2.bf16.msra.mxu0 %v3410
  %5325 = vmatprep.subr.bf16.mxu0 %v3407
  %5326 = vmatpush2.bf16.msra.mxu0 %v3406
  %5327 = vmatprep.subr.bf16.mxu0 %v3403
  %5328 = vmatpush2.bf16.msra.mxu0 %v3402
  %5329 = vmatprep.subr.bf16.mxu0 %v3399
  %5330 = vmatpush2.bf16.msra.mxu0 %v3398
  %5331 = vmatprep.subr.bf16.mxu0 %v3395
  %5332 = vmatpush2.bf16.msra.mxu0 %v3394
  %5333 = vmatprep.subr.bf16.mxu0 %v3391
  %5334 = vmatpush2.bf16.msra.mxu0 %v3390
  %5335 = vmatprep.subr.bf16.mxu0 %v3387
  %5336 = vmatpush2.bf16.msra.mxu0 %v3386
  %5337 = vmatprep.subr.bf16.mxu0 %v3383
  %5338 = vmatpush2.bf16.msra.mxu0 %v3382
  %5339 = vmatprep.mubr.bf16.mxu0 %v45
  %5340 = vmatmul.mubr.bf16.gmra.mxu0 %v44
  %v5341 = vpop.f32.mrf.mxu0
  %v5342 = vadd.f32 %v5301, %v5341
  %v5343 = vpop.f32.mrf.mxu0
  %v5344 = vadd.f32 %v5303, %v5343
  %v5345 = vpop.f32.mrf.mxu0
  %v5346 = vpop.f32.mrf.mxu0
  %5347 = vdwg.mxu0
  %5348 = vmatprep.subr.bf16.mxu0 %v3443
  %5349 = vmatpush1.bf16.msra.mxu0 %v3442
  %5350 = vmatprep.subr.bf16.mxu0 %v3439
  %5351 = vmatpush1.bf16.msra.mxu0 %v3438
  %5352 = vmatprep.subr.bf16.mxu0 %v3435
  %5353 = vmatpush1.bf16.msra.mxu0 %v3434
  %5354 = vmatprep.subr.bf16.mxu0 %v3431
  %5355 = vmatpush1.bf16.msra.mxu0 %v3430
  %5356 = vmatprep.subr.bf16.mxu0 %v3427
  %5357 = vmatpush1.bf16.msra.mxu0 %v3426
  %5358 = vmatprep.subr.bf16.mxu0 %v3423
  %5359 = vmatpush1.bf16.msra.mxu0 %v3422
  %5360 = vmatprep.subr.bf16.mxu0 %v3419
  %5361 = vmatpush1.bf16.msra.mxu0 %v3418
  %5362 = vmatprep.subr.bf16.mxu0 %v3415
  %5363 = vmatpush1.bf16.msra.mxu0 %v3414
  %5364 = vmatprep.subr.bf16.mxu0 %v3475
  %5365 = vmatpush2.bf16.msra.mxu0 %v3474
  %5366 = vmatprep.subr.bf16.mxu0 %v3471
  %5367 = vmatpush2.bf16.msra.mxu0 %v3470
  %5368 = vmatprep.subr.bf16.mxu0 %v3467
  %5369 = vmatpush2.bf16.msra.mxu0 %v3466
  %5370 = vmatprep.subr.bf16.mxu0 %v3463
  %5371 = vmatpush2.bf16.msra.mxu0 %v3462
  %5372 = vmatprep.subr.bf16.mxu0 %v3459
  %5373 = vmatpush2.bf16.msra.mxu0 %v3458
  %5374 = vmatprep.subr.bf16.mxu0 %v3455
  %5375 = vmatpush2.bf16.msra.mxu0 %v3454
  %5376 = vmatprep.subr.bf16.mxu0 %v3451
  %5377 = vmatpush2.bf16.msra.mxu0 %v3450
  %5378 = vmatprep.subr.bf16.mxu0 %v3447
  %5379 = vmatpush2.bf16.msra.mxu0 %v3446
  %5380 = vmatprep.mubr.bf16.mxu0 %v47
  %5381 = vmatmul.mubr.bf16.gmra.mxu0 %v46
  %v5382 = vpop.f32.mrf.mxu0
  %v5383 = vadd.f32 %v5342, %v5382
  %v5384 = vpop.f32.mrf.mxu0
  %v5385 = vadd.f32 %v5344, %v5384
  %v5386 = vpop.f32.mrf.mxu0
  %v5387 = vpop.f32.mrf.mxu0
  %5388 = vdwg.mxu0
  %5389 = vmatprep.subr.bf16.mxu0 %v3507
  %5390 = vmatpush1.bf16.msra.mxu0 %v3506
  %5391 = vmatprep.subr.bf16.mxu0 %v3503
  %5392 = vmatpush1.bf16.msra.mxu0 %v3502
  %5393 = vmatprep.subr.bf16.mxu0 %v3499
  %5394 = vmatpush1.bf16.msra.mxu0 %v3498
  %5395 = vmatprep.subr.bf16.mxu0 %v3495
  %5396 = vmatpush1.bf16.msra.mxu0 %v3494
  %5397 = vmatprep.subr.bf16.mxu0 %v3491
  %5398 = vmatpush1.bf16.msra.mxu0 %v3490
  %5399 = vmatprep.subr.bf16.mxu0 %v3487
  %5400 = vmatpush1.bf16.msra.mxu0 %v3486
  %5401 = vmatprep.subr.bf16.mxu0 %v3483
  %5402 = vmatpush1.bf16.msra.mxu0 %v3482
  %5403 = vmatprep.subr.bf16.mxu0 %v3479
  %5404 = vmatpush1.bf16.msra.mxu0 %v3478
  %5405 = vmatprep.subr.bf16.mxu0 %v3539
  %5406 = vmatpush2.bf16.msra.mxu0 %v3538
  %5407 = vmatprep.subr.bf16.mxu0 %v3535
  %5408 = vmatpush2.bf16.msra.mxu0 %v3534
  %5409 = vmatprep.subr.bf16.mxu0 %v3531
  %5410 = vmatpush2.bf16.msra.mxu0 %v3530
  %5411 = vmatprep.subr.bf16.mxu0 %v3527
  %5412 = vmatpush2.bf16.msra.mxu0 %v3526
  %5413 = vmatprep.subr.bf16.mxu0 %v3523
  %5414 = vmatpush2.bf16.msra.mxu0 %v3522
  %5415 = vmatprep.subr.bf16.mxu0 %v3519
  %5416 = vmatpush2.bf16.msra.mxu0 %v3518
  %5417 = vmatprep.subr.bf16.mxu0 %v3515
  %5418 = vmatpush2.bf16.msra.mxu0 %v3514
  %5419 = vmatprep.subr.bf16.mxu0 %v3511
  %5420 = vmatpush2.bf16.msra.mxu0 %v3510
  %5421 = vmatprep.mubr.bf16.mxu0 %v49
  %5422 = vmatmul.mubr.bf16.gmra.mxu0 %v48
  %v5423 = vpop.f32.mrf.mxu0
  %v5424 = vadd.f32 %v5383, %v5423
  %v5425 = vpop.f32.mrf.mxu0
  %v5426 = vadd.f32 %v5385, %v5425
  %v5427 = vpop.f32.mrf.mxu0
  %v5428 = vpop.f32.mrf.mxu0
  %5429 = vdwg.mxu0
  %5430 = vmatprep.subr.bf16.mxu0 %v3571
  %5431 = vmatpush1.bf16.msra.mxu0 %v3570
  %5432 = vmatprep.subr.bf16.mxu0 %v3567
  %5433 = vmatpush1.bf16.msra.mxu0 %v3566
  %5434 = vmatprep.subr.bf16.mxu0 %v3563
  %5435 = vmatpush1.bf16.msra.mxu0 %v3562
  %5436 = vmatprep.subr.bf16.mxu0 %v3559
  %5437 = vmatpush1.bf16.msra.mxu0 %v3558
  %5438 = vmatprep.subr.bf16.mxu0 %v3555
  %5439 = vmatpush1.bf16.msra.mxu0 %v3554
  %5440 = vmatprep.subr.bf16.mxu0 %v3551
  %5441 = vmatpush1.bf16.msra.mxu0 %v3550
  %5442 = vmatprep.subr.bf16.mxu0 %v3547
  %5443 = vmatpush1.bf16.msra.mxu0 %v3546
  %5444 = vmatprep.subr.bf16.mxu0 %v3543
  %5445 = vmatpush1.bf16.msra.mxu0 %v3542
  %5446 = vmatprep.subr.bf16.mxu0 %v3603
  %5447 = vmatpush2.bf16.msra.mxu0 %v3602
  %5448 = vmatprep.subr.bf16.mxu0 %v3599
  %5449 = vmatpush2.bf16.msra.mxu0 %v3598
  %5450 = vmatprep.subr.bf16.mxu0 %v3595
  %5451 = vmatpush2.bf16.msra.mxu0 %v3594
  %5452 = vmatprep.subr.bf16.mxu0 %v3591
  %5453 = vmatpush2.bf16.msra.mxu0 %v3590
  %5454 = vmatprep.subr.bf16.mxu0 %v3587
  %5455 = vmatpush2.bf16.msra.mxu0 %v3586
  %5456 = vmatprep.subr.bf16.mxu0 %v3583
  %5457 = vmatpush2.bf16.msra.mxu0 %v3582
  %5458 = vmatprep.subr.bf16.mxu0 %v3579
  %5459 = vmatpush2.bf16.msra.mxu0 %v3578
  %5460 = vmatprep.subr.bf16.mxu0 %v3575
  %5461 = vmatpush2.bf16.msra.mxu0 %v3574
  %5462 = vmatprep.mubr.bf16.mxu0 %v51
  %5463 = vmatmul.mubr.bf16.gmra.mxu0 %v50
  %v5464 = vpop.f32.mrf.mxu0
  %v5465 = vadd.f32 %v5424, %v5464
  %v5466 = vpop.f32.mrf.mxu0
  %v5467 = vadd.f32 %v5426, %v5466
  %v5468 = vpop.f32.mrf.mxu0
  %v5469 = vpop.f32.mrf.mxu0
  %5470 = vdwg.mxu0
  %5471 = vmatprep.subr.bf16.mxu0 %v3635
  %5472 = vmatpush1.bf16.msra.mxu0 %v3634
  %5473 = vmatprep.subr.bf16.mxu0 %v3631
  %5474 = vmatpush1.bf16.msra.mxu0 %v3630
  %5475 = vmatprep.subr.bf16.mxu0 %v3627
  %5476 = vmatpush1.bf16.msra.mxu0 %v3626
  %5477 = vmatprep.subr.bf16.mxu0 %v3623
  %5478 = vmatpush1.bf16.msra.mxu0 %v3622
  %5479 = vmatprep.subr.bf16.mxu0 %v3619
  %5480 = vmatpush1.bf16.msra.mxu0 %v3618
  %5481 = vmatprep.subr.bf16.mxu0 %v3615
  %5482 = vmatpush1.bf16.msra.mxu0 %v3614
  %5483 = vmatprep.subr.bf16.mxu0 %v3611
  %5484 = vmatpush1.bf16.msra.mxu0 %v3610
  %5485 = vmatprep.subr.bf16.mxu0 %v3607
  %5486 = vmatpush1.bf16.msra.mxu0 %v3606
  %5487 = vmatprep.subr.bf16.mxu0 %v3667
  %5488 = vmatpush2.bf16.msra.mxu0 %v3666
  %5489 = vmatprep.subr.bf16.mxu0 %v3663
  %5490 = vmatpush2.bf16.msra.mxu0 %v3662
  %5491 = vmatprep.subr.bf16.mxu0 %v3659
  %5492 = vmatpush2.bf16.msra.mxu0 %v3658
  %5493 = vmatprep.subr.bf16.mxu0 %v3655
  %5494 = vmatpush2.bf16.msra.mxu0 %v3654
  %5495 = vmatprep.subr.bf16.mxu0 %v3651
  %5496 = vmatpush2.bf16.msra.mxu0 %v3650
  %5497 = vmatprep.subr.bf16.mxu0 %v3647
  %5498 = vmatpush2.bf16.msra.mxu0 %v3646
  %5499 = vmatprep.subr.bf16.mxu0 %v3643
  %5500 = vmatpush2.bf16.msra.mxu0 %v3642
  %5501 = vmatprep.subr.bf16.mxu0 %v3639
  %5502 = vmatpush2.bf16.msra.mxu0 %v3638
  %5503 = vmatprep.mubr.bf16.mxu0 %v53
  %5504 = vmatmul.mubr.bf16.gmra.mxu0 %v52
  %v5505 = vpop.f32.mrf.mxu0
  %v5506 = vadd.f32 %v5465, %v5505
  %v5507 = vpop.f32.mrf.mxu0
  %v5508 = vadd.f32 %v5467, %v5507
  %v5509 = vpop.f32.mrf.mxu0
  %v5510 = vpop.f32.mrf.mxu0
  %5511 = vdwg.mxu0
  %5512 = vmatprep.subr.bf16.mxu0 %v3699
  %5513 = vmatpush1.bf16.msra.mxu0 %v3698
  %5514 = vmatprep.subr.bf16.mxu0 %v3695
  %5515 = vmatpush1.bf16.msra.mxu0 %v3694
  %5516 = vmatprep.subr.bf16.mxu0 %v3691
  %5517 = vmatpush1.bf16.msra.mxu0 %v3690
  %5518 = vmatprep.subr.bf16.mxu0 %v3687
  %5519 = vmatpush1.bf16.msra.mxu0 %v3686
  %5520 = vmatprep.subr.bf16.mxu0 %v3683
  %5521 = vmatpush1.bf16.msra.mxu0 %v3682
  %5522 = vmatprep.subr.bf16.mxu0 %v3679
  %5523 = vmatpush1.bf16.msra.mxu0 %v3678
  %5524 = vmatprep.subr.bf16.mxu0 %v3675
  %5525 = vmatpush1.bf16.msra.mxu0 %v3674
  %5526 = vmatprep.subr.bf16.mxu0 %v3671
  %5527 = vmatpush1.bf16.msra.mxu0 %v3670
  %5528 = vmatprep.subr.bf16.mxu0 %v3731
  %5529 = vmatpush2.bf16.msra.mxu0 %v3730
  %5530 = vmatprep.subr.bf16.mxu0 %v3727
  %5531 = vmatpush2.bf16.msra.mxu0 %v3726
  %5532 = vmatprep.subr.bf16.mxu0 %v3723
  %5533 = vmatpush2.bf16.msra.mxu0 %v3722
  %5534 = vmatprep.subr.bf16.mxu0 %v3719
  %5535 = vmatpush2.bf16.msra.mxu0 %v3718
  %5536 = vmatprep.subr.bf16.mxu0 %v3715
  %5537 = vmatpush2.bf16.msra.mxu0 %v3714
  %5538 = vmatprep.subr.bf16.mxu0 %v3711
  %5539 = vmatpush2.bf16.msra.mxu0 %v3710
  %5540 = vmatprep.subr.bf16.mxu0 %v3707
  %5541 = vmatpush2.bf16.msra.mxu0 %v3706
  %5542 = vmatprep.subr.bf16.mxu0 %v3703
  %5543 = vmatpush2.bf16.msra.mxu0 %v3702
  %5544 = vmatprep.mubr.bf16.mxu0 %v55
  %5545 = vmatmul.mubr.bf16.gmra.mxu0 %v54
  %v5546 = vpop.f32.mrf.mxu0
  %v5547 = vadd.f32 %v5506, %v5546
  %v5548 = vpop.f32.mrf.mxu0
  %v5549 = vadd.f32 %v5508, %v5548
  %v5550 = vpop.f32.mrf.mxu0
  %v5551 = vpop.f32.mrf.mxu0
  %5552 = vdwg.mxu0
  %5553 = vmatprep.subr.bf16.mxu0 %v3763
  %5554 = vmatpush1.bf16.msra.mxu0 %v3762
  %5555 = vmatprep.subr.bf16.mxu0 %v3759
  %5556 = vmatpush1.bf16.msra.mxu0 %v3758
  %5557 = vmatprep.subr.bf16.mxu0 %v3755
  %5558 = vmatpush1.bf16.msra.mxu0 %v3754
  %5559 = vmatprep.subr.bf16.mxu0 %v3751
  %5560 = vmatpush1.bf16.msra.mxu0 %v3750
  %5561 = vmatprep.subr.bf16.mxu0 %v3747
  %5562 = vmatpush1.bf16.msra.mxu0 %v3746
  %5563 = vmatprep.subr.bf16.mxu0 %v3743
  %5564 = vmatpush1.bf16.msra.mxu0 %v3742
  %5565 = vmatprep.subr.bf16.mxu0 %v3739
  %5566 = vmatpush1.bf16.msra.mxu0 %v3738
  %5567 = vmatprep.subr.bf16.mxu0 %v3735
  %5568 = vmatpush1.bf16.msra.mxu0 %v3734
  %5569 = vmatprep.subr.bf16.mxu0 %v3795
  %5570 = vmatpush2.bf16.msra.mxu0 %v3794
  %5571 = vmatprep.subr.bf16.mxu0 %v3791
  %5572 = vmatpush2.bf16.msra.mxu0 %v3790
  %5573 = vmatprep.subr.bf16.mxu0 %v3787
  %5574 = vmatpush2.bf16.msra.mxu0 %v3786
  %5575 = vmatprep.subr.bf16.mxu0 %v3783
  %5576 = vmatpush2.bf16.msra.mxu0 %v3782
  %5577 = vmatprep.subr.bf16.mxu0 %v3779
  %5578 = vmatpush2.bf16.msra.mxu0 %v3778
  %5579 = vmatprep.subr.bf16.mxu0 %v3775
  %5580 = vmatpush2.bf16.msra.mxu0 %v3774
  %5581 = vmatprep.subr.bf16.mxu0 %v3771
  %5582 = vmatpush2.bf16.msra.mxu0 %v3770
  %5583 = vmatprep.subr.bf16.mxu0 %v3767
  %5584 = vmatpush2.bf16.msra.mxu0 %v3766
  %5585 = vmatprep.mubr.bf16.mxu0 %v57
  %5586 = vmatmul.mubr.bf16.gmra.mxu0 %v56
  %v5587 = vpop.f32.mrf.mxu0
  %v5588 = vadd.f32 %v5547, %v5587
  %v5589 = vpop.f32.mrf.mxu0
  %v5590 = vadd.f32 %v5549, %v5589
  %v5591 = vpop.f32.mrf.mxu0
  %v5592 = vpop.f32.mrf.mxu0
  %5593 = vdwg.mxu0
  %5594 = vmatprep.subr.bf16.mxu0 %v3827
  %5595 = vmatpush1.bf16.msra.mxu0 %v3826
  %5596 = vmatprep.subr.bf16.mxu0 %v3823
  %5597 = vmatpush1.bf16.msra.mxu0 %v3822
  %5598 = vmatprep.subr.bf16.mxu0 %v3819
  %5599 = vmatpush1.bf16.msra.mxu0 %v3818
  %5600 = vmatprep.subr.bf16.mxu0 %v3815
  %5601 = vmatpush1.bf16.msra.mxu0 %v3814
  %5602 = vmatprep.subr.bf16.mxu0 %v3811
  %5603 = vmatpush1.bf16.msra.mxu0 %v3810
  %5604 = vmatprep.subr.bf16.mxu0 %v3807
  %5605 = vmatpush1.bf16.msra.mxu0 %v3806
  %5606 = vmatprep.subr.bf16.mxu0 %v3803
  %5607 = vmatpush1.bf16.msra.mxu0 %v3802
  %5608 = vmatprep.subr.bf16.mxu0 %v3799
  %5609 = vmatpush1.bf16.msra.mxu0 %v3798
  %5610 = vmatprep.subr.bf16.mxu0 %v3859
  %5611 = vmatpush2.bf16.msra.mxu0 %v3858
  %5612 = vmatprep.subr.bf16.mxu0 %v3855
  %5613 = vmatpush2.bf16.msra.mxu0 %v3854
  %5614 = vmatprep.subr.bf16.mxu0 %v3851
  %5615 = vmatpush2.bf16.msra.mxu0 %v3850
  %5616 = vmatprep.subr.bf16.mxu0 %v3847
  %5617 = vmatpush2.bf16.msra.mxu0 %v3846
  %5618 = vmatprep.subr.bf16.mxu0 %v3843
  %5619 = vmatpush2.bf16.msra.mxu0 %v3842
  %5620 = vmatprep.subr.bf16.mxu0 %v3839
  %5621 = vmatpush2.bf16.msra.mxu0 %v3838
  %5622 = vmatprep.subr.bf16.mxu0 %v3835
  %5623 = vmatpush2.bf16.msra.mxu0 %v3834
  %5624 = vmatprep.subr.bf16.mxu0 %v3831
  %5625 = vmatpush2.bf16.msra.mxu0 %v3830
  %5626 = vmatprep.mubr.bf16.mxu0 %v59
  %5627 = vmatmul.mubr.bf16.gmra.mxu0 %v58
  %v5628 = vpop.f32.mrf.mxu0
  %v5629 = vadd.f32 %v5588, %v5628
  %v5630 = vpop.f32.mrf.mxu0
  %v5631 = vadd.f32 %v5590, %v5630
  %v5632 = vpop.f32.mrf.mxu0
  %v5633 = vpop.f32.mrf.mxu0
  %5634 = vdwg.mxu0
  %5635 = vmatprep.subr.bf16.mxu0 %v3891
  %5636 = vmatpush1.bf16.msra.mxu0 %v3890
  %5637 = vmatprep.subr.bf16.mxu0 %v3887
  %5638 = vmatpush1.bf16.msra.mxu0 %v3886
  %5639 = vmatprep.subr.bf16.mxu0 %v3883
  %5640 = vmatpush1.bf16.msra.mxu0 %v3882
  %5641 = vmatprep.subr.bf16.mxu0 %v3879
  %5642 = vmatpush1.bf16.msra.mxu0 %v3878
  %5643 = vmatprep.subr.bf16.mxu0 %v3875
  %5644 = vmatpush1.bf16.msra.mxu0 %v3874
  %5645 = vmatprep.subr.bf16.mxu0 %v3871
  %5646 = vmatpush1.bf16.msra.mxu0 %v3870
  %5647 = vmatprep.subr.bf16.mxu0 %v3867
  %5648 = vmatpush1.bf16.msra.mxu0 %v3866
  %5649 = vmatprep.subr.bf16.mxu0 %v3863
  %5650 = vmatpush1.bf16.msra.mxu0 %v3862
  %5651 = vmatprep.subr.bf16.mxu0 %v3923
  %5652 = vmatpush2.bf16.msra.mxu0 %v3922
  %5653 = vmatprep.subr.bf16.mxu0 %v3919
  %5654 = vmatpush2.bf16.msra.mxu0 %v3918
  %5655 = vmatprep.subr.bf16.mxu0 %v3915
  %5656 = vmatpush2.bf16.msra.mxu0 %v3914
  %5657 = vmatprep.subr.bf16.mxu0 %v3911
  %5658 = vmatpush2.bf16.msra.mxu0 %v3910
  %5659 = vmatprep.subr.bf16.mxu0 %v3907
  %5660 = vmatpush2.bf16.msra.mxu0 %v3906
  %5661 = vmatprep.subr.bf16.mxu0 %v3903
  %5662 = vmatpush2.bf16.msra.mxu0 %v3902
  %5663 = vmatprep.subr.bf16.mxu0 %v3899
  %5664 = vmatpush2.bf16.msra.mxu0 %v3898
  %5665 = vmatprep.subr.bf16.mxu0 %v3895
  %5666 = vmatpush2.bf16.msra.mxu0 %v3894
  %5667 = vmatprep.mubr.bf16.mxu0 %v61
  %5668 = vmatmul.mubr.bf16.gmra.mxu0 %v60
  %v5669 = vpop.f32.mrf.mxu0
  %v5670 = vadd.f32 %v5629, %v5669
  %v5671 = vpop.f32.mrf.mxu0
  %v5672 = vadd.f32 %v5631, %v5671
  %v5673 = vpop.f32.mrf.mxu0
  %v5674 = vpop.f32.mrf.mxu0
  %5675 = vdwg.mxu0
  %v5676 = vsub.f32 0.0, %v5178
  %v5677 = vsub.f32 0.0, %v5180
  %v5678 = vsub.f32 0.0, %v5670
  %v5679 = vsub.f32 0.0, %v5672
  %v5680 = vmul.f32 %v5676, 1.442695
  %v5681 = vpow.pop %v5680
  %v5682 = vmul.f32 %v5677, 1.442695
  %v5683 = vpow.pop %v5682
  %v5684 = vmul.f32 %v5678, 1.442695
  %v5685 = vpow.pop %v5684
  %v5686 = vmul.f32 %v5679, 1.442695
  %v5687 = vpow.pop %v5686
  %v5688 = vadd.f32 %v5681, 1.0
  %v5689 = vadd.f32 %v5683, 1.0
  %v5690 = vadd.f32 %v5685, 1.0
  %v5691 = vadd.f32 %v5687, 1.0
  %v5692 = vrcp.pop %v5688
  %v5693 = vrcp.pop %v5689
  %v5694 = vrcp.pop %v5690
  %v5695 = vrcp.pop %v5691
  %v5696 = vmul.f32 %v5178, %v5692
  %v5697 = vmul.f32 %v5180, %v5693
  %v5698 = vmul.f32 %v5670, %v5694
  %v5699 = vmul.f32 %v5672, %v5695
  %v5700 = vpack.c.bf16 %v5696, %v5696
  %v5701 = vpack.c.bf16 %v5697, %v5697
  %v5702 = vpack.c.bf16 %v5698, %v5698
  %v5703 = vpack.c.bf16 %v5699, %v5699
  %v5708 = vunpack.c.l.b16 %v5700
  %v5709 = vunpack.c.l.b16 %v5701
  %v5710 = vunpack.c.l.b16 %v5702
  %v5711 = vunpack.c.l.b16 %v5703
  %v5712 = vpack.c.b16 %v5709, %v5708
  %v5713 = vpack.c.b16 %v5711, %v5710
  %5716 = vst [vmem:[%s3] sm:$0xff] %v5712
  %5717 = vst [vmem:[%s3 + $0x8] sm:$0xff] %v5713
  // Predicated region
  $region14: #{_lambda_.13} parent=0 // pred_check
    _
  $region15: #{_lambda_.13} parent=0 // pred_check_branch
    %5719 = sbr.rel (0) target = $region17
  $region16: #{_lambda_.13} parent=0 // pred_region
    _
  $region17: #{_lambda_.13} parent=0 // pred_fallthru
    _
  // Predicated region
  $region18: #{_lambda_.13} parent=0 // pred_check
    _
  $region19: #{_lambda_.13} parent=0 // pred_check_branch
    %5721 = sbr.rel (0) target = $region21
  $region20: #{_lambda_.13} parent=0 // pred_region
    _
  $region21: #{_lambda_.13} parent=0 // pred_fallthru
    _

// kernel: _lambda_.12
$region0: #{_lambda_.12}
  #allocation0 [shape = 'u32[]', space=smem, size = 0x4, offset = 0x4, fixed_abs, tag = 'smem constant byte address 0x4 - core index']
  #allocation1 [shape = 'u32[144,128]{1,0:T(1,128)}', space=vmem, size = 0x12000, scoped, tag = 'internal scratch']
  %s0 = inlined_call_operand.vmem [shape: f32[32,768], index: 0, kind: input, shape index: {}]
  %s1 = inlined_call_operand.vmem [shape: bf16[768,256], index: 1, kind: input, shape index: {}]
  %s2 = inlined_call_operand.vmem [shape: f32[1,256], index: 2, kind: input, shape index: {}]
  %s3 = inlined_call_operand.vmem [shape: bf16[32,256], index: 3, kind: output, shape index: {}]
  %s4 = sld [smem:[#allocation0]]
  $region22: #{_lambda_.12} parent=0
    _
  %s6 = ssub.s32 1, %s4
  %s7 = scalar_select 0, %s6, %s4
  // Predicated region
  $region2: #{_lambda_.12} parent=0 // pred_check
    _
  $region3: #{_lambda_.12} parent=0 // pred_check_branch
    %9 = sbr.rel (0) target = $region5
  $region4: #{_lambda_.12} parent=0 // pred_region
    _
  $region5: #{_lambda_.12} parent=0 // pred_fallthru
    _
  // Predicated region
  $region6: #{_lambda_.12} parent=0 // pred_check
    _
  $region7: #{_lambda_.12} parent=0 // pred_check_branch
    %11 = sbr.rel (0) target = $region9
  $region8: #{_lambda_.12} parent=0 // pred_region
    _
  $region9: #{_lambda_.12} parent=0 // pred_fallthru
    _
  // Predicated region
  $region10: #{_lambda_.12} parent=0 // pred_check
    _
  $region11: #{_lambda_.12} parent=0 // pred_check_branch
    %13 = sbr.rel (0) target = $region13
  $region12: #{_lambda_.12} parent=0 // pred_region
    _
  $region13: #{_lambda_.12} parent=0 // pred_fallthru
    _
  %v14 = vld [vmem:[%s0] sm:$0xff]
  %v15 = vld [vmem:[%s0 + $0x8] sm:$0xff]
  %v16 = vld [vmem:[%s0 + $0x10] sm:$0xff]
  %v17 = vld [vmem:[%s0 + $0x18] sm:$0xff]
  %v18 = vld [vmem:[%s0 + $0x20] sm:$0xff]
  %v19 = vld [vmem:[%s0 + $0x28] sm:$0xff]
  %v20 = vld [vmem:[%s0 + $0x30] sm:$0xff]
  %v21 = vld [vmem:[%s0 + $0x38] sm:$0xff]
  %v22 = vld [vmem:[%s0 + $0x40] sm:$0xff]
  %v23 = vld [vmem:[%s0 + $0x48] sm:$0xff]
  %v24 = vld [vmem:[%s0 + $0x50] sm:$0xff]
  %v25 = vld [vmem:[%s0 + $0x58] sm:$0xff]
  %v26 = vld [vmem:[%s0 + $0x60] sm:$0xff]
  %v27 = vld [vmem:[%s0 + $0x68] sm:$0xff]
  %v28 = vld [vmem:[%s0 + $0x70] sm:$0xff]
  %v29 = vld [vmem:[%s0 + $0x78] sm:$0xff]
  %v30 = vld [vmem:[%s0 + $0x80] sm:$0xff]
  %v31 = vld [vmem:[%s0 + $0x88] sm:$0xff]
  %v32 = vld [vmem:[%s0 + $0x90] sm:$0xff]
  %v33 = vld [vmem:[%s0 + $0x98] sm:$0xff]
  %v34 = vld [vmem:[%s0 + $0xa0] sm:$0xff]
  %v35 = vld [vmem:[%s0 + $0xa8] sm:$0xff]
  %v36 = vld [vmem:[%s0 + $0xb0] sm:$0xff]
  %v37 = vld [vmem:[%s0 + $0xb8] sm:$0xff]
  %v38 = vpack.c.bf16 %v20, %v14
  %v39 = vpack.c.bf16 %v21, %v15
  %v40 = vpack.c.bf16 %v22, %v16
  %v41 = vpack.c.bf16 %v23, %v17
  %v42 = vpack.c.bf16 %v24, %v18
  %v43 = vpack.c.bf16 %v25, %v19
  %v44 = vpack.c.bf16 %v32, %v26
  %v45 = vpack.c.bf16 %v33, %v27
  %v46 = vpack.c.bf16 %v34, %v28
  %v47 = vpack.c.bf16 %v35, %v29
  %v48 = vpack.c.bf16 %v36, %v30
  %v49 = vpack.c.bf16 %v37, %v31
  %v50 = vld [vmem:[%s1] sm:$0xff]
  %v51 = vld [vmem:[%s1 + $0x8] sm:$0xff]
  %v52 = vld [vmem:[%s1 + $0x10] sm:$0xff]
  %v53 = vld [vmem:[%s1 + $0x18] sm:$0xff]
  %v54 = vld [vmem:[%s1 + $0x20] sm:$0xff]
  %v55 = vld [vmem:[%s1 + $0x28] sm:$0xff]
  %v56 = vld [vmem:[%s1 + $0x30] sm:$0xff]
  %v57 = vld [vmem:[%s1 + $0x38] sm:$0xff]
  %v58 = vld [vmem:[%s1 + $0x40] sm:$0xff]
  %v59 = vld [vmem:[%s1 + $0x48] sm:$0xff]
  %v60 = vld [vmem:[%s1 + $0x50] sm:$0xff]
  %v61 = vld [vmem:[%s1 + $0x58] sm:$0xff]
  %v62 = vld [vmem:[%s1 + $0x60] sm:$0xff]
  %v63 = vld [vmem:[%s1 + $0x68] sm:$0xff]
  %v64 = vld [vmem:[%s1 + $0x70] sm:$0xff]
  %v65 = vld [vmem:[%s1 + $0x78] sm:$0xff]
  %v66 = vld [vmem:[%s1 + $0x80] sm:$0xff]
  %v67 = vld [vmem:[%s1 + $0x88] sm:$0xff]
  %v68 = vld [vmem:[%s1 + $0x90] sm:$0xff]
  %v69 = vld [vmem:[%s1 + $0x98] sm:$0xff]
  %v70 = vld [vmem:[%s1 + $0xa0] sm:$0xff]
  %v71 = vld [vmem:[%s1 + $0xa8] sm:$0xff]
  %v72 = vld [vmem:[%s1 + $0xb0] sm:$0xff]
  %v73 = vld [vmem:[%s1 + $0xb8] sm:$0xff]
  %v74 = vld [vmem:[%s1 + $0xc0] sm:$0xff]
  %v75 = vld [vmem:[%s1 + $0xc8] sm:$0xff]
  %v76 = vld [vmem:[%s1 + $0xd0] sm:$0xff]
  %v77 = vld [vmem:[%s1 + $0xd8] sm:$0xff]
  %v78 = vld [vmem:[%s1 + $0xe0] sm:$0xff]
  %v79 = vld [vmem:[%s1 + $0xe8] sm:$0xff]
  %v80 = vld [vmem:[%s1 + $0xf0] sm:$0xff]
  %v81 = vld [vmem:[%s1 + $0xf8] sm:$0xff]
  %v82 = vld [vmem:[%s1 + $0x100] sm:$0xff]
  %v83 = vld [vmem:[%s1 + $0x108] sm:$0xff]
  %v84 = vld [vmem:[%s1 + $0x110] sm:$0xff]
  %v85 = vld [vmem:[%s1 + $0x118] sm:$0xff]
  %v86 = vld [vmem:[%s1 + $0x120] sm:$0xff]
  %v87 = vld [vmem:[%s1 + $0x128] sm:$0xff]
  %v88 = vld [vmem:[%s1 + $0x130] sm:$0xff]
  %v89 = vld [vmem:[%s1 + $0x138] sm:$0xff]
  %v90 = vld [vmem:[%s1 + $0x140] sm:$0xff]
  %v91 = vld [vmem:[%s1 + $0x148] sm:$0xff]
  %v92 = vld [vmem:[%s1 + $0x150] sm:$0xff]
  %v93 = vld [vmem:[%s1 + $0x158] sm:$0xff]
  %v94 = vld [vmem:[%s1 + $0x160] sm:$0xff]
  %v95 = vld [vmem:[%s1 + $0x168] sm:$0xff]
  %v96 = vld [vmem:[%s1 + $0x170] sm:$0xff]
  %v97 = vld [vmem:[%s1 + $0x178] sm:$0xff]
  %v98 = vld [vmem:[%s1 + $0x180] sm:$0xff]
  %v99 = vld [vmem:[%s1 + $0x188] sm:$0xff]
  %v100 = vld [vmem:[%s1 + $0x190] sm:$0xff]
  %v101 = vld [vmem:[%s1 + $0x198] sm:$0xff]
  %v102 = vld [vmem:[%s1 + $0x1a0] sm:$0xff]
  %v103 = vld [vmem:[%s1 + $0x1a8] sm:$0xff]
  %v104 = vld [vmem:[%s1 + $0x1b0] sm:$0xff]
  %v105 = vld [vmem:[%s1 + $0x1b8] sm:$0xff]
  %v106 = vld [vmem:[%s1 + $0x1c0] sm:$0xff]
  %v107 = vld [vmem:[%s1 + $0x1c8] sm:$0xff]
  %v108 = vld [vmem:[%s1 + $0x1d0] sm:$0xff]
  %v109 = vld [vmem:[%s1 + $0x1d8] sm:$0xff]
  %v110 = vld [vmem:[%s1 + $0x1e0] sm:$0xff]
  %v111 = vld [vmem:[%s1 + $0x1e8] sm:$0xff]
  %v112 = vld [vmem:[%s1 + $0x1f0] sm:$0xff]
  %v113 = vld [vmem:[%s1 + $0x1f8] sm:$0xff]
  %v114 = vld [vmem:[%s1 + $0x200] sm:$0xff]
  %v115 = vld [vmem:[%s1 + $0x208] sm:$0xff]
  %v116 = vld [vmem:[%s1 + $0x210] sm:$0xff]
  %v117 = vld [vmem:[%s1 + $0x218] sm:$0xff]
  %v118 = vld [vmem:[%s1 + $0x220] sm:$0xff]
  %v119 = vld [vmem:[%s1 + $0x228] sm:$0xff]
  %v120 = vld [vmem:[%s1 + $0x230] sm:$0xff]
  %v121 = vld [vmem:[%s1 + $0x238] sm:$0xff]
  %v122 = vld [vmem:[%s1 + $0x240] sm:$0xff]
  %v123 = vld [vmem:[%s1 + $0x248] sm:$0xff]
  %v124 = vld [vmem:[%s1 + $0x250] sm:$0xff]
  %v125 = vld [vmem:[%s1 + $0x258] sm:$0xff]
  %v126 = vld [vmem:[%s1 + $0x260] sm:$0xff]
  %v127 = vld [vmem:[%s1 + $0x268] sm:$0xff]
  %v128 = vld [vmem:[%s1 + $0x270] sm:$0xff]
  %v129 = vld [vmem:[%s1 + $0x278] sm:$0xff]
  %v130 = vld [vmem:[%s1 + $0x280] sm:$0xff]
  %v131 = vld [vmem:[%s1 + $0x288] sm:$0xff]
  %v132 = vld [vmem:[%s1 + $0x290] sm:$0xff]
  %v133 = vld [vmem:[%s1 + $0x298] sm:$0xff]
  %v134 = vld [vmem:[%s1 + $0x2a0] sm:$0xff]
  %v135 = vld [vmem:[%s1 + $0x2a8] sm:$0xff]
  %v136 = vld [vmem:[%s1 + $0x2b0] sm:$0xff]
  %v137 = vld [vmem:[%s1 + $0x2b8] sm:$0xff]
  %v138 = vld [vmem:[%s1 + $0x2c0] sm:$0xff]
  %v139 = vld [vmem:[%s1 + $0x2c8] sm:$0xff]
  %v140 = vld [vmem:[%s1 + $0x2d0] sm:$0xff]
  %v141 = vld [vmem:[%s1 + $0x2d8] sm:$0xff]
  %v142 = vld [vmem:[%s1 + $0x2e0] sm:$0xff]
  %v143 = vld [vmem:[%s1 + $0x2e8] sm:$0xff]
  %v144 = vld [vmem:[%s1 + $0x2f0] sm:$0xff]
  %v145 = vld [vmem:[%s1 + $0x2f8] sm:$0xff]
  %v146 = vld [vmem:[%s2] sm:$0x3]
  %v148 = vlaneseq
  %v149 = vshrl.u32 %v148, 7
  %v150 = vsub.s32 0, %v149
  %v151 = vrot.slane %v146, %v150
  %v152 = vlaneseq
  %v153 = vshrl.u32 %v152, 7
  %v154 = vsub.s32 1, %v153
  %v155 = vrot.slane %v146, %v154
  %v254 = vunpack.c.l.b16 %v50
  %v255 = vunpack.c.h.b16 %v50
  %v256 = vunpack.c.l.b16 %v51
  %v257 = vunpack.c.h.b16 %v51
  %v258 = vunpack.c.l.b16 %v52
  %v259 = vunpack.c.h.b16 %v52
  %v260 = vunpack.c.l.b16 %v53
  %v261 = vunpack.c.h.b16 %v53
  %v262 = vunpack.c.l.b16 %v54
  %v263 = vunpack.c.h.b16 %v54
  %v264 = vunpack.c.l.b16 %v55
  %v265 = vunpack.c.h.b16 %v55
  %v266 = vunpack.c.l.b16 %v56
  %v267 = vunpack.c.h.b16 %v56
  %v268 = vunpack.c.l.b16 %v57
  %v269 = vunpack.c.h.b16 %v57
  %v270 = vunpack.c.l.b16 %v58
  %v271 = vunpack.c.h.b16 %v58
  %v272 = vunpack.c.l.b16 %v59
  %v273 = vunpack.c.h.b16 %v59
  %v274 = vunpack.c.l.b16 %v60
  %v275 = vunpack.c.h.b16 %v60
  %v276 = vunpack.c.l.b16 %v61
  %v277 = vunpack.c.h.b16 %v61
  %v278 = vunpack.c.l.b16 %v62
  %v279 = vunpack.c.h.b16 %v62
  %v280 = vunpack.c.l.b16 %v63
  %v281 = vunpack.c.h.b16 %v63
  %v282 = vunpack.c.l.b16 %v64
  %v283 = vunpack.c.h.b16 %v64
  %v284 = vunpack.c.l.b16 %v65
  %v285 = vunpack.c.h.b16 %v65
  %v286 = vunpack.c.l.b16 %v66
  %v287 = vunpack.c.h.b16 %v66
  %v288 = vunpack.c.l.b16 %v67
  %v289 = vunpack.c.h.b16 %v67
  %v290 = vunpack.c.l.b16 %v68
  %v291 = vunpack.c.h.b16 %v68
  %v292 = vunpack.c.l.b16 %v69
  %v293 = vunpack.c.h.b16 %v69
  %v294 = vunpack.c.l.b16 %v70
  %v295 = vunpack.c.h.b16 %v70
  %v296 = vunpack.c.l.b16 %v71
  %v297 = vunpack.c.h.b16 %v71
  %v298 = vunpack.c.l.b16 %v72
  %v299 = vunpack.c.h.b16 %v72
  %v300 = vunpack.c.l.b16 %v73
  %v301 = vunpack.c.h.b16 %v73
  %v302 = vunpack.c.l.b16 %v74
  %v303 = vunpack.c.h.b16 %v74
  %v304 = vunpack.c.l.b16 %v75
  %v305 = vunpack.c.h.b16 %v75
  %v306 = vunpack.c.l.b16 %v76
  %v307 = vunpack.c.h.b16 %v76
  %v308 = vunpack.c.l.b16 %v77
  %v309 = vunpack.c.h.b16 %v77
  %v310 = vunpack.c.l.b16 %v78
  %v311 = vunpack.c.h.b16 %v78
  %v312 = vunpack.c.l.b16 %v79
  %v313 = vunpack.c.h.b16 %v79
  %v314 = vunpack.c.l.b16 %v80
  %v315 = vunpack.c.h.b16 %v80
  %v316 = vunpack.c.l.b16 %v81
  %v317 = vunpack.c.h.b16 %v81
  %v318 = vunpack.c.l.b16 %v82
  %v319 = vunpack.c.h.b16 %v82
  %v320 = vunpack.c.l.b16 %v83
  %v321 = vunpack.c.h.b16 %v83
  %v322 = vunpack.c.l.b16 %v84
  %v323 = vunpack.c.h.b16 %v84
  %v324 = vunpack.c.l.b16 %v85
  %v325 = vunpack.c.h.b16 %v85
  %v326 = vunpack.c.l.b16 %v86
  %v327 = vunpack.c.h.b16 %v86
  %v328 = vunpack.c.l.b16 %v87
  %v329 = vunpack.c.h.b16 %v87
  %v330 = vunpack.c.l.b16 %v88
  %v331 = vunpack.c.h.b16 %v88
  %v332 = vunpack.c.l.b16 %v89
  %v333 = vunpack.c.h.b16 %v89
  %v334 = vunpack.c.l.b16 %v90
  %v335 = vunpack.c.h.b16 %v90
  %v336 = vunpack.c.l.b16 %v91
  %v337 = vunpack.c.h.b16 %v91
  %v338 = vunpack.c.l.b16 %v92
  %v339 = vunpack.c.h.b16 %v92
  %v340 = vunpack.c.l.b16 %v93
  %v341 = vunpack.c.h.b16 %v93
  %v342 = vunpack.c.l.b16 %v94
  %v343 = vunpack.c.h.b16 %v94
  %v344 = vunpack.c.l.b16 %v95
  %v345 = vunpack.c.h.b16 %v95
  %v346 = vunpack.c.l.b16 %v96
  %v347 = vunpack.c.h.b16 %v96
  %v348 = vunpack.c.l.b16 %v97
  %v349 = vunpack.c.h.b16 %v97
  %v350 = vunpack.c.l.b16 %v98
  %v351 = vunpack.c.h.b16 %v98
  %v352 = vunpack.c.l.b16 %v99
  %v353 = vunpack.c.h.b16 %v99
  %v354 = vunpack.c.l.b16 %v100
  %v355 = vunpack.c.h.b16 %v100
  %v356 = vunpack.c.l.b16 %v101
  %v357 = vunpack.c.h.b16 %v101
  %v358 = vunpack.c.l.b16 %v102
  %v359 = vunpack.c.h.b16 %v102
  %v360 = vunpack.c.l.b16 %v103
  %v361 = vunpack.c.h.b16 %v103
  %v362 = vunpack.c.l.b16 %v104
  %v363 = vunpack.c.h.b16 %v104
  %v364 = vunpack.c.l.b16 %v105
  %v365 = vunpack.c.h.b16 %v105
  %v366 = vunpack.c.l.b16 %v106
  %v367 = vunpack.c.h.b16 %v106
  %v368 = vunpack.c.l.b16 %v107
  %v369 = vunpack.c.h.b16 %v107
  %v370 = vunpack.c.l.b16 %v108
  %v371 = vunpack.c.h.b16 %v108
  %v372 = vunpack.c.l.b16 %v109
  %v373 = vunpack.c.h.b16 %v109
  %v374 = vunpack.c.l.b16 %v110
  %v375 = vunpack.c.h.b16 %v110
  %v376 = vunpack.c.l.b16 %v111
  %v377 = vunpack.c.h.b16 %v111
  %v378 = vunpack.c.l.b16 %v112
  %v379 = vunpack.c.h.b16 %v112
  %v380 = vunpack.c.l.b16 %v113
  %v381 = vunpack.c.h.b16 %v113
  %v382 = vunpack.c.l.b16 %v114
  %v383 = vunpack.c.h.b16 %v114
  %v384 = vunpack.c.l.b16 %v115
  %v385 = vunpack.c.h.b16 %v115
  %v386 = vunpack.c.l.b16 %v116
  %v387 = vunpack.c.h.b16 %v116
  %v388 = vunpack.c.l.b16 %v117
  %v389 = vunpack.c.h.b16 %v117
  %v390 = vunpack.c.l.b16 %v118
  %v391 = vunpack.c.h.b16 %v118
  %v392 = vunpack.c.l.b16 %v119
  %v393 = vunpack.c.h.b16 %v119
  %v394 = vunpack.c.l.b16 %v120
  %v395 = vunpack.c.h.b16 %v120
  %v396 = vunpack.c.l.b16 %v121
  %v397 = vunpack.c.h.b16 %v121
  %v398 = vunpack.c.l.b16 %v122
  %v399 = vunpack.c.h.b16 %v122
  %v400 = vunpack.c.l.b16 %v123
  %v401 = vunpack.c.h.b16 %v123
  %v402 = vunpack.c.l.b16 %v124
  %v403 = vunpack.c.h.b16 %v124
  %v404 = vunpack.c.l.b16 %v125
  %v405 = vunpack.c.h.b16 %v125
  %v406 = vunpack.c.l.b16 %v126
  %v407 = vunpack.c.h.b16 %v126
  %v408 = vunpack.c.l.b16 %v127
  %v409 = vunpack.c.h.b16 %v127
  %v410 = vunpack.c.l.b16 %v128
  %v411 = vunpack.c.h.b16 %v128
  %v412 = vunpack.c.l.b16 %v129
  %v413 = vunpack.c.h.b16 %v129
  %v414 = vunpack.c.l.b16 %v130
  %v415 = vunpack.c.h.b16 %v130
  %v416 = vunpack.c.l.b16 %v131
  %v417 = vunpack.c.h.b16 %v131
  %v418 = vunpack.c.l.b16 %v132
  %v419 = vunpack.c.h.b16 %v132
  %v420 = vunpack.c.l.b16 %v133
  %v421 = vunpack.c.h.b16 %v133
  %v422 = vunpack.c.l.b16 %v134
  %v423 = vunpack.c.h.b16 %v134
  %v424 = vunpack.c.l.b16 %v135
  %v425 = vunpack.c.h.b16 %v135
  %v426 = vunpack.c.l.b16 %v136
  %v427 = vunpack.c.h.b16 %v136
  %v428 = vunpack.c.l.b16 %v137
  %v429 = vunpack.c.h.b16 %v137
  %v430 = vunpack.c.l.b16 %v138
  %v431 = vunpack.c.h.b16 %v138
  %v432 = vunpack.c.l.b16 %v139
  %v433 = vunpack.c.h.b16 %v139
  %v434 = vunpack.c.l.b16 %v140
  %v435 = vunpack.c.h.b16 %v140
  %v436 = vunpack.c.l.b16 %v141
  %v437 = vunpack.c.h.b16 %v141
  %v438 = vunpack.c.l.b16 %v142
  %v439 = vunpack.c.h.b16 %v142
  %v440 = vunpack.c.l.b16 %v143
  %v441 = vunpack.c.h.b16 %v143
  %v442 = vunpack.c.l.b16 %v144
  %v443 = vunpack.c.h.b16 %v144
  %v444 = vunpack.c.l.b16 %v145
  %v445 = vunpack.c.h.b16 %v145
  %v446 = vpack.c.b16 %v256, %v254
  %v447 = vpack.c.b16 %v257, %v255
  %v448 = vpack.c.b16 %v260, %v258
  %v449 = vpack.c.b16 %v261, %v259
  %v450 = vpack.c.b16 %v264, %v262
  %v451 = vpack.c.b16 %v265, %v263
  %v452 = vpack.c.b16 %v268, %v266
  %v453 = vpack.c.b16 %v269, %v267
  %v454 = vpack.c.b16 %v272, %v270
  %v455 = vpack.c.b16 %v273, %v271
  %v456 = vpack.c.b16 %v276, %v274
  %v457 = vpack.c.b16 %v277, %v275
  %v458 = vpack.c.b16 %v280, %v278
  %v459 = vpack.c.b16 %v281, %v279
  %v460 = vpack.c.b16 %v284, %v282
  %v461 = vpack.c.b16 %v285, %v283
  %v462 = vpack.c.b16 %v288, %v286
  %v463 = vpack.c.b16 %v289, %v287
  %v464 = vpack.c.b16 %v292, %v290
  %v465 = vpack.c.b16 %v293, %v291
  %v466 = vpack.c.b16 %v296, %v294
  %v467 = vpack.c.b16 %v297, %v295
  %v468 = vpack.c.b16 %v300, %v298
  %v469 = vpack.c.b16 %v301, %v299
  %v470 = vpack.c.b16 %v304, %v302
  %v471 = vpack.c.b16 %v305, %v303
  %v472 = vpack.c.b16 %v308, %v306
  %v473 = vpack.c.b16 %v309, %v307
  %v474 = vpack.c.b16 %v312, %v310
  %v475 = vpack.c.b16 %v313, %v311
  %v476 = vpack.c.b16 %v316, %v314
  %v477 = vpack.c.b16 %v317, %v315
  %v478 = vpack.c.b16 %v320, %v318
  %v479 = vpack.c.b16 %v321, %v319
  %v480 = vpack.c.b16 %v324, %v322
  %v481 = vpack.c.b16 %v325, %v323
  %v482 = vpack.c.b16 %v328, %v326
  %v483 = vpack.c.b16 %v329, %v327
  %v484 = vpack.c.b16 %v332, %v330
  %v485 = vpack.c.b16 %v333, %v331
  %v486 = vpack.c.b16 %v336, %v334
  %v487 = vpack.c.b16 %v337, %v335
  %v488 = vpack.c.b16 %v340, %v338
  %v489 = vpack.c.b16 %v341, %v339
  %v490 = vpack.c.b16 %v344, %v342
  %v491 = vpack.c.b16 %v345, %v343
  %v492 = vpack.c.b16 %v348, %v346
  %v493 = vpack.c.b16 %v349, %v347
  %v494 = vpack.c.b16 %v352, %v350
  %v495 = vpack.c.b16 %v353, %v351
  %v496 = vpack.c.b16 %v356, %v354
  %v497 = vpack.c.b16 %v357, %v355
  %v498 = vpack.c.b16 %v360, %v358
  %v499 = vpack.c.b16 %v361, %v359
  %v500 = vpack.c.b16 %v364, %v362
  %v501 = vpack.c.b16 %v365, %v363
  %v502 = vpack.c.b16 %v368, %v366
  %v503 = vpack.c.b16 %v369, %v367
  %v504 = vpack.c.b16 %v372, %v370
  %v505 = vpack.c.b16 %v373, %v371
  %v506 = vpack.c.b16 %v376, %v374
  %v507 = vpack.c.b16 %v377, %v375
  %v508 = vpack.c.b16 %v380, %v378
  %v509 = vpack.c.b16 %v381, %v379
  %v510 = vpack.c.b16 %v384, %v382
  %v511 = vpack.c.b16 %v385, %v383
  %v512 = vpack.c.b16 %v388, %v386
  %v513 = vpack.c.b16 %v389, %v387
  %v514 = vpack.c.b16 %v392, %v390
  %v515 = vpack.c.b16 %v393, %v391
  %v516 = vpack.c.b16 %v396, %v394
  %v517 = vpack.c.b16 %v397, %v395
  %v518 = vpack.c.b16 %v400, %v398
  %v519 = vpack.c.b16 %v401, %v399
  %v520 = vpack.c.b16 %v404, %v402
  %v521 = vpack.c.b16 %v405, %v403
  %v522 = vpack.c.b16 %v408, %v406
  %v523 = vpack.c.b16 %v409, %v407
  %v524 = vpack.c.b16 %v412, %v410
  %v525 = vpack.c.b16 %v413, %v411
  %v526 = vpack.c.b16 %v416, %v414
  %v527 = vpack.c.b16 %v417, %v415
  %v528 = vpack.c.b16 %v420, %v418
  %v529 = vpack.c.b16 %v421, %v419
  %v530 = vpack.c.b16 %v424, %v422
  %v531 = vpack.c.b16 %v425, %v423
  %v532 = vpack.c.b16 %v428, %v426
  %v533 = vpack.c.b16 %v429, %v427
  %v534 = vpack.c.b16 %v432, %v430
  %v535 = vpack.c.b16 %v433, %v431
  %v536 = vpack.c.b16 %v436, %v434
  %v537 = vpack.c.b16 %v437, %v435
  %v538 = vpack.c.b16 %v440, %v438
  %v539 = vpack.c.b16 %v441, %v439
  %v540 = vpack.c.b16 %v444, %v442
  %v541 = vpack.c.b16 %v445, %v443
  %638 = vmatprep.subr.bf16.mxu0 %v461
  %639 = vmatpush1.bf16.msra.mxu0 %v460
  %640 = vmatprep.subr.bf16.mxu0 %v459
  %641 = vmatpush1.bf16.msra.mxu0 %v458
  %642 = vmatprep.subr.bf16.mxu0 %v457
  %643 = vmatpush1.bf16.msra.mxu0 %v456
  %644 = vmatprep.subr.bf16.mxu0 %v455
  %645 = vmatpush1.bf16.msra.mxu0 %v454
  %646 = vmatprep.subr.bf16.mxu0 %v453
  %647 = vmatpush1.bf16.msra.mxu0 %v452
  %648 = vmatprep.subr.bf16.mxu0 %v451
  %649 = vmatpush1.bf16.msra.mxu0 %v450
  %650 = vmatprep.subr.bf16.mxu0 %v449
  %651 = vmatpush1.bf16.msra.mxu0 %v448
  %652 = vmatprep.subr.bf16.mxu0 %v447
  %653 = vmatpush1.bf16.msra.mxu0 %v446
  %654 = vmatprep.subr.bf16.mxu0 %v477
  %655 = vmatpush2.bf16.msra.mxu0 %v476
  %656 = vmatprep.subr.bf16.mxu0 %v475
  %657 = vmatpush2.bf16.msra.mxu0 %v474
  %658 = vmatprep.subr.bf16.mxu0 %v473
  %659 = vmatpush2.bf16.msra.mxu0 %v472
  %660 = vmatprep.subr.bf16.mxu0 %v471
  %661 = vmatpush2.bf16.msra.mxu0 %v470
  %662 = vmatprep.subr.bf16.mxu0 %v469
  %663 = vmatpush2.bf16.msra.mxu0 %v468
  %664 = vmatprep.subr.bf16.mxu0 %v467
  %665 = vmatpush2.bf16.msra.mxu0 %v466
  %666 = vmatprep.subr.bf16.mxu0 %v465
  %667 = vmatpush2.bf16.msra.mxu0 %v464
  %668 = vmatprep.subr.bf16.mxu0 %v463
  %669 = vmatpush2.bf16.msra.mxu0 %v462
  %670 = vmatprep.mubr.bf16.mxu0 %v39
  %671 = vmatmul.mubr.bf16.gmra.mxu0 %v38
  %v672 = vpop.f32.mrf.mxu0
  %v673 = vadd.f32 %v151, %v672
  %v674 = vpop.f32.mrf.mxu0
  %v675 = vadd.f32 %v155, %v674
  %v676 = vpop.f32.mrf.mxu0
  %v677 = vadd.f32 %v151, %v676
  %v678 = vpop.f32.mrf.mxu0
  %v679 = vadd.f32 %v155, %v678
  %680 = vmatprep.mubr.bf16.mxu0 %v45
  %681 = vmatmul.mubr.bf16.gmra.mxu0 %v44
  %v682 = vpop.f32.mrf.mxu0
  %v683 = vadd.f32 %v151, %v682
  %v684 = vpop.f32.mrf.mxu0
  %v685 = vadd.f32 %v155, %v684
  %v686 = vpop.f32.mrf.mxu0
  %v687 = vadd.f32 %v151, %v686
  %v688 = vpop.f32.mrf.mxu0
  %v689 = vadd.f32 %v155, %v688
  %690 = vdwg.mxu0
  %691 = vmatprep.subr.bf16.mxu0 %v493
  %692 = vmatpush1.bf16.msra.mxu0 %v492
  %693 = vmatprep.subr.bf16.mxu0 %v491
  %694 = vmatpush1.bf16.msra.mxu0 %v490
  %695 = vmatprep.subr.bf16.mxu0 %v489
  %696 = vmatpush1.bf16.msra.mxu0 %v488
  %697 = vmatprep.subr.bf16.mxu0 %v487
  %698 = vmatpush1.bf16.msra.mxu0 %v486
  %699 = vmatprep.subr.bf16.mxu0 %v485
  %700 = vmatpush1.bf16.msra.mxu0 %v484
  %701 = vmatprep.subr.bf16.mxu0 %v483
  %702 = vmatpush1.bf16.msra.mxu0 %v482
  %703 = vmatprep.subr.bf16.mxu0 %v481
  %704 = vmatpush1.bf16.msra.mxu0 %v480
  %705 = vmatprep.subr.bf16.mxu0 %v479
  %706 = vmatpush1.bf16.msra.mxu0 %v478
  %707 = vmatprep.subr.bf16.mxu0 %v509
  %708 = vmatpush2.bf16.msra.mxu0 %v508
  %709 = vmatprep.subr.bf16.mxu0 %v507
  %710 = vmatpush2.bf16.msra.mxu0 %v506
  %711 = vmatprep.subr.bf16.mxu0 %v505
  %712 = vmatpush2.bf16.msra.mxu0 %v504
  %713 = vmatprep.subr.bf16.mxu0 %v503
  %714 = vmatpush2.bf16.msra.mxu0 %v502
  %715 = vmatprep.subr.bf16.mxu0 %v501
  %716 = vmatpush2.bf16.msra.mxu0 %v500
  %717 = vmatprep.subr.bf16.mxu0 %v499
  %718 = vmatpush2.bf16.msra.mxu0 %v498
  %719 = vmatprep.subr.bf16.mxu0 %v497
  %720 = vmatpush2.bf16.msra.mxu0 %v496
  %721 = vmatprep.subr.bf16.mxu0 %v495
  %722 = vmatpush2.bf16.msra.mxu0 %v494
  %723 = vmatprep.mubr.bf16.mxu0 %v41
  %724 = vmatmul.mubr.bf16.gmra.mxu0 %v40
  %v725 = vpop.f32.mrf.mxu0
  %v726 = vadd.f32 %v673, %v725
  %v727 = vpop.f32.mrf.mxu0
  %v728 = vadd.f32 %v675, %v727
  %v729 = vpop.f32.mrf.mxu0
  %v730 = vadd.f32 %v677, %v729
  %v731 = vpop.f32.mrf.mxu0
  %v732 = vadd.f32 %v679, %v731
  %733 = vmatprep.mubr.bf16.mxu0 %v47
  %734 = vmatmul.mubr.bf16.gmra.mxu0 %v46
  %v735 = vpop.f32.mrf.mxu0
  %v736 = vadd.f32 %v683, %v735
  %v737 = vpop.f32.mrf.mxu0
  %v738 = vadd.f32 %v685, %v737
  %v739 = vpop.f32.mrf.mxu0
  %v740 = vadd.f32 %v687, %v739
  %v741 = vpop.f32.mrf.mxu0
  %v742 = vadd.f32 %v689, %v741
  %743 = vdwg.mxu0
  %744 = vmatprep.subr.bf16.mxu0 %v525
  %745 = vmatpush1.bf16.msra.mxu0 %v524
  %746 = vmatprep.subr.bf16.mxu0 %v523
  %747 = vmatpush1.bf16.msra.mxu0 %v522
  %748 = vmatprep.subr.bf16.mxu0 %v521
  %749 = vmatpush1.bf16.msra.mxu0 %v520
  %750 = vmatprep.subr.bf16.mxu0 %v519
  %751 = vmatpush1.bf16.msra.mxu0 %v518
  %752 = vmatprep.subr.bf16.mxu0 %v517
  %753 = vmatpush1.bf16.msra.mxu0 %v516
  %754 = vmatprep.subr.bf16.mxu0 %v515
  %755 = vmatpush1.bf16.msra.mxu0 %v514
  %756 = vmatprep.subr.bf16.mxu0 %v513
  %757 = vmatpush1.bf16.msra.mxu0 %v512
  %758 = vmatprep.subr.bf16.mxu0 %v511
  %759 = vmatpush1.bf16.msra.mxu0 %v510
  %760 = vmatprep.subr.bf16.mxu0 %v541
  %761 = vmatpush2.bf16.msra.mxu0 %v540
  %762 = vmatprep.subr.bf16.mxu0 %v539
  %763 = vmatpush2.bf16.msra.mxu0 %v538
  %764 = vmatprep.subr.bf16.mxu0 %v537
  %765 = vmatpush2.bf16.msra.mxu0 %v536
  %766 = vmatprep.subr.bf16.mxu0 %v535
  %767 = vmatpush2.bf16.msra.mxu0 %v534
  %768 = vmatprep.subr.bf16.mxu0 %v533
  %769 = vmatpush2.bf16.msra.mxu0 %v532
  %770 = vmatprep.subr.bf16.mxu0 %v531
  %771 = vmatpush2.bf16.msra.mxu0 %v530
  %772 = vmatprep.subr.bf16.mxu0 %v529
  %773 = vmatpush2.bf16.msra.mxu0 %v528
  %774 = vmatprep.subr.bf16.mxu0 %v527
  %775 = vmatpush2.bf16.msra.mxu0 %v526
  %776 = vmatprep.mubr.bf16.mxu0 %v43
  %777 = vmatmul.mubr.bf16.gmra.mxu0 %v42
  %v778 = vpop.f32.mrf.mxu0
  %v779 = vadd.f32 %v726, %v778
  %v780 = vpop.f32.mrf.mxu0
  %v781 = vadd.f32 %v728, %v780
  %v782 = vpop.f32.mrf.mxu0
  %v783 = vadd.f32 %v730, %v782
  %v784 = vpop.f32.mrf.mxu0
  %v785 = vadd.f32 %v732, %v784
  %786 = vmatprep.mubr.bf16.mxu0 %v49
  %787 = vmatmul.mubr.bf16.gmra.mxu0 %v48
  %v788 = vpop.f32.mrf.mxu0
  %v789 = vadd.f32 %v736, %v788
  %v790 = vpop.f32.mrf.mxu0
  %v791 = vadd.f32 %v738, %v790
  %v792 = vpop.f32.mrf.mxu0
  %v793 = vadd.f32 %v740, %v792
  %v794 = vpop.f32.mrf.mxu0
  %v795 = vadd.f32 %v742, %v794
  %796 = vdwg.mxu0
  %v797 = vsub.f32 0.0, %v779
  %v798 = vsub.f32 0.0, %v781
  %v799 = vsub.f32 0.0, %v783
  %v800 = vsub.f32 0.0, %v785
  %v801 = vsub.f32 0.0, %v789
  %v802 = vsub.f32 0.0, %v791
  %v803 = vsub.f32 0.0, %v793
  %v804 = vsub.f32 0.0, %v795
  %v805 = vmul.f32 %v797, 1.442695
  %v806 = vpow.pop %v805
  %v807 = vmul.f32 %v798, 1.442695
  %v808 = vpow.pop %v807
  %v809 = vmul.f32 %v799, 1.442695
  %v810 = vpow.pop %v809
  %v811 = vmul.f32 %v800, 1.442695
  %v812 = vpow.pop %v811
  %v813 = vmul.f32 %v801, 1.442695
  %v814 = vpow.pop %v813
  %v815 = vmul.f32 %v802, 1.442695
  %v816 = vpow.pop %v815
  %v817 = vmul.f32 %v803, 1.442695
  %v818 = vpow.pop %v817
  %v819 = vmul.f32 %v804, 1.442695
  %v820 = vpow.pop %v819
  %v821 = vadd.f32 %v806, 1.0
  %v822 = vadd.f32 %v808, 1.0
  %v823 = vadd.f32 %v810, 1.0
  %v824 = vadd.f32 %v812, 1.0
  %v825 = vadd.f32 %v814, 1.0
  %v826 = vadd.f32 %v816, 1.0
  %v827 = vadd.f32 %v818, 1.0
  %v828 = vadd.f32 %v820, 1.0
  %v829 = vrcp.pop %v821
  %v830 = vrcp.pop %v822
  %v831 = vrcp.pop %v823
  %v832 = vrcp.pop %v824
  %v833 = vrcp.pop %v825
  %v834 = vrcp.pop %v826
  %v835 = vrcp.pop %v827
  %v836 = vrcp.pop %v828
  %v837 = vmul.f32 %v779, %v829
  %v838 = vmul.f32 %v781, %v830
  %v839 = vmul.f32 %v783, %v831
  %v840 = vmul.f32 %v785, %v832
  %v841 = vmul.f32 %v789, %v833
  %v842 = vmul.f32 %v791, %v834
  %v843 = vmul.f32 %v793, %v835
  %v844 = vmul.f32 %v795, %v836
  %v845 = vpack.c.bf16 %v839, %v837
  %v846 = vpack.c.bf16 %v840, %v838
  %v847 = vpack.c.bf16 %v843, %v841
  %v848 = vpack.c.bf16 %v844, %v842
  %v853 = vunpack.c.l.b16 %v845
  %v854 = vunpack.c.l.b16 %v846
  %v855 = vunpack.c.h.b16 %v845
  %v856 = vunpack.c.h.b16 %v846
  %v857 = vunpack.c.l.b16 %v847
  %v858 = vunpack.c.l.b16 %v848
  %v859 = vunpack.c.h.b16 %v847
  %v860 = vunpack.c.h.b16 %v848
  %v861 = vpack.c.b16 %v854, %v853
  %v862 = vpack.c.b16 %v856, %v855
  %v863 = vpack.c.b16 %v858, %v857
  %v864 = vpack.c.b16 %v860, %v859
  %869 = vst [vmem:[%s3] sm:$0xff] %v861
  %870 = vst [vmem:[%s3 + $0x8] sm:$0xff] %v862
  %871 = vst [vmem:[%s3 + $0x10] sm:$0xff] %v863
  %872 = vst [vmem:[%s3 + $0x18] sm:$0xff] %v864
  // Predicated region
  $region14: #{_lambda_.12} parent=0 // pred_check
    _
  $region15: #{_lambda_.12} parent=0 // pred_check_branch
    %874 = sbr.rel (0) target = $region17
  $region16: #{_lambda_.12} parent=0 // pred_region
    _
  $region17: #{_lambda_.12} parent=0 // pred_fallthru
    _
  // Predicated region
  $region18: #{_lambda_.12} parent=0 // pred_check
    _
  $region19: #{_lambda_.12} parent=0 // pred_check_branch
    %876 = sbr.rel (0) target = $region21
  $region20: #{_lambda_.12} parent=0 // pred_region
    _
  $region21: #{_lambda_.12} parent=0 // pred_fallthru
    _

// kernel: _lambda_.15
$region0: #{_lambda_.15}
  #allocation0 [shape = 'u32[]', space=smem, size = 0x4, offset = 0x4, fixed_abs, tag = 'smem constant byte address 0x4 - core index']
  #allocation1 [shape = 'u32[144,128]{1,0:T(1,128)}', space=vmem, size = 0x12000, scoped, tag = 'internal scratch']
  %s0 = inlined_call_operand.vmem [shape: bf16[32,256], index: 0, kind: input, shape index: {}]
  %s1 = inlined_call_operand.vmem [shape: bf16[32,256], index: 1, kind: input, shape index: {}]
  %s2 = inlined_call_operand.vmem [shape: bf16[256,256], index: 2, kind: input, shape index: {}]
  %s3 = inlined_call_operand.vmem [shape: bf16[256,256], index: 3, kind: input, shape index: {}]
  %s4 = inlined_call_operand.vmem [shape: f32[1,256], index: 4, kind: input, shape index: {}]
  %s5 = inlined_call_operand.vmem [shape: bf16[32,256], index: 5, kind: output, shape index: {}]
  %s6 = sld [smem:[#allocation0]]
  $region30: #{_lambda_.15} parent=0
    _
  %s8 = ssub.s32 1, %s6
  %s9 = scalar_select 0, %s8, %s6
  // Predicated region
  $region2: #{_lambda_.15} parent=0 // pred_check
    _
  $region3: #{_lambda_.15} parent=0 // pred_check_branch
    %11 = sbr.rel (0) target = $region5
  $region4: #{_lambda_.15} parent=0 // pred_region
    _
  $region5: #{_lambda_.15} parent=0 // pred_fallthru
    _
  // Predicated region
  $region6: #{_lambda_.15} parent=0 // pred_check
    _
  $region7: #{_lambda_.15} parent=0 // pred_check_branch
    %13 = sbr.rel (0) target = $region9
  $region8: #{_lambda_.15} parent=0 // pred_region
    _
  $region9: #{_lambda_.15} parent=0 // pred_fallthru
    _
  // Predicated region
  $region10: #{_lambda_.15} parent=0 // pred_check
    _
  $region11: #{_lambda_.15} parent=0 // pred_check_branch
    %15 = sbr.rel (0) target = $region13
  $region12: #{_lambda_.15} parent=0 // pred_region
    _
  $region13: #{_lambda_.15} parent=0 // pred_fallthru
    _
  // Predicated region
  $region14: #{_lambda_.15} parent=0 // pred_check
    _
  $region15: #{_lambda_.15} parent=0 // pred_check_branch
    %17 = sbr.rel (0) target = $region17
  $region16: #{_lambda_.15} parent=0 // pred_region
    _
  $region17: #{_lambda_.15} parent=0 // pred_fallthru
    _
  // Predicated region
  $region18: #{_lambda_.15} parent=0 // pred_check
    _
  $region19: #{_lambda_.15} parent=0 // pred_check_branch
    %19 = sbr.rel (0) target = $region21
  $region20: #{_lambda_.15} parent=0 // pred_region
    _
  $region21: #{_lambda_.15} parent=0 // pred_fallthru
    _
  %v20 = vld [vmem:[%s0] sm:$0xff]
  %v21 = vld [vmem:[%s0 + $0x8] sm:$0xff]
  %v22 = vld [vmem:[%s0 + $0x10] sm:$0xff]
  %v23 = vld [vmem:[%s0 + $0x18] sm:$0xff]
  %v24 = vld [vmem:[%s2] sm:$0xff]
  %v25 = vld [vmem:[%s2 + $0x8] sm:$0xff]
  %v26 = vld [vmem:[%s2 + $0x10] sm:$0xff]
  %v27 = vld [vmem:[%s2 + $0x18] sm:$0xff]
  %v28 = vld [vmem:[%s2 + $0x20] sm:$0xff]
  %v29 = vld [vmem:[%s2 + $0x28] sm:$0xff]
  %v30 = vld [vmem:[%s2 + $0x30] sm:$0xff]
  %v31 = vld [vmem:[%s2 + $0x38] sm:$0xff]
  %v32 = vld [vmem:[%s2 + $0x40] sm:$0xff]
  %v33 = vld [vmem:[%s2 + $0x48] sm:$0xff]
  %v34 = vld [vmem:[%s2 + $0x50] sm:$0xff]
  %v35 = vld [vmem:[%s2 + $0x58] sm:$0xff]
  %v36 = vld [vmem:[%s2 + $0x60] sm:$0xff]
  %v37 = vld [vmem:[%s2 + $0x68] sm:$0xff]
  %v38 = vld [vmem:[%s2 + $0x70] sm:$0xff]
  %v39 = vld [vmem:[%s2 + $0x78] sm:$0xff]
  %v40 = vld [vmem:[%s2 + $0x80] sm:$0xff]
  %v41 = vld [vmem:[%s2 + $0x88] sm:$0xff]
  %v42 = vld [vmem:[%s2 + $0x90] sm:$0xff]
  %v43 = vld [vmem:[%s2 + $0x98] sm:$0xff]
  %v44 = vld [vmem:[%s2 + $0xa0] sm:$0xff]
  %v45 = vld [vmem:[%s2 + $0xa8] sm:$0xff]
  %v46 = vld [vmem:[%s2 + $0xb0] sm:$0xff]
  %v47 = vld [vmem:[%s2 + $0xb8] sm:$0xff]
  %v48 = vld [vmem:[%s2 + $0xc0] sm:$0xff]
  %v49 = vld [vmem:[%s2 + $0xc8] sm:$0xff]
  %v50 = vld [vmem:[%s2 + $0xd0] sm:$0xff]
  %v51 = vld [vmem:[%s2 + $0xd8] sm:$0xff]
  %v52 = vld [vmem:[%s2 + $0xe0] sm:$0xff]
  %v53 = vld [vmem:[%s2 + $0xe8] sm:$0xff]
  %v54 = vld [vmem:[%s2 + $0xf0] sm:$0xff]
  %v55 = vld [vmem:[%s2 + $0xf8] sm:$0xff]
  %v56 = vld [vmem:[%s1] sm:$0xff]
  %v57 = vld [vmem:[%s1 + $0x8] sm:$0xff]
  %v58 = vld [vmem:[%s1 + $0x10] sm:$0xff]
  %v59 = vld [vmem:[%s1 + $0x18] sm:$0xff]
  %v60 = vld [vmem:[%s3] sm:$0xff]
  %v61 = vld [vmem:[%s3 + $0x8] sm:$0xff]
  %v62 = vld [vmem:[%s3 + $0x10] sm:$0xff]
  %v63 = vld [vmem:[%s3 + $0x18] sm:$0xff]
  %v64 = vld [vmem:[%s3 + $0x20] sm:$0xff]
  %v65 = vld [vmem:[%s3 + $0x28] sm:$0xff]
  %v66 = vld [vmem:[%s3 + $0x30] sm:$0xff]
  %v67 = vld [vmem:[%s3 + $0x38] sm:$0xff]
  %v68 = vld [vmem:[%s3 + $0x40] sm:$0xff]
  %v69 = vld [vmem:[%s3 + $0x48] sm:$0xff]
  %v70 = vld [vmem:[%s3 + $0x50] sm:$0xff]
  %v71 = vld [vmem:[%s3 + $0x58] sm:$0xff]
  %v72 = vld [vmem:[%s3 + $0x60] sm:$0xff]
  %v73 = vld [vmem:[%s3 + $0x68] sm:$0xff]
  %v74 = vld [vmem:[%s3 + $0x70] sm:$0xff]
  %v75 = vld [vmem:[%s3 + $0x78] sm:$0xff]
  %v76 = vld [vmem:[%s3 + $0x80] sm:$0xff]
  %v77 = vld [vmem:[%s3 + $0x88] sm:$0xff]
  %v78 = vld [vmem:[%s3 + $0x90] sm:$0xff]
  %v79 = vld [vmem:[%s3 + $0x98] sm:$0xff]
  %v80 = vld [vmem:[%s3 + $0xa0] sm:$0xff]
  %v81 = vld [vmem:[%s3 + $0xa8] sm:$0xff]
  %v82 = vld [vmem:[%s3 + $0xb0] sm:$0xff]
  %v83 = vld [vmem:[%s3 + $0xb8] sm:$0xff]
  %v84 = vld [vmem:[%s3 + $0xc0] sm:$0xff]
  %v85 = vld [vmem:[%s3 + $0xc8] sm:$0xff]
  %v86 = vld [vmem:[%s3 + $0xd0] sm:$0xff]
  %v87 = vld [vmem:[%s3 + $0xd8] sm:$0xff]
  %v88 = vld [vmem:[%s3 + $0xe0] sm:$0xff]
  %v89 = vld [vmem:[%s3 + $0xe8] sm:$0xff]
  %v90 = vld [vmem:[%s3 + $0xf0] sm:$0xff]
  %v91 = vld [vmem:[%s3 + $0xf8] sm:$0xff]
  %v96 = vunpack.c.l.b16 %v56
  %v97 = vunpack.c.h.b16 %v56
  %v98 = vunpack.c.l.b16 %v57
  %v99 = vunpack.c.h.b16 %v57
  %v100 = vunpack.c.l.b16 %v58
  %v101 = vunpack.c.h.b16 %v58
  %v102 = vunpack.c.l.b16 %v59
  %v103 = vunpack.c.h.b16 %v59
  %v104 = vpack.c.b16 %v98, %v96
  %v105 = vpack.c.b16 %v99, %v97
  %v106 = vpack.c.b16 %v102, %v100
  %v107 = vpack.c.b16 %v103, %v101
  %v144 = vunpack.c.l.b16 %v60
  %v145 = vunpack.c.h.b16 %v60
  %v146 = vunpack.c.l.b16 %v61
  %v147 = vunpack.c.h.b16 %v61
  %v148 = vunpack.c.l.b16 %v62
  %v149 = vunpack.c.h.b16 %v62
  %v150 = vunpack.c.l.b16 %v63
  %v151 = vunpack.c.h.b16 %v63
  %v152 = vunpack.c.l.b16 %v64
  %v153 = vunpack.c.h.b16 %v64
  %v154 = vunpack.c.l.b16 %v65
  %v155 = vunpack.c.h.b16 %v65
  %v156 = vunpack.c.l.b16 %v66
  %v157 = vunpack.c.h.b16 %v66
  %v158 = vunpack.c.l.b16 %v67
  %v159 = vunpack.c.h.b16 %v67
  %v160 = vunpack.c.l.b16 %v68
  %v161 = vunpack.c.h.b16 %v68
  %v162 = vunpack.c.l.b16 %v69
  %v163 = vunpack.c.h.b16 %v69
  %v164 = vunpack.c.l.b16 %v70
  %v165 = vunpack.c.h.b16 %v70
  %v166 = vunpack.c.l.b16 %v71
  %v167 = vunpack.c.h.b16 %v71
  %v168 = vunpack.c.l.b16 %v72
  %v169 = vunpack.c.h.b16 %v72
  %v170 = vunpack.c.l.b16 %v73
  %v171 = vunpack.c.h.b16 %v73
  %v172 = vunpack.c.l.b16 %v74
  %v173 = vunpack.c.h.b16 %v74
  %v174 = vunpack.c.l.b16 %v75
  %v175 = vunpack.c.h.b16 %v75
  %v176 = vunpack.c.l.b16 %v76
  %v177 = vunpack.c.h.b16 %v76
  %v178 = vunpack.c.l.b16 %v77
  %v179 = vunpack.c.h.b16 %v77
  %v180 = vunpack.c.l.b16 %v78
  %v181 = vunpack.c.h.b16 %v78
  %v182 = vunpack.c.l.b16 %v79
  %v183 = vunpack.c.h.b16 %v79
  %v184 = vunpack.c.l.b16 %v80
  %v185 = vunpack.c.h.b16 %v80
  %v186 = vunpack.c.l.b16 %v81
  %v187 = vunpack.c.h.b16 %v81
  %v188 = vunpack.c.l.b16 %v82
  %v189 = vunpack.c.h.b16 %v82
  %v190 = vunpack.c.l.b16 %v83
  %v191 = vunpack.c.h.b16 %v83
  %v192 = vunpack.c.l.b16 %v84
  %v193 = vunpack.c.h.b16 %v84
  %v194 = vunpack.c.l.b16 %v85
  %v195 = vunpack.c.h.b16 %v85
  %v196 = vunpack.c.l.b16 %v86
  %v197 = vunpack.c.h.b16 %v86
  %v198 = vunpack.c.l.b16 %v87
  %v199 = vunpack.c.h.b16 %v87
  %v200 = vunpack.c.l.b16 %v88
  %v201 = vunpack.c.h.b16 %v88
  %v202 = vunpack.c.l.b16 %v89
  %v203 = vunpack.c.h.b16 %v89
  %v204 = vunpack.c.l.b16 %v90
  %v205 = vunpack.c.h.b16 %v90
  %v206 = vunpack.c.l.b16 %v91
  %v207 = vunpack.c.h.b16 %v91
  %v208 = vpack.c.b16 %v146, %v144
  %v209 = vpack.c.b16 %v147, %v145
  %v210 = vpack.c.b16 %v150, %v148
  %v211 = vpack.c.b16 %v151, %v149
  %v212 = vpack.c.b16 %v154, %v152
  %v213 = vpack.c.b16 %v155, %v153
  %v214 = vpack.c.b16 %v158, %v156
  %v215 = vpack.c.b16 %v159, %v157
  %v216 = vpack.c.b16 %v162, %v160
  %v217 = vpack.c.b16 %v163, %v161
  %v218 = vpack.c.b16 %v166, %v164
  %v219 = vpack.c.b16 %v167, %v165
  %v220 = vpack.c.b16 %v170, %v168
  %v221 = vpack.c.b16 %v171, %v169
  %v222 = vpack.c.b16 %v174, %v172
  %v223 = vpack.c.b16 %v175, %v173
  %v224 = vpack.c.b16 %v178, %v176
  %v225 = vpack.c.b16 %v179, %v177
  %v226 = vpack.c.b16 %v182, %v180
  %v227 = vpack.c.b16 %v183, %v181
  %v228 = vpack.c.b16 %v186, %v184
  %v229 = vpack.c.b16 %v187, %v185
  %v230 = vpack.c.b16 %v190, %v188
  %v231 = vpack.c.b16 %v191, %v189
  %v232 = vpack.c.b16 %v194, %v192
  %v233 = vpack.c.b16 %v195, %v193
  %v234 = vpack.c.b16 %v198, %v196
  %v235 = vpack.c.b16 %v199, %v197
  %v236 = vpack.c.b16 %v202, %v200
  %v237 = vpack.c.b16 %v203, %v201
  %v238 = vpack.c.b16 %v206, %v204
  %v239 = vpack.c.b16 %v207, %v205
  %272 = vmatprep.subr.bf16.mxu0 %v223
  %273 = vmatpush1.bf16.msra.mxu0 %v222
  %274 = vmatprep.subr.bf16.mxu0 %v221
  %275 = vmatpush1.bf16.msra.mxu0 %v220
  %276 = vmatprep.subr.bf16.mxu0 %v219
  %277 = vmatpush1.bf16.msra.mxu0 %v218
  %278 = vmatprep.subr.bf16.mxu0 %v217
  %279 = vmatpush1.bf16.msra.mxu0 %v216
  %280 = vmatprep.subr.bf16.mxu0 %v215
  %281 = vmatpush1.bf16.msra.mxu0 %v214
  %282 = vmatprep.subr.bf16.mxu0 %v213
  %283 = vmatpush1.bf16.msra.mxu0 %v212
  %284 = vmatprep.subr.bf16.mxu0 %v211
  %285 = vmatpush1.bf16.msra.mxu0 %v210
  %286 = vmatprep.subr.bf16.mxu0 %v209
  %287 = vmatpush1.bf16.msra.mxu0 %v208
  %288 = vmatprep.subr.bf16.mxu0 %v239
  %289 = vmatpush2.bf16.msra.mxu0 %v238
  %290 = vmatprep.subr.bf16.mxu0 %v237
  %291 = vmatpush2.bf16.msra.mxu0 %v236
  %292 = vmatprep.subr.bf16.mxu0 %v235
  %293 = vmatpush2.bf16.msra.mxu0 %v234
  %294 = vmatprep.subr.bf16.mxu0 %v233
  %295 = vmatpush2.bf16.msra.mxu0 %v232
  %296 = vmatprep.subr.bf16.mxu0 %v231
  %297 = vmatpush2.bf16.msra.mxu0 %v230
  %298 = vmatprep.subr.bf16.mxu0 %v229
  %299 = vmatpush2.bf16.msra.mxu0 %v228
  %300 = vmatprep.subr.bf16.mxu0 %v227
  %301 = vmatpush2.bf16.msra.mxu0 %v226
  %302 = vmatprep.subr.bf16.mxu0 %v225
  %303 = vmatpush2.bf16.msra.mxu0 %v224
  %304 = vmatprep.mubr.bf16.mxu0 %v105
  %305 = vmatmul.mubr.bf16.gmra.mxu0 %v104
  %v306 = vpop.f32.mrf.mxu0
  %v307 = vadd.f32 0.0, %v306
  %v308 = vpop.f32.mrf.mxu0
  %v309 = vadd.f32 0.0, %v308
  %v310 = vpop.f32.mrf.mxu0
  %v311 = vadd.f32 0.0, %v310
  %v312 = vpop.f32.mrf.mxu0
  %v313 = vadd.f32 0.0, %v312
  %314 = vmatprep.mubr.bf16.mxu0 %v107
  %315 = vmatmul.mubr.bf16.gmra.mxu0 %v106
  %v316 = vpop.f32.mrf.mxu0
  %v317 = vadd.f32 0.0, %v316
  %v318 = vpop.f32.mrf.mxu0
  %v319 = vadd.f32 0.0, %v318
  %v320 = vpop.f32.mrf.mxu0
  %v321 = vadd.f32 0.0, %v320
  %v322 = vpop.f32.mrf.mxu0
  %v323 = vadd.f32 0.0, %v322
  %324 = vdwg.mxu0
  %v329 = vunpack.c.l.b16 %v20
  %v330 = vunpack.c.h.b16 %v20
  %v331 = vunpack.c.l.b16 %v21
  %v332 = vunpack.c.h.b16 %v21
  %v333 = vunpack.c.l.b16 %v22
  %v334 = vunpack.c.h.b16 %v22
  %v335 = vunpack.c.l.b16 %v23
  %v336 = vunpack.c.h.b16 %v23
  %v337 = vpack.c.b16 %v331, %v329
  %v338 = vpack.c.b16 %v332, %v330
  %v339 = vpack.c.b16 %v335, %v333
  %v340 = vpack.c.b16 %v336, %v334
  %v377 = vunpack.c.l.b16 %v24
  %v378 = vunpack.c.h.b16 %v24
  %v379 = vunpack.c.l.b16 %v25
  %v380 = vunpack.c.h.b16 %v25
  %v381 = vunpack.c.l.b16 %v26
  %v382 = vunpack.c.h.b16 %v26
  %v383 = vunpack.c.l.b16 %v27
  %v384 = vunpack.c.h.b16 %v27
  %v385 = vunpack.c.l.b16 %v28
  %v386 = vunpack.c.h.b16 %v28
  %v387 = vunpack.c.l.b16 %v29
  %v388 = vunpack.c.h.b16 %v29
  %v389 = vunpack.c.l.b16 %v30
  %v390 = vunpack.c.h.b16 %v30
  %v391 = vunpack.c.l.b16 %v31
  %v392 = vunpack.c.h.b16 %v31
  %v393 = vunpack.c.l.b16 %v32
  %v394 = vunpack.c.h.b16 %v32
  %v395 = vunpack.c.l.b16 %v33
  %v396 = vunpack.c.h.b16 %v33
  %v397 = vunpack.c.l.b16 %v34
  %v398 = vunpack.c.h.b16 %v34
  %v399 = vunpack.c.l.b16 %v35
  %v400 = vunpack.c.h.b16 %v35
  %v401 = vunpack.c.l.b16 %v36
  %v402 = vunpack.c.h.b16 %v36
  %v403 = vunpack.c.l.b16 %v37
  %v404 = vunpack.c.h.b16 %v37
  %v405 = vunpack.c.l.b16 %v38
  %v406 = vunpack.c.h.b16 %v38
  %v407 = vunpack.c.l.b16 %v39
  %v408 = vunpack.c.h.b16 %v39
  %v409 = vunpack.c.l.b16 %v40
  %v410 = vunpack.c.h.b16 %v40
  %v411 = vunpack.c.l.b16 %v41
  %v412 = vunpack.c.h.b16 %v41
  %v413 = vunpack.c.l.b16 %v42
  %v414 = vunpack.c.h.b16 %v42
  %v415 = vunpack.c.l.b16 %v43
  %v416 = vunpack.c.h.b16 %v43
  %v417 = vunpack.c.l.b16 %v44
  %v418 = vunpack.c.h.b16 %v44
  %v419 = vunpack.c.l.b16 %v45
  %v420 = vunpack.c.h.b16 %v45
  %v421 = vunpack.c.l.b16 %v46
  %v422 = vunpack.c.h.b16 %v46
  %v423 = vunpack.c.l.b16 %v47
  %v424 = vunpack.c.h.b16 %v47
  %v425 = vunpack.c.l.b16 %v48
  %v426 = vunpack.c.h.b16 %v48
  %v427 = vunpack.c.l.b16 %v49
  %v428 = vunpack.c.h.b16 %v49
  %v429 = vunpack.c.l.b16 %v50
  %v430 = vunpack.c.h.b16 %v50
  %v431 = vunpack.c.l.b16 %v51
  %v432 = vunpack.c.h.b16 %v51
  %v433 = vunpack.c.l.b16 %v52
  %v434 = vunpack.c.h.b16 %v52
  %v435 = vunpack.c.l.b16 %v53
  %v436 = vunpack.c.h.b16 %v53
  %v437 = vunpack.c.l.b16 %v54
  %v438 = vunpack.c.h.b16 %v54
  %v439 = vunpack.c.l.b16 %v55
  %v440 = vunpack.c.h.b16 %v55
  %v441 = vpack.c.b16 %v379, %v377
  %v442 = vpack.c.b16 %v380, %v378
  %v443 = vpack.c.b16 %v383, %v381
  %v444 = vpack.c.b16 %v384, %v382
  %v445 = vpack.c.b16 %v387, %v385
  %v446 = vpack.c.b16 %v388, %v386
  %v447 = vpack.c.b16 %v391, %v389
  %v448 = vpack.c.b16 %v392, %v390
  %v449 = vpack.c.b16 %v395, %v393
  %v450 = vpack.c.b16 %v396, %v394
  %v451 = vpack.c.b16 %v399, %v397
  %v452 = vpack.c.b16 %v400, %v398
  %v453 = vpack.c.b16 %v403, %v401
  %v454 = vpack.c.b16 %v404, %v402
  %v455 = vpack.c.b16 %v407, %v405
  %v456 = vpack.c.b16 %v408, %v406
  %v457 = vpack.c.b16 %v411, %v409
  %v458 = vpack.c.b16 %v412, %v410
  %v459 = vpack.c.b16 %v415, %v413
  %v460 = vpack.c.b16 %v416, %v414
  %v461 = vpack.c.b16 %v419, %v417
  %v462 = vpack.c.b16 %v420, %v418
  %v463 = vpack.c.b16 %v423, %v421
  %v464 = vpack.c.b16 %v424, %v422
  %v465 = vpack.c.b16 %v427, %v425
  %v466 = vpack.c.b16 %v428, %v426
  %v467 = vpack.c.b16 %v431, %v429
  %v468 = vpack.c.b16 %v432, %v430
  %v469 = vpack.c.b16 %v435, %v433
  %v470 = vpack.c.b16 %v436, %v434
  %v471 = vpack.c.b16 %v439, %v437
  %v472 = vpack.c.b16 %v440, %v438
  %505 = vmatprep.subr.bf16.mxu0 %v456
  %506 = vmatpush1.bf16.msra.mxu0 %v455
  %507 = vmatprep.subr.bf16.mxu0 %v454
  %508 = vmatpush1.bf16.msra.mxu0 %v453
  %509 = vmatprep.subr.bf16.mxu0 %v452
  %510 = vmatpush1.bf16.msra.mxu0 %v451
  %511 = vmatprep.subr.bf16.mxu0 %v450
  %512 = vmatpush1.bf16.msra.mxu0 %v449
  %513 = vmatprep.subr.bf16.mxu0 %v448
  %514 = vmatpush1.bf16.msra.mxu0 %v447
  %515 = vmatprep.subr.bf16.mxu0 %v446
  %516 = vmatpush1.bf16.msra.mxu0 %v445
  %517 = vmatprep.subr.bf16.mxu0 %v444
  %518 = vmatpush1.bf16.msra.mxu0 %v443
  %519 = vmatprep.subr.bf16.mxu0 %v442
  %520 = vmatpush1.bf16.msra.mxu0 %v441
  %521 = vmatprep.subr.bf16.mxu0 %v472
  %522 = vmatpush2.bf16.msra.mxu0 %v471
  %523 = vmatprep.subr.bf16.mxu0 %v470
  %524 = vmatpush2.bf16.msra.mxu0 %v469
  %525 = vmatprep.subr.bf16.mxu0 %v468
  %526 = vmatpush2.bf16.msra.mxu0 %v467
  %527 = vmatprep.subr.bf16.mxu0 %v466
  %528 = vmatpush2.bf16.msra.mxu0 %v465
  %529 = vmatprep.subr.bf16.mxu0 %v464
  %530 = vmatpush2.bf16.msra.mxu0 %v463
  %531 = vmatprep.subr.bf16.mxu0 %v462
  %532 = vmatpush2.bf16.msra.mxu0 %v461
  %533 = vmatprep.subr.bf16.mxu0 %v460
  %534 = vmatpush2.bf16.msra.mxu0 %v459
  %535 = vmatprep.subr.bf16.mxu0 %v458
  %536 = vmatpush2.bf16.msra.mxu0 %v457
  %537 = vmatprep.mubr.bf16.mxu0 %v338
  %538 = vmatmul.mubr.bf16.gmra.mxu0 %v337
  %v539 = vpop.f32.mrf.mxu0
  %v540 = vadd.f32 %v307, %v539
  %v541 = vpop.f32.mrf.mxu0
  %v542 = vadd.f32 %v309, %v541
  %v543 = vpop.f32.mrf.mxu0
  %v544 = vadd.f32 %v311, %v543
  %v545 = vpop.f32.mrf.mxu0
  %v546 = vadd.f32 %v313, %v545
  %547 = vmatprep.mubr.bf16.mxu0 %v340
  %548 = vmatmul.mubr.bf16.gmra.mxu0 %v339
  %v549 = vpop.f32.mrf.mxu0
  %v550 = vadd.f32 %v317, %v549
  %v551 = vpop.f32.mrf.mxu0
  %v552 = vadd.f32 %v319, %v551
  %v553 = vpop.f32.mrf.mxu0
  %v554 = vadd.f32 %v321, %v553
  %v555 = vpop.f32.mrf.mxu0
  %v556 = vadd.f32 %v323, %v555
  %557 = vdwg.mxu0
  %v558 = vld [vmem:[%s4] sm:$0x3]
  %v560 = vlaneseq
  %v561 = vshrl.u32 %v560, 7
  %v562 = vsub.s32 0, %v561
  %v563 = vrot.slane %v558, %v562
  %v564 = vlaneseq
  %v565 = vshrl.u32 %v564, 7
  %v566 = vsub.s32 1, %v565
  %v567 = vrot.slane %v558, %v566
  %v570 = vadd.f32 %v540, %v563
  %v571 = vadd.f32 %v542, %v567
  %v572 = vadd.f32 %v544, %v563
  %v573 = vadd.f32 %v546, %v567
  %v574 = vadd.f32 %v550, %v563
  %v575 = vadd.f32 %v552, %v567
  %v576 = vadd.f32 %v554, %v563
  %v577 = vadd.f32 %v556, %v567
  %v578 = vsub.f32 0.0, %v570
  %v579 = vsub.f32 0.0, %v571
  %v580 = vsub.f32 0.0, %v572
  %v581 = vsub.f32 0.0, %v573
  %v582 = vsub.f32 0.0, %v574
  %v583 = vsub.f32 0.0, %v575
  %v584 = vsub.f32 0.0, %v576
  %v585 = vsub.f32 0.0, %v577
  %v586 = vmul.f32 %v578, 1.442695
  %v587 = vpow.pop %v586
  %v588 = vmul.f32 %v579, 1.442695
  %v589 = vpow.pop %v588
  %v590 = vmul.f32 %v580, 1.442695
  %v591 = vpow.pop %v590
  %v592 = vmul.f32 %v581, 1.442695
  %v593 = vpow.pop %v592
  %v594 = vmul.f32 %v582, 1.442695
  %v595 = vpow.pop %v594
  %v596 = vmul.f32 %v583, 1.442695
  %v597 = vpow.pop %v596
  %v598 = vmul.f32 %v584, 1.442695
  %v599 = vpow.pop %v598
  %v600 = vmul.f32 %v585, 1.442695
  %v601 = vpow.pop %v600
  %v602 = vadd.f32 %v587, 1.0
  %v603 = vadd.f32 %v589, 1.0
  %v604 = vadd.f32 %v591, 1.0
  %v605 = vadd.f32 %v593, 1.0
  %v606 = vadd.f32 %v595, 1.0
  %v607 = vadd.f32 %v597, 1.0
  %v608 = vadd.f32 %v599, 1.0
  %v609 = vadd.f32 %v601, 1.0
  %v610 = vrcp.pop %v602
  %v611 = vrcp.pop %v603
  %v612 = vrcp.pop %v604
  %v613 = vrcp.pop %v605
  %v614 = vrcp.pop %v606
  %v615 = vrcp.pop %v607
  %v616 = vrcp.pop %v608
  %v617 = vrcp.pop %v609
  %v618 = vmul.f32 %v570, %v610
  %v619 = vmul.f32 %v571, %v611
  %v620 = vmul.f32 %v572, %v612
  %v621 = vmul.f32 %v573, %v613
  %v622 = vmul.f32 %v574, %v614
  %v623 = vmul.f32 %v575, %v615
  %v624 = vmul.f32 %v576, %v616
  %v625 = vmul.f32 %v577, %v617
  %v626 = vpack.c.bf16 %v620, %v618
  %v627 = vpack.c.bf16 %v621, %v619
  %v628 = vpack.c.bf16 %v624, %v622
  %v629 = vpack.c.bf16 %v625, %v623
  %v634 = vunpack.c.l.b16 %v626
  %v635 = vunpack.c.l.b16 %v627
  %v636 = vunpack.c.h.b16 %v626
  %v637 = vunpack.c.h.b16 %v627
  %v638 = vunpack.c.l.b16 %v628
  %v639 = vunpack.c.l.b16 %v629
  %v640 = vunpack.c.h.b16 %v628
  %v641 = vunpack.c.h.b16 %v629
  %v642 = vpack.c.b16 %v635, %v634
  %v643 = vpack.c.b16 %v637, %v636
  %v644 = vpack.c.b16 %v639, %v638
  %v645 = vpack.c.b16 %v641, %v640
  %650 = vst [vmem:[%s5] sm:$0xff] %v642
  %651 = vst [vmem:[%s5 + $0x8] sm:$0xff] %v643
  %652 = vst [vmem:[%s5 + $0x10] sm:$0xff] %v644
  %653 = vst [vmem:[%s5 + $0x18] sm:$0xff] %v645
  // Predicated region
  $region22: #{_lambda_.15} parent=0 // pred_check
    _
  $region23: #{_lambda_.15} parent=0 // pred_check_branch
    %655 = sbr.rel (0) target = $region25
  $region24: #{_lambda_.15} parent=0 // pred_region
    _
  $region25: #{_lambda_.15} parent=0 // pred_fallthru
    _
  // Predicated region
  $region26: #{_lambda_.15} parent=0 // pred_check
    _
  $region27: #{_lambda_.15} parent=0 // pred_check_branch
    %657 = sbr.rel (0) target = $region29
  $region28: #{_lambda_.15} parent=0 // pred_region
    _
  $region29: #{_lambda_.15} parent=0 // pred_fallthru
    _

// kernel: _lambda_.16
$region0: #{_lambda_.16}
  #allocation0 [shape = 'u32[]', space=smem, size = 0x4, offset = 0x4, fixed_abs, tag = 'smem constant byte address 0x4 - core index']
  #allocation1 [shape = 'u32[144,128]{1,0:T(1,128)}', space=vmem, size = 0x12000, scoped, tag = 'internal scratch']
  %s0 = inlined_call_operand.vmem [shape: bf16[32,128], index: 0, kind: input, shape index: {}]
  %s1 = inlined_call_operand.vmem [shape: bf16[128,128], index: 1, kind: input, shape index: {}]
  %s2 = inlined_call_operand.vmem [shape: f32[1,128], index: 2, kind: input, shape index: {}]
  %s3 = inlined_call_operand.vmem [shape: bf16[32,128], index: 3, kind: output, shape index: {}]
  %s4 = sld [smem:[#allocation0]]
  $region22: #{_lambda_.16} parent=0
    _
  %s6 = ssub.s32 1, %s4
  %s7 = scalar_select 0, %s6, %s4
  // Predicated region
  $region2: #{_lambda_.16} parent=0 // pred_check
    _
  $region3: #{_lambda_.16} parent=0 // pred_check_branch
    %9 = sbr.rel (0) target = $region5
  $region4: #{_lambda_.16} parent=0 // pred_region
    _
  $region5: #{_lambda_.16} parent=0 // pred_fallthru
    _
  // Predicated region
  $region6: #{_lambda_.16} parent=0 // pred_check
    _
  $region7: #{_lambda_.16} parent=0 // pred_check_branch
    %11 = sbr.rel (0) target = $region9
  $region8: #{_lambda_.16} parent=0 // pred_region
    _
  $region9: #{_lambda_.16} parent=0 // pred_fallthru
    _
  // Predicated region
  $region10: #{_lambda_.16} parent=0 // pred_check
    _
  $region11: #{_lambda_.16} parent=0 // pred_check_branch
    %13 = sbr.rel (0) target = $region13
  $region12: #{_lambda_.16} parent=0 // pred_region
    _
  $region13: #{_lambda_.16} parent=0 // pred_fallthru
    _
  %v15 = vld [vmem:[%s0] sm:$0xf]
  %v16 = vld [vmem:[%s0 + $0x4] sm:$0xf]
  %v17 = vld [vmem:[%s0 + $0x8] sm:$0xf]
  %v18 = vld [vmem:[%s0 + $0xc] sm:$0xf]
  %v19 = vld [vmem:[%s1] sm:$0xf]
  %v20 = vld [vmem:[%s1 + $0x4] sm:$0xf]
  %v21 = vld [vmem:[%s1 + $0x8] sm:$0xf]
  %v22 = vld [vmem:[%s1 + $0xc] sm:$0xf]
  %v23 = vld [vmem:[%s1 + $0x10] sm:$0xf]
  %v24 = vld [vmem:[%s1 + $0x14] sm:$0xf]
  %v25 = vld [vmem:[%s1 + $0x18] sm:$0xf]
  %v26 = vld [vmem:[%s1 + $0x1c] sm:$0xf]
  %v27 = vld [vmem:[%s1 + $0x20] sm:$0xf]
  %v28 = vld [vmem:[%s1 + $0x24] sm:$0xf]
  %v29 = vld [vmem:[%s1 + $0x28] sm:$0xf]
  %v30 = vld [vmem:[%s1 + $0x2c] sm:$0xf]
  %v31 = vld [vmem:[%s1 + $0x30] sm:$0xf]
  %v32 = vld [vmem:[%s1 + $0x34] sm:$0xf]
  %v33 = vld [vmem:[%s1 + $0x38] sm:$0xf]
  %v34 = vld [vmem:[%s1 + $0x3c] sm:$0xf]
  %v35 = vld [vmem:[%s2] sm:$0x1]
  %v37 = vlaneseq
  %v38 = vshrl.u32 %v37, 7
  %v39 = vsub.s32 0, %v38
  %v40 = vrot.slane %v35, %v39
  %v46 = vunpack.c.l.b16 %v15
  %v47 = vunpack.c.l.b16 %v16
  %v48 = vunpack.c.l.b16 %v17
  %v49 = vunpack.c.l.b16 %v18
  %v50 = vpack.c.b16 %v47, %v46
  %v51 = vpack.c.b16 %v49, %v48
  %v70 = vunpack.c.l.b16 %v19
  %v71 = vunpack.c.l.b16 %v20
  %v72 = vunpack.c.l.b16 %v21
  %v73 = vunpack.c.l.b16 %v22
  %v74 = vunpack.c.l.b16 %v23
  %v75 = vunpack.c.l.b16 %v24
  %v76 = vunpack.c.l.b16 %v25
  %v77 = vunpack.c.l.b16 %v26
  %v78 = vunpack.c.l.b16 %v27
  %v79 = vunpack.c.l.b16 %v28
  %v80 = vunpack.c.l.b16 %v29
  %v81 = vunpack.c.l.b16 %v30
  %v82 = vunpack.c.l.b16 %v31
  %v83 = vunpack.c.l.b16 %v32
  %v84 = vunpack.c.l.b16 %v33
  %v85 = vunpack.c.l.b16 %v34
  %v86 = vpack.c.b16 %v71, %v70
  %v87 = vpack.c.b16 %v73, %v72
  %v88 = vpack.c.b16 %v75, %v74
  %v89 = vpack.c.b16 %v77, %v76
  %v90 = vpack.c.b16 %v79, %v78
  %v91 = vpack.c.b16 %v81, %v80
  %v92 = vpack.c.b16 %v83, %v82
  %v93 = vpack.c.b16 %v85, %v84
  %102 = vmatprep.subr.bf16.mxu0 0
  %103 = vmatpush1.bf16.msra.mxu0 %v93
  %104 = vmatprep.subr.bf16.mxu0 0
  %105 = vmatpush1.bf16.msra.mxu0 %v92
  %106 = vmatprep.subr.bf16.mxu0 0
  %107 = vmatpush1.bf16.msra.mxu0 %v91
  %108 = vmatprep.subr.bf16.mxu0 0
  %109 = vmatpush1.bf16.msra.mxu0 %v90
  %110 = vmatprep.subr.bf16.mxu0 0
  %111 = vmatpush1.bf16.msra.mxu0 %v89
  %112 = vmatprep.subr.bf16.mxu0 0
  %113 = vmatpush1.bf16.msra.mxu0 %v88
  %114 = vmatprep.subr.bf16.mxu0 0
  %115 = vmatpush1.bf16.msra.mxu0 %v87
  %116 = vmatprep.subr.bf16.mxu0 0
  %117 = vmatpush1.bf16.msra.mxu0 %v86
  %118 = vmatprep.subr.bf16.mxu0 0
  %119 = vmatpush2.bf16.msra.mxu0 0
  %120 = vmatprep.subr.bf16.mxu0 0
  %121 = vmatpush2.bf16.msra.mxu0 0
  %122 = vmatprep.subr.bf16.mxu0 0
  %123 = vmatpush2.bf16.msra.mxu0 0
  %124 = vmatprep.subr.bf16.mxu0 0
  %125 = vmatpush2.bf16.msra.mxu0 0
  %126 = vmatprep.subr.bf16.mxu0 0
  %127 = vmatpush2.bf16.msra.mxu0 0
  %128 = vmatprep.subr.bf16.mxu0 0
  %129 = vmatpush2.bf16.msra.mxu0 0
  %130 = vmatprep.subr.bf16.mxu0 0
  %131 = vmatpush2.bf16.msra.mxu0 0
  %132 = vmatprep.subr.bf16.mxu0 0
  %133 = vmatpush2.bf16.msra.mxu0 0
  %134 = vmatprep.mubr.bf16.mxu0 0
  %135 = vmatmul.mubr.bf16.gmra.mxu0 %v50
  %v136 = vpop.f32.mrf.mxu0
  %v137 = vadd.f32 %v40, %v136
  %v138 = vpop.f32.mrf.mxu0
  %v139 = vpop.f32.mrf.mxu0
  %v140 = vadd.f32 %v40, %v139
  %v141 = vpop.f32.mrf.mxu0
  %142 = vmatprep.mubr.bf16.mxu0 0
  %143 = vmatmul.mubr.bf16.gmra.mxu0 %v51
  %v144 = vpop.f32.mrf.mxu0
  %v145 = vadd.f32 %v40, %v144
  %v146 = vpop.f32.mrf.mxu0
  %v147 = vpop.f32.mrf.mxu0
  %v148 = vadd.f32 %v40, %v147
  %v149 = vpop.f32.mrf.mxu0
  %150 = vdwg.mxu0
  %v151 = vsub.f32 0.0, %v137
  %v152 = vsub.f32 0.0, %v140
  %v153 = vsub.f32 0.0, %v145
  %v154 = vsub.f32 0.0, %v148
  %v155 = vmul.f32 %v151, 1.442695
  %v156 = vpow.pop %v155
  %v157 = vmul.f32 %v152, 1.442695
  %v158 = vpow.pop %v157
  %v159 = vmul.f32 %v153, 1.442695
  %v160 = vpow.pop %v159
  %v161 = vmul.f32 %v154, 1.442695
  %v162 = vpow.pop %v161
  %v163 = vadd.f32 %v156, 1.0
  %v164 = vadd.f32 %v158, 1.0
  %v165 = vadd.f32 %v160, 1.0
  %v166 = vadd.f32 %v162, 1.0
  %v167 = vrcp.pop %v163
  %v168 = vrcp.pop %v164
  %v169 = vrcp.pop %v165
  %v170 = vrcp.pop %v166
  %v171 = vmul.f32 %v137, %v167
  %v172 = vmul.f32 %v140, %v168
  %v173 = vmul.f32 %v145, %v169
  %v174 = vmul.f32 %v148, %v170
  %v175 = vpack.c.bf16 %v172, %v171
  %v176 = vpack.c.bf16 %v174, %v173
  %v179 = vunpack.c.l.b16 %v175
  %v180 = vunpack.c.h.b16 %v175
  %v181 = vunpack.c.l.b16 %v176
  %v182 = vunpack.c.h.b16 %v176
  %v183 = vpack.c.b16 %v179, %v179
  %v184 = vpack.c.b16 %v180, %v180
  %v185 = vpack.c.b16 %v181, %v181
  %v186 = vpack.c.b16 %v182, %v182
  %191 = vst [vmem:[%s3] sm:$0xf] %v183
  %192 = vst [vmem:[%s3 + $0x4] sm:$0xf] %v184
  %193 = vst [vmem:[%s3 + $0x8] sm:$0xf] %v185
  %194 = vst [vmem:[%s3 + $0xc] sm:$0xf] %v186
  // Predicated region
  $region14: #{_lambda_.16} parent=0 // pred_check
    _
  $region15: #{_lambda_.16} parent=0 // pred_check_branch
    %196 = sbr.rel (0) target = $region17
  $region16: #{_lambda_.16} parent=0 // pred_region
    _
  $region17: #{_lambda_.16} parent=0 // pred_fallthru
    _
  // Predicated region
  $region18: #{_lambda_.16} parent=0 // pred_check
    _
  $region19: #{_lambda_.16} parent=0 // pred_check_branch
    %198 = sbr.rel (0) target = $region21
  $region20: #{_lambda_.16} parent=0 // pred_region
    _
  $region21: #{_lambda_.16} parent=0 // pred_fallthru
    _

// kernel: _lambda_.18
$region0: #{_lambda_.18}
  #allocation0 [shape = 'u32[]', space=smem, size = 0x4, offset = 0x4, fixed_abs, tag = 'smem constant byte address 0x4 - core index']
  #allocation1 [shape = 'u32[144,128]{1,0:T(1,128)}', space=vmem, size = 0x12000, scoped, tag = 'internal scratch']
  %s0 = inlined_call_operand.vmem [shape: bf16[32,128], index: 0, kind: input, shape index: {}]
  %s1 = inlined_call_operand.vmem [shape: bf16[32,128], index: 1, kind: input, shape index: {}]
  %s2 = inlined_call_operand.vmem [shape: bf16[128,256], index: 2, kind: input, shape index: {}]
  %s3 = inlined_call_operand.vmem [shape: bf16[128,256], index: 3, kind: input, shape index: {}]
  %s4 = inlined_call_operand.vmem [shape: f32[1,256], index: 4, kind: input, shape index: {}]
  %s5 = inlined_call_operand.vmem [shape: bf16[256,128], index: 5, kind: input, shape index: {}]
  %s6 = inlined_call_operand.vmem [shape: f32[1,128], index: 6, kind: input, shape index: {}]
  %s7 = inlined_call_operand.vmem [shape: bf16[32,128], index: 7, kind: output, shape index: {}]
  %s8 = sld [smem:[#allocation0]]
  $region38: #{_lambda_.18} parent=0
    _
  %s10 = ssub.s32 1, %s8
  %s11 = scalar_select 0, %s10, %s8
  // Predicated region
  $region2: #{_lambda_.18} parent=0 // pred_check
    _
  $region3: #{_lambda_.18} parent=0 // pred_check_branch
    %13 = sbr.rel (0) target = $region5
  $region4: #{_lambda_.18} parent=0 // pred_region
    _
  $region5: #{_lambda_.18} parent=0 // pred_fallthru
    _
  // Predicated region
  $region6: #{_lambda_.18} parent=0 // pred_check
    _
  $region7: #{_lambda_.18} parent=0 // pred_check_branch
    %15 = sbr.rel (0) target = $region9
  $region8: #{_lambda_.18} parent=0 // pred_region
    _
  $region9: #{_lambda_.18} parent=0 // pred_fallthru
    _
  // Predicated region
  $region10: #{_lambda_.18} parent=0 // pred_check
    _
  $region11: #{_lambda_.18} parent=0 // pred_check_branch
    %17 = sbr.rel (0) target = $region13
  $region12: #{_lambda_.18} parent=0 // pred_region
    _
  $region13: #{_lambda_.18} parent=0 // pred_fallthru
    _
  // Predicated region
  $region14: #{_lambda_.18} parent=0 // pred_check
    _
  $region15: #{_lambda_.18} parent=0 // pred_check_branch
    %19 = sbr.rel (0) target = $region17
  $region16: #{_lambda_.18} parent=0 // pred_region
    _
  $region17: #{_lambda_.18} parent=0 // pred_fallthru
    _
  // Predicated region
  $region18: #{_lambda_.18} parent=0 // pred_check
    _
  $region19: #{_lambda_.18} parent=0 // pred_check_branch
    %21 = sbr.rel (0) target = $region21
  $region20: #{_lambda_.18} parent=0 // pred_region
    _
  $region21: #{_lambda_.18} parent=0 // pred_fallthru
    _
  // Predicated region
  $region22: #{_lambda_.18} parent=0 // pred_check
    _
  $region23: #{_lambda_.18} parent=0 // pred_check_branch
    %23 = sbr.rel (0) target = $region25
  $region24: #{_lambda_.18} parent=0 // pred_region
    _
  $region25: #{_lambda_.18} parent=0 // pred_fallthru
    _
  // Predicated region
  $region26: #{_lambda_.18} parent=0 // pred_check
    _
  $region27: #{_lambda_.18} parent=0 // pred_check_branch
    %25 = sbr.rel (0) target = $region29
  $region28: #{_lambda_.18} parent=0 // pred_region
    _
  $region29: #{_lambda_.18} parent=0 // pred_fallthru
    _
  %v27 = vld [vmem:[%s0] sm:$0xf]
  %v28 = vld [vmem:[%s0 + $0x4] sm:$0xf]
  %v29 = vld [vmem:[%s0 + $0x8] sm:$0xf]
  %v30 = vld [vmem:[%s0 + $0xc] sm:$0xf]
  %v31 = vld [vmem:[%s2] sm:$0xff]
  %v32 = vld [vmem:[%s2 + $0x8] sm:$0xff]
  %v33 = vld [vmem:[%s2 + $0x10] sm:$0xff]
  %v34 = vld [vmem:[%s2 + $0x18] sm:$0xff]
  %v35 = vld [vmem:[%s2 + $0x20] sm:$0xff]
  %v36 = vld [vmem:[%s2 + $0x28] sm:$0xff]
  %v37 = vld [vmem:[%s2 + $0x30] sm:$0xff]
  %v38 = vld [vmem:[%s2 + $0x38] sm:$0xff]
  %v39 = vld [vmem:[%s2 + $0x40] sm:$0xff]
  %v40 = vld [vmem:[%s2 + $0x48] sm:$0xff]
  %v41 = vld [vmem:[%s2 + $0x50] sm:$0xff]
  %v42 = vld [vmem:[%s2 + $0x58] sm:$0xff]
  %v43 = vld [vmem:[%s2 + $0x60] sm:$0xff]
  %v44 = vld [vmem:[%s2 + $0x68] sm:$0xff]
  %v45 = vld [vmem:[%s2 + $0x70] sm:$0xff]
  %v46 = vld [vmem:[%s2 + $0x78] sm:$0xff]
  %v47 = vld [vmem:[%s1] sm:$0xf]
  %v48 = vld [vmem:[%s1 + $0x4] sm:$0xf]
  %v49 = vld [vmem:[%s1 + $0x8] sm:$0xf]
  %v50 = vld [vmem:[%s1 + $0xc] sm:$0xf]
  %v51 = vld [vmem:[%s3] sm:$0xff]
  %v52 = vld [vmem:[%s3 + $0x8] sm:$0xff]
  %v53 = vld [vmem:[%s3 + $0x10] sm:$0xff]
  %v54 = vld [vmem:[%s3 + $0x18] sm:$0xff]
  %v55 = vld [vmem:[%s3 + $0x20] sm:$0xff]
  %v56 = vld [vmem:[%s3 + $0x28] sm:$0xff]
  %v57 = vld [vmem:[%s3 + $0x30] sm:$0xff]
  %v58 = vld [vmem:[%s3 + $0x38] sm:$0xff]
  %v59 = vld [vmem:[%s3 + $0x40] sm:$0xff]
  %v60 = vld [vmem:[%s3 + $0x48] sm:$0xff]
  %v61 = vld [vmem:[%s3 + $0x50] sm:$0xff]
  %v62 = vld [vmem:[%s3 + $0x58] sm:$0xff]
  %v63 = vld [vmem:[%s3 + $0x60] sm:$0xff]
  %v64 = vld [vmem:[%s3 + $0x68] sm:$0xff]
  %v65 = vld [vmem:[%s3 + $0x70] sm:$0xff]
  %v66 = vld [vmem:[%s3 + $0x78] sm:$0xff]
  %v71 = vunpack.c.l.b16 %v47
  %v72 = vunpack.c.l.b16 %v48
  %v73 = vunpack.c.l.b16 %v49
  %v74 = vunpack.c.l.b16 %v50
  %v75 = vpack.c.b16 %v72, %v71
  %v76 = vpack.c.b16 %v74, %v73
  %v95 = vunpack.c.l.b16 %v51
  %v96 = vunpack.c.h.b16 %v51
  %v97 = vunpack.c.l.b16 %v52
  %v98 = vunpack.c.h.b16 %v52
  %v99 = vunpack.c.l.b16 %v53
  %v100 = vunpack.c.h.b16 %v53
  %v101 = vunpack.c.l.b16 %v54
  %v102 = vunpack.c.h.b16 %v54
  %v103 = vunpack.c.l.b16 %v55
  %v104 = vunpack.c.h.b16 %v55
  %v105 = vunpack.c.l.b16 %v56
  %v106 = vunpack.c.h.b16 %v56
  %v107 = vunpack.c.l.b16 %v57
  %v108 = vunpack.c.h.b16 %v57
  %v109 = vunpack.c.l.b16 %v58
  %v110 = vunpack.c.h.b16 %v58
  %v111 = vunpack.c.l.b16 %v59
  %v112 = vunpack.c.h.b16 %v59
  %v113 = vunpack.c.l.b16 %v60
  %v114 = vunpack.c.h.b16 %v60
  %v115 = vunpack.c.l.b16 %v61
  %v116 = vunpack.c.h.b16 %v61
  %v117 = vunpack.c.l.b16 %v62
  %v118 = vunpack.c.h.b16 %v62
  %v119 = vunpack.c.l.b16 %v63
  %v120 = vunpack.c.h.b16 %v63
  %v121 = vunpack.c.l.b16 %v64
  %v122 = vunpack.c.h.b16 %v64
  %v123 = vunpack.c.l.b16 %v65
  %v124 = vunpack.c.h.b16 %v65
  %v125 = vunpack.c.l.b16 %v66
  %v126 = vunpack.c.h.b16 %v66
  %v127 = vpack.c.b16 %v97, %v95
  %v128 = vpack.c.b16 %v98, %v96
  %v129 = vpack.c.b16 %v101, %v99
  %v130 = vpack.c.b16 %v102, %v100
  %v131 = vpack.c.b16 %v105, %v103
  %v132 = vpack.c.b16 %v106, %v104
  %v133 = vpack.c.b16 %v109, %v107
  %v134 = vpack.c.b16 %v110, %v108
  %v135 = vpack.c.b16 %v113, %v111
  %v136 = vpack.c.b16 %v114, %v112
  %v137 = vpack.c.b16 %v117, %v115
  %v138 = vpack.c.b16 %v118, %v116
  %v139 = vpack.c.b16 %v121, %v119
  %v140 = vpack.c.b16 %v122, %v120
  %v141 = vpack.c.b16 %v125, %v123
  %v142 = vpack.c.b16 %v126, %v124
  %159 = vmatprep.subr.bf16.mxu0 %v142
  %160 = vmatpush1.bf16.msra.mxu0 %v141
  %161 = vmatprep.subr.bf16.mxu0 %v140
  %162 = vmatpush1.bf16.msra.mxu0 %v139
  %163 = vmatprep.subr.bf16.mxu0 %v138
  %164 = vmatpush1.bf16.msra.mxu0 %v137
  %165 = vmatprep.subr.bf16.mxu0 %v136
  %166 = vmatpush1.bf16.msra.mxu0 %v135
  %167 = vmatprep.subr.bf16.mxu0 %v134
  %168 = vmatpush1.bf16.msra.mxu0 %v133
  %169 = vmatprep.subr.bf16.mxu0 %v132
  %170 = vmatpush1.bf16.msra.mxu0 %v131
  %171 = vmatprep.subr.bf16.mxu0 %v130
  %172 = vmatpush1.bf16.msra.mxu0 %v129
  %173 = vmatprep.subr.bf16.mxu0 %v128
  %174 = vmatpush1.bf16.msra.mxu0 %v127
  %175 = vmatprep.subr.bf16.mxu0 0
  %176 = vmatpush2.bf16.msra.mxu0 0
  %177 = vmatprep.subr.bf16.mxu0 0
  %178 = vmatpush2.bf16.msra.mxu0 0
  %179 = vmatprep.subr.bf16.mxu0 0
  %180 = vmatpush2.bf16.msra.mxu0 0
  %181 = vmatprep.subr.bf16.mxu0 0
  %182 = vmatpush2.bf16.msra.mxu0 0
  %183 = vmatprep.subr.bf16.mxu0 0
  %184 = vmatpush2.bf16.msra.mxu0 0
  %185 = vmatprep.subr.bf16.mxu0 0
  %186 = vmatpush2.bf16.msra.mxu0 0
  %187 = vmatprep.subr.bf16.mxu0 0
  %188 = vmatpush2.bf16.msra.mxu0 0
  %189 = vmatprep.subr.bf16.mxu0 0
  %190 = vmatpush2.bf16.msra.mxu0 0
  %191 = vmatprep.mubr.bf16.mxu0 0
  %192 = vmatmul.mubr.bf16.gmra.mxu0 %v75
  %v193 = vpop.f32.mrf.mxu0
  %v194 = vadd.f32 0.0, %v193
  %v195 = vpop.f32.mrf.mxu0
  %v196 = vadd.f32 0.0, %v195
  %v197 = vpop.f32.mrf.mxu0
  %v198 = vadd.f32 0.0, %v197
  %v199 = vpop.f32.mrf.mxu0
  %v200 = vadd.f32 0.0, %v199
  %201 = vmatprep.mubr.bf16.mxu0 0
  %202 = vmatmul.mubr.bf16.gmra.mxu0 %v76
  %v203 = vpop.f32.mrf.mxu0
  %v204 = vadd.f32 0.0, %v203
  %v205 = vpop.f32.mrf.mxu0
  %v206 = vadd.f32 0.0, %v205
  %v207 = vpop.f32.mrf.mxu0
  %v208 = vadd.f32 0.0, %v207
  %v209 = vpop.f32.mrf.mxu0
  %v210 = vadd.f32 0.0, %v209
  %211 = vdwg.mxu0
  %v216 = vunpack.c.l.b16 %v27
  %v217 = vunpack.c.l.b16 %v28
  %v218 = vunpack.c.l.b16 %v29
  %v219 = vunpack.c.l.b16 %v30
  %v220 = vpack.c.b16 %v217, %v216
  %v221 = vpack.c.b16 %v219, %v218
  %v240 = vunpack.c.l.b16 %v31
  %v241 = vunpack.c.h.b16 %v31
  %v242 = vunpack.c.l.b16 %v32
  %v243 = vunpack.c.h.b16 %v32
  %v244 = vunpack.c.l.b16 %v33
  %v245 = vunpack.c.h.b16 %v33
  %v246 = vunpack.c.l.b16 %v34
  %v247 = vunpack.c.h.b16 %v34
  %v248 = vunpack.c.l.b16 %v35
  %v249 = vunpack.c.h.b16 %v35
  %v250 = vunpack.c.l.b16 %v36
  %v251 = vunpack.c.h.b16 %v36
  %v252 = vunpack.c.l.b16 %v37
  %v253 = vunpack.c.h.b16 %v37
  %v254 = vunpack.c.l.b16 %v38
  %v255 = vunpack.c.h.b16 %v38
  %v256 = vunpack.c.l.b16 %v39
  %v257 = vunpack.c.h.b16 %v39
  %v258 = vunpack.c.l.b16 %v40
  %v259 = vunpack.c.h.b16 %v40
  %v260 = vunpack.c.l.b16 %v41
  %v261 = vunpack.c.h.b16 %v41
  %v262 = vunpack.c.l.b16 %v42
  %v263 = vunpack.c.h.b16 %v42
  %v264 = vunpack.c.l.b16 %v43
  %v265 = vunpack.c.h.b16 %v43
  %v266 = vunpack.c.l.b16 %v44
  %v267 = vunpack.c.h.b16 %v44
  %v268 = vunpack.c.l.b16 %v45
  %v269 = vunpack.c.h.b16 %v45
  %v270 = vunpack.c.l.b16 %v46
  %v271 = vunpack.c.h.b16 %v46
  %v272 = vpack.c.b16 %v242, %v240
  %v273 = vpack.c.b16 %v243, %v241
  %v274 = vpack.c.b16 %v246, %v244
  %v275 = vpack.c.b16 %v247, %v245
  %v276 = vpack.c.b16 %v250, %v248
  %v277 = vpack.c.b16 %v251, %v249
  %v278 = vpack.c.b16 %v254, %v252
  %v279 = vpack.c.b16 %v255, %v253
  %v280 = vpack.c.b16 %v258, %v256
  %v281 = vpack.c.b16 %v259, %v257
  %v282 = vpack.c.b16 %v262, %v260
  %v283 = vpack.c.b16 %v263, %v261
  %v284 = vpack.c.b16 %v266, %v264
  %v285 = vpack.c.b16 %v267, %v265
  %v286 = vpack.c.b16 %v270, %v268
  %v287 = vpack.c.b16 %v271, %v269
  %304 = vmatprep.subr.bf16.mxu0 %v287
  %305 = vmatpush1.bf16.msra.mxu0 %v286
  %306 = vmatprep.subr.bf16.mxu0 %v285
  %307 = vmatpush1.bf16.msra.mxu0 %v284
  %308 = vmatprep.subr.bf16.mxu0 %v283
  %309 = vmatpush1.bf16.msra.mxu0 %v282
  %310 = vmatprep.subr.bf16.mxu0 %v281
  %311 = vmatpush1.bf16.msra.mxu0 %v280
  %312 = vmatprep.subr.bf16.mxu0 %v279
  %313 = vmatpush1.bf16.msra.mxu0 %v278
  %314 = vmatprep.subr.bf16.mxu0 %v277
  %315 = vmatpush1.bf16.msra.mxu0 %v276
  %316 = vmatprep.subr.bf16.mxu0 %v275
  %317 = vmatpush1.bf16.msra.mxu0 %v274
  %318 = vmatprep.subr.bf16.mxu0 %v273
  %319 = vmatpush1.bf16.msra.mxu0 %v272
  %320 = vmatprep.subr.bf16.mxu0 0
  %321 = vmatpush2.bf16.msra.mxu0 0
  %322 = vmatprep.subr.bf16.mxu0 0
  %323 = vmatpush2.bf16.msra.mxu0 0
  %324 = vmatprep.subr.bf16.mxu0 0
  %325 = vmatpush2.bf16.msra.mxu0 0
  %326 = vmatprep.subr.bf16.mxu0 0
  %327 = vmatpush2.bf16.msra.mxu0 0
  %328 = vmatprep.subr.bf16.mxu0 0
  %329 = vmatpush2.bf16.msra.mxu0 0
  %330 = vmatprep.subr.bf16.mxu0 0
  %331 = vmatpush2.bf16.msra.mxu0 0
  %332 = vmatprep.subr.bf16.mxu0 0
  %333 = vmatpush2.bf16.msra.mxu0 0
  %334 = vmatprep.subr.bf16.mxu0 0
  %335 = vmatpush2.bf16.msra.mxu0 0
  %336 = vmatprep.mubr.bf16.mxu0 0
  %337 = vmatmul.mubr.bf16.gmra.mxu0 %v220
  %v338 = vpop.f32.mrf.mxu0
  %v339 = vadd.f32 %v194, %v338
  %v340 = vpop.f32.mrf.mxu0
  %v341 = vadd.f32 %v196, %v340
  %v342 = vpop.f32.mrf.mxu0
  %v343 = vadd.f32 %v198, %v342
  %v344 = vpop.f32.mrf.mxu0
  %v345 = vadd.f32 %v200, %v344
  %346 = vmatprep.mubr.bf16.mxu0 0
  %347 = vmatmul.mubr.bf16.gmra.mxu0 %v221
  %v348 = vpop.f32.mrf.mxu0
  %v349 = vadd.f32 %v204, %v348
  %v350 = vpop.f32.mrf.mxu0
  %v351 = vadd.f32 %v206, %v350
  %v352 = vpop.f32.mrf.mxu0
  %v353 = vadd.f32 %v208, %v352
  %v354 = vpop.f32.mrf.mxu0
  %v355 = vadd.f32 %v210, %v354
  %356 = vdwg.mxu0
  %v357 = vld [vmem:[%s4] sm:$0x3]
  %v359 = vlaneseq
  %v360 = vshrl.u32 %v359, 7
  %v361 = vsub.s32 0, %v360
  %v362 = vrot.slane %v357, %v361
  %v363 = vlaneseq
  %v364 = vshrl.u32 %v363, 7
  %v365 = vsub.s32 1, %v364
  %v366 = vrot.slane %v357, %v365
  %v369 = vadd.f32 %v339, %v362
  %v370 = vadd.f32 %v341, %v366
  %v371 = vadd.f32 %v343, %v362
  %v372 = vadd.f32 %v345, %v366
  %v373 = vadd.f32 %v349, %v362
  %v374 = vadd.f32 %v351, %v366
  %v375 = vadd.f32 %v353, %v362
  %v376 = vadd.f32 %v355, %v366
  %v377 = vsub.f32 0.0, %v369
  %v378 = vsub.f32 0.0, %v370
  %v379 = vsub.f32 0.0, %v371
  %v380 = vsub.f32 0.0, %v372
  %v381 = vsub.f32 0.0, %v373
  %v382 = vsub.f32 0.0, %v374
  %v383 = vsub.f32 0.0, %v375
  %v384 = vsub.f32 0.0, %v376
  %v385 = vmul.f32 %v377, 1.442695
  %v386 = vpow.pop %v385
  %v387 = vmul.f32 %v378, 1.442695
  %v388 = vpow.pop %v387
  %v389 = vmul.f32 %v379, 1.442695
  %v390 = vpow.pop %v389
  %v391 = vmul.f32 %v380, 1.442695
  %v392 = vpow.pop %v391
  %v393 = vmul.f32 %v381, 1.442695
  %v394 = vpow.pop %v393
  %v395 = vmul.f32 %v382, 1.442695
  %v396 = vpow.pop %v395
  %v397 = vmul.f32 %v383, 1.442695
  %v398 = vpow.pop %v397
  %v399 = vmul.f32 %v384, 1.442695
  %v400 = vpow.pop %v399
  %v401 = vadd.f32 %v386, 1.0
  %v402 = vadd.f32 %v388, 1.0
  %v403 = vadd.f32 %v390, 1.0
  %v404 = vadd.f32 %v392, 1.0
  %v405 = vadd.f32 %v394, 1.0
  %v406 = vadd.f32 %v396, 1.0
  %v407 = vadd.f32 %v398, 1.0
  %v408 = vadd.f32 %v400, 1.0
  %v409 = vrcp.pop %v401
  %v410 = vrcp.pop %v402
  %v411 = vrcp.pop %v403
  %v412 = vrcp.pop %v404
  %v413 = vrcp.pop %v405
  %v414 = vrcp.pop %v406
  %v415 = vrcp.pop %v407
  %v416 = vrcp.pop %v408
  %v417 = vmul.f32 %v369, %v409
  %v418 = vmul.f32 %v370, %v410
  %v419 = vmul.f32 %v371, %v411
  %v420 = vmul.f32 %v372, %v412
  %v421 = vmul.f32 %v373, %v413
  %v422 = vmul.f32 %v374, %v414
  %v423 = vmul.f32 %v375, %v415
  %v424 = vmul.f32 %v376, %v416
  %v425 = vpack.c.bf16 %v419, %v417
  %v426 = vpack.c.bf16 %v420, %v418
  %v427 = vpack.c.bf16 %v423, %v421
  %v428 = vpack.c.bf16 %v424, %v422
  %v429 = vld [vmem:[%s5] sm:$0xf]
  %v430 = vld [vmem:[%s5 + $0x4] sm:$0xf]
  %v431 = vld [vmem:[%s5 + $0x8] sm:$0xf]
  %v432 = vld [vmem:[%s5 + $0xc] sm:$0xf]
  %v433 = vld [vmem:[%s5 + $0x10] sm:$0xf]
  %v434 = vld [vmem:[%s5 + $0x14] sm:$0xf]
  %v435 = vld [vmem:[%s5 + $0x18] sm:$0xf]
  %v436 = vld [vmem:[%s5 + $0x1c] sm:$0xf]
  %v437 = vld [vmem:[%s5 + $0x20] sm:$0xf]
  %v438 = vld [vmem:[%s5 + $0x24] sm:$0xf]
  %v439 = vld [vmem:[%s5 + $0x28] sm:$0xf]
  %v440 = vld [vmem:[%s5 + $0x2c] sm:$0xf]
  %v441 = vld [vmem:[%s5 + $0x30] sm:$0xf]
  %v442 = vld [vmem:[%s5 + $0x34] sm:$0xf]
  %v443 = vld [vmem:[%s5 + $0x38] sm:$0xf]
  %v444 = vld [vmem:[%s5 + $0x3c] sm:$0xf]
  %v445 = vld [vmem:[%s5 + $0x40] sm:$0xf]
  %v446 = vld [vmem:[%s5 + $0x44] sm:$0xf]
  %v447 = vld [vmem:[%s5 + $0x48] sm:$0xf]
  %v448 = vld [vmem:[%s5 + $0x4c] sm:$0xf]
  %v449 = vld [vmem:[%s5 + $0x50] sm:$0xf]
  %v450 = vld [vmem:[%s5 + $0x54] sm:$0xf]
  %v451 = vld [vmem:[%s5 + $0x58] sm:$0xf]
  %v452 = vld [vmem:[%s5 + $0x5c] sm:$0xf]
  %v453 = vld [vmem:[%s5 + $0x60] sm:$0xf]
  %v454 = vld [vmem:[%s5 + $0x64] sm:$0xf]
  %v455 = vld [vmem:[%s5 + $0x68] sm:$0xf]
  %v456 = vld [vmem:[%s5 + $0x6c] sm:$0xf]
  %v457 = vld [vmem:[%s5 + $0x70] sm:$0xf]
  %v458 = vld [vmem:[%s5 + $0x74] sm:$0xf]
  %v459 = vld [vmem:[%s5 + $0x78] sm:$0xf]
  %v460 = vld [vmem:[%s5 + $0x7c] sm:$0xf]
  %v461 = vld [vmem:[%s6] sm:$0x1]
  %v463 = vlaneseq
  %v464 = vshrl.u32 %v463, 7
  %v465 = vsub.s32 0, %v464
  %v466 = vrot.slane %v461, %v465
  %v500 = vunpack.c.l.b16 %v429
  %v501 = vunpack.c.l.b16 %v430
  %v502 = vunpack.c.l.b16 %v431
  %v503 = vunpack.c.l.b16 %v432
  %v504 = vunpack.c.l.b16 %v433
  %v505 = vunpack.c.l.b16 %v434
  %v506 = vunpack.c.l.b16 %v435
  %v507 = vunpack.c.l.b16 %v436
  %v508 = vunpack.c.l.b16 %v437
  %v509 = vunpack.c.l.b16 %v438
  %v510 = vunpack.c.l.b16 %v439
  %v511 = vunpack.c.l.b16 %v440
  %v512 = vunpack.c.l.b16 %v441
  %v513 = vunpack.c.l.b16 %v442
  %v514 = vunpack.c.l.b16 %v443
  %v515 = vunpack.c.l.b16 %v444
  %v516 = vunpack.c.l.b16 %v445
  %v517 = vunpack.c.l.b16 %v446
  %v518 = vunpack.c.l.b16 %v447
  %v519 = vunpack.c.l.b16 %v448
  %v520 = vunpack.c.l.b16 %v449
  %v521 = vunpack.c.l.b16 %v450
  %v522 = vunpack.c.l.b16 %v451
  %v523 = vunpack.c.l.b16 %v452
  %v524 = vunpack.c.l.b16 %v453
  %v525 = vunpack.c.l.b16 %v454
  %v526 = vunpack.c.l.b16 %v455
  %v527 = vunpack.c.l.b16 %v456
  %v528 = vunpack.c.l.b16 %v457
  %v529 = vunpack.c.l.b16 %v458
  %v530 = vunpack.c.l.b16 %v459
  %v531 = vunpack.c.l.b16 %v460
  %v532 = vpack.c.b16 %v501, %v500
  %v533 = vpack.c.b16 %v503, %v502
  %v534 = vpack.c.b16 %v505, %v504
  %v535 = vpack.c.b16 %v507, %v506
  %v536 = vpack.c.b16 %v509, %v508
  %v537 = vpack.c.b16 %v511, %v510
  %v538 = vpack.c.b16 %v513, %v512
  %v539 = vpack.c.b16 %v515, %v514
  %v540 = vpack.c.b16 %v517, %v516
  %v541 = vpack.c.b16 %v519, %v518
  %v542 = vpack.c.b16 %v521, %v520
  %v543 = vpack.c.b16 %v523, %v522
  %v544 = vpack.c.b16 %v525, %v524
  %v545 = vpack.c.b16 %v527, %v526
  %v546 = vpack.c.b16 %v529, %v528
  %v547 = vpack.c.b16 %v531, %v530
  %564 = vmatprep.subr.bf16.mxu0 0
  %565 = vmatpush1.bf16.msra.mxu0 %v539
  %566 = vmatprep.subr.bf16.mxu0 0
  %567 = vmatpush1.bf16.msra.mxu0 %v538
  %568 = vmatprep.subr.bf16.mxu0 0
  %569 = vmatpush1.bf16.msra.mxu0 %v537
  %570 = vmatprep.subr.bf16.mxu0 0
  %571 = vmatpush1.bf16.msra.mxu0 %v536
  %572 = vmatprep.subr.bf16.mxu0 0
  %573 = vmatpush1.bf16.msra.mxu0 %v535
  %574 = vmatprep.subr.bf16.mxu0 0
  %575 = vmatpush1.bf16.msra.mxu0 %v534
  %576 = vmatprep.subr.bf16.mxu0 0
  %577 = vmatpush1.bf16.msra.mxu0 %v533
  %578 = vmatprep.subr.bf16.mxu0 0
  %579 = vmatpush1.bf16.msra.mxu0 %v532
  %580 = vmatprep.subr.bf16.mxu0 0
  %581 = vmatpush2.bf16.msra.mxu0 %v547
  %582 = vmatprep.subr.bf16.mxu0 0
  %583 = vmatpush2.bf16.msra.mxu0 %v546
  %584 = vmatprep.subr.bf16.mxu0 0
  %585 = vmatpush2.bf16.msra.mxu0 %v545
  %586 = vmatprep.subr.bf16.mxu0 0
  %587 = vmatpush2.bf16.msra.mxu0 %v544
  %588 = vmatprep.subr.bf16.mxu0 0
  %589 = vmatpush2.bf16.msra.mxu0 %v543
  %590 = vmatprep.subr.bf16.mxu0 0
  %591 = vmatpush2.bf16.msra.mxu0 %v542
  %592 = vmatprep.subr.bf16.mxu0 0
  %593 = vmatpush2.bf16.msra.mxu0 %v541
  %594 = vmatprep.subr.bf16.mxu0 0
  %595 = vmatpush2.bf16.msra.mxu0 %v540
  %596 = vmatprep.mubr.bf16.mxu0 %v426
  %597 = vmatmul.mubr.bf16.gmra.mxu0 %v425
  %v598 = vpop.f32.mrf.mxu0
  %v599 = vadd.f32 %v466, %v598
  %v600 = vpop.f32.mrf.mxu0
  %v601 = vpop.f32.mrf.mxu0
  %v602 = vadd.f32 %v466, %v601
  %v603 = vpop.f32.mrf.mxu0
  %604 = vmatprep.mubr.bf16.mxu0 %v428
  %605 = vmatmul.mubr.bf16.gmra.mxu0 %v427
  %v606 = vpop.f32.mrf.mxu0
  %v607 = vadd.f32 %v466, %v606
  %v608 = vpop.f32.mrf.mxu0
  %v609 = vpop.f32.mrf.mxu0
  %v610 = vadd.f32 %v466, %v609
  %v611 = vpop.f32.mrf.mxu0
  %612 = vdwg.mxu0
  %v613 = vsub.f32 0.0, %v599
  %v614 = vsub.f32 0.0, %v602
  %v615 = vsub.f32 0.0, %v607
  %v616 = vsub.f32 0.0, %v610
  %v617 = vmul.f32 %v613, 1.442695
  %v618 = vpow.pop %v617
  %v619 = vmul.f32 %v614, 1.442695
  %v620 = vpow.pop %v619
  %v621 = vmul.f32 %v615, 1.442695
  %v622 = vpow.pop %v621
  %v623 = vmul.f32 %v616, 1.442695
  %v624 = vpow.pop %v623
  %v625 = vadd.f32 %v618, 1.0
  %v626 = vadd.f32 %v620, 1.0
  %v627 = vadd.f32 %v622, 1.0
  %v628 = vadd.f32 %v624, 1.0
  %v629 = vrcp.pop %v625
  %v630 = vrcp.pop %v626
  %v631 = vrcp.pop %v627
  %v632 = vrcp.pop %v628
  %v633 = vmul.f32 %v599, %v629
  %v634 = vmul.f32 %v602, %v630
  %v635 = vmul.f32 %v607, %v631
  %v636 = vmul.f32 %v610, %v632
  %v637 = vpack.c.bf16 %v634, %v633
  %v638 = vpack.c.bf16 %v636, %v635
  %v641 = vunpack.c.l.b16 %v637
  %v642 = vunpack.c.h.b16 %v637
  %v643 = vunpack.c.l.b16 %v638
  %v644 = vunpack.c.h.b16 %v638
  %v645 = vpack.c.b16 %v641, %v641
  %v646 = vpack.c.b16 %v642, %v642
  %v647 = vpack.c.b16 %v643, %v643
  %v648 = vpack.c.b16 %v644, %v644
  %653 = vst [vmem:[%s7] sm:$0xf] %v645
  %654 = vst [vmem:[%s7 + $0x4] sm:$0xf] %v646
  %655 = vst [vmem:[%s7 + $0x8] sm:$0xf] %v647
  %656 = vst [vmem:[%s7 + $0xc] sm:$0xf] %v648
  // Predicated region
  $region30: #{_lambda_.18} parent=0 // pred_check
    _
  $region31: #{_lambda_.18} parent=0 // pred_check_branch
    %658 = sbr.rel (0) target = $region33
  $region32: #{_lambda_.18} parent=0 // pred_region
    _
  $region33: #{_lambda_.18} parent=0 // pred_fallthru
    _
  // Predicated region
  $region34: #{_lambda_.18} parent=0 // pred_check
    _
  $region35: #{_lambda_.18} parent=0 // pred_check_branch
    %660 = sbr.rel (0) target = $region37
  $region36: #{_lambda_.18} parent=0 // pred_region
    _
  $region37: #{_lambda_.18} parent=0 // pred_fallthru
    _

// kernel: _lambda_.17
$region0: #{_lambda_.17}
  #allocation0 [shape = 'u32[]', space=smem, size = 0x4, offset = 0x4, fixed_abs, tag = 'smem constant byte address 0x4 - core index']
  #allocation1 [shape = 'u32[144,128]{1,0:T(1,128)}', space=vmem, size = 0x12000, scoped, tag = 'internal scratch']
  %s0 = inlined_call_operand.vmem [shape: bf16[2,1,42,128], index: 0, kind: input, shape index: {}]
  %s1 = inlined_call_operand.vmem [shape: bf16[9,128,128], index: 1, kind: input, shape index: {}]
  %s2 = inlined_call_operand.vmem [shape: f32[1,128], index: 2, kind: input, shape index: {}]
  %s3 = inlined_call_operand.vmem [shape: bf16[2,1,24,128], index: 3, kind: output, shape index: {}]
  %s4 = sld [smem:[#allocation0]]
  $region45: #{_lambda_.17} parent=0
    _
  %s6 = ssub.s32 1, %s4
  %s7 = scalar_select 0, %s6, %s4
  loop: start=0, step=1, limit=4
  $region2: #{_lambda_.17} parent=0 // loop_pre_header
    _
  $region3: #{_lambda_.17} parent=0 // loop_header
    %s9 = sphi 0, %s13
    %p10 = scmp.ge.s32.totalorder %s9, 4
    %s16 = sphi 0, %s28
    %s17 = sphi 0, %s24
    %s18 = sphi 0, %s16
    %s19 = sphi 0, %s17
    %s20 = sphi 0, %s18
    %s21 = sphi 0, %s19
    %s33 = sphi 0, %s35
    %s36 = sphi 0, %s33
    %s37 = sphi 0, %s36
    %s53 = sphi 0, %s37
    %s57 = sphi 0, %s57
    %s59 = sphi 0, %s57
    %s60 = sphi 0, %s59
    %s74 = sphi 0, %s60
    %s78 = sphi 0, %s78
    %s80 = sphi 0, %s78
    %s81 = sphi 0, %s80
    %s95 = sphi 0, %s81
    %s103 = sphi 0, %s105
    %s106 = sphi 0, %s103
    %s107 = sphi 0, %s106
    %s123 = sphi 0, %s107
  $region4: #{_lambda_.17} parent=0 // loop_header_branch
    %12 = sbr.rel (%p10) target = $region8
  $region5: #{_lambda_.17} parent=0 // loop_body
    %s14 = ssub.s32 %s9, 1
    %s15 = ssub.s32 %s9, 2
    %s22 = sadd.s32 1, %s17
    %p23 = scmp.ge.s32.totalorder %s22, 1
    %s24 = scalar_select %p23, 0, %s22
    %s25 = sadd.s32 1, %s16
    %s26 = scalar_select %p23, %s25, %s16
    %p27 = scmp.ge.s32.totalorder %s26, 2
    %s28 = scalar_select %p27, 0, %s26
    %s29 = ssub.s32 %s16, %s28
    %s30 = ssub.s32 %s17, %s24
    %s31 = sor.u32 %s29, %s30
    %p32 = scmp.eq.s32.totalorder %s31, 0
    %s34 = sadd.s32 %s33, 1
    %s35 = scalar_select %p32, %s33, %s34
    %p38 = pneg %p32
    %p39 = scmp.eq.s32.totalorder %s9, 1
    %p40 = por %p38, %p39
    %p41 = scmp.ne.s32.totalorder %s33, %s36
    %p42 = scmp.eq.s32.totalorder %s9, 0
    %p43 = por %p41, %p42
    %p44 = scmp.ne.s32.totalorder %s33, %s36
    %p45 = scmp.eq.s32.totalorder %s14, 1
    %p46 = por %p44, %p45
    %p47 = scmp.ne.s32.totalorder %s36, %s37
    %p48 = scmp.eq.s32.totalorder %s14, 0
    %p49 = por %p47, %p48
    %p50 = scmp.ne.s32.totalorder %s36, %s37
    %p51 = scmp.eq.s32.totalorder %s15, 1
    %p52 = por %p50, %p51
    %p54 = scmp.ne.s32.totalorder %s37, %s53
    %p55 = scmp.eq.s32.totalorder %s15, 0
    %p56 = por %p54, %p55
    %s58 = sadd.s32 %s57, 1
    %p61 = scmp.eq.s32.totalorder %s9, 1
    %p62 = scmp.ne.s32.totalorder %s57, %s59
    %p63 = scmp.eq.s32.totalorder %s9, 0
    %p64 = por %p62, %p63
    %p65 = scmp.ne.s32.totalorder %s57, %s59
    %p66 = scmp.eq.s32.totalorder %s14, 1
    %p67 = por %p65, %p66
    %p68 = scmp.ne.s32.totalorder %s59, %s60
    %p69 = scmp.eq.s32.totalorder %s14, 0
    %p70 = por %p68, %p69
    %p71 = scmp.ne.s32.totalorder %s59, %s60
    %p72 = scmp.eq.s32.totalorder %s15, 1
    %p73 = por %p71, %p72
    %p75 = scmp.ne.s32.totalorder %s60, %s74
    %p76 = scmp.eq.s32.totalorder %s15, 0
    %p77 = por %p75, %p76
    %s79 = sadd.s32 %s78, 1
    %p82 = scmp.eq.s32.totalorder %s9, 1
    %p83 = scmp.ne.s32.totalorder %s78, %s80
    %p84 = scmp.eq.s32.totalorder %s9, 0
    %p85 = por %p83, %p84
    %p86 = scmp.ne.s32.totalorder %s78, %s80
    %p87 = scmp.eq.s32.totalorder %s14, 1
    %p88 = por %p86, %p87
    %p89 = scmp.ne.s32.totalorder %s80, %s81
    %p90 = scmp.eq.s32.totalorder %s14, 0
    %p91 = por %p89, %p90
    %p92 = scmp.ne.s32.totalorder %s80, %s81
    %p93 = scmp.eq.s32.totalorder %s15, 1
    %p94 = por %p92, %p93
    %p96 = scmp.ne.s32.totalorder %s81, %s95
    %p97 = scmp.eq.s32.totalorder %s15, 0
    %p98 = por %p96, %p97
    %s99 = ssub.s32 %s16, %s28
    %s100 = ssub.s32 %s17, %s24
    %s101 = sor.u32 %s99, %s100
    %p102 = scmp.eq.s32.totalorder %s101, 0
    %s104 = sadd.s32 %s103, 1
    %s105 = scalar_select %p102, %s103, %s104
    %p108 = pneg %p102
    %p109 = scmp.eq.s32.totalorder %s9, 1
    %p110 = por %p108, %p109
    %p111 = scmp.ne.s32.totalorder %s103, %s106
    %p112 = scmp.eq.s32.totalorder %s9, 0
    %p113 = por %p111, %p112
    %p114 = scmp.ne.s32.totalorder %s103, %s106
    %p115 = scmp.eq.s32.totalorder %s14, 1
    %p116 = por %p114, %p115
    %p117 = scmp.ne.s32.totalorder %s106, %s107
    %p118 = scmp.eq.s32.totalorder %s14, 0
    %p119 = por %p117, %p118
    %p120 = scmp.ne.s32.totalorder %s106, %s107
    %p121 = scmp.eq.s32.totalorder %s15, 1
    %p122 = por %p120, %p121
    %p124 = scmp.ne.s32.totalorder %s107, %s123
    %p125 = scmp.eq.s32.totalorder %s15, 0
    %p126 = por %p124, %p125
    %p127 = scmp.le.s32.totalorder 1, %s9
    %p128 = scmp.lt.s32.totalorder %s9, 3
    %p129 = pnand %p127, %p128
    %p130 = pneg %p129
    // Predicated region
    $region9: #{_lambda_.17} parent=5 // pred_check
      _
    $region10: #{_lambda_.17} parent=5 // pred_check_branch
      %132 = sbr.rel (%p129) target = $region12
    $region11: #{_lambda_.17} parent=5 // pred_region
      %s133 = ssub.s32 %s9, 1
      // Predicated region
      $region13: #{_lambda_.17} parent=11 // pred_check
        %p134 = pneg %p70
      $region14: #{_lambda_.17} parent=11 // pred_check_branch
        %136 = sbr.rel (%p134) target = $region16
      $region15: #{_lambda_.17} parent=11 // pred_region
        _
      $region16: #{_lambda_.17} parent=11 // pred_fallthru
        _
      // Predicated region
      $region17: #{_lambda_.17} parent=11 // pred_check
        %p137 = pneg %p91
      $region18: #{_lambda_.17} parent=11 // pred_check_branch
        %139 = sbr.rel (%p137) target = $region20
      $region19: #{_lambda_.17} parent=11 // pred_region
        _
      $region20: #{_lambda_.17} parent=11 // pred_fallthru
        _
    $region12: #{_lambda_.17} parent=5 // pred_fallthru
      _
    %p140 = scmp.lt.s32.totalorder %s9, 2
    // Predicated region
    $region21: #{_lambda_.17} parent=5 // pred_check
      %p141 = pneg %p140
    $region22: #{_lambda_.17} parent=5 // pred_check_branch
      %143 = sbr.rel (%p141) target = $region24
    $region23: #{_lambda_.17} parent=5 // pred_region
      // Predicated region
      $region25: #{_lambda_.17} parent=23 // pred_check
        %p144 = pneg %p43
      $region26: #{_lambda_.17} parent=23 // pred_check_branch
        %146 = sbr.rel (%p144) target = $region28
      $region27: #{_lambda_.17} parent=23 // pred_region
        %p147 = scmp.lt.s32.totalorder %s16, 1
        %s148 = scalar_select %p147, %s16, 1
        %p149 = scmp.lt.s32.totalorder %s17, 0
        %s150 = scalar_select %p149, %s17, 0
        %s151 = smul.addr %s150, 6
        %s152 = smul.addr %s148, 6
        %s153 = sadd.s32 %s151, %s152
        %s154 = smul.addr %s153, 4
        %s155 = scalar_lea.vmem %s0, %s154
      $region28: #{_lambda_.17} parent=23 // pred_fallthru
        _
    $region24: #{_lambda_.17} parent=5 // pred_fallthru
      _
    %p156 = scmp.le.s32.totalorder 1, %s9
    %p157 = scmp.lt.s32.totalorder %s9, 3
    %p158 = pnand %p156, %p157
    %p159 = pneg %p158
    // Predicated region
    $region29: #{_lambda_.17} parent=5 // pred_check
      _
    $region30: #{_lambda_.17} parent=5 // pred_check_branch
      %161 = sbr.rel (%p158) target = $region32
    $region31: #{_lambda_.17} parent=5 // pred_region
      %s162 = ssub.s32 %s9, 1
      %p163 = scmp.lt.s32.totalorder %s18, 1
      %s164 = scalar_select %p163, %s18, 1
      %p165 = scmp.lt.s32.totalorder %s19, 0
      %s166 = scalar_select %p165, %s19, 0
      %s167 = smul.addr %s166, 6
      %s168 = smul.addr %s164, 6
      %s169 = sadd.s32 %s167, %s168
      %s170 = smul.addr %s169, 4
      %s171 = scalar_lea.vmem %s0, %s170
      %p172 = pneg %p49
      %p173 = pneg %p46
      %p174 = pneg %p70
      %p175 = pneg %p67
      %p176 = pneg %p91
      %p177 = pneg %p88
      %p178 = pneg %p119
      %p179 = pneg %p116
      %p180 = scmp.lt.s32.totalorder %s18, 1
      %s181 = scalar_select %p180, %s18, 1
      %p182 = scmp.lt.s32.totalorder %s19, 0
      %s183 = scalar_select %p182, %s19, 0
      %s184 = smul.addr %s183, 3
      %s185 = smul.addr %s181, 3
      %s186 = sadd.s32 %s184, %s185
      %s187 = smul.addr %s186, 4
      %s188 = scalar_lea.vmem %s3, %s187
      %p189 = scmp.lt.s32.totalorder %s18, 1
      %s190 = scalar_select %p189, %s18, 1
      %p191 = scmp.lt.s32.totalorder %s19, 0
      %s192 = scalar_select %p191, %s19, 0
      %s193 = smul.addr %s192, 6
      %s194 = smul.addr %s190, 6
      %s195 = sadd.s32 %s193, %s194
      %s196 = smul.addr %s195, 4
      %s197 = scalar_lea.vmem %s0, %s196
      %p198 = scmp.lt.s32.totalorder %s18, 1
      %s199 = scalar_select %p198, %s18, 1
      %p200 = scmp.lt.s32.totalorder %s19, 0
      %s201 = scalar_select %p200, %s19, 0
      %s202 = smul.addr %s201, 3
      %s203 = smul.addr %s199, 3
      %s204 = sadd.s32 %s202, %s203
      %s205 = smul.addr %s204, 4
      %s206 = scalar_lea.vmem %s3, %s205
      %v208 = vld [vmem:[%s197] sm:$0xf]
      %v209 = vld [vmem:[%s197 + $0x4] sm:$0xf]
      %v210 = vld [vmem:[%s197 + $0x8] sm:$0xf]
      %v211 = vld [vmem:[%s1] sm:$0xf]
      %v212 = vld [vmem:[%s1 + $0x4] sm:$0xf]
      %v213 = vld [vmem:[%s1 + $0x8] sm:$0xf]
      %v214 = vld [vmem:[%s1 + $0xc] sm:$0xf]
      %v215 = vld [vmem:[%s1 + $0x10] sm:$0xf]
      %v216 = vld [vmem:[%s1 + $0x14] sm:$0xf]
      %v217 = vld [vmem:[%s1 + $0x18] sm:$0xf]
      %v218 = vld [vmem:[%s1 + $0x1c] sm:$0xf]
      %v219 = vld [vmem:[%s1 + $0x20] sm:$0xf]
      %v220 = vld [vmem:[%s1 + $0x24] sm:$0xf]
      %v221 = vld [vmem:[%s1 + $0x28] sm:$0xf]
      %v222 = vld [vmem:[%s1 + $0x2c] sm:$0xf]
      %v223 = vld [vmem:[%s1 + $0x30] sm:$0xf]
      %v224 = vld [vmem:[%s1 + $0x34] sm:$0xf]
      %v225 = vld [vmem:[%s1 + $0x38] sm:$0xf]
      %v226 = vld [vmem:[%s1 + $0x3c] sm:$0xf]
      %v227 = vld [vmem:[%s197 + $0xc] sm:$0x1]
      %s228 = scalar_lea.vmem %s1, 64
      %v229 = vld [vmem:[%s228] sm:$0xf]
      %v230 = vld [vmem:[%s228 + $0x4] sm:$0xf]
      %v231 = vld [vmem:[%s228 + $0x8] sm:$0xf]
      %v232 = vld [vmem:[%s228 + $0xc] sm:$0xf]
      %v233 = vld [vmem:[%s228 + $0x10] sm:$0xf]
      %v234 = vld [vmem:[%s228 + $0x14] sm:$0xf]
      %v235 = vld [vmem:[%s228 + $0x18] sm:$0xf]
      %v236 = vld [vmem:[%s228 + $0x1c] sm:$0xf]
      %v237 = vld [vmem:[%s228 + $0x20] sm:$0xf]
      %v238 = vld [vmem:[%s228 + $0x24] sm:$0xf]
      %v239 = vld [vmem:[%s228 + $0x28] sm:$0xf]
      %v240 = vld [vmem:[%s228 + $0x2c] sm:$0xf]
      %v241 = vld [vmem:[%s228 + $0x30] sm:$0xf]
      %v242 = vld [vmem:[%s228 + $0x34] sm:$0xf]
      %v243 = vld [vmem:[%s228 + $0x38] sm:$0xf]
      %v244 = vld [vmem:[%s228 + $0x3c] sm:$0xf]
      %v249 = vunpack.c.l.b16 %v208
      %v250 = vunpack.c.l.b16 %v209
      %v251 = vunpack.c.l.b16 %v210
      %v252 = vunpack.c.l.b16 %v227
      %v253 = vpack.c.b16 %v250, %v249
      %v254 = vpack.c.b16 %v252, %v251
      %vm255 = vsmask.f32 7424
      %v257 = vshrl.u32 %v253, 16
      %v259 = vshll.u32 %v253, 16
      %v261 = vrot.slane %v259, 1
      %v262 = vor.u32 %v257, %v261
      %v264 = vshll.u32 %v254, 16
      %v266 = vrot.slane %v264, 1
      %v267 = vsel %vm255, %v262, %v266
      %v268 = vshrl.u32 %v254, 16
      %v270 = vor.u32 %v268, %v266
      %v289 = vunpack.c.l.b16 %v229
      %v290 = vunpack.c.l.b16 %v230
      %v291 = vunpack.c.l.b16 %v231
      %v292 = vunpack.c.l.b16 %v232
      %v293 = vunpack.c.l.b16 %v233
      %v294 = vunpack.c.l.b16 %v234
      %v295 = vunpack.c.l.b16 %v235
      %v296 = vunpack.c.l.b16 %v236
      %v297 = vunpack.c.l.b16 %v237
      %v298 = vunpack.c.l.b16 %v238
      %v299 = vunpack.c.l.b16 %v239
      %v300 = vunpack.c.l.b16 %v240
      %v301 = vunpack.c.l.b16 %v241
      %v302 = vunpack.c.l.b16 %v242
      %v303 = vunpack.c.l.b16 %v243
      %v304 = vunpack.c.l.b16 %v244
      %v305 = vpack.c.b16 %v290, %v289
      %v306 = vpack.c.b16 %v292, %v291
      %v307 = vpack.c.b16 %v294, %v293
      %v308 = vpack.c.b16 %v296, %v295
      %v309 = vpack.c.b16 %v298, %v297
      %v310 = vpack.c.b16 %v300, %v299
      %v311 = vpack.c.b16 %v302, %v301
      %v312 = vpack.c.b16 %v304, %v303
      %321 = vmatprep.subr.bf16.mxu0 0
      %322 = vmatpush1.bf16.msra.mxu0 %v312
      %323 = vmatprep.subr.bf16.mxu0 0
      %324 = vmatpush1.bf16.msra.mxu0 %v311
      %325 = vmatprep.subr.bf16.mxu0 0
      %326 = vmatpush1.bf16.msra.mxu0 %v310
      %327 = vmatprep.subr.bf16.mxu0 0
      %328 = vmatpush1.bf16.msra.mxu0 %v309
      %329 = vmatprep.subr.bf16.mxu0 0
      %330 = vmatpush1.bf16.msra.mxu0 %v308
      %331 = vmatprep.subr.bf16.mxu0 0
      %332 = vmatpush1.bf16.msra.mxu0 %v307
      %333 = vmatprep.subr.bf16.mxu0 0
      %334 = vmatpush1.bf16.msra.mxu0 %v306
      %335 = vmatprep.subr.bf16.mxu0 0
      %336 = vmatpush1.bf16.msra.mxu0 %v305
      %337 = vmatprep.subr.bf16.mxu0 0
      %338 = vmatpush2.bf16.msra.mxu0 0
      %339 = vmatprep.subr.bf16.mxu0 0
      %340 = vmatpush2.bf16.msra.mxu0 0
      %341 = vmatprep.subr.bf16.mxu0 0
      %342 = vmatpush2.bf16.msra.mxu0 0
      %343 = vmatprep.subr.bf16.mxu0 0
      %344 = vmatpush2.bf16.msra.mxu0 0
      %345 = vmatprep.subr.bf16.mxu0 0
      %346 = vmatpush2.bf16.msra.mxu0 0
      %347 = vmatprep.subr.bf16.mxu0 0
      %348 = vmatpush2.bf16.msra.mxu0 0
      %349 = vmatprep.subr.bf16.mxu0 0
      %350 = vmatpush2.bf16.msra.mxu0 0
      %351 = vmatprep.subr.bf16.mxu0 0
      %352 = vmatpush2.bf16.msra.mxu0 0
      %353 = vmatprep.mubr.bf16.mxu0 0
      %354 = vmatmul.mubr.bf16.gmra.mxu0 %v267
      %v355 = vpop.f32.mrf.mxu0
      %v356 = vadd.f32 0.0, %v355
      %v357 = vpop.f32.mrf.mxu0
      %v358 = vpop.f32.mrf.mxu0
      %v359 = vadd.f32 0.0, %v358
      %v360 = vpop.f32.mrf.mxu0
      %361 = vmatprep.mubr.bf16.mxu0 0
      %362 = vmatmul.mubr.bf16.gmra.mxu0 %v270
      %v363 = vpop.f32.mrf.mxu0
      %v364 = vadd.f32 0.0, %v363
      %v365 = vpop.f32.mrf.mxu0
      %v366 = vpop.f32.mrf.mxu0
      %v367 = vpop.f32.mrf.mxu0
      %368 = vdwg.mxu0
      %v369 = vpack.c.b16 %v251, %v251
      %v388 = vunpack.c.l.b16 %v211
      %v389 = vunpack.c.l.b16 %v212
      %v390 = vunpack.c.l.b16 %v213
      %v391 = vunpack.c.l.b16 %v214
      %v392 = vunpack.c.l.b16 %v215
      %v393 = vunpack.c.l.b16 %v216
      %v394 = vunpack.c.l.b16 %v217
      %v395 = vunpack.c.l.b16 %v218
      %v396 = vunpack.c.l.b16 %v219
      %v397 = vunpack.c.l.b16 %v220
      %v398 = vunpack.c.l.b16 %v221
      %v399 = vunpack.c.l.b16 %v222
      %v400 = vunpack.c.l.b16 %v223
      %v401 = vunpack.c.l.b16 %v224
      %v402 = vunpack.c.l.b16 %v225
      %v403 = vunpack.c.l.b16 %v226
      %v404 = vpack.c.b16 %v389, %v388
      %v405 = vpack.c.b16 %v391, %v390
      %v406 = vpack.c.b16 %v393, %v392
      %v407 = vpack.c.b16 %v395, %v394
      %v408 = vpack.c.b16 %v397, %v396
      %v409 = vpack.c.b16 %v399, %v398
      %v410 = vpack.c.b16 %v401, %v400
      %v411 = vpack.c.b16 %v403, %v402
      %420 = vmatprep.subr.bf16.mxu0 0
      %421 = vmatpush1.bf16.msra.mxu0 %v411
      %422 = vmatprep.subr.bf16.mxu0 0
      %423 = vmatpush1.bf16.msra.mxu0 %v410
      %424 = vmatprep.subr.bf16.mxu0 0
      %425 = vmatpush1.bf16.msra.mxu0 %v409
      %426 = vmatprep.subr.bf16.mxu0 0
      %427 = vmatpush1.bf16.msra.mxu0 %v408
      %428 = vmatprep.subr.bf16.mxu0 0
      %429 = vmatpush1.bf16.msra.mxu0 %v407
      %430 = vmatprep.subr.bf16.mxu0 0
      %431 = vmatpush1.bf16.msra.mxu0 %v406
      %432 = vmatprep.subr.bf16.mxu0 0
      %433 = vmatpush1.bf16.msra.mxu0 %v405
      %434 = vmatprep.subr.bf16.mxu0 0
      %435 = vmatpush1.bf16.msra.mxu0 %v404
      %436 = vmatprep.subr.bf16.mxu0 0
      %437 = vmatpush2.bf16.msra.mxu0 0
      %438 = vmatprep.subr.bf16.mxu0 0
      %439 = vmatpush2.bf16.msra.mxu0 0
      %440 = vmatprep.subr.bf16.mxu0 0
      %441 = vmatpush2.bf16.msra.mxu0 0
      %442 = vmatprep.subr.bf16.mxu0 0
      %443 = vmatpush2.bf16.msra.mxu0 0
      %444 = vmatprep.subr.bf16.mxu0 0
      %445 = vmatpush2.bf16.msra.mxu0 0
      %446 = vmatprep.subr.bf16.mxu0 0
      %447 = vmatpush2.bf16.msra.mxu0 0
      %448 = vmatprep.subr.bf16.mxu0 0
      %449 = vmatpush2.bf16.msra.mxu0 0
      %450 = vmatprep.subr.bf16.mxu0 0
      %451 = vmatpush2.bf16.msra.mxu0 0
      %452 = vmatprep.mubr.bf16.mxu0 0
      %453 = vmatmul.mubr.bf16.gmra.mxu0 %v253
      %v454 = vpop.f32.mrf.mxu0
      %v455 = vadd.f32 %v356, %v454
      %v456 = vpop.f32.mrf.mxu0
      %v457 = vpop.f32.mrf.mxu0
      %v458 = vadd.f32 %v359, %v457
      %v459 = vpop.f32.mrf.mxu0
      %460 = vmatprep.mubr.bf16.mxu0 0
      %461 = vmatmul.mubr.bf16.gmra.mxu0 %v369
      %v462 = vpop.f32.mrf.mxu0
      %v463 = vadd.f32 %v364, %v462
      %v464 = vpop.f32.mrf.mxu0
      %v465 = vpop.f32.mrf.mxu0
      %v466 = vpop.f32.mrf.mxu0
      %467 = vdwg.mxu0
      %v468 = vld [vmem:[%s197] sm:$0xe]
      %s469 = scalar_lea.vmem %s1, 128
      %v470 = vld [vmem:[%s469] sm:$0xf]
      %v471 = vld [vmem:[%s469 + $0x4] sm:$0xf]
      %v472 = vld [vmem:[%s469 + $0x8] sm:$0xf]
      %v473 = vld [vmem:[%s469 + $0xc] sm:$0xf]
      %v474 = vld [vmem:[%s469 + $0x10] sm:$0xf]
      %v475 = vld [vmem:[%s469 + $0x14] sm:$0xf]
      %v476 = vld [vmem:[%s469 + $0x18] sm:$0xf]
      %v477 = vld [vmem:[%s469 + $0x1c] sm:$0xf]
      %v478 = vld [vmem:[%s469 + $0x20] sm:$0xf]
      %v479 = vld [vmem:[%s469 + $0x24] sm:$0xf]
      %v480 = vld [vmem:[%s469 + $0x28] sm:$0xf]
      %v481 = vld [vmem:[%s469 + $0x2c] sm:$0xf]
      %v482 = vld [vmem:[%s469 + $0x30] sm:$0xf]
      %v483 = vld [vmem:[%s469 + $0x34] sm:$0xf]
      %v484 = vld [vmem:[%s469 + $0x38] sm:$0xf]
      %v485 = vld [vmem:[%s469 + $0x3c] sm:$0xf]
      %v487 = vunpack.c.l.b16 %v468
      %v488 = vpack.c.b16 %v250, %v487
      %vm489 = vcmask 1046528
      %v490 = vrot.slane %v488, 1
      %v491 = vrot.slane %v254, 1
      %v492 = vsel %vm489, %v490, %v491
      %v511 = vunpack.c.l.b16 %v470
      %v512 = vunpack.c.l.b16 %v471
      %v513 = vunpack.c.l.b16 %v472
      %v514 = vunpack.c.l.b16 %v473
      %v515 = vunpack.c.l.b16 %v474
      %v516 = vunpack.c.l.b16 %v475
      %v517 = vunpack.c.l.b16 %v476
      %v518 = vunpack.c.l.b16 %v477
      %v519 = vunpack.c.l.b16 %v478
      %v520 = vunpack.c.l.b16 %v479
      %v521 = vunpack.c.l.b16 %v480
      %v522 = vunpack.c.l.b16 %v481
      %v523 = vunpack.c.l.b16 %v482
      %v524 = vunpack.c.l.b16 %v483
      %v525 = vunpack.c.l.b16 %v484
      %v526 = vunpack.c.l.b16 %v485
      %v527 = vpack.c.b16 %v512, %v511
      %v528 = vpack.c.b16 %v514, %v513
      %v529 = vpack.c.b16 %v516, %v515
      %v530 = vpack.c.b16 %v518, %v517
      %v531 = vpack.c.b16 %v520, %v519
      %v532 = vpack.c.b16 %v522, %v521
      %v533 = vpack.c.b16 %v524, %v523
      %v534 = vpack.c.b16 %v526, %v525
      %543 = vmatprep.subr.bf16.mxu0 0
      %544 = vmatpush1.bf16.msra.mxu0 %v534
      %545 = vmatprep.subr.bf16.mxu0 0
      %546 = vmatpush1.bf16.msra.mxu0 %v533
      %547 = vmatprep.subr.bf16.mxu0 0
      %548 = vmatpush1.bf16.msra.mxu0 %v532
      %549 = vmatprep.subr.bf16.mxu0 0
      %550 = vmatpush1.bf16.msra.mxu0 %v531
      %551 = vmatprep.subr.bf16.mxu0 0
      %552 = vmatpush1.bf16.msra.mxu0 %v530
      %553 = vmatprep.subr.bf16.mxu0 0
      %554 = vmatpush1.bf16.msra.mxu0 %v529
      %555 = vmatprep.subr.bf16.mxu0 0
      %556 = vmatpush1.bf16.msra.mxu0 %v528
      %557 = vmatprep.subr.bf16.mxu0 0
      %558 = vmatpush1.bf16.msra.mxu0 %v527
      %559 = vmatprep.subr.bf16.mxu0 0
      %560 = vmatpush2.bf16.msra.mxu0 0
      %561 = vmatprep.subr.bf16.mxu0 0
      %562 = vmatpush2.bf16.msra.mxu0 0
      %563 = vmatprep.subr.bf16.mxu0 0
      %564 = vmatpush2.bf16.msra.mxu0 0
      %565 = vmatprep.subr.bf16.mxu0 0
      %566 = vmatpush2.bf16.msra.mxu0 0
      %567 = vmatprep.subr.bf16.mxu0 0
      %568 = vmatpush2.bf16.msra.mxu0 0
      %569 = vmatprep.subr.bf16.mxu0 0
      %570 = vmatpush2.bf16.msra.mxu0 0
      %571 = vmatprep.subr.bf16.mxu0 0
      %572 = vmatpush2.bf16.msra.mxu0 0
      %573 = vmatprep.subr.bf16.mxu0 0
      %574 = vmatpush2.bf16.msra.mxu0 0
      %575 = vmatprep.mubr.bf16.mxu0 0
      %576 = vmatmul.mubr.bf16.gmra.mxu0 %v492
      %v577 = vpop.f32.mrf.mxu0
      %v578 = vadd.f32 0.0, %v577
      %v579 = vpop.f32.mrf.mxu0
      %v580 = vpop.f32.mrf.mxu0
      %v581 = vadd.f32 0.0, %v580
      %v582 = vpop.f32.mrf.mxu0
      %583 = vmatprep.mubr.bf16.mxu0 0
      %584 = vmatmul.mubr.bf16.gmra.mxu0 %v491
      %v585 = vpop.f32.mrf.mxu0
      %v586 = vadd.f32 0.0, %v585
      %v587 = vpop.f32.mrf.mxu0
      %v588 = vpop.f32.mrf.mxu0
      %v589 = vpop.f32.mrf.mxu0
      %590 = vdwg.mxu0
      %v591 = vadd.f32 %v455, %v578
      %v592 = vadd.f32 %v458, %v581
      %v593 = vadd.f32 %v463, %v586
      %v594 = vld [vmem:[%s197] sm:$0x8]
      %v595 = vld [vmem:[%s197 + $0xc] sm:$0x7]
      %s596 = scalar_lea.vmem %s1, 192
      %v597 = vld [vmem:[%s596] sm:$0xf]
      %v598 = vld [vmem:[%s596 + $0x4] sm:$0xf]
      %v599 = vld [vmem:[%s596 + $0x8] sm:$0xf]
      %v600 = vld [vmem:[%s596 + $0xc] sm:$0xf]
      %v601 = vld [vmem:[%s596 + $0x10] sm:$0xf]
      %v602 = vld [vmem:[%s596 + $0x14] sm:$0xf]
      %v603 = vld [vmem:[%s596 + $0x18] sm:$0xf]
      %v604 = vld [vmem:[%s596 + $0x1c] sm:$0xf]
      %v605 = vld [vmem:[%s596 + $0x20] sm:$0xf]
      %v606 = vld [vmem:[%s596 + $0x24] sm:$0xf]
      %v607 = vld [vmem:[%s596 + $0x28] sm:$0xf]
      %v608 = vld [vmem:[%s596 + $0x2c] sm:$0xf]
      %v609 = vld [vmem:[%s596 + $0x30] sm:$0xf]
      %v610 = vld [vmem:[%s596 + $0x34] sm:$0xf]
      %v611 = vld [vmem:[%s596 + $0x38] sm:$0xf]
      %v612 = vld [vmem:[%s596 + $0x3c] sm:$0xf]
      %v615 = vunpack.c.l.b16 %v594
      %v616 = vunpack.c.l.b16 %v595
      %v617 = vpack.c.b16 %v250, %v615
      %v618 = vpack.c.b16 %v616, %v251
      %vm619 = vcmask 1044480
      %v620 = vrot.slane %v617, 3
      %v621 = vrot.slane %v618, 3
      %v622 = vsel %vm619, %v620, %v621
      %v641 = vunpack.c.l.b16 %v597
      %v642 = vunpack.c.l.b16 %v598
      %v643 = vunpack.c.l.b16 %v599
      %v644 = vunpack.c.l.b16 %v600
      %v645 = vunpack.c.l.b16 %v601
      %v646 = vunpack.c.l.b16 %v602
      %v647 = vunpack.c.l.b16 %v603
      %v648 = vunpack.c.l.b16 %v604
      %v649 = vunpack.c.l.b16 %v605
      %v650 = vunpack.c.l.b16 %v606
      %v651 = vunpack.c.l.b16 %v607
      %v652 = vunpack.c.l.b16 %v608
      %v653 = vunpack.c.l.b16 %v609
      %v654 = vunpack.c.l.b16 %v610
      %v655 = vunpack.c.l.b16 %v611
      %v656 = vunpack.c.l.b16 %v612
      %v657 = vpack.c.b16 %v642, %v641
      %v658 = vpack.c.b16 %v644, %v643
      %v659 = vpack.c.b16 %v646, %v645
      %v660 = vpack.c.b16 %v648, %v647
      %v661 = vpack.c.b16 %v650, %v649
      %v662 = vpack.c.b16 %v652, %v651
      %v663 = vpack.c.b16 %v654, %v653
      %v664 = vpack.c.b16 %v656, %v655
      %673 = vmatprep.subr.bf16.mxu0 0
      %674 = vmatpush1.bf16.msra.mxu0 %v664
      %675 = vmatprep.subr.bf16.mxu0 0
      %676 = vmatpush1.bf16.msra.mxu0 %v663
      %677 = vmatprep.subr.bf16.mxu0 0
      %678 = vmatpush1.bf16.msra.mxu0 %v662
      %679 = vmatprep.subr.bf16.mxu0 0
      %680 = vmatpush1.bf16.msra.mxu0 %v661
      %681 = vmatprep.subr.bf16.mxu0 0
      %682 = vmatpush1.bf16.msra.mxu0 %v660
      %683 = vmatprep.subr.bf16.mxu0 0
      %684 = vmatpush1.bf16.msra.mxu0 %v659
      %685 = vmatprep.subr.bf16.mxu0 0
      %686 = vmatpush1.bf16.msra.mxu0 %v658
      %687 = vmatprep.subr.bf16.mxu0 0
      %688 = vmatpush1.bf16.msra.mxu0 %v657
      %689 = vmatprep.subr.bf16.mxu0 0
      %690 = vmatpush2.bf16.msra.mxu0 0
      %691 = vmatprep.subr.bf16.mxu0 0
      %692 = vmatpush2.bf16.msra.mxu0 0
      %693 = vmatprep.subr.bf16.mxu0 0
      %694 = vmatpush2.bf16.msra.mxu0 0
      %695 = vmatprep.subr.bf16.mxu0 0
      %696 = vmatpush2.bf16.msra.mxu0 0
      %697 = vmatprep.subr.bf16.mxu0 0
      %698 = vmatpush2.bf16.msra.mxu0 0
      %699 = vmatprep.subr.bf16.mxu0 0
      %700 = vmatpush2.bf16.msra.mxu0 0
      %701 = vmatprep.subr.bf16.mxu0 0
      %702 = vmatpush2.bf16.msra.mxu0 0
      %703 = vmatprep.subr.bf16.mxu0 0
      %704 = vmatpush2.bf16.msra.mxu0 0
      %705 = vmatprep.mubr.bf16.mxu0 0
      %706 = vmatmul.mubr.bf16.gmra.mxu0 %v622
      %v707 = vpop.f32.mrf.mxu0
      %v708 = vadd.f32 0.0, %v707
      %v709 = vpop.f32.mrf.mxu0
      %v710 = vpop.f32.mrf.mxu0
      %v711 = vadd.f32 0.0, %v710
      %v712 = vpop.f32.mrf.mxu0
      %713 = vmatprep.mubr.bf16.mxu0 0
      %714 = vmatmul.mubr.bf16.gmra.mxu0 %v621
      %v715 = vpop.f32.mrf.mxu0
      %v716 = vadd.f32 0.0, %v715
      %v717 = vpop.f32.mrf.mxu0
      %v718 = vpop.f32.mrf.mxu0
      %v719 = vpop.f32.mrf.mxu0
      %720 = vdwg.mxu0
      %v721 = vadd.f32 %v591, %v708
      %v722 = vadd.f32 %v592, %v711
      %v723 = vadd.f32 %v593, %v716
      %v724 = vld [vmem:[%s197 + $0xc] sm:$0xf]
      %s725 = scalar_lea.vmem %s1, 256
      %v726 = vld [vmem:[%s725] sm:$0xf]
      %v727 = vld [vmem:[%s725 + $0x4] sm:$0xf]
      %v728 = vld [vmem:[%s725 + $0x8] sm:$0xf]
      %v729 = vld [vmem:[%s725 + $0xc] sm:$0xf]
      %v730 = vld [vmem:[%s725 + $0x10] sm:$0xf]
      %v731 = vld [vmem:[%s725 + $0x14] sm:$0xf]
      %v732 = vld [vmem:[%s725 + $0x18] sm:$0xf]
      %v733 = vld [vmem:[%s725 + $0x1c] sm:$0xf]
      %v734 = vld [vmem:[%s725 + $0x20] sm:$0xf]
      %v735 = vld [vmem:[%s725 + $0x24] sm:$0xf]
      %v736 = vld [vmem:[%s725 + $0x28] sm:$0xf]
      %v737 = vld [vmem:[%s725 + $0x2c] sm:$0xf]
      %v738 = vld [vmem:[%s725 + $0x30] sm:$0xf]
      %v739 = vld [vmem:[%s725 + $0x34] sm:$0xf]
      %v740 = vld [vmem:[%s725 + $0x38] sm:$0xf]
      %v741 = vld [vmem:[%s725 + $0x3c] sm:$0xf]
      %v743 = vunpack.c.l.b16 %v724
      %v744 = vpack.c.b16 %v743, %v251
      %vm745 = vsmask.f32 4352
      %v747 = vshrl.u32 %v617, 16
      %v749 = vrot.slane %v747, 3
      %v750 = vshll.u32 %v617, 16
      %v752 = vrot.slane %v750, 4
      %v753 = vor.u32 %v749, %v752
      %v755 = vshrl.u32 %v744, 16
      %v757 = vrot.slane %v755, 3
      %v758 = vshll.u32 %v744, 16
      %v760 = vrot.slane %v758, 4
      %v761 = vor.u32 %v757, %v760
      %v762 = vsel %vm745, %v753, %v761
      %v781 = vunpack.c.l.b16 %v726
      %v782 = vunpack.c.l.b16 %v727
      %v783 = vunpack.c.l.b16 %v728
      %v784 = vunpack.c.l.b16 %v729
      %v785 = vunpack.c.l.b16 %v730
      %v786 = vunpack.c.l.b16 %v731
      %v787 = vunpack.c.l.b16 %v732
      %v788 = vunpack.c.l.b16 %v733
      %v789 = vunpack.c.l.b16 %v734
      %v790 = vunpack.c.l.b16 %v735
      %v791 = vunpack.c.l.b16 %v736
      %v792 = vunpack.c.l.b16 %v737
      %v793 = vunpack.c.l.b16 %v738
      %v794 = vunpack.c.l.b16 %v739
      %v795 = vunpack.c.l.b16 %v740
      %v796 = vunpack.c.l.b16 %v741
      %v797 = vpack.c.b16 %v782, %v781
      %v798 = vpack.c.b16 %v784, %v783
      %v799 = vpack.c.b16 %v786, %v785
      %v800 = vpack.c.b16 %v788, %v787
      %v801 = vpack.c.b16 %v790, %v789
      %v802 = vpack.c.b16 %v792, %v791
      %v803 = vpack.c.b16 %v794, %v793
      %v804 = vpack.c.b16 %v796, %v795
      %813 = vmatprep.subr.bf16.mxu0 0
      %814 = vmatpush1.bf16.msra.mxu0 %v804
      %815 = vmatprep.subr.bf16.mxu0 0
      %816 = vmatpush1.bf16.msra.mxu0 %v803
      %817 = vmatprep.subr.bf16.mxu0 0
      %818 = vmatpush1.bf16.msra.mxu0 %v802
      %819 = vmatprep.subr.bf16.mxu0 0
      %820 = vmatpush1.bf16.msra.mxu0 %v801
      %821 = vmatprep.subr.bf16.mxu0 0
      %822 = vmatpush1.bf16.msra.mxu0 %v800
      %823 = vmatprep.subr.bf16.mxu0 0
      %824 = vmatpush1.bf16.msra.mxu0 %v799
      %825 = vmatprep.subr.bf16.mxu0 0
      %826 = vmatpush1.bf16.msra.mxu0 %v798
      %827 = vmatprep.subr.bf16.mxu0 0
      %828 = vmatpush1.bf16.msra.mxu0 %v797
      %829 = vmatprep.subr.bf16.mxu0 0
      %830 = vmatpush2.bf16.msra.mxu0 0
      %831 = vmatprep.subr.bf16.mxu0 0
      %832 = vmatpush2.bf16.msra.mxu0 0
      %833 = vmatprep.subr.bf16.mxu0 0
      %834 = vmatpush2.bf16.msra.mxu0 0
      %835 = vmatprep.subr.bf16.mxu0 0
      %836 = vmatpush2.bf16.msra.mxu0 0
      %837 = vmatprep.subr.bf16.mxu0 0
      %838 = vmatpush2.bf16.msra.mxu0 0
      %839 = vmatprep.subr.bf16.mxu0 0
      %840 = vmatpush2.bf16.msra.mxu0 0
      %841 = vmatprep.subr.bf16.mxu0 0
      %842 = vmatpush2.bf16.msra.mxu0 0
      %843 = vmatprep.subr.bf16.mxu0 0
      %844 = vmatpush2.bf16.msra.mxu0 0
      %845 = vmatprep.mubr.bf16.mxu0 0
      %846 = vmatmul.mubr.bf16.gmra.mxu0 %v762
      %v847 = vpop.f32.mrf.mxu0
      %v848 = vadd.f32 0.0, %v847
      %v849 = vpop.f32.mrf.mxu0
      %v850 = vpop.f32.mrf.mxu0
      %v851 = vadd.f32 0.0, %v850
      %v852 = vpop.f32.mrf.mxu0
      %853 = vmatprep.mubr.bf16.mxu0 0
      %854 = vmatmul.mubr.bf16.gmra.mxu0 %v761
      %v855 = vpop.f32.mrf.mxu0
      %v856 = vadd.f32 0.0, %v855
      %v857 = vpop.f32.mrf.mxu0
      %v858 = vpop.f32.mrf.mxu0
      %v859 = vpop.f32.mrf.mxu0
      %860 = vdwg.mxu0
      %v861 = vadd.f32 %v721, %v848
      %v862 = vadd.f32 %v722, %v851
      %v863 = vadd.f32 %v723, %v856
      %s864 = scalar_lea.vmem %s1, 320
      %v865 = vld [vmem:[%s864] sm:$0xf]
      %v866 = vld [vmem:[%s864 + $0x4] sm:$0xf]
      %v867 = vld [vmem:[%s864 + $0x8] sm:$0xf]
      %v868 = vld [vmem:[%s864 + $0xc] sm:$0xf]
      %v869 = vld [vmem:[%s864 + $0x10] sm:$0xf]
      %v870 = vld [vmem:[%s864 + $0x14] sm:$0xf]
      %v871 = vld [vmem:[%s864 + $0x18] sm:$0xf]
      %v872 = vld [vmem:[%s864 + $0x1c] sm:$0xf]
      %v873 = vld [vmem:[%s864 + $0x20] sm:$0xf]
      %v874 = vld [vmem:[%s864 + $0x24] sm:$0xf]
      %v875 = vld [vmem:[%s864 + $0x28] sm:$0xf]
      %v876 = vld [vmem:[%s864 + $0x2c] sm:$0xf]
      %v877 = vld [vmem:[%s864 + $0x30] sm:$0xf]
      %v878 = vld [vmem:[%s864 + $0x34] sm:$0xf]
      %v879 = vld [vmem:[%s864 + $0x38] sm:$0xf]
      %v880 = vld [vmem:[%s864 + $0x3c] sm:$0xf]
      %v881 = vpack.c.b16 %v251, %v250
      %v882 = vpack.c.b16 %v743, %v743
      %v901 = vunpack.c.l.b16 %v865
      %v902 = vunpack.c.l.b16 %v866
      %v903 = vunpack.c.l.b16 %v867
      %v904 = vunpack.c.l.b16 %v868
      %v905 = vunpack.c.l.b16 %v869
      %v906 = vunpack.c.l.b16 %v870
      %v907 = vunpack.c.l.b16 %v871
      %v908 = vunpack.c.l.b16 %v872
      %v909 = vunpack.c.l.b16 %v873
      %v910 = vunpack.c.l.b16 %v874
      %v911 = vunpack.c.l.b16 %v875
      %v912 = vunpack.c.l.b16 %v876
      %v913 = vunpack.c.l.b16 %v877
      %v914 = vunpack.c.l.b16 %v878
      %v915 = vunpack.c.l.b16 %v879
      %v916 = vunpack.c.l.b16 %v880
      %v917 = vpack.c.b16 %v902, %v901
      %v918 = vpack.c.b16 %v904, %v903
      %v919 = vpack.c.b16 %v906, %v905
      %v920 = vpack.c.b16 %v908, %v907
      %v921 = vpack.c.b16 %v910, %v909
      %v922 = vpack.c.b16 %v912, %v911
      %v923 = vpack.c.b16 %v914, %v913
      %v924 = vpack.c.b16 %v916, %v915
      %933 = vmatprep.subr.bf16.mxu0 0
      %934 = vmatpush1.bf16.msra.mxu0 %v924
      %935 = vmatprep.subr.bf16.mxu0 0
      %936 = vmatpush1.bf16.msra.mxu0 %v923
      %937 = vmatprep.subr.bf16.mxu0 0
      %938 = vmatpush1.bf16.msra.mxu0 %v922
      %939 = vmatprep.subr.bf16.mxu0 0
      %940 = vmatpush1.bf16.msra.mxu0 %v921
      %941 = vmatprep.subr.bf16.mxu0 0
      %942 = vmatpush1.bf16.msra.mxu0 %v920
      %943 = vmatprep.subr.bf16.mxu0 0
      %944 = vmatpush1.bf16.msra.mxu0 %v919
      %945 = vmatprep.subr.bf16.mxu0 0
      %946 = vmatpush1.bf16.msra.mxu0 %v918
      %947 = vmatprep.subr.bf16.mxu0 0
      %948 = vmatpush1.bf16.msra.mxu0 %v917
      %949 = vmatprep.subr.bf16.mxu0 0
      %950 = vmatpush2.bf16.msra.mxu0 0
      %951 = vmatprep.subr.bf16.mxu0 0
      %952 = vmatpush2.bf16.msra.mxu0 0
      %953 = vmatprep.subr.bf16.mxu0 0
      %954 = vmatpush2.bf16.msra.mxu0 0
      %955 = vmatprep.subr.bf16.mxu0 0
      %956 = vmatpush2.bf16.msra.mxu0 0
      %957 = vmatprep.subr.bf16.mxu0 0
      %958 = vmatpush2.bf16.msra.mxu0 0
      %959 = vmatprep.subr.bf16.mxu0 0
      %960 = vmatpush2.bf16.msra.mxu0 0
      %961 = vmatprep.subr.bf16.mxu0 0
      %962 = vmatpush2.bf16.msra.mxu0 0
      %963 = vmatprep.subr.bf16.mxu0 0
      %964 = vmatpush2.bf16.msra.mxu0 0
      %965 = vmatprep.mubr.bf16.mxu0 0
      %966 = vmatmul.mubr.bf16.gmra.mxu0 %v881
      %v967 = vpop.f32.mrf.mxu0
      %v968 = vadd.f32 0.0, %v967
      %v969 = vpop.f32.mrf.mxu0
      %v970 = vpop.f32.mrf.mxu0
      %v971 = vadd.f32 0.0, %v970
      %v972 = vpop.f32.mrf.mxu0
      %973 = vmatprep.mubr.bf16.mxu0 0
      %974 = vmatmul.mubr.bf16.gmra.mxu0 %v882
      %v975 = vpop.f32.mrf.mxu0
      %v976 = vadd.f32 0.0, %v975
      %v977 = vpop.f32.mrf.mxu0
      %v978 = vpop.f32.mrf.mxu0
      %v979 = vpop.f32.mrf.mxu0
      %980 = vdwg.mxu0
      %v981 = vadd.f32 %v861, %v968
      %v982 = vadd.f32 %v862, %v971
      %v983 = vadd.f32 %v863, %v976
      %v984 = vld [vmem:[%s197 + $0x4] sm:$0xc]
      %v985 = vld [vmem:[%s197 + $0x8] sm:$0xf]
      %v986 = vld [vmem:[%s197 + $0xc] sm:$0xf]
      %v987 = vld [vmem:[%s197 + $0x10] sm:$0x3]
      %s988 = scalar_lea.vmem %s1, 384
      %v989 = vld [vmem:[%s988] sm:$0xf]
      %v990 = vld [vmem:[%s988 + $0x4] sm:$0xf]
      %v991 = vld [vmem:[%s988 + $0x8] sm:$0xf]
      %v992 = vld [vmem:[%s988 + $0xc] sm:$0xf]
      %v993 = vld [vmem:[%s988 + $0x10] sm:$0xf]
      %v994 = vld [vmem:[%s988 + $0x14] sm:$0xf]
      %v995 = vld [vmem:[%s988 + $0x18] sm:$0xf]
      %v996 = vld [vmem:[%s988 + $0x1c] sm:$0xf]
      %v997 = vld [vmem:[%s988 + $0x20] sm:$0xf]
      %v998 = vld [vmem:[%s988 + $0x24] sm:$0xf]
      %v999 = vld [vmem:[%s988 + $0x28] sm:$0xf]
      %v1000 = vld [vmem:[%s988 + $0x2c] sm:$0xf]
      %v1001 = vld [vmem:[%s988 + $0x30] sm:$0xf]
      %v1002 = vld [vmem:[%s988 + $0x34] sm:$0xf]
      %v1003 = vld [vmem:[%s988 + $0x38] sm:$0xf]
      %v1004 = vld [vmem:[%s988 + $0x3c] sm:$0xf]
      %v1009 = vunpack.c.l.b16 %v984
      %v1010 = vunpack.c.l.b16 %v985
      %v1011 = vunpack.c.l.b16 %v986
      %v1012 = vunpack.c.l.b16 %v987
      %v1013 = vpack.c.b16 %v1010, %v1009
      %v1014 = vpack.c.b16 %v1012, %v1011
      %vm1015 = vcmask 1045504
      %v1016 = vrot.slane %v1013, 2
      %v1017 = vrot.slane %v1014, 2
      %v1018 = vsel %vm1015, %v1016, %v1017
      %v1037 = vunpack.c.l.b16 %v989
      %v1038 = vunpack.c.l.b16 %v990
      %v1039 = vunpack.c.l.b16 %v991
      %v1040 = vunpack.c.l.b16 %v992
      %v1041 = vunpack.c.l.b16 %v993
      %v1042 = vunpack.c.l.b16 %v994
      %v1043 = vunpack.c.l.b16 %v995
      %v1044 = vunpack.c.l.b16 %v996
      %v1045 = vunpack.c.l.b16 %v997
      %v1046 = vunpack.c.l.b16 %v998
      %v1047 = vunpack.c.l.b16 %v999
      %v1048 = vunpack.c.l.b16 %v1000
      %v1049 = vunpack.c.l.b16 %v1001
      %v1050 = vunpack.c.l.b16 %v1002
      %v1051 = vunpack.c.l.b16 %v1003
      %v1052 = vunpack.c.l.b16 %v1004
      %v1053 = vpack.c.b16 %v1038, %v1037
      %v1054 = vpack.c.b16 %v1040, %v1039
      %v1055 = vpack.c.b16 %v1042, %v1041
      %v1056 = vpack.c.b16 %v1044, %v1043
      %v1057 = vpack.c.b16 %v1046, %v1045
      %v1058 = vpack.c.b16 %v1048, %v1047
      %v1059 = vpack.c.b16 %v1050, %v1049
      %v1060 = vpack.c.b16 %v1052, %v1051
      %1069 = vmatprep.subr.bf16.mxu0 0
      %1070 = vmatpush1.bf16.msra.mxu0 %v1060
      %1071 = vmatprep.subr.bf16.mxu0 0
      %1072 = vmatpush1.bf16.msra.mxu0 %v1059
      %1073 = vmatprep.subr.bf16.mxu0 0
      %1074 = vmatpush1.bf16.msra.mxu0 %v1058
      %1075 = vmatprep.subr.bf16.mxu0 0
      %1076 = vmatpush1.bf16.msra.mxu0 %v1057
      %1077 = vmatprep.subr.bf16.mxu0 0
      %1078 = vmatpush1.bf16.msra.mxu0 %v1056
      %1079 = vmatprep.subr.bf16.mxu0 0
      %1080 = vmatpush1.bf16.msra.mxu0 %v1055
      %1081 = vmatprep.subr.bf16.mxu0 0
      %1082 = vmatpush1.bf16.msra.mxu0 %v1054
      %1083 = vmatprep.subr.bf16.mxu0 0
      %1084 = vmatpush1.bf16.msra.mxu0 %v1053
      %1085 = vmatprep.subr.bf16.mxu0 0
      %1086 = vmatpush2.bf16.msra.mxu0 0
      %1087 = vmatprep.subr.bf16.mxu0 0
      %1088 = vmatpush2.bf16.msra.mxu0 0
      %1089 = vmatprep.subr.bf16.mxu0 0
      %1090 = vmatpush2.bf16.msra.mxu0 0
      %1091 = vmatprep.subr.bf16.mxu0 0
      %1092 = vmatpush2.bf16.msra.mxu0 0
      %1093 = vmatprep.subr.bf16.mxu0 0
      %1094 = vmatpush2.bf16.msra.mxu0 0
      %1095 = vmatprep.subr.bf16.mxu0 0
      %1096 = vmatpush2.bf16.msra.mxu0 0
      %1097 = vmatprep.subr.bf16.mxu0 0
      %1098 = vmatpush2.bf16.msra.mxu0 0
      %1099 = vmatprep.subr.bf16.mxu0 0
      %1100 = vmatpush2.bf16.msra.mxu0 0
      %1101 = vmatprep.mubr.bf16.mxu0 0
      %1102 = vmatmul.mubr.bf16.gmra.mxu0 %v1018
      %v1103 = vpop.f32.mrf.mxu0
      %v1104 = vadd.f32 0.0, %v1103
      %v1105 = vpop.f32.mrf.mxu0
      %v1106 = vpop.f32.mrf.mxu0
      %v1107 = vadd.f32 0.0, %v1106
      %v1108 = vpop.f32.mrf.mxu0
      %1109 = vmatprep.mubr.bf16.mxu0 0
      %1110 = vmatmul.mubr.bf16.gmra.mxu0 %v1017
      %v1111 = vpop.f32.mrf.mxu0
      %v1112 = vadd.f32 0.0, %v1111
      %v1113 = vpop.f32.mrf.mxu0
      %v1114 = vpop.f32.mrf.mxu0
      %v1115 = vpop.f32.mrf.mxu0
      %1116 = vdwg.mxu0
      %v1117 = vadd.f32 %v981, %v1104
      %v1118 = vadd.f32 %v982, %v1107
      %v1119 = vadd.f32 %v983, %v1112
      %v1120 = vld [vmem:[%s197 + $0x10] sm:$0x7]
      %s1121 = scalar_lea.vmem %s1, 448
      %v1122 = vld [vmem:[%s1121] sm:$0xf]
      %v1123 = vld [vmem:[%s1121 + $0x4] sm:$0xf]
      %v1124 = vld [vmem:[%s1121 + $0x8] sm:$0xf]
      %v1125 = vld [vmem:[%s1121 + $0xc] sm:$0xf]
      %v1126 = vld [vmem:[%s1121 + $0x10] sm:$0xf]
      %v1127 = vld [vmem:[%s1121 + $0x14] sm:$0xf]
      %v1128 = vld [vmem:[%s1121 + $0x18] sm:$0xf]
      %v1129 = vld [vmem:[%s1121 + $0x1c] sm:$0xf]
      %v1130 = vld [vmem:[%s1121 + $0x20] sm:$0xf]
      %v1131 = vld [vmem:[%s1121 + $0x24] sm:$0xf]
      %v1132 = vld [vmem:[%s1121 + $0x28] sm:$0xf]
      %v1133 = vld [vmem:[%s1121 + $0x2c] sm:$0xf]
      %v1134 = vld [vmem:[%s1121 + $0x30] sm:$0xf]
      %v1135 = vld [vmem:[%s1121 + $0x34] sm:$0xf]
      %v1136 = vld [vmem:[%s1121 + $0x38] sm:$0xf]
      %v1137 = vld [vmem:[%s1121 + $0x3c] sm:$0xf]
      %v1139 = vunpack.c.l.b16 %v1120
      %v1140 = vpack.c.b16 %v1139, %v1011
      %vm1141 = vsmask.f32 5376
      %v1143 = vshrl.u32 %v1013, 16
      %v1145 = vrot.slane %v1143, 2
      %v1146 = vshll.u32 %v1013, 16
      %v1148 = vrot.slane %v1146, 3
      %v1149 = vor.u32 %v1145, %v1148
      %v1151 = vshrl.u32 %v1140, 16
      %v1153 = vrot.slane %v1151, 2
      %v1154 = vshll.u32 %v1140, 16
      %v1156 = vrot.slane %v1154, 3
      %v1157 = vor.u32 %v1153, %v1156
      %v1158 = vsel %vm1141, %v1149, %v1157
      %v1177 = vunpack.c.l.b16 %v1122
      %v1178 = vunpack.c.l.b16 %v1123
      %v1179 = vunpack.c.l.b16 %v1124
      %v1180 = vunpack.c.l.b16 %v1125
      %v1181 = vunpack.c.l.b16 %v1126
      %v1182 = vunpack.c.l.b16 %v1127
      %v1183 = vunpack.c.l.b16 %v1128
      %v1184 = vunpack.c.l.b16 %v1129
      %v1185 = vunpack.c.l.b16 %v1130
      %v1186 = vunpack.c.l.b16 %v1131
      %v1187 = vunpack.c.l.b16 %v1132
      %v1188 = vunpack.c.l.b16 %v1133
      %v1189 = vunpack.c.l.b16 %v1134
      %v1190 = vunpack.c.l.b16 %v1135
      %v1191 = vunpack.c.l.b16 %v1136
      %v1192 = vunpack.c.l.b16 %v1137
      %v1193 = vpack.c.b16 %v1178, %v1177
      %v1194 = vpack.c.b16 %v1180, %v1179
      %v1195 = vpack.c.b16 %v1182, %v1181
      %v1196 = vpack.c.b16 %v1184, %v1183
      %v1197 = vpack.c.b16 %v1186, %v1185
      %v1198 = vpack.c.b16 %v1188, %v1187
      %v1199 = vpack.c.b16 %v1190, %v1189
      %v1200 = vpack.c.b16 %v1192, %v1191
      %1209 = vmatprep.subr.bf16.mxu0 0
      %1210 = vmatpush1.bf16.msra.mxu0 %v1200
      %1211 = vmatprep.subr.bf16.mxu0 0
      %1212 = vmatpush1.bf16.msra.mxu0 %v1199
      %1213 = vmatprep.subr.bf16.mxu0 0
      %1214 = vmatpush1.bf16.msra.mxu0 %v1198
      %1215 = vmatprep.subr.bf16.mxu0 0
      %1216 = vmatpush1.bf16.msra.mxu0 %v1197
      %1217 = vmatprep.subr.bf16.mxu0 0
      %1218 = vmatpush1.bf16.msra.mxu0 %v1196
      %1219 = vmatprep.subr.bf16.mxu0 0
      %1220 = vmatpush1.bf16.msra.mxu0 %v1195
      %1221 = vmatprep.subr.bf16.mxu0 0
      %1222 = vmatpush1.bf16.msra.mxu0 %v1194
      %1223 = vmatprep.subr.bf16.mxu0 0
      %1224 = vmatpush1.bf16.msra.mxu0 %v1193
      %1225 = vmatprep.subr.bf16.mxu0 0
      %1226 = vmatpush2.bf16.msra.mxu0 0
      %1227 = vmatprep.subr.bf16.mxu0 0
      %1228 = vmatpush2.bf16.msra.mxu0 0
      %1229 = vmatprep.subr.bf16.mxu0 0
      %1230 = vmatpush2.bf16.msra.mxu0 0
      %1231 = vmatprep.subr.bf16.mxu0 0
      %1232 = vmatpush2.bf16.msra.mxu0 0
      %1233 = vmatprep.subr.bf16.mxu0 0
      %1234 = vmatpush2.bf16.msra.mxu0 0
      %1235 = vmatprep.subr.bf16.mxu0 0
      %1236 = vmatpush2.bf16.msra.mxu0 0
      %1237 = vmatprep.subr.bf16.mxu0 0
      %1238 = vmatpush2.bf16.msra.mxu0 0
      %1239 = vmatprep.subr.bf16.mxu0 0
      %1240 = vmatpush2.bf16.msra.mxu0 0
      %1241 = vmatprep.mubr.bf16.mxu0 0
      %1242 = vmatmul.mubr.bf16.gmra.mxu0 %v1158
      %v1243 = vpop.f32.mrf.mxu0
      %v1244 = vadd.f32 0.0, %v1243
      %v1245 = vpop.f32.mrf.mxu0
      %v1246 = vpop.f32.mrf.mxu0
      %v1247 = vadd.f32 0.0, %v1246
      %v1248 = vpop.f32.mrf.mxu0
      %1249 = vmatprep.mubr.bf16.mxu0 0
      %1250 = vmatmul.mubr.bf16.gmra.mxu0 %v1157
      %v1251 = vpop.f32.mrf.mxu0
      %v1252 = vadd.f32 0.0, %v1251
      %v1253 = vpop.f32.mrf.mxu0
      %v1254 = vpop.f32.mrf.mxu0
      %v1255 = vpop.f32.mrf.mxu0
      %1256 = vdwg.mxu0
      %v1257 = vadd.f32 %v1117, %v1244
      %v1258 = vadd.f32 %v1118, %v1247
      %v1259 = vadd.f32 %v1119, %v1252
      %v1260 = vld [vmem:[%s197 + $0x4] sm:$0x8]
      %s1261 = scalar_lea.vmem %s1, 512
      %v1262 = vld [vmem:[%s1261] sm:$0xf]
      %v1263 = vld [vmem:[%s1261 + $0x4] sm:$0xf]
      %v1264 = vld [vmem:[%s1261 + $0x8] sm:$0xf]
      %v1265 = vld [vmem:[%s1261 + $0xc] sm:$0xf]
      %v1266 = vld [vmem:[%s1261 + $0x10] sm:$0xf]
      %v1267 = vld [vmem:[%s1261 + $0x14] sm:$0xf]
      %v1268 = vld [vmem:[%s1261 + $0x18] sm:$0xf]
      %v1269 = vld [vmem:[%s1261 + $0x1c] sm:$0xf]
      %v1270 = vld [vmem:[%s1261 + $0x20] sm:$0xf]
      %v1271 = vld [vmem:[%s1261 + $0x24] sm:$0xf]
      %v1272 = vld [vmem:[%s1261 + $0x28] sm:$0xf]
      %v1273 = vld [vmem:[%s1261 + $0x2c] sm:$0xf]
      %v1274 = vld [vmem:[%s1261 + $0x30] sm:$0xf]
      %v1275 = vld [vmem:[%s1261 + $0x34] sm:$0xf]
      %v1276 = vld [vmem:[%s1261 + $0x38] sm:$0xf]
      %v1277 = vld [vmem:[%s1261 + $0x3c] sm:$0xf]
      %v1279 = vunpack.c.l.b16 %v1260
      %v1280 = vpack.c.b16 %v1010, %v1279
      %v1281 = vrot.slane %v1280, 3
      %v1282 = vrot.slane %v1140, 3
      %v1283 = vsel %vm619, %v1281, %v1282
      %v1302 = vunpack.c.l.b16 %v1262
      %v1303 = vunpack.c.l.b16 %v1263
      %v1304 = vunpack.c.l.b16 %v1264
      %v1305 = vunpack.c.l.b16 %v1265
      %v1306 = vunpack.c.l.b16 %v1266
      %v1307 = vunpack.c.l.b16 %v1267
      %v1308 = vunpack.c.l.b16 %v1268
      %v1309 = vunpack.c.l.b16 %v1269
      %v1310 = vunpack.c.l.b16 %v1270
      %v1311 = vunpack.c.l.b16 %v1271
      %v1312 = vunpack.c.l.b16 %v1272
      %v1313 = vunpack.c.l.b16 %v1273
      %v1314 = vunpack.c.l.b16 %v1274
      %v1315 = vunpack.c.l.b16 %v1275
      %v1316 = vunpack.c.l.b16 %v1276
      %v1317 = vunpack.c.l.b16 %v1277
      %v1318 = vpack.c.b16 %v1303, %v1302
      %v1319 = vpack.c.b16 %v1305, %v1304
      %v1320 = vpack.c.b16 %v1307, %v1306
      %v1321 = vpack.c.b16 %v1309, %v1308
      %v1322 = vpack.c.b16 %v1311, %v1310
      %v1323 = vpack.c.b16 %v1313, %v1312
      %v1324 = vpack.c.b16 %v1315, %v1314
      %v1325 = vpack.c.b16 %v1317, %v1316
      %1334 = vmatprep.subr.bf16.mxu0 0
      %1335 = vmatpush1.bf16.msra.mxu0 %v1325
      %1336 = vmatprep.subr.bf16.mxu0 0
      %1337 = vmatpush1.bf16.msra.mxu0 %v1324
      %1338 = vmatprep.subr.bf16.mxu0 0
      %1339 = vmatpush1.bf16.msra.mxu0 %v1323
      %1340 = vmatprep.subr.bf16.mxu0 0
      %1341 = vmatpush1.bf16.msra.mxu0 %v1322
      %1342 = vmatprep.subr.bf16.mxu0 0
      %1343 = vmatpush1.bf16.msra.mxu0 %v1321
      %1344 = vmatprep.subr.bf16.mxu0 0
      %1345 = vmatpush1.bf16.msra.mxu0 %v1320
      %1346 = vmatprep.subr.bf16.mxu0 0
      %1347 = vmatpush1.bf16.msra.mxu0 %v1319
      %1348 = vmatprep.subr.bf16.mxu0 0
      %1349 = vmatpush1.bf16.msra.mxu0 %v1318
      %1350 = vmatprep.subr.bf16.mxu0 0
      %1351 = vmatpush2.bf16.msra.mxu0 0
      %1352 = vmatprep.subr.bf16.mxu0 0
      %1353 = vmatpush2.bf16.msra.mxu0 0
      %1354 = vmatprep.subr.bf16.mxu0 0
      %1355 = vmatpush2.bf16.msra.mxu0 0
      %1356 = vmatprep.subr.bf16.mxu0 0
      %1357 = vmatpush2.bf16.msra.mxu0 0
      %1358 = vmatprep.subr.bf16.mxu0 0
      %1359 = vmatpush2.bf16.msra.mxu0 0
      %1360 = vmatprep.subr.bf16.mxu0 0
      %1361 = vmatpush2.bf16.msra.mxu0 0
      %1362 = vmatprep.subr.bf16.mxu0 0
      %1363 = vmatpush2.bf16.msra.mxu0 0
      %1364 = vmatprep.subr.bf16.mxu0 0
      %1365 = vmatpush2.bf16.msra.mxu0 0
      %1366 = vmatprep.mubr.bf16.mxu0 0
      %1367 = vmatmul.mubr.bf16.gmra.mxu0 %v1283
      %v1368 = vpop.f32.mrf.mxu0
      %v1369 = vadd.f32 0.0, %v1368
      %v1370 = vpop.f32.mrf.mxu0
      %v1371 = vpop.f32.mrf.mxu0
      %v1372 = vadd.f32 0.0, %v1371
      %v1373 = vpop.f32.mrf.mxu0
      %1374 = vmatprep.mubr.bf16.mxu0 0
      %1375 = vmatmul.mubr.bf16.gmra.mxu0 %v1282
      %v1376 = vpop.f32.mrf.mxu0
      %v1377 = vadd.f32 0.0, %v1376
      %v1378 = vpop.f32.mrf.mxu0
      %v1379 = vpop.f32.mrf.mxu0
      %v1380 = vpop.f32.mrf.mxu0
      %1381 = vdwg.mxu0
      %v1382 = vadd.f32 %v1257, %v1369
      %v1383 = vadd.f32 %v1258, %v1372
      %v1384 = vadd.f32 %v1259, %v1377
      %v1385 = vld [vmem:[%s2] sm:$0x1]
      %v1387 = vlaneseq
      %v1388 = vshrl.u32 %v1387, 7
      %v1389 = vsub.s32 0, %v1388
      %v1390 = vrot.slane %v1385, %v1389
      %v1392 = vadd.f32 %v1382, %v1390
      %v1393 = vadd.f32 %v1383, %v1390
      %v1394 = vadd.f32 %v1384, %v1390
      %v1395 = vsub.f32 0.0, %v1392
      %v1396 = vsub.f32 0.0, %v1393
      %v1397 = vsub.f32 0.0, %v1394
      %v1398 = vmul.f32 %v1395, 1.442695
      %v1399 = vpow.pop %v1398
      %v1400 = vmul.f32 %v1396, 1.442695
      %v1401 = vpow.pop %v1400
      %v1402 = vmul.f32 %v1397, 1.442695
      %v1403 = vpow.pop %v1402
      %v1404 = vadd.f32 %v1399, 1.0
      %v1405 = vadd.f32 %v1401, 1.0
      %v1406 = vadd.f32 %v1403, 1.0
      %v1407 = vrcp.pop %v1404
      %v1408 = vrcp.pop %v1405
      %v1409 = vrcp.pop %v1406
      %v1410 = vmul.f32 %v1392, %v1407
      %v1411 = vmul.f32 %v1393, %v1408
      %v1412 = vmul.f32 %v1394, %v1409
      %v1413 = vpack.c.bf16 %v1411, %v1410
      %v1414 = vpack.c.bf16 %v1412, %v1412
      %v1417 = vunpack.c.l.b16 %v1413
      %v1418 = vunpack.c.h.b16 %v1413
      %v1419 = vunpack.c.l.b16 %v1414
      %v1420 = vpack.c.b16 %v1417, %v1417
      %v1421 = vpack.c.b16 %v1418, %v1418
      %v1422 = vpack.c.b16 %v1419, %v1419
      %1426 = vst [vmem:[%s206] sm:$0xf] %v1420
      %1427 = vst [vmem:[%s206 + $0x4] sm:$0xf] %v1421
      %1428 = vst [vmem:[%s206 + $0x8] sm:$0xf] %v1422
      %p1429 = scmp.lt.s32.totalorder %s18, 1
      %s1430 = scalar_select %p1429, %s18, 1
      %p1431 = scmp.lt.s32.totalorder %s19, 0
      %s1432 = scalar_select %p1431, %s19, 0
      %s1433 = smul.addr %s1432, 3
      %s1434 = smul.addr %s1430, 3
      %s1435 = sadd.s32 %s1433, %s1434
      %s1436 = smul.addr %s1435, 4
      %s1437 = scalar_lea.vmem %s3, %s1436
      // Predicated region
      $region33: #{_lambda_.17} parent=31 // pred_check
        %p1438 = pneg %p116
      $region34: #{_lambda_.17} parent=31 // pred_check_branch
        %1440 = sbr.rel (%p1438) target = $region36
      $region35: #{_lambda_.17} parent=31 // pred_region
        _
      $region36: #{_lambda_.17} parent=31 // pred_fallthru
        _
    $region32: #{_lambda_.17} parent=5 // pred_fallthru
      _
    %p1441 = scmp.le.s32.totalorder 2, %s9
    // Predicated region
    $region37: #{_lambda_.17} parent=5 // pred_check
      %p1442 = pneg %p1441
    $region38: #{_lambda_.17} parent=5 // pred_check_branch
      %1444 = sbr.rel (%p1442) target = $region40
    $region39: #{_lambda_.17} parent=5 // pred_region
      %s1445 = ssub.s32 %s9, 2
      // Predicated region
      $region41: #{_lambda_.17} parent=39 // pred_check
        %p1446 = pneg %p122
      $region42: #{_lambda_.17} parent=39 // pred_check_branch
        %1448 = sbr.rel (%p1446) target = $region44
      $region43: #{_lambda_.17} parent=39 // pred_region
        %p1449 = scmp.lt.s32.totalorder %s20, 1
        %s1450 = scalar_select %p1449, %s20, 1
        %p1451 = scmp.lt.s32.totalorder %s21, 0
        %s1452 = scalar_select %p1451, %s21, 0
        %s1453 = smul.addr %s1452, 3
        %s1454 = smul.addr %s1450, 3
        %s1455 = sadd.s32 %s1453, %s1454
        %s1456 = smul.addr %s1455, 4
        %s1457 = scalar_lea.vmem %s3, %s1456
      $region44: #{_lambda_.17} parent=39 // pred_fallthru
        _
    $region40: #{_lambda_.17} parent=5 // pred_fallthru
      _
  $region6: #{_lambda_.17} parent=0 // loop_footer
    %s13 = sadd.s32 1, %s9
  $region7: #{_lambda_.17} parent=0 // loop_footer_branch
    %8 = sbr.rel target = $region3
  $region8: #{_lambda_.17} parent=0 // loop_exit
    _

// kernel: _lambda_.11
$region0: #{_lambda_.11}
  #allocation0 [shape = 'u32[]', space=smem, size = 0x4, offset = 0x4, fixed_abs, tag = 'smem constant byte address 0x4 - core index']
  #allocation1 [shape = 'u32[144,128]{1,0:T(1,128)}', space=vmem, size = 0x12000, scoped, tag = 'internal scratch']
  %s0 = inlined_call_operand.vmem [shape: f32[128,192], index: 0, kind: input, shape index: {}]
  %s1 = inlined_call_operand.vmem [shape: bf16[192,128], index: 1, kind: input, shape index: {}]
  %s2 = inlined_call_operand.vmem [shape: f32[1,128], index: 2, kind: input, shape index: {}]
  %s3 = inlined_call_operand.vmem [shape: bf16[128,128], index: 3, kind: output, shape index: {}]
  %s4 = sld [smem:[#allocation0]]
  $region22: #{_lambda_.11} parent=0
    _
  %s6 = ssub.s32 1, %s4
  %s7 = scalar_select 0, %s6, %s4
  // Predicated region
  $region2: #{_lambda_.11} parent=0 // pred_check
    _
  $region3: #{_lambda_.11} parent=0 // pred_check_branch
    %9 = sbr.rel (0) target = $region5
  $region4: #{_lambda_.11} parent=0 // pred_region
    _
  $region5: #{_lambda_.11} parent=0 // pred_fallthru
    _
  // Predicated region
  $region6: #{_lambda_.11} parent=0 // pred_check
    _
  $region7: #{_lambda_.11} parent=0 // pred_check_branch
    %11 = sbr.rel (0) target = $region9
  $region8: #{_lambda_.11} parent=0 // pred_region
    _
  $region9: #{_lambda_.11} parent=0 // pred_fallthru
    _
  // Predicated region
  $region10: #{_lambda_.11} parent=0 // pred_check
    _
  $region11: #{_lambda_.11} parent=0 // pred_check_branch
    %13 = sbr.rel (0) target = $region13
  $region12: #{_lambda_.11} parent=0 // pred_region
    _
  $region13: #{_lambda_.11} parent=0 // pred_fallthru
    _
  %v15 = vld [vmem:[%s0] sm:$0xff]
  %v16 = vld [vmem:[%s0 + $0x8] sm:$0xff]
  %v17 = vld [vmem:[%s0 + $0x10] sm:$0xff]
  %v18 = vld [vmem:[%s0 + $0x18] sm:$0xff]
  %v19 = vld [vmem:[%s0 + $0x20] sm:$0xff]
  %v20 = vld [vmem:[%s0 + $0x28] sm:$0xff]
  %v21 = vld [vmem:[%s0 + $0x30] sm:$0xff]
  %v22 = vld [vmem:[%s0 + $0x38] sm:$0xff]
  %v23 = vld [vmem:[%s0 + $0x40] sm:$0xff]
  %v24 = vld [vmem:[%s0 + $0x48] sm:$0xff]
  %v25 = vld [vmem:[%s0 + $0x50] sm:$0xff]
  %v26 = vld [vmem:[%s0 + $0x58] sm:$0xff]
  %v27 = vld [vmem:[%s0 + $0x60] sm:$0xff]
  %v28 = vld [vmem:[%s0 + $0x68] sm:$0xff]
  %v29 = vld [vmem:[%s0 + $0x70] sm:$0xff]
  %v30 = vld [vmem:[%s0 + $0x78] sm:$0xff]
  %v31 = vld [vmem:[%s0 + $0x80] sm:$0xff]
  %v32 = vld [vmem:[%s0 + $0x88] sm:$0xff]
  %v33 = vld [vmem:[%s0 + $0x90] sm:$0xff]
  %v34 = vld [vmem:[%s0 + $0x98] sm:$0xff]
  %v35 = vld [vmem:[%s0 + $0xa0] sm:$0xff]
  %v36 = vld [vmem:[%s0 + $0xa8] sm:$0xff]
  %v37 = vld [vmem:[%s0 + $0xb0] sm:$0xff]
  %v38 = vld [vmem:[%s0 + $0xb8] sm:$0xff]
  %v39 = vld [vmem:[%s0 + $0xc0] sm:$0xff]
  %v40 = vld [vmem:[%s0 + $0xc8] sm:$0xff]
  %v41 = vld [vmem:[%s0 + $0xd0] sm:$0xff]
  %v42 = vld [vmem:[%s0 + $0xd8] sm:$0xff]
  %v43 = vld [vmem:[%s0 + $0xe0] sm:$0xff]
  %v44 = vld [vmem:[%s0 + $0xe8] sm:$0xff]
  %v45 = vld [vmem:[%s0 + $0xf0] sm:$0xff]
  %v46 = vld [vmem:[%s0 + $0xf8] sm:$0xff]
  %v47 = vpack.c.bf16 %v17, %v15
  %v48 = vpack.c.bf16 %v18, %v16
  %v49 = vpack.c.bf16 %v21, %v19
  %v50 = vpack.c.bf16 %v22, %v20
  %v51 = vpack.c.bf16 %v25, %v23
  %v52 = vpack.c.bf16 %v26, %v24
  %v53 = vpack.c.bf16 %v29, %v27
  %v54 = vpack.c.bf16 %v30, %v28
  %v55 = vpack.c.bf16 %v33, %v31
  %v56 = vpack.c.bf16 %v34, %v32
  %v57 = vpack.c.bf16 %v37, %v35
  %v58 = vpack.c.bf16 %v38, %v36
  %v59 = vpack.c.bf16 %v41, %v39
  %v60 = vpack.c.bf16 %v42, %v40
  %v61 = vpack.c.bf16 %v45, %v43
  %v62 = vpack.c.bf16 %v46, %v44
  %v63 = vld [vmem:[%s1] sm:$0xf]
  %v64 = vld [vmem:[%s1 + $0x4] sm:$0xf]
  %v65 = vld [vmem:[%s1 + $0x8] sm:$0xf]
  %v66 = vld [vmem:[%s1 + $0xc] sm:$0xf]
  %v67 = vld [vmem:[%s1 + $0x10] sm:$0xf]
  %v68 = vld [vmem:[%s1 + $0x14] sm:$0xf]
  %v69 = vld [vmem:[%s1 + $0x18] sm:$0xf]
  %v70 = vld [vmem:[%s1 + $0x1c] sm:$0xf]
  %v71 = vld [vmem:[%s1 + $0x20] sm:$0xf]
  %v72 = vld [vmem:[%s1 + $0x24] sm:$0xf]
  %v73 = vld [vmem:[%s1 + $0x28] sm:$0xf]
  %v74 = vld [vmem:[%s1 + $0x2c] sm:$0xf]
  %v75 = vld [vmem:[%s1 + $0x30] sm:$0xf]
  %v76 = vld [vmem:[%s1 + $0x34] sm:$0xf]
  %v77 = vld [vmem:[%s1 + $0x38] sm:$0xf]
  %v78 = vld [vmem:[%s1 + $0x3c] sm:$0xf]
  %v79 = vld [vmem:[%s1 + $0x40] sm:$0xf]
  %v80 = vld [vmem:[%s1 + $0x44] sm:$0xf]
  %v81 = vld [vmem:[%s1 + $0x48] sm:$0xf]
  %v82 = vld [vmem:[%s1 + $0x4c] sm:$0xf]
  %v83 = vld [vmem:[%s1 + $0x50] sm:$0xf]
  %v84 = vld [vmem:[%s1 + $0x54] sm:$0xf]
  %v85 = vld [vmem:[%s1 + $0x58] sm:$0xf]
  %v86 = vld [vmem:[%s1 + $0x5c] sm:$0xf]
  %v87 = vld [vmem:[%s2] sm:$0x1]
  %v89 = vlaneseq
  %v90 = vshrl.u32 %v89, 7
  %v91 = vsub.s32 0, %v90
  %v92 = vrot.slane %v87, %v91
  %v118 = vunpack.c.l.b16 %v63
  %v119 = vunpack.c.l.b16 %v64
  %v120 = vunpack.c.l.b16 %v65
  %v121 = vunpack.c.l.b16 %v66
  %v122 = vunpack.c.l.b16 %v67
  %v123 = vunpack.c.l.b16 %v68
  %v124 = vunpack.c.l.b16 %v69
  %v125 = vunpack.c.l.b16 %v70
  %v126 = vunpack.c.l.b16 %v71
  %v127 = vunpack.c.l.b16 %v72
  %v128 = vunpack.c.l.b16 %v73
  %v129 = vunpack.c.l.b16 %v74
  %v130 = vunpack.c.l.b16 %v75
  %v131 = vunpack.c.l.b16 %v76
  %v132 = vunpack.c.l.b16 %v77
  %v133 = vunpack.c.l.b16 %v78
  %v134 = vunpack.c.l.b16 %v79
  %v135 = vunpack.c.l.b16 %v80
  %v136 = vunpack.c.l.b16 %v81
  %v137 = vunpack.c.l.b16 %v82
  %v138 = vunpack.c.l.b16 %v83
  %v139 = vunpack.c.l.b16 %v84
  %v140 = vunpack.c.l.b16 %v85
  %v141 = vunpack.c.l.b16 %v86
  %v142 = vpack.c.b16 %v119, %v118
  %v143 = vpack.c.b16 %v121, %v120
  %v144 = vpack.c.b16 %v123, %v122
  %v145 = vpack.c.b16 %v125, %v124
  %v146 = vpack.c.b16 %v127, %v126
  %v147 = vpack.c.b16 %v129, %v128
  %v148 = vpack.c.b16 %v131, %v130
  %v149 = vpack.c.b16 %v133, %v132
  %v150 = vpack.c.b16 %v135, %v134
  %v151 = vpack.c.b16 %v137, %v136
  %v152 = vpack.c.b16 %v139, %v138
  %v153 = vpack.c.b16 %v141, %v140
  %vm166 = vcmask 523264
  %v168 = vsel %vm166, %v48, 0
  %v171 = vsel %vm166, %v50, 0
  %v174 = vsel %vm166, %v52, 0
  %v177 = vsel %vm166, %v54, 0
  %v180 = vsel %vm166, %v56, 0
  %v183 = vsel %vm166, %v58, 0
  %v186 = vsel %vm166, %v60, 0
  %v189 = vsel %vm166, %v62, 0
  %191 = vmatprep.subr.bf16.mxu0 0
  %192 = vmatpush1.bf16.msra.mxu0 %v149
  %193 = vmatprep.subr.bf16.mxu0 0
  %194 = vmatpush1.bf16.msra.mxu0 %v148
  %195 = vmatprep.subr.bf16.mxu0 0
  %196 = vmatpush1.bf16.msra.mxu0 %v147
  %197 = vmatprep.subr.bf16.mxu0 0
  %198 = vmatpush1.bf16.msra.mxu0 %v146
  %199 = vmatprep.subr.bf16.mxu0 0
  %200 = vmatpush1.bf16.msra.mxu0 %v145
  %201 = vmatprep.subr.bf16.mxu0 0
  %202 = vmatpush1.bf16.msra.mxu0 %v144
  %203 = vmatprep.subr.bf16.mxu0 0
  %204 = vmatpush1.bf16.msra.mxu0 %v143
  %205 = vmatprep.subr.bf16.mxu0 0
  %206 = vmatpush1.bf16.msra.mxu0 %v142
  %207 = vmatprep.subr.bf16.mxu0 0
  %208 = vmatpush2.bf16.msra.mxu0 0
  %209 = vmatprep.subr.bf16.mxu0 0
  %210 = vmatpush2.bf16.msra.mxu0 0
  %211 = vmatprep.subr.bf16.mxu0 0
  %212 = vmatpush2.bf16.msra.mxu0 0
  %213 = vmatprep.subr.bf16.mxu0 0
  %214 = vmatpush2.bf16.msra.mxu0 0
  %215 = vmatprep.subr.bf16.mxu0 0
  %216 = vmatpush2.bf16.msra.mxu0 %v153
  %217 = vmatprep.subr.bf16.mxu0 0
  %218 = vmatpush2.bf16.msra.mxu0 %v152
  %219 = vmatprep.subr.bf16.mxu0 0
  %220 = vmatpush2.bf16.msra.mxu0 %v151
  %221 = vmatprep.subr.bf16.mxu0 0
  %222 = vmatpush2.bf16.msra.mxu0 %v150
  %223 = vmatprep.mubr.bf16.mxu0 %v168
  %224 = vmatmul.mubr.bf16.gmra.mxu0 %v47
  %v225 = vpop.f32.mrf.mxu0
  %v226 = vadd.f32 %v92, %v225
  %v227 = vpop.f32.mrf.mxu0
  %v228 = vpop.f32.mrf.mxu0
  %v229 = vadd.f32 %v92, %v228
  %v230 = vpop.f32.mrf.mxu0
  %231 = vmatprep.mubr.bf16.mxu0 %v171
  %232 = vmatmul.mubr.bf16.gmra.mxu0 %v49
  %v233 = vpop.f32.mrf.mxu0
  %v234 = vadd.f32 %v92, %v233
  %v235 = vpop.f32.mrf.mxu0
  %v236 = vpop.f32.mrf.mxu0
  %v237 = vadd.f32 %v92, %v236
  %v238 = vpop.f32.mrf.mxu0
  %239 = vmatprep.mubr.bf16.mxu0 %v174
  %240 = vmatmul.mubr.bf16.gmra.mxu0 %v51
  %v241 = vpop.f32.mrf.mxu0
  %v242 = vadd.f32 %v92, %v241
  %v243 = vpop.f32.mrf.mxu0
  %v244 = vpop.f32.mrf.mxu0
  %v245 = vadd.f32 %v92, %v244
  %v246 = vpop.f32.mrf.mxu0
  %247 = vmatprep.mubr.bf16.mxu0 %v177
  %248 = vmatmul.mubr.bf16.gmra.mxu0 %v53
  %v249 = vpop.f32.mrf.mxu0
  %v250 = vadd.f32 %v92, %v249
  %v251 = vpop.f32.mrf.mxu0
  %v252 = vpop.f32.mrf.mxu0
  %v253 = vadd.f32 %v92, %v252
  %v254 = vpop.f32.mrf.mxu0
  %255 = vmatprep.mubr.bf16.mxu0 %v180
  %256 = vmatmul.mubr.bf16.gmra.mxu0 %v55
  %v257 = vpop.f32.mrf.mxu0
  %v258 = vadd.f32 %v92, %v257
  %v259 = vpop.f32.mrf.mxu0
  %v260 = vpop.f32.mrf.mxu0
  %v261 = vadd.f32 %v92, %v260
  %v262 = vpop.f32.mrf.mxu0
  %263 = vmatprep.mubr.bf16.mxu0 %v183
  %264 = vmatmul.mubr.bf16.gmra.mxu0 %v57
  %v265 = vpop.f32.mrf.mxu0
  %v266 = vadd.f32 %v92, %v265
  %v267 = vpop.f32.mrf.mxu0
  %v268 = vpop.f32.mrf.mxu0
  %v269 = vadd.f32 %v92, %v268
  %v270 = vpop.f32.mrf.mxu0
  %271 = vmatprep.mubr.bf16.mxu0 %v186
  %272 = vmatmul.mubr.bf16.gmra.mxu0 %v59
  %v273 = vpop.f32.mrf.mxu0
  %v274 = vadd.f32 %v92, %v273
  %v275 = vpop.f32.mrf.mxu0
  %v276 = vpop.f32.mrf.mxu0
  %v277 = vadd.f32 %v92, %v276
  %v278 = vpop.f32.mrf.mxu0
  %279 = vmatprep.mubr.bf16.mxu0 %v189
  %280 = vmatmul.mubr.bf16.gmra.mxu0 %v61
  %v281 = vpop.f32.mrf.mxu0
  %v282 = vadd.f32 %v92, %v281
  %v283 = vpop.f32.mrf.mxu0
  %v284 = vpop.f32.mrf.mxu0
  %v285 = vadd.f32 %v92, %v284
  %v286 = vpop.f32.mrf.mxu0
  %287 = vdwg.mxu0
  %v288 = vsub.f32 0.0, %v226
  %v289 = vsub.f32 0.0, %v229
  %v290 = vsub.f32 0.0, %v234
  %v291 = vsub.f32 0.0, %v237
  %v292 = vsub.f32 0.0, %v242
  %v293 = vsub.f32 0.0, %v245
  %v294 = vsub.f32 0.0, %v250
  %v295 = vsub.f32 0.0, %v253
  %v296 = vsub.f32 0.0, %v258
  %v297 = vsub.f32 0.0, %v261
  %v298 = vsub.f32 0.0, %v266
  %v299 = vsub.f32 0.0, %v269
  %v300 = vsub.f32 0.0, %v274
  %v301 = vsub.f32 0.0, %v277
  %v302 = vsub.f32 0.0, %v282
  %v303 = vsub.f32 0.0, %v285
  %v304 = vmul.f32 %v288, 1.442695
  %v305 = vpow.pop %v304
  %v306 = vmul.f32 %v289, 1.442695
  %v307 = vpow.pop %v306
  %v308 = vmul.f32 %v290, 1.442695
  %v309 = vpow.pop %v308
  %v310 = vmul.f32 %v291, 1.442695
  %v311 = vpow.pop %v310
  %v312 = vmul.f32 %v292, 1.442695
  %v313 = vpow.pop %v312
  %v314 = vmul.f32 %v293, 1.442695
  %v315 = vpow.pop %v314
  %v316 = vmul.f32 %v294, 1.442695
  %v317 = vpow.pop %v316
  %v318 = vmul.f32 %v295, 1.442695
  %v319 = vpow.pop %v318
  %v320 = vmul.f32 %v296, 1.442695
  %v321 = vpow.pop %v320
  %v322 = vmul.f32 %v297, 1.442695
  %v323 = vpow.pop %v322
  %v324 = vmul.f32 %v298, 1.442695
  %v325 = vpow.pop %v324
  %v326 = vmul.f32 %v299, 1.442695
  %v327 = vpow.pop %v326
  %v328 = vmul.f32 %v300, 1.442695
  %v329 = vpow.pop %v328
  %v330 = vmul.f32 %v301, 1.442695
  %v331 = vpow.pop %v330
  %v332 = vmul.f32 %v302, 1.442695
  %v333 = vpow.pop %v332
  %v334 = vmul.f32 %v303, 1.442695
  %v335 = vpow.pop %v334
  %v336 = vadd.f32 %v305, 1.0
  %v337 = vadd.f32 %v307, 1.0
  %v338 = vadd.f32 %v309, 1.0
  %v339 = vadd.f32 %v311, 1.0
  %v340 = vadd.f32 %v313, 1.0
  %v341 = vadd.f32 %v315, 1.0
  %v342 = vadd.f32 %v317, 1.0
  %v343 = vadd.f32 %v319, 1.0
  %v344 = vadd.f32 %v321, 1.0
  %v345 = vadd.f32 %v323, 1.0
  %v346 = vadd.f32 %v325, 1.0
  %v347 = vadd.f32 %v327, 1.0
  %v348 = vadd.f32 %v329, 1.0
  %v349 = vadd.f32 %v331, 1.0
  %v350 = vadd.f32 %v333, 1.0
  %v351 = vadd.f32 %v335, 1.0
  %v352 = vrcp.pop %v336
  %v353 = vrcp.pop %v337
  %v354 = vrcp.pop %v338
  %v355 = vrcp.pop %v339
  %v356 = vrcp.pop %v340
  %v357 = vrcp.pop %v341
  %v358 = vrcp.pop %v342
  %v359 = vrcp.pop %v343
  %v360 = vrcp.pop %v344
  %v361 = vrcp.pop %v345
  %v362 = vrcp.pop %v346
  %v363 = vrcp.pop %v347
  %v364 = vrcp.pop %v348
  %v365 = vrcp.pop %v349
  %v366 = vrcp.pop %v350
  %v367 = vrcp.pop %v351
  %v368 = vmul.f32 %v226, %v352
  %v369 = vmul.f32 %v229, %v353
  %v370 = vmul.f32 %v234, %v354
  %v371 = vmul.f32 %v237, %v355
  %v372 = vmul.f32 %v242, %v356
  %v373 = vmul.f32 %v245, %v357
  %v374 = vmul.f32 %v250, %v358
  %v375 = vmul.f32 %v253, %v359
  %v376 = vmul.f32 %v258, %v360
  %v377 = vmul.f32 %v261, %v361
  %v378 = vmul.f32 %v266, %v362
  %v379 = vmul.f32 %v269, %v363
  %v380 = vmul.f32 %v274, %v364
  %v381 = vmul.f32 %v277, %v365
  %v382 = vmul.f32 %v282, %v366
  %v383 = vmul.f32 %v285, %v367
  %v384 = vpack.c.bf16 %v369, %v368
  %v385 = vpack.c.bf16 %v371, %v370
  %v386 = vpack.c.bf16 %v373, %v372
  %v387 = vpack.c.bf16 %v375, %v374
  %v388 = vpack.c.bf16 %v377, %v376
  %v389 = vpack.c.bf16 %v379, %v378
  %v390 = vpack.c.bf16 %v381, %v380
  %v391 = vpack.c.bf16 %v383, %v382
  %v400 = vunpack.c.l.b16 %v384
  %v401 = vunpack.c.h.b16 %v384
  %v402 = vunpack.c.l.b16 %v385
  %v403 = vunpack.c.h.b16 %v385
  %v404 = vunpack.c.l.b16 %v386
  %v405 = vunpack.c.h.b16 %v386
  %v406 = vunpack.c.l.b16 %v387
  %v407 = vunpack.c.h.b16 %v387
  %v408 = vunpack.c.l.b16 %v388
  %v409 = vunpack.c.h.b16 %v388
  %v410 = vunpack.c.l.b16 %v389
  %v411 = vunpack.c.h.b16 %v389
  %v412 = vunpack.c.l.b16 %v390
  %v413 = vunpack.c.h.b16 %v390
  %v414 = vunpack.c.l.b16 %v391
  %v415 = vunpack.c.h.b16 %v391
  %v416 = vpack.c.b16 %v400, %v400
  %v417 = vpack.c.b16 %v401, %v401
  %v418 = vpack.c.b16 %v402, %v402
  %v419 = vpack.c.b16 %v403, %v403
  %v420 = vpack.c.b16 %v404, %v404
  %v421 = vpack.c.b16 %v405, %v405
  %v422 = vpack.c.b16 %v406, %v406
  %v423 = vpack.c.b16 %v407, %v407
  %v424 = vpack.c.b16 %v408, %v408
  %v425 = vpack.c.b16 %v409, %v409
  %v426 = vpack.c.b16 %v410, %v410
  %v427 = vpack.c.b16 %v411, %v411
  %v428 = vpack.c.b16 %v412, %v412
  %v429 = vpack.c.b16 %v413, %v413
  %v430 = vpack.c.b16 %v414, %v414
  %v431 = vpack.c.b16 %v415, %v415
  %448 = vst [vmem:[%s3] sm:$0xf] %v416
  %449 = vst [vmem:[%s3 + $0x4] sm:$0xf] %v417
  %450 = vst [vmem:[%s3 + $0x8] sm:$0xf] %v418
  %451 = vst [vmem:[%s3 + $0xc] sm:$0xf] %v419
  %452 = vst [vmem:[%s3 + $0x10] sm:$0xf] %v420
  %453 = vst [vmem:[%s3 + $0x14] sm:$0xf] %v421
  %454 = vst [vmem:[%s3 + $0x18] sm:$0xf] %v422
  %455 = vst [vmem:[%s3 + $0x1c] sm:$0xf] %v423
  %456 = vst [vmem:[%s3 + $0x20] sm:$0xf] %v424
  %457 = vst [vmem:[%s3 + $0x24] sm:$0xf] %v425
  %458 = vst [vmem:[%s3 + $0x28] sm:$0xf] %v426
  %459 = vst [vmem:[%s3 + $0x2c] sm:$0xf] %v427
  %460 = vst [vmem:[%s3 + $0x30] sm:$0xf] %v428
  %461 = vst [vmem:[%s3 + $0x34] sm:$0xf] %v429
  %462 = vst [vmem:[%s3 + $0x38] sm:$0xf] %v430
  %463 = vst [vmem:[%s3 + $0x3c] sm:$0xf] %v431
  // Predicated region
  $region14: #{_lambda_.11} parent=0 // pred_check
    _
  $region15: #{_lambda_.11} parent=0 // pred_check_branch
    %465 = sbr.rel (0) target = $region17
  $region16: #{_lambda_.11} parent=0 // pred_region
    _
  $region17: #{_lambda_.11} parent=0 // pred_fallthru
    _
  // Predicated region
  $region18: #{_lambda_.11} parent=0 // pred_check
    _
  $region19: #{_lambda_.11} parent=0 // pred_check_branch
    %467 = sbr.rel (0) target = $region21
  $region20: #{_lambda_.11} parent=0 // pred_region
    _
  $region21: #{_lambda_.11} parent=0 // pred_fallthru
    _

// kernel: _lambda_.19
$region0: #{_lambda_.19}
  #allocation0 [shape = 'u32[]', space=smem, size = 0x4, offset = 0x4, fixed_abs, tag = 'smem constant byte address 0x4 - core index']
  #allocation1 [shape = 'u32[144,128]{1,0:T(1,128)}', space=vmem, size = 0x12000, scoped, tag = 'internal scratch']
  %s0 = inlined_call_operand.vmem [shape: bf16[128,128], index: 0, kind: input, shape index: {}]
  %s1 = inlined_call_operand.vmem [shape: bf16[128,128], index: 1, kind: input, shape index: {}]
  %s2 = inlined_call_operand.vmem [shape: bf16[128,128], index: 2, kind: input, shape index: {}]
  %s3 = inlined_call_operand.vmem [shape: bf16[128,128], index: 3, kind: input, shape index: {}]
  %s4 = inlined_call_operand.vmem [shape: f32[1,128], index: 4, kind: input, shape index: {}]
  %s5 = inlined_call_operand.vmem [shape: bf16[128,128], index: 5, kind: input, shape index: {}]
  %s6 = inlined_call_operand.vmem [shape: f32[1,128], index: 6, kind: input, shape index: {}]
  %s7 = inlined_call_operand.hbm [shape: f32[128,128], index: 7, kind: output, shape index: {}]
  %s8 = sld [smem:[#allocation0]]
  $region38: #{_lambda_.19} parent=0
    _
  %s10 = ssub.s32 1, %s8
  %s11 = scalar_select 0, %s10, %s8
  $region1: #{_lambda_.19} parent=0
    #allocation2 [shape = 'u8[65536]{0}', space=vmem, size = 0x10000, scoped, tag = 'output window, operand 0, single buffered']
    #allocation3 [shape = 's32[1]{0}', space=sflag, size = 0x4, scoped, tag = 'scoped memory for _lambda_.19']
    %12 = vsyncpa [#allocation3], 0
    // Predicated region
    $region2: #{_lambda_.19} parent=1 // pred_check
      _
    $region3: #{_lambda_.19} parent=1 // pred_check_branch
      %14 = sbr.rel (0) target = $region5
    $region4: #{_lambda_.19} parent=1 // pred_region
      _
    $region5: #{_lambda_.19} parent=1 // pred_fallthru
      _
    // Predicated region
    $region6: #{_lambda_.19} parent=1 // pred_check
      _
    $region7: #{_lambda_.19} parent=1 // pred_check_branch
      %16 = sbr.rel (0) target = $region9
    $region8: #{_lambda_.19} parent=1 // pred_region
      _
    $region9: #{_lambda_.19} parent=1 // pred_fallthru
      _
    // Predicated region
    $region10: #{_lambda_.19} parent=1 // pred_check
      _
    $region11: #{_lambda_.19} parent=1 // pred_check_branch
      %18 = sbr.rel (0) target = $region13
    $region12: #{_lambda_.19} parent=1 // pred_region
      _
    $region13: #{_lambda_.19} parent=1 // pred_fallthru
      _
    // Predicated region
    $region14: #{_lambda_.19} parent=1 // pred_check
      _
    $region15: #{_lambda_.19} parent=1 // pred_check_branch
      %20 = sbr.rel (0) target = $region17
    $region16: #{_lambda_.19} parent=1 // pred_region
      _
    $region17: #{_lambda_.19} parent=1 // pred_fallthru
      _
    // Predicated region
    $region18: #{_lambda_.19} parent=1 // pred_check
      _
    $region19: #{_lambda_.19} parent=1 // pred_check_branch
      %22 = sbr.rel (0) target = $region21
    $region20: #{_lambda_.19} parent=1 // pred_region
      _
    $region21: #{_lambda_.19} parent=1 // pred_fallthru
      _
    // Predicated region
    $region22: #{_lambda_.19} parent=1 // pred_check
      _
    $region23: #{_lambda_.19} parent=1 // pred_check_branch
      %24 = sbr.rel (0) target = $region25
    $region24: #{_lambda_.19} parent=1 // pred_region
      _
    $region25: #{_lambda_.19} parent=1 // pred_fallthru
      _
    // Predicated region
    $region26: #{_lambda_.19} parent=1 // pred_check
      _
    $region27: #{_lambda_.19} parent=1 // pred_check_branch
      %26 = sbr.rel (0) target = $region29
    $region28: #{_lambda_.19} parent=1 // pred_region
      _
    $region29: #{_lambda_.19} parent=1 // pred_fallthru
      _
    %v28 = vld [vmem:[%s0] sm:$0xf]
    %v29 = vld [vmem:[%s0 + $0x4] sm:$0xf]
    %v30 = vld [vmem:[%s0 + $0x8] sm:$0xf]
    %v31 = vld [vmem:[%s0 + $0xc] sm:$0xf]
    %v32 = vld [vmem:[%s0 + $0x10] sm:$0xf]
    %v33 = vld [vmem:[%s0 + $0x14] sm:$0xf]
    %v34 = vld [vmem:[%s0 + $0x18] sm:$0xf]
    %v35 = vld [vmem:[%s0 + $0x1c] sm:$0xf]
    %v36 = vld [vmem:[%s0 + $0x20] sm:$0xf]
    %v37 = vld [vmem:[%s0 + $0x24] sm:$0xf]
    %v38 = vld [vmem:[%s0 + $0x28] sm:$0xf]
    %v39 = vld [vmem:[%s0 + $0x2c] sm:$0xf]
    %v40 = vld [vmem:[%s0 + $0x30] sm:$0xf]
    %v41 = vld [vmem:[%s0 + $0x34] sm:$0xf]
    %v42 = vld [vmem:[%s0 + $0x38] sm:$0xf]
    %v43 = vld [vmem:[%s0 + $0x3c] sm:$0xf]
    %v44 = vld [vmem:[%s2] sm:$0xf]
    %v45 = vld [vmem:[%s2 + $0x4] sm:$0xf]
    %v46 = vld [vmem:[%s2 + $0x8] sm:$0xf]
    %v47 = vld [vmem:[%s2 + $0xc] sm:$0xf]
    %v48 = vld [vmem:[%s2 + $0x10] sm:$0xf]
    %v49 = vld [vmem:[%s2 + $0x14] sm:$0xf]
    %v50 = vld [vmem:[%s2 + $0x18] sm:$0xf]
    %v51 = vld [vmem:[%s2 + $0x1c] sm:$0xf]
    %v52 = vld [vmem:[%s2 + $0x20] sm:$0xf]
    %v53 = vld [vmem:[%s2 + $0x24] sm:$0xf]
    %v54 = vld [vmem:[%s2 + $0x28] sm:$0xf]
    %v55 = vld [vmem:[%s2 + $0x2c] sm:$0xf]
    %v56 = vld [vmem:[%s2 + $0x30] sm:$0xf]
    %v57 = vld [vmem:[%s2 + $0x34] sm:$0xf]
    %v58 = vld [vmem:[%s2 + $0x38] sm:$0xf]
    %v59 = vld [vmem:[%s2 + $0x3c] sm:$0xf]
    %v60 = vld [vmem:[%s1] sm:$0xf]
    %v61 = vld [vmem:[%s1 + $0x4] sm:$0xf]
    %v62 = vld [vmem:[%s1 + $0x8] sm:$0xf]
    %v63 = vld [vmem:[%s1 + $0xc] sm:$0xf]
    %v64 = vld [vmem:[%s1 + $0x10] sm:$0xf]
    %v65 = vld [vmem:[%s1 + $0x14] sm:$0xf]
    %v66 = vld [vmem:[%s1 + $0x18] sm:$0xf]
    %v67 = vld [vmem:[%s1 + $0x1c] sm:$0xf]
    %v68 = vld [vmem:[%s1 + $0x20] sm:$0xf]
    %v69 = vld [vmem:[%s1 + $0x24] sm:$0xf]
    %v70 = vld [vmem:[%s1 + $0x28] sm:$0xf]
    %v71 = vld [vmem:[%s1 + $0x2c] sm:$0xf]
    %v72 = vld [vmem:[%s1 + $0x30] sm:$0xf]
    %v73 = vld [vmem:[%s1 + $0x34] sm:$0xf]
    %v74 = vld [vmem:[%s1 + $0x38] sm:$0xf]
    %v75 = vld [vmem:[%s1 + $0x3c] sm:$0xf]
    %v76 = vld [vmem:[%s3] sm:$0xf]
    %v77 = vld [vmem:[%s3 + $0x4] sm:$0xf]
    %v78 = vld [vmem:[%s3 + $0x8] sm:$0xf]
    %v79 = vld [vmem:[%s3 + $0xc] sm:$0xf]
    %v80 = vld [vmem:[%s3 + $0x10] sm:$0xf]
    %v81 = vld [vmem:[%s3 + $0x14] sm:$0xf]
    %v82 = vld [vmem:[%s3 + $0x18] sm:$0xf]
    %v83 = vld [vmem:[%s3 + $0x1c] sm:$0xf]
    %v84 = vld [vmem:[%s3 + $0x20] sm:$0xf]
    %v85 = vld [vmem:[%s3 + $0x24] sm:$0xf]
    %v86 = vld [vmem:[%s3 + $0x28] sm:$0xf]
    %v87 = vld [vmem:[%s3 + $0x2c] sm:$0xf]
    %v88 = vld [vmem:[%s3 + $0x30] sm:$0xf]
    %v89 = vld [vmem:[%s3 + $0x34] sm:$0xf]
    %v90 = vld [vmem:[%s3 + $0x38] sm:$0xf]
    %v91 = vld [vmem:[%s3 + $0x3c] sm:$0xf]
    %v108 = vunpack.c.l.b16 %v60
    %v109 = vunpack.c.l.b16 %v61
    %v110 = vunpack.c.l.b16 %v62
    %v111 = vunpack.c.l.b16 %v63
    %v112 = vunpack.c.l.b16 %v64
    %v113 = vunpack.c.l.b16 %v65
    %v114 = vunpack.c.l.b16 %v66
    %v115 = vunpack.c.l.b16 %v67
    %v116 = vunpack.c.l.b16 %v68
    %v117 = vunpack.c.l.b16 %v69
    %v118 = vunpack.c.l.b16 %v70
    %v119 = vunpack.c.l.b16 %v71
    %v120 = vunpack.c.l.b16 %v72
    %v121 = vunpack.c.l.b16 %v73
    %v122 = vunpack.c.l.b16 %v74
    %v123 = vunpack.c.l.b16 %v75
    %v124 = vpack.c.b16 %v109, %v108
    %v125 = vpack.c.b16 %v111, %v110
    %v126 = vpack.c.b16 %v113, %v112
    %v127 = vpack.c.b16 %v115, %v114
    %v128 = vpack.c.b16 %v117, %v116
    %v129 = vpack.c.b16 %v119, %v118
    %v130 = vpack.c.b16 %v121, %v120
    %v131 = vpack.c.b16 %v123, %v122
    %v156 = vunpack.c.l.b16 %v76
    %v157 = vunpack.c.l.b16 %v77
    %v158 = vunpack.c.l.b16 %v78
    %v159 = vunpack.c.l.b16 %v79
    %v160 = vunpack.c.l.b16 %v80
    %v161 = vunpack.c.l.b16 %v81
    %v162 = vunpack.c.l.b16 %v82
    %v163 = vunpack.c.l.b16 %v83
    %v164 = vunpack.c.l.b16 %v84
    %v165 = vunpack.c.l.b16 %v85
    %v166 = vunpack.c.l.b16 %v86
    %v167 = vunpack.c.l.b16 %v87
    %v168 = vunpack.c.l.b16 %v88
    %v169 = vunpack.c.l.b16 %v89
    %v170 = vunpack.c.l.b16 %v90
    %v171 = vunpack.c.l.b16 %v91
    %v172 = vpack.c.b16 %v157, %v156
    %v173 = vpack.c.b16 %v159, %v158
    %v174 = vpack.c.b16 %v161, %v160
    %v175 = vpack.c.b16 %v163, %v162
    %v176 = vpack.c.b16 %v165, %v164
    %v177 = vpack.c.b16 %v167, %v166
    %v178 = vpack.c.b16 %v169, %v168
    %v179 = vpack.c.b16 %v171, %v170
    %188 = vmatprep.subr.bf16.mxu0 0
    %189 = vmatpush1.bf16.msra.mxu0 %v179
    %190 = vmatprep.subr.bf16.mxu0 0
    %191 = vmatpush1.bf16.msra.mxu0 %v178
    %192 = vmatprep.subr.bf16.mxu0 0
    %193 = vmatpush1.bf16.msra.mxu0 %v177
    %194 = vmatprep.subr.bf16.mxu0 0
    %195 = vmatpush1.bf16.msra.mxu0 %v176
    %196 = vmatprep.subr.bf16.mxu0 0
    %197 = vmatpush1.bf16.msra.mxu0 %v175
    %198 = vmatprep.subr.bf16.mxu0 0
    %199 = vmatpush1.bf16.msra.mxu0 %v174
    %200 = vmatprep.subr.bf16.mxu0 0
    %201 = vmatpush1.bf16.msra.mxu0 %v173
    %202 = vmatprep.subr.bf16.mxu0 0
    %203 = vmatpush1.bf16.msra.mxu0 %v172
    %204 = vmatprep.subr.bf16.mxu0 0
    %205 = vmatpush2.bf16.msra.mxu0 0
    %206 = vmatprep.subr.bf16.mxu0 0
    %207 = vmatpush2.bf16.msra.mxu0 0
    %208 = vmatprep.subr.bf16.mxu0 0
    %209 = vmatpush2.bf16.msra.mxu0 0
    %210 = vmatprep.subr.bf16.mxu0 0
    %211 = vmatpush2.bf16.msra.mxu0 0
    %212 = vmatprep.subr.bf16.mxu0 0
    %213 = vmatpush2.bf16.msra.mxu0 0
    %214 = vmatprep.subr.bf16.mxu0 0
    %215 = vmatpush2.bf16.msra.mxu0 0
    %216 = vmatprep.subr.bf16.mxu0 0
    %217 = vmatpush2.bf16.msra.mxu0 0
    %218 = vmatprep.subr.bf16.mxu0 0
    %219 = vmatpush2.bf16.msra.mxu0 0
    %220 = vmatprep.mubr.bf16.mxu0 0
    %221 = vmatmul.mubr.bf16.gmra.mxu0 %v124
    %v222 = vpop.f32.mrf.mxu0
    %v223 = vadd.f32 0.0, %v222
    %v224 = vpop.f32.mrf.mxu0
    %v225 = vpop.f32.mrf.mxu0
    %v226 = vadd.f32 0.0, %v225
    %v227 = vpop.f32.mrf.mxu0
    %228 = vmatprep.mubr.bf16.mxu0 0
    %229 = vmatmul.mubr.bf16.gmra.mxu0 %v125
    %v230 = vpop.f32.mrf.mxu0
    %v231 = vadd.f32 0.0, %v230
    %v232 = vpop.f32.mrf.mxu0
    %v233 = vpop.f32.mrf.mxu0
    %v234 = vadd.f32 0.0, %v233
    %v235 = vpop.f32.mrf.mxu0
    %236 = vmatprep.mubr.bf16.mxu0 0
    %237 = vmatmul.mubr.bf16.gmra.mxu0 %v126
    %v238 = vpop.f32.mrf.mxu0
    %v239 = vadd.f32 0.0, %v238
    %v240 = vpop.f32.mrf.mxu0
    %v241 = vpop.f32.mrf.mxu0
    %v242 = vadd.f32 0.0, %v241
    %v243 = vpop.f32.mrf.mxu0
    %244 = vmatprep.mubr.bf16.mxu0 0
    %245 = vmatmul.mubr.bf16.gmra.mxu0 %v127
    %v246 = vpop.f32.mrf.mxu0
    %v247 = vadd.f32 0.0, %v246
    %v248 = vpop.f32.mrf.mxu0
    %v249 = vpop.f32.mrf.mxu0
    %v250 = vadd.f32 0.0, %v249
    %v251 = vpop.f32.mrf.mxu0
    %252 = vmatprep.mubr.bf16.mxu0 0
    %253 = vmatmul.mubr.bf16.gmra.mxu0 %v128
    %v254 = vpop.f32.mrf.mxu0
    %v255 = vadd.f32 0.0, %v254
    %v256 = vpop.f32.mrf.mxu0
    %v257 = vpop.f32.mrf.mxu0
    %v258 = vadd.f32 0.0, %v257
    %v259 = vpop.f32.mrf.mxu0
    %260 = vmatprep.mubr.bf16.mxu0 0
    %261 = vmatmul.mubr.bf16.gmra.mxu0 %v129
    %v262 = vpop.f32.mrf.mxu0
    %v263 = vadd.f32 0.0, %v262
    %v264 = vpop.f32.mrf.mxu0
    %v265 = vpop.f32.mrf.mxu0
    %v266 = vadd.f32 0.0, %v265
    %v267 = vpop.f32.mrf.mxu0
    %268 = vmatprep.mubr.bf16.mxu0 0
    %269 = vmatmul.mubr.bf16.gmra.mxu0 %v130
    %v270 = vpop.f32.mrf.mxu0
    %v271 = vadd.f32 0.0, %v270
    %v272 = vpop.f32.mrf.mxu0
    %v273 = vpop.f32.mrf.mxu0
    %v274 = vadd.f32 0.0, %v273
    %v275 = vpop.f32.mrf.mxu0
    %276 = vmatprep.mubr.bf16.mxu0 0
    %277 = vmatmul.mubr.bf16.gmra.mxu0 %v131
    %v278 = vpop.f32.mrf.mxu0
    %v279 = vadd.f32 0.0, %v278
    %v280 = vpop.f32.mrf.mxu0
    %v281 = vpop.f32.mrf.mxu0
    %v282 = vadd.f32 0.0, %v281
    %v283 = vpop.f32.mrf.mxu0
    %284 = vdwg.mxu0
    %v301 = vunpack.c.l.b16 %v28
    %v302 = vunpack.c.l.b16 %v29
    %v303 = vunpack.c.l.b16 %v30
    %v304 = vunpack.c.l.b16 %v31
    %v305 = vunpack.c.l.b16 %v32
    %v306 = vunpack.c.l.b16 %v33
    %v307 = vunpack.c.l.b16 %v34
    %v308 = vunpack.c.l.b16 %v35
    %v309 = vunpack.c.l.b16 %v36
    %v310 = vunpack.c.l.b16 %v37
    %v311 = vunpack.c.l.b16 %v38
    %v312 = vunpack.c.l.b16 %v39
    %v313 = vunpack.c.l.b16 %v40
    %v314 = vunpack.c.l.b16 %v41
    %v315 = vunpack.c.l.b16 %v42
    %v316 = vunpack.c.l.b16 %v43
    %v317 = vpack.c.b16 %v302, %v301
    %v318 = vpack.c.b16 %v304, %v303
    %v319 = vpack.c.b16 %v306, %v305
    %v320 = vpack.c.b16 %v308, %v307
    %v321 = vpack.c.b16 %v310, %v309
    %v322 = vpack.c.b16 %v312, %v311
    %v323 = vpack.c.b16 %v314, %v313
    %v324 = vpack.c.b16 %v316, %v315
    %v349 = vunpack.c.l.b16 %v44
    %v350 = vunpack.c.l.b16 %v45
    %v351 = vunpack.c.l.b16 %v46
    %v352 = vunpack.c.l.b16 %v47
    %v353 = vunpack.c.l.b16 %v48
    %v354 = vunpack.c.l.b16 %v49
    %v355 = vunpack.c.l.b16 %v50
    %v356 = vunpack.c.l.b16 %v51
    %v357 = vunpack.c.l.b16 %v52
    %v358 = vunpack.c.l.b16 %v53
    %v359 = vunpack.c.l.b16 %v54
    %v360 = vunpack.c.l.b16 %v55
    %v361 = vunpack.c.l.b16 %v56
    %v362 = vunpack.c.l.b16 %v57
    %v363 = vunpack.c.l.b16 %v58
    %v364 = vunpack.c.l.b16 %v59
    %v365 = vpack.c.b16 %v350, %v349
    %v366 = vpack.c.b16 %v352, %v351
    %v367 = vpack.c.b16 %v354, %v353
    %v368 = vpack.c.b16 %v356, %v355
    %v369 = vpack.c.b16 %v358, %v357
    %v370 = vpack.c.b16 %v360, %v359
    %v371 = vpack.c.b16 %v362, %v361
    %v372 = vpack.c.b16 %v364, %v363
    %381 = vmatprep.subr.bf16.mxu0 0
    %382 = vmatpush1.bf16.msra.mxu0 %v372
    %383 = vmatprep.subr.bf16.mxu0 0
    %384 = vmatpush1.bf16.msra.mxu0 %v371
    %385 = vmatprep.subr.bf16.mxu0 0
    %386 = vmatpush1.bf16.msra.mxu0 %v370
    %387 = vmatprep.subr.bf16.mxu0 0
    %388 = vmatpush1.bf16.msra.mxu0 %v369
    %389 = vmatprep.subr.bf16.mxu0 0
    %390 = vmatpush1.bf16.msra.mxu0 %v368
    %391 = vmatprep.subr.bf16.mxu0 0
    %392 = vmatpush1.bf16.msra.mxu0 %v367
    %393 = vmatprep.subr.bf16.mxu0 0
    %394 = vmatpush1.bf16.msra.mxu0 %v366
    %395 = vmatprep.subr.bf16.mxu0 0
    %396 = vmatpush1.bf16.msra.mxu0 %v365
    %397 = vmatprep.subr.bf16.mxu0 0
    %398 = vmatpush2.bf16.msra.mxu0 0
    %399 = vmatprep.subr.bf16.mxu0 0
    %400 = vmatpush2.bf16.msra.mxu0 0
    %401 = vmatprep.subr.bf16.mxu0 0
    %402 = vmatpush2.bf16.msra.mxu0 0
    %403 = vmatprep.subr.bf16.mxu0 0
    %404 = vmatpush2.bf16.msra.mxu0 0
    %405 = vmatprep.subr.bf16.mxu0 0
    %406 = vmatpush2.bf16.msra.mxu0 0
    %407 = vmatprep.subr.bf16.mxu0 0
    %408 = vmatpush2.bf16.msra.mxu0 0
    %409 = vmatprep.subr.bf16.mxu0 0
    %410 = vmatpush2.bf16.msra.mxu0 0
    %411 = vmatprep.subr.bf16.mxu0 0
    %412 = vmatpush2.bf16.msra.mxu0 0
    %413 = vmatprep.mubr.bf16.mxu0 0
    %414 = vmatmul.mubr.bf16.gmra.mxu0 %v317
    %v415 = vpop.f32.mrf.mxu0
    %v416 = vadd.f32 %v223, %v415
    %v417 = vpop.f32.mrf.mxu0
    %v418 = vpop.f32.mrf.mxu0
    %v419 = vadd.f32 %v226, %v418
    %v420 = vpop.f32.mrf.mxu0
    %421 = vmatprep.mubr.bf16.mxu0 0
    %422 = vmatmul.mubr.bf16.gmra.mxu0 %v318
    %v423 = vpop.f32.mrf.mxu0
    %v424 = vadd.f32 %v231, %v423
    %v425 = vpop.f32.mrf.mxu0
    %v426 = vpop.f32.mrf.mxu0
    %v427 = vadd.f32 %v234, %v426
    %v428 = vpop.f32.mrf.mxu0
    %429 = vmatprep.mubr.bf16.mxu0 0
    %430 = vmatmul.mubr.bf16.gmra.mxu0 %v319
    %v431 = vpop.f32.mrf.mxu0
    %v432 = vadd.f32 %v239, %v431
    %v433 = vpop.f32.mrf.mxu0
    %v434 = vpop.f32.mrf.mxu0
    %v435 = vadd.f32 %v242, %v434
    %v436 = vpop.f32.mrf.mxu0
    %437 = vmatprep.mubr.bf16.mxu0 0
    %438 = vmatmul.mubr.bf16.gmra.mxu0 %v320
    %v439 = vpop.f32.mrf.mxu0
    %v440 = vadd.f32 %v247, %v439
    %v441 = vpop.f32.mrf.mxu0
    %v442 = vpop.f32.mrf.mxu0
    %v443 = vadd.f32 %v250, %v442
    %v444 = vpop.f32.mrf.mxu0
    %445 = vmatprep.mubr.bf16.mxu0 0
    %446 = vmatmul.mubr.bf16.gmra.mxu0 %v321
    %v447 = vpop.f32.mrf.mxu0
    %v448 = vadd.f32 %v255, %v447
    %v449 = vpop.f32.mrf.mxu0
    %v450 = vpop.f32.mrf.mxu0
    %v451 = vadd.f32 %v258, %v450
    %v452 = vpop.f32.mrf.mxu0
    %453 = vmatprep.mubr.bf16.mxu0 0
    %454 = vmatmul.mubr.bf16.gmra.mxu0 %v322
    %v455 = vpop.f32.mrf.mxu0
    %v456 = vadd.f32 %v263, %v455
    %v457 = vpop.f32.mrf.mxu0
    %v458 = vpop.f32.mrf.mxu0
    %v459 = vadd.f32 %v266, %v458
    %v460 = vpop.f32.mrf.mxu0
    %461 = vmatprep.mubr.bf16.mxu0 0
    %462 = vmatmul.mubr.bf16.gmra.mxu0 %v323
    %v463 = vpop.f32.mrf.mxu0
    %v464 = vadd.f32 %v271, %v463
    %v465 = vpop.f32.mrf.mxu0
    %v466 = vpop.f32.mrf.mxu0
    %v467 = vadd.f32 %v274, %v466
    %v468 = vpop.f32.mrf.mxu0
    %469 = vmatprep.mubr.bf16.mxu0 0
    %470 = vmatmul.mubr.bf16.gmra.mxu0 %v324
    %v471 = vpop.f32.mrf.mxu0
    %v472 = vadd.f32 %v279, %v471
    %v473 = vpop.f32.mrf.mxu0
    %v474 = vpop.f32.mrf.mxu0
    %v475 = vadd.f32 %v282, %v474
    %v476 = vpop.f32.mrf.mxu0
    %477 = vdwg.mxu0
    %v478 = vld [vmem:[%s4] sm:$0x1]
    %v480 = vlaneseq
    %v481 = vshrl.u32 %v480, 7
    %v482 = vsub.s32 0, %v481
    %v483 = vrot.slane %v478, %v482
    %v485 = vadd.f32 %v416, %v483
    %v486 = vadd.f32 %v419, %v483
    %v487 = vadd.f32 %v424, %v483
    %v488 = vadd.f32 %v427, %v483
    %v489 = vadd.f32 %v432, %v483
    %v490 = vadd.f32 %v435, %v483
    %v491 = vadd.f32 %v440, %v483
    %v492 = vadd.f32 %v443, %v483
    %v493 = vadd.f32 %v448, %v483
    %v494 = vadd.f32 %v451, %v483
    %v495 = vadd.f32 %v456, %v483
    %v496 = vadd.f32 %v459, %v483
    %v497 = vadd.f32 %v464, %v483
    %v498 = vadd.f32 %v467, %v483
    %v499 = vadd.f32 %v472, %v483
    %v500 = vadd.f32 %v475, %v483
    %v501 = vsub.f32 0.0, %v485
    %v502 = vsub.f32 0.0, %v486
    %v503 = vsub.f32 0.0, %v487
    %v504 = vsub.f32 0.0, %v488
    %v505 = vsub.f32 0.0, %v489
    %v506 = vsub.f32 0.0, %v490
    %v507 = vsub.f32 0.0, %v491
    %v508 = vsub.f32 0.0, %v492
    %v509 = vsub.f32 0.0, %v493
    %v510 = vsub.f32 0.0, %v494
    %v511 = vsub.f32 0.0, %v495
    %v512 = vsub.f32 0.0, %v496
    %v513 = vsub.f32 0.0, %v497
    %v514 = vsub.f32 0.0, %v498
    %v515 = vsub.f32 0.0, %v499
    %v516 = vsub.f32 0.0, %v500
    %v517 = vmul.f32 %v501, 1.442695
    %v518 = vpow.pop %v517
    %v519 = vmul.f32 %v502, 1.442695
    %v520 = vpow.pop %v519
    %v521 = vmul.f32 %v503, 1.442695
    %v522 = vpow.pop %v521
    %v523 = vmul.f32 %v504, 1.442695
    %v524 = vpow.pop %v523
    %v525 = vmul.f32 %v505, 1.442695
    %v526 = vpow.pop %v525
    %v527 = vmul.f32 %v506, 1.442695
    %v528 = vpow.pop %v527
    %v529 = vmul.f32 %v507, 1.442695
    %v530 = vpow.pop %v529
    %v531 = vmul.f32 %v508, 1.442695
    %v532 = vpow.pop %v531
    %v533 = vmul.f32 %v509, 1.442695
    %v534 = vpow.pop %v533
    %v535 = vmul.f32 %v510, 1.442695
    %v536 = vpow.pop %v535
    %v537 = vmul.f32 %v511, 1.442695
    %v538 = vpow.pop %v537
    %v539 = vmul.f32 %v512, 1.442695
    %v540 = vpow.pop %v539
    %v541 = vmul.f32 %v513, 1.442695
    %v542 = vpow.pop %v541
    %v543 = vmul.f32 %v514, 1.442695
    %v544 = vpow.pop %v543
    %v545 = vmul.f32 %v515, 1.442695
    %v546 = vpow.pop %v545
    %v547 = vmul.f32 %v516, 1.442695
    %v548 = vpow.pop %v547
    %v549 = vadd.f32 %v518, 1.0
    %v550 = vadd.f32 %v520, 1.0
    %v551 = vadd.f32 %v522, 1.0
    %v552 = vadd.f32 %v524, 1.0
    %v553 = vadd.f32 %v526, 1.0
    %v554 = vadd.f32 %v528, 1.0
    %v555 = vadd.f32 %v530, 1.0
    %v556 = vadd.f32 %v532, 1.0
    %v557 = vadd.f32 %v534, 1.0
    %v558 = vadd.f32 %v536, 1.0
    %v559 = vadd.f32 %v538, 1.0
    %v560 = vadd.f32 %v540, 1.0
    %v561 = vadd.f32 %v542, 1.0
    %v562 = vadd.f32 %v544, 1.0
    %v563 = vadd.f32 %v546, 1.0
    %v564 = vadd.f32 %v548, 1.0
    %v565 = vrcp.pop %v549
    %v566 = vrcp.pop %v550
    %v567 = vrcp.pop %v551
    %v568 = vrcp.pop %v552
    %v569 = vrcp.pop %v553
    %v570 = vrcp.pop %v554
    %v571 = vrcp.pop %v555
    %v572 = vrcp.pop %v556
    %v573 = vrcp.pop %v557
    %v574 = vrcp.pop %v558
    %v575 = vrcp.pop %v559
    %v576 = vrcp.pop %v560
    %v577 = vrcp.pop %v561
    %v578 = vrcp.pop %v562
    %v579 = vrcp.pop %v563
    %v580 = vrcp.pop %v564
    %v581 = vmul.f32 %v485, %v565
    %v582 = vmul.f32 %v486, %v566
    %v583 = vmul.f32 %v487, %v567
    %v584 = vmul.f32 %v488, %v568
    %v585 = vmul.f32 %v489, %v569
    %v586 = vmul.f32 %v490, %v570
    %v587 = vmul.f32 %v491, %v571
    %v588 = vmul.f32 %v492, %v572
    %v589 = vmul.f32 %v493, %v573
    %v590 = vmul.f32 %v494, %v574
    %v591 = vmul.f32 %v495, %v575
    %v592 = vmul.f32 %v496, %v576
    %v593 = vmul.f32 %v497, %v577
    %v594 = vmul.f32 %v498, %v578
    %v595 = vmul.f32 %v499, %v579
    %v596 = vmul.f32 %v500, %v580
    %v597 = vpack.c.bf16 %v582, %v581
    %v598 = vpack.c.bf16 %v584, %v583
    %v599 = vpack.c.bf16 %v586, %v585
    %v600 = vpack.c.bf16 %v588, %v587
    %v601 = vpack.c.bf16 %v590, %v589
    %v602 = vpack.c.bf16 %v592, %v591
    %v603 = vpack.c.bf16 %v594, %v593
    %v604 = vpack.c.bf16 %v596, %v595
    %v605 = vld [vmem:[%s5] sm:$0xf]
    %v606 = vld [vmem:[%s5 + $0x4] sm:$0xf]
    %v607 = vld [vmem:[%s5 + $0x8] sm:$0xf]
    %v608 = vld [vmem:[%s5 + $0xc] sm:$0xf]
    %v609 = vld [vmem:[%s5 + $0x10] sm:$0xf]
    %v610 = vld [vmem:[%s5 + $0x14] sm:$0xf]
    %v611 = vld [vmem:[%s5 + $0x18] sm:$0xf]
    %v612 = vld [vmem:[%s5 + $0x1c] sm:$0xf]
    %v613 = vld [vmem:[%s5 + $0x20] sm:$0xf]
    %v614 = vld [vmem:[%s5 + $0x24] sm:$0xf]
    %v615 = vld [vmem:[%s5 + $0x28] sm:$0xf]
    %v616 = vld [vmem:[%s5 + $0x2c] sm:$0xf]
    %v617 = vld [vmem:[%s5 + $0x30] sm:$0xf]
    %v618 = vld [vmem:[%s5 + $0x34] sm:$0xf]
    %v619 = vld [vmem:[%s5 + $0x38] sm:$0xf]
    %v620 = vld [vmem:[%s5 + $0x3c] sm:$0xf]
    %v621 = vld [vmem:[%s6] sm:$0x1]
    %v623 = vlaneseq
    %v624 = vshrl.u32 %v623, 7
    %v625 = vsub.s32 0, %v624
    %v626 = vrot.slane %v621, %v625
    %v644 = vunpack.c.l.b16 %v605
    %v645 = vunpack.c.l.b16 %v606
    %v646 = vunpack.c.l.b16 %v607
    %v647 = vunpack.c.l.b16 %v608
    %v648 = vunpack.c.l.b16 %v609
    %v649 = vunpack.c.l.b16 %v610
    %v650 = vunpack.c.l.b16 %v611
    %v651 = vunpack.c.l.b16 %v612
    %v652 = vunpack.c.l.b16 %v613
    %v653 = vunpack.c.l.b16 %v614
    %v654 = vunpack.c.l.b16 %v615
    %v655 = vunpack.c.l.b16 %v616
    %v656 = vunpack.c.l.b16 %v617
    %v657 = vunpack.c.l.b16 %v618
    %v658 = vunpack.c.l.b16 %v619
    %v659 = vunpack.c.l.b16 %v620
    %v660 = vpack.c.b16 %v645, %v644
    %v661 = vpack.c.b16 %v647, %v646
    %v662 = vpack.c.b16 %v649, %v648
    %v663 = vpack.c.b16 %v651, %v650
    %v664 = vpack.c.b16 %v653, %v652
    %v665 = vpack.c.b16 %v655, %v654
    %v666 = vpack.c.b16 %v657, %v656
    %v667 = vpack.c.b16 %v659, %v658
    %676 = vmatprep.subr.bf16.mxu0 0
    %677 = vmatpush1.bf16.msra.mxu0 %v667
    %678 = vmatprep.subr.bf16.mxu0 0
    %679 = vmatpush1.bf16.msra.mxu0 %v666
    %680 = vmatprep.subr.bf16.mxu0 0
    %681 = vmatpush1.bf16.msra.mxu0 %v665
    %682 = vmatprep.subr.bf16.mxu0 0
    %683 = vmatpush1.bf16.msra.mxu0 %v664
    %684 = vmatprep.subr.bf16.mxu0 0
    %685 = vmatpush1.bf16.msra.mxu0 %v663
    %686 = vmatprep.subr.bf16.mxu0 0
    %687 = vmatpush1.bf16.msra.mxu0 %v662
    %688 = vmatprep.subr.bf16.mxu0 0
    %689 = vmatpush1.bf16.msra.mxu0 %v661
    %690 = vmatprep.subr.bf16.mxu0 0
    %691 = vmatpush1.bf16.msra.mxu0 %v660
    %692 = vmatprep.subr.bf16.mxu0 0
    %693 = vmatpush2.bf16.msra.mxu0 0
    %694 = vmatprep.subr.bf16.mxu0 0
    %695 = vmatpush2.bf16.msra.mxu0 0
    %696 = vmatprep.subr.bf16.mxu0 0
    %697 = vmatpush2.bf16.msra.mxu0 0
    %698 = vmatprep.subr.bf16.mxu0 0
    %699 = vmatpush2.bf16.msra.mxu0 0
    %700 = vmatprep.subr.bf16.mxu0 0
    %701 = vmatpush2.bf16.msra.mxu0 0
    %702 = vmatprep.subr.bf16.mxu0 0
    %703 = vmatpush2.bf16.msra.mxu0 0
    %704 = vmatprep.subr.bf16.mxu0 0
    %705 = vmatpush2.bf16.msra.mxu0 0
    %706 = vmatprep.subr.bf16.mxu0 0
    %707 = vmatpush2.bf16.msra.mxu0 0
    %708 = vmatprep.mubr.bf16.mxu0 0
    %709 = vmatmul.mubr.bf16.gmra.mxu0 %v597
    %v710 = vpop.f32.mrf.mxu0
    %v711 = vadd.f32 %v626, %v710
    %v712 = vpop.f32.mrf.mxu0
    %v713 = vpop.f32.mrf.mxu0
    %v714 = vadd.f32 %v626, %v713
    %v715 = vpop.f32.mrf.mxu0
    %716 = vmatprep.mubr.bf16.mxu0 0
    %717 = vmatmul.mubr.bf16.gmra.mxu0 %v598
    %v718 = vpop.f32.mrf.mxu0
    %v719 = vadd.f32 %v626, %v718
    %v720 = vpop.f32.mrf.mxu0
    %v721 = vpop.f32.mrf.mxu0
    %v722 = vadd.f32 %v626, %v721
    %v723 = vpop.f32.mrf.mxu0
    %724 = vmatprep.mubr.bf16.mxu0 0
    %725 = vmatmul.mubr.bf16.gmra.mxu0 %v599
    %v726 = vpop.f32.mrf.mxu0
    %v727 = vadd.f32 %v626, %v726
    %v728 = vpop.f32.mrf.mxu0
    %v729 = vpop.f32.mrf.mxu0
    %v730 = vadd.f32 %v626, %v729
    %v731 = vpop.f32.mrf.mxu0
    %732 = vmatprep.mubr.bf16.mxu0 0
    %733 = vmatmul.mubr.bf16.gmra.mxu0 %v600
    %v734 = vpop.f32.mrf.mxu0
    %v735 = vadd.f32 %v626, %v734
    %v736 = vpop.f32.mrf.mxu0
    %v737 = vpop.f32.mrf.mxu0
    %v738 = vadd.f32 %v626, %v737
    %v739 = vpop.f32.mrf.mxu0
    %740 = vmatprep.mubr.bf16.mxu0 0
    %741 = vmatmul.mubr.bf16.gmra.mxu0 %v601
    %v742 = vpop.f32.mrf.mxu0
    %v743 = vadd.f32 %v626, %v742
    %v744 = vpop.f32.mrf.mxu0
    %v745 = vpop.f32.mrf.mxu0
    %v746 = vadd.f32 %v626, %v745
    %v747 = vpop.f32.mrf.mxu0
    %748 = vmatprep.mubr.bf16.mxu0 0
    %749 = vmatmul.mubr.bf16.gmra.mxu0 %v602
    %v750 = vpop.f32.mrf.mxu0
    %v751 = vadd.f32 %v626, %v750
    %v752 = vpop.f32.mrf.mxu0
    %v753 = vpop.f32.mrf.mxu0
    %v754 = vadd.f32 %v626, %v753
    %v755 = vpop.f32.mrf.mxu0
    %756 = vmatprep.mubr.bf16.mxu0 0
    %757 = vmatmul.mubr.bf16.gmra.mxu0 %v603
    %v758 = vpop.f32.mrf.mxu0
    %v759 = vadd.f32 %v626, %v758
    %v760 = vpop.f32.mrf.mxu0
    %v761 = vpop.f32.mrf.mxu0
    %v762 = vadd.f32 %v626, %v761
    %v763 = vpop.f32.mrf.mxu0
    %764 = vmatprep.mubr.bf16.mxu0 0
    %765 = vmatmul.mubr.bf16.gmra.mxu0 %v604
    %v766 = vpop.f32.mrf.mxu0
    %v767 = vadd.f32 %v626, %v766
    %v768 = vpop.f32.mrf.mxu0
    %v769 = vpop.f32.mrf.mxu0
    %v770 = vadd.f32 %v626, %v769
    %v771 = vpop.f32.mrf.mxu0
    %772 = vdwg.mxu0
    %773 = vst [vmem:[#allocation2] sm:$0xff] %v711
    %774 = vst [vmem:[#allocation2 + $0x8] sm:$0xff] %v714
    %775 = vst [vmem:[#allocation2 + $0x10] sm:$0xff] %v719
    %776 = vst [vmem:[#allocation2 + $0x18] sm:$0xff] %v722
    %777 = vst [vmem:[#allocation2 + $0x20] sm:$0xff] %v727
    %778 = vst [vmem:[#allocation2 + $0x28] sm:$0xff] %v730
    %779 = vst [vmem:[#allocation2 + $0x30] sm:$0xff] %v735
    %780 = vst [vmem:[#allocation2 + $0x38] sm:$0xff] %v738
    %781 = vst [vmem:[#allocation2 + $0x40] sm:$0xff] %v743
    %782 = vst [vmem:[#allocation2 + $0x48] sm:$0xff] %v746
    %783 = vst [vmem:[#allocation2 + $0x50] sm:$0xff] %v751
    %784 = vst [vmem:[#allocation2 + $0x58] sm:$0xff] %v754
    %785 = vst [vmem:[#allocation2 + $0x60] sm:$0xff] %v759
    %786 = vst [vmem:[#allocation2 + $0x68] sm:$0xff] %v762
    %787 = vst [vmem:[#allocation2 + $0x70] sm:$0xff] %v767
    %788 = vst [vmem:[#allocation2 + $0x78] sm:$0xff] %v770
    // Predicated region
    $region30: #{_lambda_.19} parent=1 // pred_check
      _
    $region31: #{_lambda_.19} parent=1 // pred_check_branch
      %790 = sbr.rel (0) target = $region33
    $region32: #{_lambda_.19} parent=1 // pred_region
      %s792 = ssub.s32 2048, 2048
      %793 = vsyncadd [#allocation3], %s792
      %s794 = sshll.u32 [#allocation2], 4
      %s795 = int_to_ptr.vmem [resolvable:$true] %s794
      %800 = dma.vmem_to_hbm [thread:$0]  %s795, 2048, %s7, [#allocation3], 128, 128, 8
    $region33: #{_lambda_.19} parent=1 // pred_fallthru
      _
    // Predicated region
    $region34: #{_lambda_.19} parent=1 // pred_check
      _
    $region35: #{_lambda_.19} parent=1 // pred_check_branch
      %802 = sbr.rel (0) target = $region37
    $region36: #{_lambda_.19} parent=1 // pred_region
      %803 = dma.done [#allocation3], 2048
    $region37: #{_lambda_.19} parent=1 // pred_fallthru
      _
    %804 = vsyncpa [#allocation3], 1

// kernel: _lambda_.20
$region0: #{_lambda_.20}
  #allocation0 [shape = 'u32[]', space=smem, size = 0x4, offset = 0x4, fixed_abs, tag = 'smem constant byte address 0x4 - core index']
  #allocation1 [shape = 'u32[144,128]{1,0:T(1,128)}', space=vmem, size = 0x12000, scoped, tag = 'internal scratch']
  %s0 = inlined_call_operand.vmem [shape: bf16[32,128], index: 0, kind: input, shape index: {}]
  %s1 = inlined_call_operand.vmem [shape: bf16[128,256], index: 1, kind: input, shape index: {}]
  %s2 = inlined_call_operand.vmem [shape: f32[1,256], index: 2, kind: input, shape index: {}]
  %s3 = inlined_call_operand.vmem [shape: bf16[256,128], index: 3, kind: input, shape index: {}]
  %s4 = inlined_call_operand.vmem [shape: f32[1,128], index: 4, kind: input, shape index: {}]
  %s5 = inlined_call_operand.hbm [shape: f32[32,128], index: 5, kind: output, shape index: {}]
  %s6 = sld [smem:[#allocation0]]
  $region30: #{_lambda_.20} parent=0
    _
  %s8 = ssub.s32 1, %s6
  %s9 = scalar_select 0, %s8, %s6
  $region1: #{_lambda_.20} parent=0
    #allocation2 [shape = 'u8[16384]{0}', space=vmem, size = 0x4000, scoped, tag = 'output window, operand 0, single buffered']
    #allocation3 [shape = 's32[1]{0}', space=sflag, size = 0x4, scoped, tag = 'scoped memory for _lambda_.20']
    %10 = vsyncpa [#allocation3], 0
    // Predicated region
    $region2: #{_lambda_.20} parent=1 // pred_check
      _
    $region3: #{_lambda_.20} parent=1 // pred_check_branch
      %12 = sbr.rel (0) target = $region5
    $region4: #{_lambda_.20} parent=1 // pred_region
      _
    $region5: #{_lambda_.20} parent=1 // pred_fallthru
      _
    // Predicated region
    $region6: #{_lambda_.20} parent=1 // pred_check
      _
    $region7: #{_lambda_.20} parent=1 // pred_check_branch
      %14 = sbr.rel (0) target = $region9
    $region8: #{_lambda_.20} parent=1 // pred_region
      _
    $region9: #{_lambda_.20} parent=1 // pred_fallthru
      _
    // Predicated region
    $region10: #{_lambda_.20} parent=1 // pred_check
      _
    $region11: #{_lambda_.20} parent=1 // pred_check_branch
      %16 = sbr.rel (0) target = $region13
    $region12: #{_lambda_.20} parent=1 // pred_region
      _
    $region13: #{_lambda_.20} parent=1 // pred_fallthru
      _
    // Predicated region
    $region14: #{_lambda_.20} parent=1 // pred_check
      _
    $region15: #{_lambda_.20} parent=1 // pred_check_branch
      %18 = sbr.rel (0) target = $region17
    $region16: #{_lambda_.20} parent=1 // pred_region
      _
    $region17: #{_lambda_.20} parent=1 // pred_fallthru
      _
    // Predicated region
    $region18: #{_lambda_.20} parent=1 // pred_check
      _
    $region19: #{_lambda_.20} parent=1 // pred_check_branch
      %20 = sbr.rel (0) target = $region21
    $region20: #{_lambda_.20} parent=1 // pred_region
      _
    $region21: #{_lambda_.20} parent=1 // pred_fallthru
      _
    %v22 = vld [vmem:[%s0] sm:$0xf]
    %v23 = vld [vmem:[%s0 + $0x4] sm:$0xf]
    %v24 = vld [vmem:[%s0 + $0x8] sm:$0xf]
    %v25 = vld [vmem:[%s0 + $0xc] sm:$0xf]
    %v26 = vld [vmem:[%s1] sm:$0xff]
    %v27 = vld [vmem:[%s1 + $0x8] sm:$0xff]
    %v28 = vld [vmem:[%s1 + $0x10] sm:$0xff]
    %v29 = vld [vmem:[%s1 + $0x18] sm:$0xff]
    %v30 = vld [vmem:[%s1 + $0x20] sm:$0xff]
    %v31 = vld [vmem:[%s1 + $0x28] sm:$0xff]
    %v32 = vld [vmem:[%s1 + $0x30] sm:$0xff]
    %v33 = vld [vmem:[%s1 + $0x38] sm:$0xff]
    %v34 = vld [vmem:[%s1 + $0x40] sm:$0xff]
    %v35 = vld [vmem:[%s1 + $0x48] sm:$0xff]
    %v36 = vld [vmem:[%s1 + $0x50] sm:$0xff]
    %v37 = vld [vmem:[%s1 + $0x58] sm:$0xff]
    %v38 = vld [vmem:[%s1 + $0x60] sm:$0xff]
    %v39 = vld [vmem:[%s1 + $0x68] sm:$0xff]
    %v40 = vld [vmem:[%s1 + $0x70] sm:$0xff]
    %v41 = vld [vmem:[%s1 + $0x78] sm:$0xff]
    %v42 = vld [vmem:[%s2] sm:$0x3]
    %v44 = vlaneseq
    %v45 = vshrl.u32 %v44, 7
    %v46 = vsub.s32 0, %v45
    %v47 = vrot.slane %v42, %v46
    %v48 = vlaneseq
    %v49 = vshrl.u32 %v48, 7
    %v50 = vsub.s32 1, %v49
    %v51 = vrot.slane %v42, %v50
    %v58 = vunpack.c.l.b16 %v22
    %v59 = vunpack.c.l.b16 %v23
    %v60 = vunpack.c.l.b16 %v24
    %v61 = vunpack.c.l.b16 %v25
    %v62 = vpack.c.b16 %v59, %v58
    %v63 = vpack.c.b16 %v61, %v60
    %v82 = vunpack.c.l.b16 %v26
    %v83 = vunpack.c.h.b16 %v26
    %v84 = vunpack.c.l.b16 %v27
    %v85 = vunpack.c.h.b16 %v27
    %v86 = vunpack.c.l.b16 %v28
    %v87 = vunpack.c.h.b16 %v28
    %v88 = vunpack.c.l.b16 %v29
    %v89 = vunpack.c.h.b16 %v29
    %v90 = vunpack.c.l.b16 %v30
    %v91 = vunpack.c.h.b16 %v30
    %v92 = vunpack.c.l.b16 %v31
    %v93 = vunpack.c.h.b16 %v31
    %v94 = vunpack.c.l.b16 %v32
    %v95 = vunpack.c.h.b16 %v32
    %v96 = vunpack.c.l.b16 %v33
    %v97 = vunpack.c.h.b16 %v33
    %v98 = vunpack.c.l.b16 %v34
    %v99 = vunpack.c.h.b16 %v34
    %v100 = vunpack.c.l.b16 %v35
    %v101 = vunpack.c.h.b16 %v35
    %v102 = vunpack.c.l.b16 %v36
    %v103 = vunpack.c.h.b16 %v36
    %v104 = vunpack.c.l.b16 %v37
    %v105 = vunpack.c.h.b16 %v37
    %v106 = vunpack.c.l.b16 %v38
    %v107 = vunpack.c.h.b16 %v38
    %v108 = vunpack.c.l.b16 %v39
    %v109 = vunpack.c.h.b16 %v39
    %v110 = vunpack.c.l.b16 %v40
    %v111 = vunpack.c.h.b16 %v40
    %v112 = vunpack.c.l.b16 %v41
    %v113 = vunpack.c.h.b16 %v41
    %v114 = vpack.c.b16 %v84, %v82
    %v115 = vpack.c.b16 %v85, %v83
    %v116 = vpack.c.b16 %v88, %v86
    %v117 = vpack.c.b16 %v89, %v87
    %v118 = vpack.c.b16 %v92, %v90
    %v119 = vpack.c.b16 %v93, %v91
    %v120 = vpack.c.b16 %v96, %v94
    %v121 = vpack.c.b16 %v97, %v95
    %v122 = vpack.c.b16 %v100, %v98
    %v123 = vpack.c.b16 %v101, %v99
    %v124 = vpack.c.b16 %v104, %v102
    %v125 = vpack.c.b16 %v105, %v103
    %v126 = vpack.c.b16 %v108, %v106
    %v127 = vpack.c.b16 %v109, %v107
    %v128 = vpack.c.b16 %v112, %v110
    %v129 = vpack.c.b16 %v113, %v111
    %146 = vmatprep.subr.bf16.mxu0 %v129
    %147 = vmatpush1.bf16.msra.mxu0 %v128
    %148 = vmatprep.subr.bf16.mxu0 %v127
    %149 = vmatpush1.bf16.msra.mxu0 %v126
    %150 = vmatprep.subr.bf16.mxu0 %v125
    %151 = vmatpush1.bf16.msra.mxu0 %v124
    %152 = vmatprep.subr.bf16.mxu0 %v123
    %153 = vmatpush1.bf16.msra.mxu0 %v122
    %154 = vmatprep.subr.bf16.mxu0 %v121
    %155 = vmatpush1.bf16.msra.mxu0 %v120
    %156 = vmatprep.subr.bf16.mxu0 %v119
    %157 = vmatpush1.bf16.msra.mxu0 %v118
    %158 = vmatprep.subr.bf16.mxu0 %v117
    %159 = vmatpush1.bf16.msra.mxu0 %v116
    %160 = vmatprep.subr.bf16.mxu0 %v115
    %161 = vmatpush1.bf16.msra.mxu0 %v114
    %162 = vmatprep.subr.bf16.mxu0 0
    %163 = vmatpush2.bf16.msra.mxu0 0
    %164 = vmatprep.subr.bf16.mxu0 0
    %165 = vmatpush2.bf16.msra.mxu0 0
    %166 = vmatprep.subr.bf16.mxu0 0
    %167 = vmatpush2.bf16.msra.mxu0 0
    %168 = vmatprep.subr.bf16.mxu0 0
    %169 = vmatpush2.bf16.msra.mxu0 0
    %170 = vmatprep.subr.bf16.mxu0 0
    %171 = vmatpush2.bf16.msra.mxu0 0
    %172 = vmatprep.subr.bf16.mxu0 0
    %173 = vmatpush2.bf16.msra.mxu0 0
    %174 = vmatprep.subr.bf16.mxu0 0
    %175 = vmatpush2.bf16.msra.mxu0 0
    %176 = vmatprep.subr.bf16.mxu0 0
    %177 = vmatpush2.bf16.msra.mxu0 0
    %178 = vmatprep.mubr.bf16.mxu0 0
    %179 = vmatmul.mubr.bf16.gmra.mxu0 %v62
    %v180 = vpop.f32.mrf.mxu0
    %v181 = vadd.f32 %v47, %v180
    %v182 = vpop.f32.mrf.mxu0
    %v183 = vadd.f32 %v51, %v182
    %v184 = vpop.f32.mrf.mxu0
    %v185 = vadd.f32 %v47, %v184
    %v186 = vpop.f32.mrf.mxu0
    %v187 = vadd.f32 %v51, %v186
    %188 = vmatprep.mubr.bf16.mxu0 0
    %189 = vmatmul.mubr.bf16.gmra.mxu0 %v63
    %v190 = vpop.f32.mrf.mxu0
    %v191 = vadd.f32 %v47, %v190
    %v192 = vpop.f32.mrf.mxu0
    %v193 = vadd.f32 %v51, %v192
    %v194 = vpop.f32.mrf.mxu0
    %v195 = vadd.f32 %v47, %v194
    %v196 = vpop.f32.mrf.mxu0
    %v197 = vadd.f32 %v51, %v196
    %198 = vdwg.mxu0
    %v199 = vsub.f32 0.0, %v181
    %v200 = vsub.f32 0.0, %v183
    %v201 = vsub.f32 0.0, %v185
    %v202 = vsub.f32 0.0, %v187
    %v203 = vsub.f32 0.0, %v191
    %v204 = vsub.f32 0.0, %v193
    %v205 = vsub.f32 0.0, %v195
    %v206 = vsub.f32 0.0, %v197
    %v207 = vmul.f32 %v199, 1.442695
    %v208 = vpow.pop %v207
    %v209 = vmul.f32 %v200, 1.442695
    %v210 = vpow.pop %v209
    %v211 = vmul.f32 %v201, 1.442695
    %v212 = vpow.pop %v211
    %v213 = vmul.f32 %v202, 1.442695
    %v214 = vpow.pop %v213
    %v215 = vmul.f32 %v203, 1.442695
    %v216 = vpow.pop %v215
    %v217 = vmul.f32 %v204, 1.442695
    %v218 = vpow.pop %v217
    %v219 = vmul.f32 %v205, 1.442695
    %v220 = vpow.pop %v219
    %v221 = vmul.f32 %v206, 1.442695
    %v222 = vpow.pop %v221
    %v223 = vadd.f32 %v208, 1.0
    %v224 = vadd.f32 %v210, 1.0
    %v225 = vadd.f32 %v212, 1.0
    %v226 = vadd.f32 %v214, 1.0
    %v227 = vadd.f32 %v216, 1.0
    %v228 = vadd.f32 %v218, 1.0
    %v229 = vadd.f32 %v220, 1.0
    %v230 = vadd.f32 %v222, 1.0
    %v231 = vrcp.pop %v223
    %v232 = vrcp.pop %v224
    %v233 = vrcp.pop %v225
    %v234 = vrcp.pop %v226
    %v235 = vrcp.pop %v227
    %v236 = vrcp.pop %v228
    %v237 = vrcp.pop %v229
    %v238 = vrcp.pop %v230
    %v239 = vmul.f32 %v181, %v231
    %v240 = vmul.f32 %v183, %v232
    %v241 = vmul.f32 %v185, %v233
    %v242 = vmul.f32 %v187, %v234
    %v243 = vmul.f32 %v191, %v235
    %v244 = vmul.f32 %v193, %v236
    %v245 = vmul.f32 %v195, %v237
    %v246 = vmul.f32 %v197, %v238
    %v247 = vpack.c.bf16 %v241, %v239
    %v248 = vpack.c.bf16 %v242, %v240
    %v249 = vpack.c.bf16 %v245, %v243
    %v250 = vpack.c.bf16 %v246, %v244
    %v251 = vld [vmem:[%s3] sm:$0xf]
    %v252 = vld [vmem:[%s3 + $0x4] sm:$0xf]
    %v253 = vld [vmem:[%s3 + $0x8] sm:$0xf]
    %v254 = vld [vmem:[%s3 + $0xc] sm:$0xf]
    %v255 = vld [vmem:[%s3 + $0x10] sm:$0xf]
    %v256 = vld [vmem:[%s3 + $0x14] sm:$0xf]
    %v257 = vld [vmem:[%s3 + $0x18] sm:$0xf]
    %v258 = vld [vmem:[%s3 + $0x1c] sm:$0xf]
    %v259 = vld [vmem:[%s3 + $0x20] sm:$0xf]
    %v260 = vld [vmem:[%s3 + $0x24] sm:$0xf]
    %v261 = vld [vmem:[%s3 + $0x28] sm:$0xf]
    %v262 = vld [vmem:[%s3 + $0x2c] sm:$0xf]
    %v263 = vld [vmem:[%s3 + $0x30] sm:$0xf]
    %v264 = vld [vmem:[%s3 + $0x34] sm:$0xf]
    %v265 = vld [vmem:[%s3 + $0x38] sm:$0xf]
    %v266 = vld [vmem:[%s3 + $0x3c] sm:$0xf]
    %v267 = vld [vmem:[%s3 + $0x40] sm:$0xf]
    %v268 = vld [vmem:[%s3 + $0x44] sm:$0xf]
    %v269 = vld [vmem:[%s3 + $0x48] sm:$0xf]
    %v270 = vld [vmem:[%s3 + $0x4c] sm:$0xf]
    %v271 = vld [vmem:[%s3 + $0x50] sm:$0xf]
    %v272 = vld [vmem:[%s3 + $0x54] sm:$0xf]
    %v273 = vld [vmem:[%s3 + $0x58] sm:$0xf]
    %v274 = vld [vmem:[%s3 + $0x5c] sm:$0xf]
    %v275 = vld [vmem:[%s3 + $0x60] sm:$0xf]
    %v276 = vld [vmem:[%s3 + $0x64] sm:$0xf]
    %v277 = vld [vmem:[%s3 + $0x68] sm:$0xf]
    %v278 = vld [vmem:[%s3 + $0x6c] sm:$0xf]
    %v279 = vld [vmem:[%s3 + $0x70] sm:$0xf]
    %v280 = vld [vmem:[%s3 + $0x74] sm:$0xf]
    %v281 = vld [vmem:[%s3 + $0x78] sm:$0xf]
    %v282 = vld [vmem:[%s3 + $0x7c] sm:$0xf]
    %v283 = vld [vmem:[%s4] sm:$0x1]
    %v285 = vlaneseq
    %v286 = vshrl.u32 %v285, 7
    %v287 = vsub.s32 0, %v286
    %v288 = vrot.slane %v283, %v287
    %v322 = vunpack.c.l.b16 %v251
    %v323 = vunpack.c.l.b16 %v252
    %v324 = vunpack.c.l.b16 %v253
    %v325 = vunpack.c.l.b16 %v254
    %v326 = vunpack.c.l.b16 %v255
    %v327 = vunpack.c.l.b16 %v256
    %v328 = vunpack.c.l.b16 %v257
    %v329 = vunpack.c.l.b16 %v258
    %v330 = vunpack.c.l.b16 %v259
    %v331 = vunpack.c.l.b16 %v260
    %v332 = vunpack.c.l.b16 %v261
    %v333 = vunpack.c.l.b16 %v262
    %v334 = vunpack.c.l.b16 %v263
    %v335 = vunpack.c.l.b16 %v264
    %v336 = vunpack.c.l.b16 %v265
    %v337 = vunpack.c.l.b16 %v266
    %v338 = vunpack.c.l.b16 %v267
    %v339 = vunpack.c.l.b16 %v268
    %v340 = vunpack.c.l.b16 %v269
    %v341 = vunpack.c.l.b16 %v270
    %v342 = vunpack.c.l.b16 %v271
    %v343 = vunpack.c.l.b16 %v272
    %v344 = vunpack.c.l.b16 %v273
    %v345 = vunpack.c.l.b16 %v274
    %v346 = vunpack.c.l.b16 %v275
    %v347 = vunpack.c.l.b16 %v276
    %v348 = vunpack.c.l.b16 %v277
    %v349 = vunpack.c.l.b16 %v278
    %v350 = vunpack.c.l.b16 %v279
    %v351 = vunpack.c.l.b16 %v280
    %v352 = vunpack.c.l.b16 %v281
    %v353 = vunpack.c.l.b16 %v282
    %v354 = vpack.c.b16 %v323, %v322
    %v355 = vpack.c.b16 %v325, %v324
    %v356 = vpack.c.b16 %v327, %v326
    %v357 = vpack.c.b16 %v329, %v328
    %v358 = vpack.c.b16 %v331, %v330
    %v359 = vpack.c.b16 %v333, %v332
    %v360 = vpack.c.b16 %v335, %v334
    %v361 = vpack.c.b16 %v337, %v336
    %v362 = vpack.c.b16 %v339, %v338
    %v363 = vpack.c.b16 %v341, %v340
    %v364 = vpack.c.b16 %v343, %v342
    %v365 = vpack.c.b16 %v345, %v344
    %v366 = vpack.c.b16 %v347, %v346
    %v367 = vpack.c.b16 %v349, %v348
    %v368 = vpack.c.b16 %v351, %v350
    %v369 = vpack.c.b16 %v353, %v352
    %386 = vmatprep.subr.bf16.mxu0 0
    %387 = vmatpush1.bf16.msra.mxu0 %v361
    %388 = vmatprep.subr.bf16.mxu0 0
    %389 = vmatpush1.bf16.msra.mxu0 %v360
    %390 = vmatprep.subr.bf16.mxu0 0
    %391 = vmatpush1.bf16.msra.mxu0 %v359
    %392 = vmatprep.subr.bf16.mxu0 0
    %393 = vmatpush1.bf16.msra.mxu0 %v358
    %394 = vmatprep.subr.bf16.mxu0 0
    %395 = vmatpush1.bf16.msra.mxu0 %v357
    %396 = vmatprep.subr.bf16.mxu0 0
    %397 = vmatpush1.bf16.msra.mxu0 %v356
    %398 = vmatprep.subr.bf16.mxu0 0
    %399 = vmatpush1.bf16.msra.mxu0 %v355
    %400 = vmatprep.subr.bf16.mxu0 0
    %401 = vmatpush1.bf16.msra.mxu0 %v354
    %402 = vmatprep.subr.bf16.mxu0 0
    %403 = vmatpush2.bf16.msra.mxu0 %v369
    %404 = vmatprep.subr.bf16.mxu0 0
    %405 = vmatpush2.bf16.msra.mxu0 %v368
    %406 = vmatprep.subr.bf16.mxu0 0
    %407 = vmatpush2.bf16.msra.mxu0 %v367
    %408 = vmatprep.subr.bf16.mxu0 0
    %409 = vmatpush2.bf16.msra.mxu0 %v366
    %410 = vmatprep.subr.bf16.mxu0 0
    %411 = vmatpush2.bf16.msra.mxu0 %v365
    %412 = vmatprep.subr.bf16.mxu0 0
    %413 = vmatpush2.bf16.msra.mxu0 %v364
    %414 = vmatprep.subr.bf16.mxu0 0
    %415 = vmatpush2.bf16.msra.mxu0 %v363
    %416 = vmatprep.subr.bf16.mxu0 0
    %417 = vmatpush2.bf16.msra.mxu0 %v362
    %418 = vmatprep.mubr.bf16.mxu0 %v248
    %419 = vmatmul.mubr.bf16.gmra.mxu0 %v247
    %v420 = vpop.f32.mrf.mxu0
    %v421 = vadd.f32 %v288, %v420
    %v422 = vpop.f32.mrf.mxu0
    %v423 = vpop.f32.mrf.mxu0
    %v424 = vadd.f32 %v288, %v423
    %v425 = vpop.f32.mrf.mxu0
    %426 = vmatprep.mubr.bf16.mxu0 %v250
    %427 = vmatmul.mubr.bf16.gmra.mxu0 %v249
    %v428 = vpop.f32.mrf.mxu0
    %v429 = vadd.f32 %v288, %v428
    %v430 = vpop.f32.mrf.mxu0
    %v431 = vpop.f32.mrf.mxu0
    %v432 = vadd.f32 %v288, %v431
    %v433 = vpop.f32.mrf.mxu0
    %434 = vdwg.mxu0
    %435 = vst [vmem:[#allocation2] sm:$0xff] %v421
    %436 = vst [vmem:[#allocation2 + $0x8] sm:$0xff] %v424
    %437 = vst [vmem:[#allocation2 + $0x10] sm:$0xff] %v429
    %438 = vst [vmem:[#allocation2 + $0x18] sm:$0xff] %v432
    // Predicated region
    $region22: #{_lambda_.20} parent=1 // pred_check
      _
    $region23: #{_lambda_.20} parent=1 // pred_check_branch
      %440 = sbr.rel (0) target = $region25
    $region24: #{_lambda_.20} parent=1 // pred_region
      %s442 = ssub.s32 512, 512
      %443 = vsyncadd [#allocation3], %s442
      %s444 = sshll.u32 [#allocation2], 4
      %s445 = int_to_ptr.vmem [resolvable:$true] %s444
      %450 = dma.vmem_to_hbm [thread:$0]  %s445, 512, %s5, [#allocation3], 128, 128, 8
    $region25: #{_lambda_.20} parent=1 // pred_fallthru
      _
    // Predicated region
    $region26: #{_lambda_.20} parent=1 // pred_check
      _
    $region27: #{_lambda_.20} parent=1 // pred_check_branch
      %452 = sbr.rel (0) target = $region29
    $region28: #{_lambda_.20} parent=1 // pred_region
      %453 = dma.done [#allocation3], 512
    $region29: #{_lambda_.20} parent=1 // pred_fallthru
      _
    %454 = vsyncpa [#allocation3], 1

// kernel: _lambda_.21
$region0: #{_lambda_.21}
  #allocation0 [shape = 'u32[]', space=smem, size = 0x4, offset = 0x4, fixed_abs, tag = 'smem constant byte address 0x4 - core index']
  #allocation1 [shape = 'u32[144,128]{1,0:T(1,128)}', space=vmem, size = 0x12000, scoped, tag = 'internal scratch']
  %s0 = inlined_call_operand.vmem [shape: bf16[8,256], index: 0, kind: input, shape index: {}]
  %s1 = inlined_call_operand.vmem [shape: bf16[256,512], index: 1, kind: input, shape index: {}]
  %s2 = inlined_call_operand.vmem [shape: f32[1,512], index: 2, kind: input, shape index: {}]
  %s3 = inlined_call_operand.vmem [shape: bf16[512,128], index: 3, kind: input, shape index: {}]
  %s4 = inlined_call_operand.vmem [shape: f32[1,128], index: 4, kind: input, shape index: {}]
  %s5 = inlined_call_operand.hbm [shape: f32[8,128], index: 5, kind: output, shape index: {}]
  %s6 = sld [smem:[#allocation0]]
  $region30: #{_lambda_.21} parent=0
    _
  %s8 = ssub.s32 1, %s6
  %s9 = scalar_select 0, %s8, %s6
  $region1: #{_lambda_.21} parent=0
    #allocation2 [shape = 'u8[4096]{0}', space=vmem, size = 0x1000, scoped, tag = 'output window, operand 0, single buffered']
    #allocation3 [shape = 's32[1]{0}', space=sflag, size = 0x4, scoped, tag = 'scoped memory for _lambda_.21']
    %10 = vsyncpa [#allocation3], 0
    // Predicated region
    $region2: #{_lambda_.21} parent=1 // pred_check
      _
    $region3: #{_lambda_.21} parent=1 // pred_check_branch
      %12 = sbr.rel (0) target = $region5
    $region4: #{_lambda_.21} parent=1 // pred_region
      _
    $region5: #{_lambda_.21} parent=1 // pred_fallthru
      _
    // Predicated region
    $region6: #{_lambda_.21} parent=1 // pred_check
      _
    $region7: #{_lambda_.21} parent=1 // pred_check_branch
      %14 = sbr.rel (0) target = $region9
    $region8: #{_lambda_.21} parent=1 // pred_region
      _
    $region9: #{_lambda_.21} parent=1 // pred_fallthru
      _
    // Predicated region
    $region10: #{_lambda_.21} parent=1 // pred_check
      _
    $region11: #{_lambda_.21} parent=1 // pred_check_branch
      %16 = sbr.rel (0) target = $region13
    $region12: #{_lambda_.21} parent=1 // pred_region
      _
    $region13: #{_lambda_.21} parent=1 // pred_fallthru
      _
    // Predicated region
    $region14: #{_lambda_.21} parent=1 // pred_check
      _
    $region15: #{_lambda_.21} parent=1 // pred_check_branch
      %18 = sbr.rel (0) target = $region17
    $region16: #{_lambda_.21} parent=1 // pred_region
      _
    $region17: #{_lambda_.21} parent=1 // pred_fallthru
      _
    // Predicated region
    $region18: #{_lambda_.21} parent=1 // pred_check
      _
    $region19: #{_lambda_.21} parent=1 // pred_check_branch
      %20 = sbr.rel (0) target = $region21
    $region20: #{_lambda_.21} parent=1 // pred_region
      _
    $region21: #{_lambda_.21} parent=1 // pred_fallthru
      _
    %v22 = vld [vmem:[%s0] sm:$0xff]
    %v23 = vld [vmem:[%s1] sm:$0xff]
    %v24 = vld [vmem:[%s1 + $0x8] sm:$0xff]
    %v25 = vld [vmem:[%s1 + $0x10] sm:$0xff]
    %v26 = vld [vmem:[%s1 + $0x18] sm:$0xff]
    %v27 = vld [vmem:[%s1 + $0x20] sm:$0xff]
    %v28 = vld [vmem:[%s1 + $0x28] sm:$0xff]
    %v29 = vld [vmem:[%s1 + $0x30] sm:$0xff]
    %v30 = vld [vmem:[%s1 + $0x38] sm:$0xff]
    %v31 = vld [vmem:[%s1 + $0x40] sm:$0xff]
    %v32 = vld [vmem:[%s1 + $0x48] sm:$0xff]
    %v33 = vld [vmem:[%s1 + $0x50] sm:$0xff]
    %v34 = vld [vmem:[%s1 + $0x58] sm:$0xff]
    %v35 = vld [vmem:[%s1 + $0x60] sm:$0xff]
    %v36 = vld [vmem:[%s1 + $0x68] sm:$0xff]
    %v37 = vld [vmem:[%s1 + $0x70] sm:$0xff]
    %v38 = vld [vmem:[%s1 + $0x78] sm:$0xff]
    %v39 = vld [vmem:[%s1 + $0x80] sm:$0xff]
    %v40 = vld [vmem:[%s1 + $0x88] sm:$0xff]
    %v41 = vld [vmem:[%s1 + $0x90] sm:$0xff]
    %v42 = vld [vmem:[%s1 + $0x98] sm:$0xff]
    %v43 = vld [vmem:[%s1 + $0xa0] sm:$0xff]
    %v44 = vld [vmem:[%s1 + $0xa8] sm:$0xff]
    %v45 = vld [vmem:[%s1 + $0xb0] sm:$0xff]
    %v46 = vld [vmem:[%s1 + $0xb8] sm:$0xff]
    %v47 = vld [vmem:[%s1 + $0xc0] sm:$0xff]
    %v48 = vld [vmem:[%s1 + $0xc8] sm:$0xff]
    %v49 = vld [vmem:[%s1 + $0xd0] sm:$0xff]
    %v50 = vld [vmem:[%s1 + $0xd8] sm:$0xff]
    %v51 = vld [vmem:[%s1 + $0xe0] sm:$0xff]
    %v52 = vld [vmem:[%s1 + $0xe8] sm:$0xff]
    %v53 = vld [vmem:[%s1 + $0xf0] sm:$0xff]
    %v54 = vld [vmem:[%s1 + $0xf8] sm:$0xff]
    %v55 = vld [vmem:[%s1 + $0x100] sm:$0xff]
    %v56 = vld [vmem:[%s1 + $0x108] sm:$0xff]
    %v57 = vld [vmem:[%s1 + $0x110] sm:$0xff]
    %v58 = vld [vmem:[%s1 + $0x118] sm:$0xff]
    %v59 = vld [vmem:[%s1 + $0x120] sm:$0xff]
    %v60 = vld [vmem:[%s1 + $0x128] sm:$0xff]
    %v61 = vld [vmem:[%s1 + $0x130] sm:$0xff]
    %v62 = vld [vmem:[%s1 + $0x138] sm:$0xff]
    %v63 = vld [vmem:[%s1 + $0x140] sm:$0xff]
    %v64 = vld [vmem:[%s1 + $0x148] sm:$0xff]
    %v65 = vld [vmem:[%s1 + $0x150] sm:$0xff]
    %v66 = vld [vmem:[%s1 + $0x158] sm:$0xff]
    %v67 = vld [vmem:[%s1 + $0x160] sm:$0xff]
    %v68 = vld [vmem:[%s1 + $0x168] sm:$0xff]
    %v69 = vld [vmem:[%s1 + $0x170] sm:$0xff]
    %v70 = vld [vmem:[%s1 + $0x178] sm:$0xff]
    %v71 = vld [vmem:[%s1 + $0x180] sm:$0xff]
    %v72 = vld [vmem:[%s1 + $0x188] sm:$0xff]
    %v73 = vld [vmem:[%s1 + $0x190] sm:$0xff]
    %v74 = vld [vmem:[%s1 + $0x198] sm:$0xff]
    %v75 = vld [vmem:[%s1 + $0x1a0] sm:$0xff]
    %v76 = vld [vmem:[%s1 + $0x1a8] sm:$0xff]
    %v77 = vld [vmem:[%s1 + $0x1b0] sm:$0xff]
    %v78 = vld [vmem:[%s1 + $0x1b8] sm:$0xff]
    %v79 = vld [vmem:[%s1 + $0x1c0] sm:$0xff]
    %v80 = vld [vmem:[%s1 + $0x1c8] sm:$0xff]
    %v81 = vld [vmem:[%s1 + $0x1d0] sm:$0xff]
    %v82 = vld [vmem:[%s1 + $0x1d8] sm:$0xff]
    %v83 = vld [vmem:[%s1 + $0x1e0] sm:$0xff]
    %v84 = vld [vmem:[%s1 + $0x1e8] sm:$0xff]
    %v85 = vld [vmem:[%s1 + $0x1f0] sm:$0xff]
    %v86 = vld [vmem:[%s1 + $0x1f8] sm:$0xff]
    %v87 = vld [vmem:[%s2] sm:$0xf]
    %v89 = vlaneseq
    %v90 = vshrl.u32 %v89, 7
    %v91 = vsub.s32 0, %v90
    %v92 = vrot.slane %v87, %v91
    %v93 = vlaneseq
    %v94 = vshrl.u32 %v93, 7
    %v95 = vsub.s32 1, %v94
    %v96 = vrot.slane %v87, %v95
    %v97 = vlaneseq
    %v98 = vshrl.u32 %v97, 7
    %v99 = vsub.s32 2, %v98
    %v100 = vrot.slane %v87, %v99
    %v101 = vlaneseq
    %v102 = vshrl.u32 %v101, 7
    %v103 = vsub.s32 3, %v102
    %v104 = vrot.slane %v87, %v103
    %v110 = vunpack.c.l.b16 %v22
    %v111 = vunpack.c.h.b16 %v22
    %v112 = vpack.c.b16 %v110, %v110
    %v113 = vpack.c.b16 %v111, %v111
    %v180 = vunpack.c.l.b16 %v23
    %v181 = vunpack.c.h.b16 %v23
    %v182 = vunpack.c.l.b16 %v24
    %v183 = vunpack.c.h.b16 %v24
    %v184 = vunpack.c.l.b16 %v25
    %v185 = vunpack.c.h.b16 %v25
    %v186 = vunpack.c.l.b16 %v26
    %v187 = vunpack.c.h.b16 %v26
    %v188 = vunpack.c.l.b16 %v27
    %v189 = vunpack.c.h.b16 %v27
    %v190 = vunpack.c.l.b16 %v28
    %v191 = vunpack.c.h.b16 %v28
    %v192 = vunpack.c.l.b16 %v29
    %v193 = vunpack.c.h.b16 %v29
    %v194 = vunpack.c.l.b16 %v30
    %v195 = vunpack.c.h.b16 %v30
    %v196 = vunpack.c.l.b16 %v31
    %v197 = vunpack.c.h.b16 %v31
    %v198 = vunpack.c.l.b16 %v32
    %v199 = vunpack.c.h.b16 %v32
    %v200 = vunpack.c.l.b16 %v33
    %v201 = vunpack.c.h.b16 %v33
    %v202 = vunpack.c.l.b16 %v34
    %v203 = vunpack.c.h.b16 %v34
    %v204 = vunpack.c.l.b16 %v35
    %v205 = vunpack.c.h.b16 %v35
    %v206 = vunpack.c.l.b16 %v36
    %v207 = vunpack.c.h.b16 %v36
    %v208 = vunpack.c.l.b16 %v37
    %v209 = vunpack.c.h.b16 %v37
    %v210 = vunpack.c.l.b16 %v38
    %v211 = vunpack.c.h.b16 %v38
    %v212 = vunpack.c.l.b16 %v39
    %v213 = vunpack.c.h.b16 %v39
    %v214 = vunpack.c.l.b16 %v40
    %v215 = vunpack.c.h.b16 %v40
    %v216 = vunpack.c.l.b16 %v41
    %v217 = vunpack.c.h.b16 %v41
    %v218 = vunpack.c.l.b16 %v42
    %v219 = vunpack.c.h.b16 %v42
    %v220 = vunpack.c.l.b16 %v43
    %v221 = vunpack.c.h.b16 %v43
    %v222 = vunpack.c.l.b16 %v44
    %v223 = vunpack.c.h.b16 %v44
    %v224 = vunpack.c.l.b16 %v45
    %v225 = vunpack.c.h.b16 %v45
    %v226 = vunpack.c.l.b16 %v46
    %v227 = vunpack.c.h.b16 %v46
    %v228 = vunpack.c.l.b16 %v47
    %v229 = vunpack.c.h.b16 %v47
    %v230 = vunpack.c.l.b16 %v48
    %v231 = vunpack.c.h.b16 %v48
    %v232 = vunpack.c.l.b16 %v49
    %v233 = vunpack.c.h.b16 %v49
    %v234 = vunpack.c.l.b16 %v50
    %v235 = vunpack.c.h.b16 %v50
    %v236 = vunpack.c.l.b16 %v51
    %v237 = vunpack.c.h.b16 %v51
    %v238 = vunpack.c.l.b16 %v52
    %v239 = vunpack.c.h.b16 %v52
    %v240 = vunpack.c.l.b16 %v53
    %v241 = vunpack.c.h.b16 %v53
    %v242 = vunpack.c.l.b16 %v54
    %v243 = vunpack.c.h.b16 %v54
    %v244 = vunpack.c.l.b16 %v55
    %v245 = vunpack.c.h.b16 %v55
    %v246 = vunpack.c.l.b16 %v56
    %v247 = vunpack.c.h.b16 %v56
    %v248 = vunpack.c.l.b16 %v57
    %v249 = vunpack.c.h.b16 %v57
    %v250 = vunpack.c.l.b16 %v58
    %v251 = vunpack.c.h.b16 %v58
    %v252 = vunpack.c.l.b16 %v59
    %v253 = vunpack.c.h.b16 %v59
    %v254 = vunpack.c.l.b16 %v60
    %v255 = vunpack.c.h.b16 %v60
    %v256 = vunpack.c.l.b16 %v61
    %v257 = vunpack.c.h.b16 %v61
    %v258 = vunpack.c.l.b16 %v62
    %v259 = vunpack.c.h.b16 %v62
    %v260 = vunpack.c.l.b16 %v63
    %v261 = vunpack.c.h.b16 %v63
    %v262 = vunpack.c.l.b16 %v64
    %v263 = vunpack.c.h.b16 %v64
    %v264 = vunpack.c.l.b16 %v65
    %v265 = vunpack.c.h.b16 %v65
    %v266 = vunpack.c.l.b16 %v66
    %v267 = vunpack.c.h.b16 %v66
    %v268 = vunpack.c.l.b16 %v67
    %v269 = vunpack.c.h.b16 %v67
    %v270 = vunpack.c.l.b16 %v68
    %v271 = vunpack.c.h.b16 %v68
    %v272 = vunpack.c.l.b16 %v69
    %v273 = vunpack.c.h.b16 %v69
    %v274 = vunpack.c.l.b16 %v70
    %v275 = vunpack.c.h.b16 %v70
    %v276 = vunpack.c.l.b16 %v71
    %v277 = vunpack.c.h.b16 %v71
    %v278 = vunpack.c.l.b16 %v72
    %v279 = vunpack.c.h.b16 %v72
    %v280 = vunpack.c.l.b16 %v73
    %v281 = vunpack.c.h.b16 %v73
    %v282 = vunpack.c.l.b16 %v74
    %v283 = vunpack.c.h.b16 %v74
    %v284 = vunpack.c.l.b16 %v75
    %v285 = vunpack.c.h.b16 %v75
    %v286 = vunpack.c.l.b16 %v76
    %v287 = vunpack.c.h.b16 %v76
    %v288 = vunpack.c.l.b16 %v77
    %v289 = vunpack.c.h.b16 %v77
    %v290 = vunpack.c.l.b16 %v78
    %v291 = vunpack.c.h.b16 %v78
    %v292 = vunpack.c.l.b16 %v79
    %v293 = vunpack.c.h.b16 %v79
    %v294 = vunpack.c.l.b16 %v80
    %v295 = vunpack.c.h.b16 %v80
    %v296 = vunpack.c.l.b16 %v81
    %v297 = vunpack.c.h.b16 %v81
    %v298 = vunpack.c.l.b16 %v82
    %v299 = vunpack.c.h.b16 %v82
    %v300 = vunpack.c.l.b16 %v83
    %v301 = vunpack.c.h.b16 %v83
    %v302 = vunpack.c.l.b16 %v84
    %v303 = vunpack.c.h.b16 %v84
    %v304 = vunpack.c.l.b16 %v85
    %v305 = vunpack.c.h.b16 %v85
    %v306 = vunpack.c.l.b16 %v86
    %v307 = vunpack.c.h.b16 %v86
    %v308 = vpack.c.b16 %v184, %v180
    %v309 = vpack.c.b16 %v185, %v181
    %v310 = vpack.c.b16 %v186, %v182
    %v311 = vpack.c.b16 %v187, %v183
    %v312 = vpack.c.b16 %v192, %v188
    %v313 = vpack.c.b16 %v193, %v189
    %v314 = vpack.c.b16 %v194, %v190
    %v315 = vpack.c.b16 %v195, %v191
    %v316 = vpack.c.b16 %v200, %v196
    %v317 = vpack.c.b16 %v201, %v197
    %v318 = vpack.c.b16 %v202, %v198
    %v319 = vpack.c.b16 %v203, %v199
    %v320 = vpack.c.b16 %v208, %v204
    %v321 = vpack.c.b16 %v209, %v205
    %v322 = vpack.c.b16 %v210, %v206
    %v323 = vpack.c.b16 %v211, %v207
    %v324 = vpack.c.b16 %v216, %v212
    %v325 = vpack.c.b16 %v217, %v213
    %v326 = vpack.c.b16 %v218, %v214
    %v327 = vpack.c.b16 %v219, %v215
    %v328 = vpack.c.b16 %v224, %v220
    %v329 = vpack.c.b16 %v225, %v221
    %v330 = vpack.c.b16 %v226, %v222
    %v331 = vpack.c.b16 %v227, %v223
    %v332 = vpack.c.b16 %v232, %v228
    %v333 = vpack.c.b16 %v233, %v229
    %v334 = vpack.c.b16 %v234, %v230
    %v335 = vpack.c.b16 %v235, %v231
    %v336 = vpack.c.b16 %v240, %v236
    %v337 = vpack.c.b16 %v241, %v237
    %v338 = vpack.c.b16 %v242, %v238
    %v339 = vpack.c.b16 %v243, %v239
    %v340 = vpack.c.b16 %v248, %v244
    %v341 = vpack.c.b16 %v249, %v245
    %v342 = vpack.c.b16 %v250, %v246
    %v343 = vpack.c.b16 %v251, %v247
    %v344 = vpack.c.b16 %v256, %v252
    %v345 = vpack.c.b16 %v257, %v253
    %v346 = vpack.c.b16 %v258, %v254
    %v347 = vpack.c.b16 %v259, %v255
    %v348 = vpack.c.b16 %v264, %v260
    %v349 = vpack.c.b16 %v265, %v261
    %v350 = vpack.c.b16 %v266, %v262
    %v351 = vpack.c.b16 %v267, %v263
    %v352 = vpack.c.b16 %v272, %v268
    %v353 = vpack.c.b16 %v273, %v269
    %v354 = vpack.c.b16 %v274, %v270
    %v355 = vpack.c.b16 %v275, %v271
    %v356 = vpack.c.b16 %v280, %v276
    %v357 = vpack.c.b16 %v281, %v277
    %v358 = vpack.c.b16 %v282, %v278
    %v359 = vpack.c.b16 %v283, %v279
    %v360 = vpack.c.b16 %v288, %v284
    %v361 = vpack.c.b16 %v289, %v285
    %v362 = vpack.c.b16 %v290, %v286
    %v363 = vpack.c.b16 %v291, %v287
    %v364 = vpack.c.b16 %v296, %v292
    %v365 = vpack.c.b16 %v297, %v293
    %v366 = vpack.c.b16 %v298, %v294
    %v367 = vpack.c.b16 %v299, %v295
    %v368 = vpack.c.b16 %v304, %v300
    %v369 = vpack.c.b16 %v305, %v301
    %v370 = vpack.c.b16 %v306, %v302
    %v371 = vpack.c.b16 %v307, %v303
    %436 = vmatprep.subr.bf16.mxu0 %v337
    %437 = vmatpush1.bf16.msra.mxu0 %v336
    %438 = vmatprep.subr.bf16.mxu0 %v333
    %439 = vmatpush1.bf16.msra.mxu0 %v332
    %440 = vmatprep.subr.bf16.mxu0 %v329
    %441 = vmatpush1.bf16.msra.mxu0 %v328
    %442 = vmatprep.subr.bf16.mxu0 %v325
    %443 = vmatpush1.bf16.msra.mxu0 %v324
    %444 = vmatprep.subr.bf16.mxu0 %v321
    %445 = vmatpush1.bf16.msra.mxu0 %v320
    %446 = vmatprep.subr.bf16.mxu0 %v317
    %447 = vmatpush1.bf16.msra.mxu0 %v316
    %448 = vmatprep.subr.bf16.mxu0 %v313
    %449 = vmatpush1.bf16.msra.mxu0 %v312
    %450 = vmatprep.subr.bf16.mxu0 %v309
    %451 = vmatpush1.bf16.msra.mxu0 %v308
    %452 = vmatprep.subr.bf16.mxu0 %v369
    %453 = vmatpush2.bf16.msra.mxu0 %v368
    %454 = vmatprep.subr.bf16.mxu0 %v365
    %455 = vmatpush2.bf16.msra.mxu0 %v364
    %456 = vmatprep.subr.bf16.mxu0 %v361
    %457 = vmatpush2.bf16.msra.mxu0 %v360
    %458 = vmatprep.subr.bf16.mxu0 %v357
    %459 = vmatpush2.bf16.msra.mxu0 %v356
    %460 = vmatprep.subr.bf16.mxu0 %v353
    %461 = vmatpush2.bf16.msra.mxu0 %v352
    %462 = vmatprep.subr.bf16.mxu0 %v349
    %463 = vmatpush2.bf16.msra.mxu0 %v348
    %464 = vmatprep.subr.bf16.mxu0 %v345
    %465 = vmatpush2.bf16.msra.mxu0 %v344
    %466 = vmatprep.subr.bf16.mxu0 %v341
    %467 = vmatpush2.bf16.msra.mxu0 %v340
    %468 = vmatprep.mubr.bf16.mxu0 %v113
    %469 = vmatmul.mubr.bf16.gmra.mxu0 %v112
    %v470 = vpop.f32.mrf.mxu0
    %v471 = vadd.f32 %v92, %v470
    %v472 = vpop.f32.mrf.mxu0
    %v473 = vadd.f32 %v96, %v472
    %v474 = vpop.f32.mrf.mxu0
    %v475 = vpop.f32.mrf.mxu0
    %476 = vdwg.mxu0
    %477 = vmatprep.subr.bf16.mxu0 %v339
    %478 = vmatpush1.bf16.msra.mxu0 %v338
    %479 = vmatprep.subr.bf16.mxu0 %v335
    %480 = vmatpush1.bf16.msra.mxu0 %v334
    %481 = vmatprep.subr.bf16.mxu0 %v331
    %482 = vmatpush1.bf16.msra.mxu0 %v330
    %483 = vmatprep.subr.bf16.mxu0 %v327
    %484 = vmatpush1.bf16.msra.mxu0 %v326
    %485 = vmatprep.subr.bf16.mxu0 %v323
    %486 = vmatpush1.bf16.msra.mxu0 %v322
    %487 = vmatprep.subr.bf16.mxu0 %v319
    %488 = vmatpush1.bf16.msra.mxu0 %v318
    %489 = vmatprep.subr.bf16.mxu0 %v315
    %490 = vmatpush1.bf16.msra.mxu0 %v314
    %491 = vmatprep.subr.bf16.mxu0 %v311
    %492 = vmatpush1.bf16.msra.mxu0 %v310
    %493 = vmatprep.subr.bf16.mxu0 %v371
    %494 = vmatpush2.bf16.msra.mxu0 %v370
    %495 = vmatprep.subr.bf16.mxu0 %v367
    %496 = vmatpush2.bf16.msra.mxu0 %v366
    %497 = vmatprep.subr.bf16.mxu0 %v363
    %498 = vmatpush2.bf16.msra.mxu0 %v362
    %499 = vmatprep.subr.bf16.mxu0 %v359
    %500 = vmatpush2.bf16.msra.mxu0 %v358
    %501 = vmatprep.subr.bf16.mxu0 %v355
    %502 = vmatpush2.bf16.msra.mxu0 %v354
    %503 = vmatprep.subr.bf16.mxu0 %v351
    %504 = vmatpush2.bf16.msra.mxu0 %v350
    %505 = vmatprep.subr.bf16.mxu0 %v347
    %506 = vmatpush2.bf16.msra.mxu0 %v346
    %507 = vmatprep.subr.bf16.mxu0 %v343
    %508 = vmatpush2.bf16.msra.mxu0 %v342
    %509 = vmatprep.mubr.bf16.mxu0 %v113
    %510 = vmatmul.mubr.bf16.gmra.mxu0 %v112
    %v511 = vpop.f32.mrf.mxu0
    %v512 = vadd.f32 %v100, %v511
    %v513 = vpop.f32.mrf.mxu0
    %v514 = vadd.f32 %v104, %v513
    %v515 = vpop.f32.mrf.mxu0
    %v516 = vpop.f32.mrf.mxu0
    %517 = vdwg.mxu0
    %v518 = vsub.f32 0.0, %v471
    %v519 = vsub.f32 0.0, %v473
    %v520 = vsub.f32 0.0, %v512
    %v521 = vsub.f32 0.0, %v514
    %v522 = vmul.f32 %v518, 1.442695
    %v523 = vpow.pop %v522
    %v524 = vmul.f32 %v519, 1.442695
    %v525 = vpow.pop %v524
    %v526 = vmul.f32 %v520, 1.442695
    %v527 = vpow.pop %v526
    %v528 = vmul.f32 %v521, 1.442695
    %v529 = vpow.pop %v528
    %v530 = vadd.f32 %v523, 1.0
    %v531 = vadd.f32 %v525, 1.0
    %v532 = vadd.f32 %v527, 1.0
    %v533 = vadd.f32 %v529, 1.0
    %v534 = vrcp.pop %v530
    %v535 = vrcp.pop %v531
    %v536 = vrcp.pop %v532
    %v537 = vrcp.pop %v533
    %v538 = vmul.f32 %v471, %v534
    %v539 = vmul.f32 %v473, %v535
    %v540 = vmul.f32 %v512, %v536
    %v541 = vmul.f32 %v514, %v537
    %v542 = vpack.c.bf16 %v538, %v538
    %v543 = vpack.c.bf16 %v539, %v539
    %v544 = vpack.c.bf16 %v540, %v540
    %v545 = vpack.c.bf16 %v541, %v541
    %v546 = vld [vmem:[%s3] sm:$0xf]
    %v547 = vld [vmem:[%s3 + $0x4] sm:$0xf]
    %v548 = vld [vmem:[%s3 + $0x8] sm:$0xf]
    %v549 = vld [vmem:[%s3 + $0xc] sm:$0xf]
    %v550 = vld [vmem:[%s3 + $0x10] sm:$0xf]
    %v551 = vld [vmem:[%s3 + $0x14] sm:$0xf]
    %v552 = vld [vmem:[%s3 + $0x18] sm:$0xf]
    %v553 = vld [vmem:[%s3 + $0x1c] sm:$0xf]
    %v554 = vld [vmem:[%s3 + $0x20] sm:$0xf]
    %v555 = vld [vmem:[%s3 + $0x24] sm:$0xf]
    %v556 = vld [vmem:[%s3 + $0x28] sm:$0xf]
    %v557 = vld [vmem:[%s3 + $0x2c] sm:$0xf]
    %v558 = vld [vmem:[%s3 + $0x30] sm:$0xf]
    %v559 = vld [vmem:[%s3 + $0x34] sm:$0xf]
    %v560 = vld [vmem:[%s3 + $0x38] sm:$0xf]
    %v561 = vld [vmem:[%s3 + $0x3c] sm:$0xf]
    %v562 = vld [vmem:[%s3 + $0x40] sm:$0xf]
    %v563 = vld [vmem:[%s3 + $0x44] sm:$0xf]
    %v564 = vld [vmem:[%s3 + $0x48] sm:$0xf]
    %v565 = vld [vmem:[%s3 + $0x4c] sm:$0xf]
    %v566 = vld [vmem:[%s3 + $0x50] sm:$0xf]
    %v567 = vld [vmem:[%s3 + $0x54] sm:$0xf]
    %v568 = vld [vmem:[%s3 + $0x58] sm:$0xf]
    %v569 = vld [vmem:[%s3 + $0x5c] sm:$0xf]
    %v570 = vld [vmem:[%s3 + $0x60] sm:$0xf]
    %v571 = vld [vmem:[%s3 + $0x64] sm:$0xf]
    %v572 = vld [vmem:[%s3 + $0x68] sm:$0xf]
    %v573 = vld [vmem:[%s3 + $0x6c] sm:$0xf]
    %v574 = vld [vmem:[%s3 + $0x70] sm:$0xf]
    %v575 = vld [vmem:[%s3 + $0x74] sm:$0xf]
    %v576 = vld [vmem:[%s3 + $0x78] sm:$0xf]
    %v577 = vld [vmem:[%s3 + $0x7c] sm:$0xf]
    %v578 = vld [vmem:[%s3 + $0x80] sm:$0xf]
    %v579 = vld [vmem:[%s3 + $0x84] sm:$0xf]
    %v580 = vld [vmem:[%s3 + $0x88] sm:$0xf]
    %v581 = vld [vmem:[%s3 + $0x8c] sm:$0xf]
    %v582 = vld [vmem:[%s3 + $0x90] sm:$0xf]
    %v583 = vld [vmem:[%s3 + $0x94] sm:$0xf]
    %v584 = vld [vmem:[%s3 + $0x98] sm:$0xf]
    %v585 = vld [vmem:[%s3 + $0x9c] sm:$0xf]
    %v586 = vld [vmem:[%s3 + $0xa0] sm:$0xf]
    %v587 = vld [vmem:[%s3 + $0xa4] sm:$0xf]
    %v588 = vld [vmem:[%s3 + $0xa8] sm:$0xf]
    %v589 = vld [vmem:[%s3 + $0xac] sm:$0xf]
    %v590 = vld [vmem:[%s3 + $0xb0] sm:$0xf]
    %v591 = vld [vmem:[%s3 + $0xb4] sm:$0xf]
    %v592 = vld [vmem:[%s3 + $0xb8] sm:$0xf]
    %v593 = vld [vmem:[%s3 + $0xbc] sm:$0xf]
    %v594 = vld [vmem:[%s3 + $0xc0] sm:$0xf]
    %v595 = vld [vmem:[%s3 + $0xc4] sm:$0xf]
    %v596 = vld [vmem:[%s3 + $0xc8] sm:$0xf]
    %v597 = vld [vmem:[%s3 + $0xcc] sm:$0xf]
    %v598 = vld [vmem:[%s3 + $0xd0] sm:$0xf]
    %v599 = vld [vmem:[%s3 + $0xd4] sm:$0xf]
    %v600 = vld [vmem:[%s3 + $0xd8] sm:$0xf]
    %v601 = vld [vmem:[%s3 + $0xdc] sm:$0xf]
    %v602 = vld [vmem:[%s3 + $0xe0] sm:$0xf]
    %v603 = vld [vmem:[%s3 + $0xe4] sm:$0xf]
    %v604 = vld [vmem:[%s3 + $0xe8] sm:$0xf]
    %v605 = vld [vmem:[%s3 + $0xec] sm:$0xf]
    %v606 = vld [vmem:[%s3 + $0xf0] sm:$0xf]
    %v607 = vld [vmem:[%s3 + $0xf4] sm:$0xf]
    %v608 = vld [vmem:[%s3 + $0xf8] sm:$0xf]
    %v609 = vld [vmem:[%s3 + $0xfc] sm:$0xf]
    %v610 = vld [vmem:[%s4] sm:$0x1]
    %v612 = vlaneseq
    %v613 = vshrl.u32 %v612, 7
    %v614 = vsub.s32 0, %v613
    %v615 = vrot.slane %v610, %v614
    %v681 = vunpack.c.l.b16 %v546
    %v682 = vunpack.c.l.b16 %v547
    %v683 = vunpack.c.l.b16 %v548
    %v684 = vunpack.c.l.b16 %v549
    %v685 = vunpack.c.l.b16 %v550
    %v686 = vunpack.c.l.b16 %v551
    %v687 = vunpack.c.l.b16 %v552
    %v688 = vunpack.c.l.b16 %v553
    %v689 = vunpack.c.l.b16 %v554
    %v690 = vunpack.c.l.b16 %v555
    %v691 = vunpack.c.l.b16 %v556
    %v692 = vunpack.c.l.b16 %v557
    %v693 = vunpack.c.l.b16 %v558
    %v694 = vunpack.c.l.b16 %v559
    %v695 = vunpack.c.l.b16 %v560
    %v696 = vunpack.c.l.b16 %v561
    %v697 = vunpack.c.l.b16 %v562
    %v698 = vunpack.c.l.b16 %v563
    %v699 = vunpack.c.l.b16 %v564
    %v700 = vunpack.c.l.b16 %v565
    %v701 = vunpack.c.l.b16 %v566
    %v702 = vunpack.c.l.b16 %v567
    %v703 = vunpack.c.l.b16 %v568
    %v704 = vunpack.c.l.b16 %v569
    %v705 = vunpack.c.l.b16 %v570
    %v706 = vunpack.c.l.b16 %v571
    %v707 = vunpack.c.l.b16 %v572
    %v708 = vunpack.c.l.b16 %v573
    %v709 = vunpack.c.l.b16 %v574
    %v710 = vunpack.c.l.b16 %v575
    %v711 = vunpack.c.l.b16 %v576
    %v712 = vunpack.c.l.b16 %v577
    %v713 = vunpack.c.l.b16 %v578
    %v714 = vunpack.c.l.b16 %v579
    %v715 = vunpack.c.l.b16 %v580
    %v716 = vunpack.c.l.b16 %v581
    %v717 = vunpack.c.l.b16 %v582
    %v718 = vunpack.c.l.b16 %v583
    %v719 = vunpack.c.l.b16 %v584
    %v720 = vunpack.c.l.b16 %v585
    %v721 = vunpack.c.l.b16 %v586
    %v722 = vunpack.c.l.b16 %v587
    %v723 = vunpack.c.l.b16 %v588
    %v724 = vunpack.c.l.b16 %v589
    %v725 = vunpack.c.l.b16 %v590
    %v726 = vunpack.c.l.b16 %v591
    %v727 = vunpack.c.l.b16 %v592
    %v728 = vunpack.c.l.b16 %v593
    %v729 = vunpack.c.l.b16 %v594
    %v730 = vunpack.c.l.b16 %v595
    %v731 = vunpack.c.l.b16 %v596
    %v732 = vunpack.c.l.b16 %v597
    %v733 = vunpack.c.l.b16 %v598
    %v734 = vunpack.c.l.b16 %v599
    %v735 = vunpack.c.l.b16 %v600
    %v736 = vunpack.c.l.b16 %v601
    %v737 = vunpack.c.l.b16 %v602
    %v738 = vunpack.c.l.b16 %v603
    %v739 = vunpack.c.l.b16 %v604
    %v740 = vunpack.c.l.b16 %v605
    %v741 = vunpack.c.l.b16 %v606
    %v742 = vunpack.c.l.b16 %v607
    %v743 = vunpack.c.l.b16 %v608
    %v744 = vunpack.c.l.b16 %v609
    %v745 = vpack.c.b16 %v682, %v681
    %v746 = vpack.c.b16 %v684, %v683
    %v747 = vpack.c.b16 %v686, %v685
    %v748 = vpack.c.b16 %v688, %v687
    %v749 = vpack.c.b16 %v690, %v689
    %v750 = vpack.c.b16 %v692, %v691
    %v751 = vpack.c.b16 %v694, %v693
    %v752 = vpack.c.b16 %v696, %v695
    %v753 = vpack.c.b16 %v698, %v697
    %v754 = vpack.c.b16 %v700, %v699
    %v755 = vpack.c.b16 %v702, %v701
    %v756 = vpack.c.b16 %v704, %v703
    %v757 = vpack.c.b16 %v706, %v705
    %v758 = vpack.c.b16 %v708, %v707
    %v759 = vpack.c.b16 %v710, %v709
    %v760 = vpack.c.b16 %v712, %v711
    %v761 = vpack.c.b16 %v714, %v713
    %v762 = vpack.c.b16 %v716, %v715
    %v763 = vpack.c.b16 %v718, %v717
    %v764 = vpack.c.b16 %v720, %v719
    %v765 = vpack.c.b16 %v722, %v721
    %v766 = vpack.c.b16 %v724, %v723
    %v767 = vpack.c.b16 %v726, %v725
    %v768 = vpack.c.b16 %v728, %v727
    %v769 = vpack.c.b16 %v730, %v729
    %v770 = vpack.c.b16 %v732, %v731
    %v771 = vpack.c.b16 %v734, %v733
    %v772 = vpack.c.b16 %v736, %v735
    %v773 = vpack.c.b16 %v738, %v737
    %v774 = vpack.c.b16 %v740, %v739
    %v775 = vpack.c.b16 %v742, %v741
    %v776 = vpack.c.b16 %v744, %v743
    %809 = vmatprep.subr.bf16.mxu0 0
    %810 = vmatpush1.bf16.msra.mxu0 %v752
    %811 = vmatprep.subr.bf16.mxu0 0
    %812 = vmatpush1.bf16.msra.mxu0 %v751
    %813 = vmatprep.subr.bf16.mxu0 0
    %814 = vmatpush1.bf16.msra.mxu0 %v750
    %815 = vmatprep.subr.bf16.mxu0 0
    %816 = vmatpush1.bf16.msra.mxu0 %v749
    %817 = vmatprep.subr.bf16.mxu0 0
    %818 = vmatpush1.bf16.msra.mxu0 %v748
    %819 = vmatprep.subr.bf16.mxu0 0
    %820 = vmatpush1.bf16.msra.mxu0 %v747
    %821 = vmatprep.subr.bf16.mxu0 0
    %822 = vmatpush1.bf16.msra.mxu0 %v746
    %823 = vmatprep.subr.bf16.mxu0 0
    %824 = vmatpush1.bf16.msra.mxu0 %v745
    %825 = vmatprep.subr.bf16.mxu0 0
    %826 = vmatpush2.bf16.msra.mxu0 %v760
    %827 = vmatprep.subr.bf16.mxu0 0
    %828 = vmatpush2.bf16.msra.mxu0 %v759
    %829 = vmatprep.subr.bf16.mxu0 0
    %830 = vmatpush2.bf16.msra.mxu0 %v758
    %831 = vmatprep.subr.bf16.mxu0 0
    %832 = vmatpush2.bf16.msra.mxu0 %v757
    %833 = vmatprep.subr.bf16.mxu0 0
    %834 = vmatpush2.bf16.msra.mxu0 %v756
    %835 = vmatprep.subr.bf16.mxu0 0
    %836 = vmatpush2.bf16.msra.mxu0 %v755
    %837 = vmatprep.subr.bf16.mxu0 0
    %838 = vmatpush2.bf16.msra.mxu0 %v754
    %839 = vmatprep.subr.bf16.mxu0 0
    %840 = vmatpush2.bf16.msra.mxu0 %v753
    %841 = vmatprep.mubr.bf16.mxu0 %v543
    %842 = vmatmul.mubr.bf16.gmra.mxu0 %v542
    %v843 = vpop.f32.mrf.mxu0
    %v844 = vadd.f32 %v615, %v843
    %v845 = vpop.f32.mrf.mxu0
    %v846 = vpop.f32.mrf.mxu0
    %v847 = vpop.f32.mrf.mxu0
    %848 = vdwg.mxu0
    %849 = vmatprep.subr.bf16.mxu0 0
    %850 = vmatpush1.bf16.msra.mxu0 %v768
    %851 = vmatprep.subr.bf16.mxu0 0
    %852 = vmatpush1.bf16.msra.mxu0 %v767
    %853 = vmatprep.subr.bf16.mxu0 0
    %854 = vmatpush1.bf16.msra.mxu0 %v766
    %855 = vmatprep.subr.bf16.mxu0 0
    %856 = vmatpush1.bf16.msra.mxu0 %v765
    %857 = vmatprep.subr.bf16.mxu0 0
    %858 = vmatpush1.bf16.msra.mxu0 %v764
    %859 = vmatprep.subr.bf16.mxu0 0
    %860 = vmatpush1.bf16.msra.mxu0 %v763
    %861 = vmatprep.subr.bf16.mxu0 0
    %862 = vmatpush1.bf16.msra.mxu0 %v762
    %863 = vmatprep.subr.bf16.mxu0 0
    %864 = vmatpush1.bf16.msra.mxu0 %v761
    %865 = vmatprep.subr.bf16.mxu0 0
    %866 = vmatpush2.bf16.msra.mxu0 %v776
    %867 = vmatprep.subr.bf16.mxu0 0
    %868 = vmatpush2.bf16.msra.mxu0 %v775
    %869 = vmatprep.subr.bf16.mxu0 0
    %870 = vmatpush2.bf16.msra.mxu0 %v774
    %871 = vmatprep.subr.bf16.mxu0 0
    %872 = vmatpush2.bf16.msra.mxu0 %v773
    %873 = vmatprep.subr.bf16.mxu0 0
    %874 = vmatpush2.bf16.msra.mxu0 %v772
    %875 = vmatprep.subr.bf16.mxu0 0
    %876 = vmatpush2.bf16.msra.mxu0 %v771
    %877 = vmatprep.subr.bf16.mxu0 0
    %878 = vmatpush2.bf16.msra.mxu0 %v770
    %879 = vmatprep.subr.bf16.mxu0 0
    %880 = vmatpush2.bf16.msra.mxu0 %v769
    %881 = vmatprep.mubr.bf16.mxu0 %v545
    %882 = vmatmul.mubr.bf16.gmra.mxu0 %v544
    %v883 = vpop.f32.mrf.mxu0
    %v884 = vadd.f32 %v844, %v883
    %v885 = vpop.f32.mrf.mxu0
    %v886 = vpop.f32.mrf.mxu0
    %v887 = vpop.f32.mrf.mxu0
    %888 = vdwg.mxu0
    %889 = vst [vmem:[#allocation2] sm:$0xff] %v884
    // Predicated region
    $region22: #{_lambda_.21} parent=1 // pred_check
      _
    $region23: #{_lambda_.21} parent=1 // pred_check_branch
      %891 = sbr.rel (0) target = $region25
    $region24: #{_lambda_.21} parent=1 // pred_region
      %s893 = ssub.s32 128, 128
      %894 = vsyncadd [#allocation3], %s893
      %s896 = sshll.u32 [#allocation2], 4
      %s897 = int_to_ptr.vmem [resolvable:$true] %s896
      %899 = dma.vmem_to_hbm [thread:$0]  %s897, 128, %s5, [#allocation3]
    $region25: #{_lambda_.21} parent=1 // pred_fallthru
      _
    // Predicated region
    $region26: #{_lambda_.21} parent=1 // pred_check
      _
    $region27: #{_lambda_.21} parent=1 // pred_check_branch
      %901 = sbr.rel (0) target = $region29
    $region28: #{_lambda_.21} parent=1 // pred_region
      %902 = dma.done [#allocation3], 128
    $region29: #{_lambda_.21} parent=1 // pred_fallthru
      _
    %903 = vsyncpa [#allocation3], 1

</llo_original>
